<compile_context>
chip_gen: v5e
topology: v5e:2x2
jax: 0.10.0
libtpu: 0.0.40
codegen_flags: <defaults>
</compile_context>

<pallas_src>
import functools

import jax
import jax.numpy as jnp
from jax import lax
from jax.experimental import pallas as pl
from jax.experimental.pallas import tpu as pltpu

EPS = 1e-5
LANE = 128
SUBLANE_BF16 = 16


def _round_up(x, m):
    return (x + m - 1) // m * m


def _vmem_limit_bytes():
    """Generation-aware VMEM budget (v7x has 64 MiB, v5e/v6e have 128 MiB)."""
    cap = 64 * 1024 * 1024                       # conservative default (v7x)
    try:
        cap = int(pltpu.get_tpu_info().vmem_capacity_bytes)
    except Exception:
        pass
    return int(max(min(cap * 3 // 4, 110 * 1024 * 1024), 16 * 1024 * 1024))


def _bn(y, gamma, beta, *, relu):
    """Training-mode BatchNorm over axis 0, two-pass (mean, then centered var).

    Lane-padded channels carry all-zero activations and gamma=beta=0, so they
    stay exactly zero through the normalization.
    """
    m = y.shape[0]
    mean = jnp.sum(y, axis=0, keepdims=True) * (1.0 / m)
    cent = y - mean
    var = jnp.sum(cent * cent, axis=0, keepdims=True) * (1.0 / m)
    out = cent * (lax.rsqrt(var + EPS) * gamma) + beta
    return jnp.maximum(out, 0.0) if relu else out


def _resblk_kernel(has_extra, Cin, Cout, *refs):
    if has_extra:
        (x_ref, w1_ref, g1_ref, bt1_ref, w2_ref, g2_ref, bt2_ref,
         we_ref, ge_ref, bte_ref, out_ref, pad_ref) = refs
    else:
        (x_ref, w1_ref, g1_ref, bt1_ref, w2_ref, g2_ref, bt2_ref,
         out_ref, pad_ref) = refs

    N, H, W, _ = x_ref.shape
    CoP = w1_ref.shape[-1]               # lane-padded output channels (x128)
    K1 = w1_ref.shape[0]                 # round_up(9*Cin, 128)
    K2 = w2_ref.shape[0]                 # round_up(9*Cout, 128)
    M = N * H * W
    Wp = pad_ref.shape[2]
    Cp = pad_ref.shape[3]

    # ---- zero ONLY the 1-pixel halo of the (reused) padded scratch ---------
    zrow = jnp.zeros((N, 1, Wp, Cp), pad_ref.dtype)
    pad_ref[:, 0:1, :, :] = zrow
    pad_ref[:, H + 1:H + 2, :, :] = zrow
    zcol = jnp.zeros((N, H, 1, Cp), pad_ref.dtype)
    pad_ref[:, 1:H + 1, 0:1, :] = zcol
    pad_ref[:, 1:H + 1, W + 1:W + 2, :] = zcol

    def packed_cols(C, K):
        """Packed im2col: 9 real-width taps laid contiguously, zero-filled to K."""
        taps = [pad_ref[:, kh:kh + H, kw:kw + W, :C]
                for kh in range(3) for kw in range(3)]
        if K > 9 * C:
            taps.append(jnp.zeros((N, H, W, K - 9 * C), pad_ref.dtype))
        col = jnp.concatenate(taps, axis=-1)          # (N, H, W, K), K % 128 == 0
        return col.reshape(M, K)

    # ---- conv1 (3x3, pad=1, stride=1): one bf16 MXU matmul, packed K -------
    pad_ref[:, 1:H + 1, 1:W + 1, :Cin] = x_ref[...].astype(pad_ref.dtype)
    col1 = packed_cols(Cin, K1)                       # (M, K1) bf16
    acc1 = jnp.dot(col1, w1_ref[...], preferred_element_type=jnp.float32)
    out1 = _bn(acc1, g1_ref[...], bt1_ref[...], relu=True)     # relu(bn1(conv1))

    # ---- shortcut (1x1 conv + BN) reuses the conv1 packed im2col -----------
    if has_extra:
        # we_ref has the 1x1 weight embedded in the center-tap rows, zero elsewhere
        sc = jnp.dot(col1, we_ref[...], preferred_element_type=jnp.float32)
        sc = _bn(sc, ge_ref[...], bte_ref[...], relu=False)    # (M, CoP)

    # ---- conv2 (3x3, pad=1, stride=1) + bn2 (no relu yet) ------------------
    pad_ref[:, 1:H + 1, 1:W + 1, :CoP] = (
        out1.reshape(N, H, W, CoP).astype(pad_ref.dtype))
    col2 = packed_cols(Cout, K2)                      # (M, K2) bf16
    acc2 = jnp.dot(col2, w2_ref[...], preferred_element_type=jnp.float32)
    out2 = _bn(acc2, g2_ref[...], bt2_ref[...], relu=False)    # (M, CoP)

    # ---- residual add + final ReLU, write back REAL channels only ----------
    if has_extra:
        res = jnp.maximum(sc + out2, 0.0)                       # (M, CoP)
        out_ref[...] = res.reshape(N, H, W, CoP)[..., :Cout]
    else:
        # identity shortcut (Cin == Cout): late, exact-f32 read of x
        out2_4d = out2.reshape(N, H, W, CoP)[..., :Cout]
        out_ref[...] = jnp.maximum(x_ref[...] + out2_4d, 0.0)


def resblk_forward(x_nchw, params, *, has_extra=True):
    """x_nchw: (N, Cin, H, W) float32 -> (N, Cout, H, W) float32."""
    N, Cin, H, W = x_nchw.shape
    Cout = params["w1"].shape[-1]
    if not has_extra:
        assert Cin == Cout, "identity shortcut requires ch_in == ch_out"

    CoP = _round_up(Cout, LANE)          # lane-padded output channels (kernel-internal)
    K1 = _round_up(9 * Cin, LANE)        # packed contraction dims
    K2 = _round_up(9 * Cout, LANE)
    Cp = max(Cin, CoP)                   # channel width of the reused pad scratch
    Wp = _round_up(W + 2, SUBLANE_BF16)  # sublane-aligned padded width (bf16)
    M = N * H * W

    # NHWC, REAL channels in HBM (no wrapper-side channel padding).
    x = jnp.transpose(x_nchw, (0, 2, 3, 1)).astype(jnp.float32)

    def pack_w3x3(w, cin, k_pad):
        # (3,3,cin,Cout) -> (9*cin, Cout) (kh,kw,ci major) -> zero-pad K / Cout.
        w = w.astype(jnp.float32).reshape(9 * cin, Cout)
        w = jnp.pad(w, ((0, k_pad - 9 * cin), (0, CoP - Cout)))
        return w.astype(jnp.bfloat16)

    def pad_row(v):
        v = v.astype(jnp.float32).reshape(1, -1)
        return jnp.pad(v, ((0, 0), (0, CoP - v.shape[1])))   # zeros keep pad lanes 0

    args = [
        x,
        pack_w3x3(params["w1"], Cin, K1),
        pad_row(params["g1"]), pad_row(params["bt1"]),
        pack_w3x3(params["w2"], Cout, K2),
        pad_row(params["g2"]), pad_row(params["bt2"]),
    ]
    if has_extra:
        # 1x1 shortcut weight embedded in the center-tap rows of the conv1 K dim.
        we = jnp.zeros((K1, CoP), jnp.float32)
        we = we.at[4 * Cin:5 * Cin, :Cout].set(params["we"].astype(jnp.float32))
        args += [we.astype(jnp.bfloat16),
                 pad_row(params["ge"]), pad_row(params["bte"])]

    n_mm = 3 if has_extra else 2
    flops = 2 * M * CoP * (K1 + K2 + (K1 if has_extra else 0))
    bytes_accessed = sum(int(a.size) * a.dtype.itemsize for a in args) \
        + M * Cout * 4
    cost = pl.CostEstimate(flops=int(flops),
                           transcendentals=int(n_mm * CoP),
                           bytes_accessed=int(bytes_accessed))

    vmem = pl.BlockSpec(memory_space=pltpu.MemorySpace.VMEM)
    out_nhwc = pl.pallas_call(
        functools.partial(_resblk_kernel, has_extra, Cin, Cout),
        out_shape=jax.ShapeDtypeStruct((N, H, W, Cout), jnp.float32),
        in_specs=[vmem] * len(args),
        out_specs=vmem,
        scratch_shapes=[
            # single reused halo-padded activation buffer (bf16 = MXU operand dtype)
            pltpu.VMEM((N, H + 2, Wp, Cp), jnp.bfloat16),
        ],
        compiler_params=pltpu.CompilerParams(
            vmem_limit_bytes=_vmem_limit_bytes()),
        cost_estimate=cost,
    )(*args)

    return jnp.transpose(out_nhwc, (0, 3, 1, 2))


def resblk_reference(x_nchw, params, *, has_extra=True):
    """Pure-JAX f32 reference mirroring the PyTorch forward (training-mode BN).

    Keeps the conv biases (as nn.Conv2d does); they cancel exactly under
    training-mode BatchNorm, which is why the kernel can drop them.
    """
    x = jnp.transpose(x_nchw, (0, 2, 3, 1)).astype(jnp.float32)

    def conv(y, w, b):
        out = lax.conv_general_dilated(
            y, w, (1, 1), "SAME", dimension_numbers=("NHWC", "HWIO", "NHWC"))
        return out + b.reshape(1, 1, 1, -1)

    def bn(y, g, bt):
        mean = jnp.mean(y, axis=(0, 1, 2), keepdims=True)
        var = jnp.mean((y - mean) ** 2, axis=(0, 1, 2), keepdims=True)
        return (y - mean) / jnp.sqrt(var + EPS) * g.reshape(1, 1, 1, -1) \
            + bt.reshape(1, 1, 1, -1)

    out = jax.nn.relu(bn(conv(x, params["w1"], params["b1"]),
                         params["g1"], params["bt1"]))
    out = bn(conv(out, params["w2"], params["b2"]), params["g2"], params["bt2"])
    if has_extra:
        we = params["we"].reshape(1, 1, *params["we"].shape)
        sc = bn(conv(x, we, params["be"]), params["ge"], params["bte"])
    else:
        sc = x
    out = jax.nn.relu(sc + out)
    return jnp.transpose(out, (0, 3, 1, 2))


if __name__ == "__main__":
    key = jax.random.PRNGKey(0)
    N, Cin, Cout, H, W = 2, 4, 8, 16, 16          # ch_in != ch_out -> extra path
    ks = jax.random.split(key, 14)

    params = {
        "w1": 0.1 * jax.random.normal(ks[0], (3, 3, Cin, Cout), jnp.float32),
        "b1": 0.1 * jax.random.normal(ks[1], (Cout,), jnp.float32),
        "g1": 1.0 + 0.1 * jax.random.normal(ks[2], (Cout,), jnp.float32),
        "bt1": 0.1 * jax.random.normal(ks[3], (Cout,), jnp.float32),
        "w2": 0.1 * jax.random.normal(ks[4], (3, 3, Cout, Cout), jnp.float32),
        "b2": 0.1 * jax.random.normal(ks[5], (Cout,), jnp.float32),
        "g2": 1.0 + 0.1 * jax.random.normal(ks[6], (Cout,), jnp.float32),
        "bt2": 0.1 * jax.random.normal(ks[7], (Cout,), jnp.float32),
        "we": 0.1 * jax.random.normal(ks[8], (Cin, Cout), jnp.float32),
        "be": 0.1 * jax.random.normal(ks[9], (Cout,), jnp.float32),
        "ge": 1.0 + 0.1 * jax.random.normal(ks[10], (Cout,), jnp.float32),
        "bte": 0.1 * jax.random.normal(ks[11], (Cout,), jnp.float32),
    }
    x = jax.random.normal(ks[13], (N, Cin, H, W), jnp.float32)

    out = resblk_forward(x, params, has_extra=True)
    jax.block_until_ready(out)

    ref = resblk_reference(x, params, has_extra=True)
    assert out.shape == (N, Cout, H, W)
    # Tolerance is loosened vs. pure-f32 because conv operands go through the
    # MXU in bf16 (f32 accumulation / BN math); the f32 reference is exact.
    assert jnp.allclose(out, ref, atol=5e-2, rtol=5e-2), \
        f"max abs err = {jnp.max(jnp.abs(out - ref))}"
    print("KERNEL_OK")
</pallas_src>

<mosaic_0001>
module attributes {stable_mosaic.version = 11 : i64} {
  func.func @_resblk_kernel(%arg0: memref<2x16x16x4xf32, #tpu.memory_space<vmem>>, %arg1: memref<128x128xbf16, #tpu.memory_space<vmem>>, %arg2: memref<1x128xf32, #tpu.memory_space<vmem>>, %arg3: memref<1x128xf32, #tpu.memory_space<vmem>>, %arg4: memref<128x128xbf16, #tpu.memory_space<vmem>>, %arg5: memref<1x128xf32, #tpu.memory_space<vmem>>, %arg6: memref<1x128xf32, #tpu.memory_space<vmem>>, %arg7: memref<128x128xbf16, #tpu.memory_space<vmem>>, %arg8: memref<1x128xf32, #tpu.memory_space<vmem>>, %arg9: memref<1x128xf32, #tpu.memory_space<vmem>>, %arg10: memref<2x16x16x8xf32, #tpu.memory_space<vmem>>, %arg11: memref<2x18x32x128xbf16, #tpu.memory_space<vmem>>) attributes {dimension_semantics = [], scalar_prefetch = 0 : i64, scratch_operands = 1 : i64, tpu.core_type = #tpu.core_type<tc>} {
    %cst = arith.constant 0.000000e+00 : bf16
    %0 = vector.broadcast %cst : bf16 to vector<2x1x32x128xbf16>
    %c0 = arith.constant 0 : index
    %c0_0 = arith.constant 0 : index
    %c0_1 = arith.constant 0 : index
    %c0_2 = arith.constant 0 : index
    %1 = vector.load %arg11[%c0, %c0_0, %c0_1, %c0_2] : memref<2x18x32x128xbf16, #tpu.memory_space<vmem>>, vector<2x1x32x128xbf16>
    tpu.vector_store %arg11[%c0, %c0_0, %c0_1, %c0_2], %0 {strides = array<i32>} : memref<2x18x32x128xbf16, #tpu.memory_space<vmem>>, vector<2x1x32x128xbf16>,
    %c0_3 = arith.constant 0 : index
    %c17 = arith.constant 17 : index
    %c0_4 = arith.constant 0 : index
    %c0_5 = arith.constant 0 : index
    %2 = vector.load %arg11[%c0_3, %c17, %c0_4, %c0_5] : memref<2x18x32x128xbf16, #tpu.memory_space<vmem>>, vector<2x1x32x128xbf16>
    tpu.vector_store %arg11[%c0_3, %c17, %c0_4, %c0_5], %0 {strides = array<i32>} : memref<2x18x32x128xbf16, #tpu.memory_space<vmem>>, vector<2x1x32x128xbf16>,
    %cst_6 = arith.constant 0.000000e+00 : bf16
    %3 = vector.broadcast %cst_6 : bf16 to vector<2x16x1x128xbf16>
    %c0_7 = arith.constant 0 : index
    %c1 = arith.constant 1 : index
    %c0_8 = arith.constant 0 : index
    %c0_9 = arith.constant 0 : index
    %4 = vector.load %arg11[%c0_7, %c1, %c0_8, %c0_9] : memref<2x18x32x128xbf16, #tpu.memory_space<vmem>>, vector<2x16x1x128xbf16>
    tpu.vector_store %arg11[%c0_7, %c1, %c0_8, %c0_9], %3 {strides = array<i32>} : memref<2x18x32x128xbf16, #tpu.memory_space<vmem>>, vector<2x16x1x128xbf16>,
    %c0_10 = arith.constant 0 : index
    %c1_11 = arith.constant 1 : index
    %c17_12 = arith.constant 17 : index
    %c0_13 = arith.constant 0 : index
    %5 = vector.load %arg11[%c0_10, %c1_11, %c17_12, %c0_13] : memref<2x18x32x128xbf16, #tpu.memory_space<vmem>>, vector<2x16x1x128xbf16>
    tpu.vector_store %arg11[%c0_10, %c1_11, %c17_12, %c0_13], %3 {strides = array<i32>} : memref<2x18x32x128xbf16, #tpu.memory_space<vmem>>, vector<2x16x1x128xbf16>,
    %c0_14 = arith.constant 0 : index
    %c0_15 = arith.constant 0 : index
    %c0_16 = arith.constant 0 : index
    %c0_17 = arith.constant 0 : index
    %6 = vector.load %arg0[%c0_14, %c0_15, %c0_16, %c0_17] : memref<2x16x16x4xf32, #tpu.memory_space<vmem>>, vector<2x16x16x4xf32>
    %7 = arith.truncf %6 : vector<2x16x16x4xf32> to vector<2x16x16x4xbf16>
    %c0_18 = arith.constant 0 : index
    %c1_19 = arith.constant 1 : index
    %c1_20 = arith.constant 1 : index
    %c0_21 = arith.constant 0 : index
    %8 = vector.load %arg11[%c0_18, %c1_19, %c1_20, %c0_21] : memref<2x18x32x128xbf16, #tpu.memory_space<vmem>>, vector<2x16x16x4xbf16>
    tpu.vector_store %arg11[%c0_18, %c1_19, %c1_20, %c0_21], %7 {strides = array<i32>} : memref<2x18x32x128xbf16, #tpu.memory_space<vmem>>, vector<2x16x16x4xbf16>,
    %c0_22 = arith.constant 0 : index
    %c0_23 = arith.constant 0 : index
    %c0_24 = arith.constant 0 : index
    %c0_25 = arith.constant 0 : index
    %9 = vector.load %arg11[%c0_22, %c0_23, %c0_24, %c0_25] : memref<2x18x32x128xbf16, #tpu.memory_space<vmem>>, vector<2x16x16x4xbf16>
    %c0_26 = arith.constant 0 : index
    %c0_27 = arith.constant 0 : index
    %c1_28 = arith.constant 1 : index
    %c0_29 = arith.constant 0 : index
    %10 = vector.load %arg11[%c0_26, %c0_27, %c1_28, %c0_29] : memref<2x18x32x128xbf16, #tpu.memory_space<vmem>>, vector<2x16x16x4xbf16>
    %c0_30 = arith.constant 0 : index
    %c0_31 = arith.constant 0 : index
    %c2 = arith.constant 2 : index
    %c0_32 = arith.constant 0 : index
    %11 = vector.load %arg11[%c0_30, %c0_31, %c2, %c0_32] : memref<2x18x32x128xbf16, #tpu.memory_space<vmem>>, vector<2x16x16x4xbf16>
    %c0_33 = arith.constant 0 : index
    %c1_34 = arith.constant 1 : index
    %c0_35 = arith.constant 0 : index
    %c0_36 = arith.constant 0 : index
    %12 = vector.load %arg11[%c0_33, %c1_34, %c0_35, %c0_36] : memref<2x18x32x128xbf16, #tpu.memory_space<vmem>>, vector<2x16x16x4xbf16>
    %c0_37 = arith.constant 0 : index
    %c1_38 = arith.constant 1 : index
    %c1_39 = arith.constant 1 : index
    %c0_40 = arith.constant 0 : index
    %13 = vector.load %arg11[%c0_37, %c1_38, %c1_39, %c0_40] : memref<2x18x32x128xbf16, #tpu.memory_space<vmem>>, vector<2x16x16x4xbf16>
    %c0_41 = arith.constant 0 : index
    %c1_42 = arith.constant 1 : index
    %c2_43 = arith.constant 2 : index
    %c0_44 = arith.constant 0 : index
    %14 = vector.load %arg11[%c0_41, %c1_42, %c2_43, %c0_44] : memref<2x18x32x128xbf16, #tpu.memory_space<vmem>>, vector<2x16x16x4xbf16>
    %c0_45 = arith.constant 0 : index
    %c2_46 = arith.constant 2 : index
    %c0_47 = arith.constant 0 : index
    %c0_48 = arith.constant 0 : index
    %15 = vector.load %arg11[%c0_45, %c2_46, %c0_47, %c0_48] : memref<2x18x32x128xbf16, #tpu.memory_space<vmem>>, vector<2x16x16x4xbf16>
    %c0_49 = arith.constant 0 : index
    %c2_50 = arith.constant 2 : index
    %c1_51 = arith.constant 1 : index
    %c0_52 = arith.constant 0 : index
    %16 = vector.load %arg11[%c0_49, %c2_50, %c1_51, %c0_52] : memref<2x18x32x128xbf16, #tpu.memory_space<vmem>>, vector<2x16x16x4xbf16>
    %c0_53 = arith.constant 0 : index
    %c2_54 = arith.constant 2 : index
    %c2_55 = arith.constant 2 : index
    %c0_56 = arith.constant 0 : index
    %17 = vector.load %arg11[%c0_53, %c2_54, %c2_55, %c0_56] : memref<2x18x32x128xbf16, #tpu.memory_space<vmem>>, vector<2x16x16x4xbf16>
    %cst_57 = arith.constant 0.000000e+00 : bf16
    %18 = vector.broadcast %cst_57 : bf16 to vector<2x16x16x92xbf16>
    %19 = tpu.concatenate %9, %10, %11, %12, %13, %14, %15, %16, %17, %18 in 3 : vector<2x16x16x4xbf16>, vector<2x16x16x4xbf16>, vector<2x16x16x4xbf16>, vector<2x16x16x4xbf16>, vector<2x16x16x4xbf16>, vector<2x16x16x4xbf16>, vector<2x16x16x4xbf16>, vector<2x16x16x4xbf16>, vector<2x16x16x4xbf16>, vector<2x16x16x92xbf16> -> vector<2x16x16x128xbf16>
    %20 = vector.shape_cast %19 : vector<2x16x16x128xbf16> to vector<512x128xbf16>
    %c0_58 = arith.constant 0 : index
    %c0_59 = arith.constant 0 : index
    %21 = vector.load %arg1[%c0_58, %c0_59] : memref<128x128xbf16, #tpu.memory_space<vmem>>, vector<128x128xbf16>
    %cst_60 = arith.constant dense<0.000000e+00> : vector<512x128xf32>
    %22 = tpu.matmul %20, %21, %cst_60 {dimension_numbers = #tpu.dot_dimension_numbers<[1], [0], [0], [1], [0, 0, 1, 1], [], []>} : vector<512x128xbf16>, vector<128x128xbf16>, vector<512x128xf32> -> vector<512x128xf32>
    %c0_61 = arith.constant 0 : index
    %c0_62 = arith.constant 0 : index
    %23 = vector.load %arg2[%c0_61, %c0_62] : memref<1x128xf32, #tpu.memory_space<vmem>>, vector<1x128xf32>
    %c0_63 = arith.constant 0 : index
    %c0_64 = arith.constant 0 : index
    %24 = vector.load %arg3[%c0_63, %c0_64] : memref<1x128xf32, #tpu.memory_space<vmem>>, vector<1x128xf32>
    %cst_65 = arith.constant dense<0.000000e+00> : vector<128xf32>
    %25 = vector.multi_reduction <add>, %22, %cst_65 [0] : vector<512x128xf32> to vector<128xf32>
    %26 = vector.shape_cast %25 : vector<128xf32> to vector<1x128xf32>
    %cst_66 = arith.constant 0.001953125 : f32
    %27 = vector.broadcast %cst_66 : f32 to vector<1x128xf32>
    %28 = arith.mulf %26, %27 : vector<1x128xf32>
    %29 = vector.broadcast %28 : vector<1x128xf32> to vector<512x128xf32>
    %30 = arith.subf %22, %29 : vector<512x128xf32>
    %31 = arith.mulf %30, %30 : vector<512x128xf32>
    %cst_67 = arith.constant dense<0.000000e+00> : vector<128xf32>
    %32 = vector.multi_reduction <add>, %31, %cst_67 [0] : vector<512x128xf32> to vector<128xf32>
    %33 = vector.shape_cast %32 : vector<128xf32> to vector<1x128xf32>
    %cst_68 = arith.constant 0.001953125 : f32
    %34 = vector.broadcast %cst_68 : f32 to vector<1x128xf32>
    %35 = arith.mulf %33, %34 : vector<1x128xf32>
    %cst_69 = arith.constant 9.99999974E-6 : f32
    %36 = vector.broadcast %cst_69 : f32 to vector<1x128xf32>
    %37 = arith.addf %35, %36 : vector<1x128xf32>
    %38 = math.rsqrt %37 : vector<1x128xf32>
    %39 = arith.mulf %38, %23 : vector<1x128xf32>
    %40 = vector.broadcast %39 : vector<1x128xf32> to vector<512x128xf32>
    %41 = arith.mulf %30, %40 : vector<512x128xf32>
    %42 = vector.broadcast %24 : vector<1x128xf32> to vector<512x128xf32>
    %43 = arith.addf %41, %42 : vector<512x128xf32>
    %cst_70 = arith.constant 0.000000e+00 : f32
    %44 = vector.broadcast %cst_70 : f32 to vector<512x128xf32>
    %45 = arith.maximumf %43, %44 : vector<512x128xf32>
    %c0_71 = arith.constant 0 : index
    %c0_72 = arith.constant 0 : index
    %46 = vector.load %arg7[%c0_71, %c0_72] : memref<128x128xbf16, #tpu.memory_space<vmem>>, vector<128x128xbf16>
    %cst_73 = arith.constant dense<0.000000e+00> : vector<512x128xf32>
    %47 = tpu.matmul %20, %46, %cst_73 {dimension_numbers = #tpu.dot_dimension_numbers<[1], [0], [0], [1], [0, 0, 1, 1], [], []>} : vector<512x128xbf16>, vector<128x128xbf16>, vector<512x128xf32> -> vector<512x128xf32>
    %c0_74 = arith.constant 0 : index
    %c0_75 = arith.constant 0 : index
    %48 = vector.load %arg8[%c0_74, %c0_75] : memref<1x128xf32, #tpu.memory_space<vmem>>, vector<1x128xf32>
    %c0_76 = arith.constant 0 : index
    %c0_77 = arith.constant 0 : index
    %49 = vector.load %arg9[%c0_76, %c0_77] : memref<1x128xf32, #tpu.memory_space<vmem>>, vector<1x128xf32>
    %cst_78 = arith.constant dense<0.000000e+00> : vector<128xf32>
    %50 = vector.multi_reduction <add>, %47, %cst_78 [0] : vector<512x128xf32> to vector<128xf32>
    %51 = vector.shape_cast %50 : vector<128xf32> to vector<1x128xf32>
    %cst_79 = arith.constant 0.001953125 : f32
    %52 = vector.broadcast %cst_79 : f32 to vector<1x128xf32>
    %53 = arith.mulf %51, %52 : vector<1x128xf32>
    %54 = vector.broadcast %53 : vector<1x128xf32> to vector<512x128xf32>
    %55 = arith.subf %47, %54 : vector<512x128xf32>
    %56 = arith.mulf %55, %55 : vector<512x128xf32>
    %cst_80 = arith.constant dense<0.000000e+00> : vector<128xf32>
    %57 = vector.multi_reduction <add>, %56, %cst_80 [0] : vector<512x128xf32> to vector<128xf32>
    %58 = vector.shape_cast %57 : vector<128xf32> to vector<1x128xf32>
    %cst_81 = arith.constant 0.001953125 : f32
    %59 = vector.broadcast %cst_81 : f32 to vector<1x128xf32>
    %60 = arith.mulf %58, %59 : vector<1x128xf32>
    %cst_82 = arith.constant 9.99999974E-6 : f32
    %61 = vector.broadcast %cst_82 : f32 to vector<1x128xf32>
    %62 = arith.addf %60, %61 : vector<1x128xf32>
    %63 = math.rsqrt %62 : vector<1x128xf32>
    %64 = arith.mulf %63, %48 : vector<1x128xf32>
    %65 = vector.broadcast %64 : vector<1x128xf32> to vector<512x128xf32>
    %66 = arith.mulf %55, %65 : vector<512x128xf32>
    %67 = vector.broadcast %49 : vector<1x128xf32> to vector<512x128xf32>
    %68 = arith.addf %66, %67 : vector<512x128xf32>
    %69 = vector.shape_cast %45 : vector<512x128xf32> to vector<2x16x16x128xf32>
    %70 = arith.truncf %69 : vector<2x16x16x128xf32> to vector<2x16x16x128xbf16>
    %c0_83 = arith.constant 0 : index
    %c1_84 = arith.constant 1 : index
    %c1_85 = arith.constant 1 : index
    %c0_86 = arith.constant 0 : index
    %71 = vector.load %arg11[%c0_83, %c1_84, %c1_85, %c0_86] : memref<2x18x32x128xbf16, #tpu.memory_space<vmem>>, vector<2x16x16x128xbf16>
    tpu.vector_store %arg11[%c0_83, %c1_84, %c1_85, %c0_86], %70 {strides = array<i32>} : memref<2x18x32x128xbf16, #tpu.memory_space<vmem>>, vector<2x16x16x128xbf16>,
    %c0_87 = arith.constant 0 : index
    %c0_88 = arith.constant 0 : index
    %c0_89 = arith.constant 0 : index
    %c0_90 = arith.constant 0 : index
    %72 = vector.load %arg11[%c0_87, %c0_88, %c0_89, %c0_90] : memref<2x18x32x128xbf16, #tpu.memory_space<vmem>>, vector<2x16x16x8xbf16>
    %c0_91 = arith.constant 0 : index
    %c0_92 = arith.constant 0 : index
    %c1_93 = arith.constant 1 : index
    %c0_94 = arith.constant 0 : index
    %73 = vector.load %arg11[%c0_91, %c0_92, %c1_93, %c0_94] : memref<2x18x32x128xbf16, #tpu.memory_space<vmem>>, vector<2x16x16x8xbf16>
    %c0_95 = arith.constant 0 : index
    %c0_96 = arith.constant 0 : index
    %c2_97 = arith.constant 2 : index
    %c0_98 = arith.constant 0 : index
    %74 = vector.load %arg11[%c0_95, %c0_96, %c2_97, %c0_98] : memref<2x18x32x128xbf16, #tpu.memory_space<vmem>>, vector<2x16x16x8xbf16>
    %c0_99 = arith.constant 0 : index
    %c1_100 = arith.constant 1 : index
    %c0_101 = arith.constant 0 : index
    %c0_102 = arith.constant 0 : index
    %75 = vector.load %arg11[%c0_99, %c1_100, %c0_101, %c0_102] : memref<2x18x32x128xbf16, #tpu.memory_space<vmem>>, vector<2x16x16x8xbf16>
    %c0_103 = arith.constant 0 : index
    %c1_104 = arith.constant 1 : index
    %c1_105 = arith.constant 1 : index
    %c0_106 = arith.constant 0 : index
    %76 = vector.load %arg11[%c0_103, %c1_104, %c1_105, %c0_106] : memref<2x18x32x128xbf16, #tpu.memory_space<vmem>>, vector<2x16x16x8xbf16>
    %c0_107 = arith.constant 0 : index
    %c1_108 = arith.constant 1 : index
    %c2_109 = arith.constant 2 : index
    %c0_110 = arith.constant 0 : index
    %77 = vector.load %arg11[%c0_107, %c1_108, %c2_109, %c0_110] : memref<2x18x32x128xbf16, #tpu.memory_space<vmem>>, vector<2x16x16x8xbf16>
    %c0_111 = arith.constant 0 : index
    %c2_112 = arith.constant 2 : index
    %c0_113 = arith.constant 0 : index
    %c0_114 = arith.constant 0 : index
    %78 = vector.load %arg11[%c0_111, %c2_112, %c0_113, %c0_114] : memref<2x18x32x128xbf16, #tpu.memory_space<vmem>>, vector<2x16x16x8xbf16>
    %c0_115 = arith.constant 0 : index
    %c2_116 = arith.constant 2 : index
    %c1_117 = arith.constant 1 : index
    %c0_118 = arith.constant 0 : index
    %79 = vector.load %arg11[%c0_115, %c2_116, %c1_117, %c0_118] : memref<2x18x32x128xbf16, #tpu.memory_space<vmem>>, vector<2x16x16x8xbf16>
    %c0_119 = arith.constant 0 : index
    %c2_120 = arith.constant 2 : index
    %c2_121 = arith.constant 2 : index
    %c0_122 = arith.constant 0 : index
    %80 = vector.load %arg11[%c0_119, %c2_120, %c2_121, %c0_122] : memref<2x18x32x128xbf16, #tpu.memory_space<vmem>>, vector<2x16x16x8xbf16>
    %cst_123 = arith.constant 0.000000e+00 : bf16
    %81 = vector.broadcast %cst_123 : bf16 to vector<2x16x16x56xbf16>
    %82 = tpu.concatenate %72, %73, %74, %75, %76, %77, %78, %79, %80, %81 in 3 : vector<2x16x16x8xbf16>, vector<2x16x16x8xbf16>, vector<2x16x16x8xbf16>, vector<2x16x16x8xbf16>, vector<2x16x16x8xbf16>, vector<2x16x16x8xbf16>, vector<2x16x16x8xbf16>, vector<2x16x16x8xbf16>, vector<2x16x16x8xbf16>, vector<2x16x16x56xbf16> -> vector<2x16x16x128xbf16>
    %83 = vector.shape_cast %82 : vector<2x16x16x128xbf16> to vector<512x128xbf16>
    %c0_124 = arith.constant 0 : index
    %c0_125 = arith.constant 0 : index
    %84 = vector.load %arg4[%c0_124, %c0_125] : memref<128x128xbf16, #tpu.memory_space<vmem>>, vector<128x128xbf16>
    %cst_126 = arith.constant dense<0.000000e+00> : vector<512x128xf32>
    %85 = tpu.matmul %83, %84, %cst_126 {dimension_numbers = #tpu.dot_dimension_numbers<[1], [0], [0], [1], [0, 0, 1, 1], [], []>} : vector<512x128xbf16>, vector<128x128xbf16>, vector<512x128xf32> -> vector<512x128xf32>
    %c0_127 = arith.constant 0 : index
    %c0_128 = arith.constant 0 : index
    %86 = vector.load %arg5[%c0_127, %c0_128] : memref<1x128xf32, #tpu.memory_space<vmem>>, vector<1x128xf32>
    %c0_129 = arith.constant 0 : index
    %c0_130 = arith.constant 0 : index
    %87 = vector.load %arg6[%c0_129, %c0_130] : memref<1x128xf32, #tpu.memory_space<vmem>>, vector<1x128xf32>
    %cst_131 = arith.constant dense<0.000000e+00> : vector<128xf32>
    %88 = vector.multi_reduction <add>, %85, %cst_131 [0] : vector<512x128xf32> to vector<128xf32>
    %89 = vector.shape_cast %88 : vector<128xf32> to vector<1x128xf32>
    %cst_132 = arith.constant 0.001953125 : f32
    %90 = vector.broadcast %cst_132 : f32 to vector<1x128xf32>
    %91 = arith.mulf %89, %90 : vector<1x128xf32>
    %92 = vector.broadcast %91 : vector<1x128xf32> to vector<512x128xf32>
    %93 = arith.subf %85, %92 : vector<512x128xf32>
    %94 = arith.mulf %93, %93 : vector<512x128xf32>
    %cst_133 = arith.constant dense<0.000000e+00> : vector<128xf32>
    %95 = vector.multi_reduction <add>, %94, %cst_133 [0] : vector<512x128xf32> to vector<128xf32>
    %96 = vector.shape_cast %95 : vector<128xf32> to vector<1x128xf32>
    %cst_134 = arith.constant 0.001953125 : f32
    %97 = vector.broadcast %cst_134 : f32 to vector<1x128xf32>
    %98 = arith.mulf %96, %97 : vector<1x128xf32>
    %cst_135 = arith.constant 9.99999974E-6 : f32
    %99 = vector.broadcast %cst_135 : f32 to vector<1x128xf32>
    %100 = arith.addf %98, %99 : vector<1x128xf32>
    %101 = math.rsqrt %100 : vector<1x128xf32>
    %102 = arith.mulf %101, %86 : vector<1x128xf32>
    %103 = vector.broadcast %102 : vector<1x128xf32> to vector<512x128xf32>
    %104 = arith.mulf %93, %103 : vector<512x128xf32>
    %105 = vector.broadcast %87 : vector<1x128xf32> to vector<512x128xf32>
    %106 = arith.addf %104, %105 : vector<512x128xf32>
    %107 = arith.addf %68, %106 : vector<512x128xf32>
    %cst_136 = arith.constant 0.000000e+00 : f32
    %108 = vector.broadcast %cst_136 : f32 to vector<512x128xf32>
    %109 = arith.maximumf %107, %108 : vector<512x128xf32>
    %110 = vector.shape_cast %109 : vector<512x128xf32> to vector<2x16x16x128xf32>
    %111 = vector.extract_strided_slice %110 {offsets = [0, 0, 0, 0], sizes = [2, 16, 16, 8], strides = [1, 1, 1, 1]} : vector<2x16x16x128xf32> to vector<2x16x16x8xf32>
    %c0_137 = arith.constant 0 : index
    %c0_138 = arith.constant 0 : index
    %c0_139 = arith.constant 0 : index
    %c0_140 = arith.constant 0 : index
    %112 = vector.load %arg10[%c0_137, %c0_138, %c0_139, %c0_140] : memref<2x16x16x8xf32, #tpu.memory_space<vmem>>, vector<2x16x16x8xf32>
    tpu.vector_store %arg10[%c0_137, %c0_138, %c0_139, %c0_140], %111 {strides = array<i32>} : memref<2x16x16x8xf32, #tpu.memory_space<vmem>>, vector<2x16x16x8xf32>,
    return
  }
}

</mosaic_0001>

<llo_original>
// kernel: tpu_custom_call.1
$region0: #{tpu_custom_call.1}
  #allocation0 [shape = 'u32[]', space=smem, size = 0x4, offset = 0x4, fixed_abs, tag = 'smem constant byte address 0x4 - core index']
  #allocation1 [shape = 'u32[72,128]{1,0:T(1,128)}', space=vmem, size = 0x9000, scoped, tag = 'internal scratch']
  #allocation2 [shape = 'bf16[2,18,32,128]{3,2,1,0:T(8,128)(2,1)}', space=vmem, size = 0x48000, scoped, tag = 'scratch operand']
  %s0 = inlined_call_operand.vmem [shape: f32[2,16,16,4], index: 0, kind: input, shape index: {}]
  %s1 = inlined_call_operand.vmem [shape: bf16[128,128], index: 1, kind: input, shape index: {}]
  %s2 = inlined_call_operand.vmem [shape: f32[1,128], index: 2, kind: input, shape index: {}]
  %s3 = inlined_call_operand.vmem [shape: f32[1,128], index: 3, kind: input, shape index: {}]
  %s4 = inlined_call_operand.vmem [shape: bf16[128,128], index: 4, kind: input, shape index: {}]
  %s5 = inlined_call_operand.vmem [shape: f32[1,128], index: 5, kind: input, shape index: {}]
  %s6 = inlined_call_operand.vmem [shape: f32[1,128], index: 6, kind: input, shape index: {}]
  %s7 = inlined_call_operand.vmem [shape: bf16[128,128], index: 7, kind: input, shape index: {}]
  %s8 = inlined_call_operand.vmem [shape: f32[1,128], index: 8, kind: input, shape index: {}]
  %s9 = inlined_call_operand.vmem [shape: f32[1,128], index: 9, kind: input, shape index: {}]
  %s10 = inlined_call_operand.vmem [shape: f32[2,16,16,8], index: 10, kind: output, shape index: {}]
  %s11 = sld [smem:[#allocation0]]
  $region50: #{tpu_custom_call.1} parent=0
    _
  %s13 = ssub.s32 1, %s11
  %s14 = scalar_select 0, %s13, %s11
  // Predicated region
  $region2: #{tpu_custom_call.1} parent=0 // pred_check
    _
  $region3: #{tpu_custom_call.1} parent=0 // pred_check_branch
    %16 = sbr.rel (0) target = $region5
  $region4: #{tpu_custom_call.1} parent=0 // pred_region
    _
  $region5: #{tpu_custom_call.1} parent=0 // pred_fallthru
    _
  // Predicated region
  $region6: #{tpu_custom_call.1} parent=0 // pred_check
    _
  $region7: #{tpu_custom_call.1} parent=0 // pred_check_branch
    %18 = sbr.rel (0) target = $region9
  $region8: #{tpu_custom_call.1} parent=0 // pred_region
    _
  $region9: #{tpu_custom_call.1} parent=0 // pred_fallthru
    _
  // Predicated region
  $region10: #{tpu_custom_call.1} parent=0 // pred_check
    _
  $region11: #{tpu_custom_call.1} parent=0 // pred_check_branch
    %20 = sbr.rel (0) target = $region13
  $region12: #{tpu_custom_call.1} parent=0 // pred_region
    _
  $region13: #{tpu_custom_call.1} parent=0 // pred_fallthru
    _
  // Predicated region
  $region14: #{tpu_custom_call.1} parent=0 // pred_check
    _
  $region15: #{tpu_custom_call.1} parent=0 // pred_check_branch
    %22 = sbr.rel (0) target = $region17
  $region16: #{tpu_custom_call.1} parent=0 // pred_region
    _
  $region17: #{tpu_custom_call.1} parent=0 // pred_fallthru
    _
  // Predicated region
  $region18: #{tpu_custom_call.1} parent=0 // pred_check
    _
  $region19: #{tpu_custom_call.1} parent=0 // pred_check_branch
    %24 = sbr.rel (0) target = $region21
  $region20: #{tpu_custom_call.1} parent=0 // pred_region
    _
  $region21: #{tpu_custom_call.1} parent=0 // pred_fallthru
    _
  // Predicated region
  $region22: #{tpu_custom_call.1} parent=0 // pred_check
    _
  $region23: #{tpu_custom_call.1} parent=0 // pred_check_branch
    %26 = sbr.rel (0) target = $region25
  $region24: #{tpu_custom_call.1} parent=0 // pred_region
    _
  $region25: #{tpu_custom_call.1} parent=0 // pred_fallthru
    _
  // Predicated region
  $region26: #{tpu_custom_call.1} parent=0 // pred_check
    _
  $region27: #{tpu_custom_call.1} parent=0 // pred_check_branch
    %28 = sbr.rel (0) target = $region29
  $region28: #{tpu_custom_call.1} parent=0 // pred_region
    _
  $region29: #{tpu_custom_call.1} parent=0 // pred_fallthru
    _
  // Predicated region
  $region30: #{tpu_custom_call.1} parent=0 // pred_check
    _
  $region31: #{tpu_custom_call.1} parent=0 // pred_check_branch
    %30 = sbr.rel (0) target = $region33
  $region32: #{tpu_custom_call.1} parent=0 // pred_region
    _
  $region33: #{tpu_custom_call.1} parent=0 // pred_fallthru
    _
  // Predicated region
  $region34: #{tpu_custom_call.1} parent=0 // pred_check
    _
  $region35: #{tpu_custom_call.1} parent=0 // pred_check_branch
    %32 = sbr.rel (0) target = $region37
  $region36: #{tpu_custom_call.1} parent=0 // pred_region
    _
  $region37: #{tpu_custom_call.1} parent=0 // pred_fallthru
    _
  // Predicated region
  $region38: #{tpu_custom_call.1} parent=0 // pred_check
    _
  $region39: #{tpu_custom_call.1} parent=0 // pred_check_branch
    %34 = sbr.rel (0) target = $region41
  $region40: #{tpu_custom_call.1} parent=0 // pred_region
    _
  $region41: #{tpu_custom_call.1} parent=0 // pred_fallthru
    _
  %36 = vst [vmem:[#allocation2] sm:$0xf] 0
  %37 = vst [vmem:[#allocation2 + $0x4] sm:$0xf] 0
  %38 = vst [vmem:[#allocation2 + $0x8] sm:$0xf] 0
  %39 = vst [vmem:[#allocation2 + $0xc] sm:$0xf] 0
  %40 = vst [vmem:[#allocation2 + $0x120] sm:$0xf] 0
  %41 = vst [vmem:[#allocation2 + $0x124] sm:$0xf] 0
  %42 = vst [vmem:[#allocation2 + $0x128] sm:$0xf] 0
  %43 = vst [vmem:[#allocation2 + $0x12c] sm:$0xf] 0
  %s44 = scalar_lea.vmem [#allocation2], 272
  %45 = vst [vmem:[%s44] sm:$0xf] 0
  %46 = vst [vmem:[%s44 + $0x4] sm:$0xf] 0
  %47 = vst [vmem:[%s44 + $0x8] sm:$0xf] 0
  %48 = vst [vmem:[%s44 + $0xc] sm:$0xf] 0
  %49 = vst [vmem:[%s44 + $0x120] sm:$0xf] 0
  %50 = vst [vmem:[%s44 + $0x124] sm:$0xf] 0
  %51 = vst [vmem:[%s44 + $0x128] sm:$0xf] 0
  %52 = vst [vmem:[%s44 + $0x12c] sm:$0xf] 0
  %s53 = scalar_lea.vmem [#allocation2], 16
  %vm54 = vcmask 1040384
  %vm55 = vsmask.f32 256
  %vm56 = vmand %vm54, %vm55
  %v57 = vld [vmem:[%s53] sm:$0x1]
  %v58 = vsel %vm56, 0, %v57
  %59 = vst [vmem:[%s53] sm:$0x1] %v58
  %v60 = vld [vmem:[%s53 + $0x10] sm:$0x1]
  %v61 = vsel %vm56, 0, %v60
  %62 = vst [vmem:[%s53 + $0x10] sm:$0x1] %v61
  %v63 = vld [vmem:[%s53 + $0x20] sm:$0x1]
  %v64 = vsel %vm56, 0, %v63
  %65 = vst [vmem:[%s53 + $0x20] sm:$0x1] %v64
  %v66 = vld [vmem:[%s53 + $0x30] sm:$0x1]
  %v67 = vsel %vm56, 0, %v66
  %68 = vst [vmem:[%s53 + $0x30] sm:$0x1] %v67
  %v69 = vld [vmem:[%s53 + $0x40] sm:$0x1]
  %v70 = vsel %vm56, 0, %v69
  %71 = vst [vmem:[%s53 + $0x40] sm:$0x1] %v70
  %v72 = vld [vmem:[%s53 + $0x50] sm:$0x1]
  %v73 = vsel %vm56, 0, %v72
  %74 = vst [vmem:[%s53 + $0x50] sm:$0x1] %v73
  %v75 = vld [vmem:[%s53 + $0x60] sm:$0x1]
  %v76 = vsel %vm56, 0, %v75
  %77 = vst [vmem:[%s53 + $0x60] sm:$0x1] %v76
  %v78 = vld [vmem:[%s53 + $0x70] sm:$0x1]
  %v79 = vsel %vm56, 0, %v78
  %80 = vst [vmem:[%s53 + $0x70] sm:$0x1] %v79
  %v81 = vld [vmem:[%s53 + $0x80] sm:$0x1]
  %v82 = vsel %vm56, 0, %v81
  %83 = vst [vmem:[%s53 + $0x80] sm:$0x1] %v82
  %v84 = vld [vmem:[%s53 + $0x90] sm:$0x1]
  %v85 = vsel %vm56, 0, %v84
  %86 = vst [vmem:[%s53 + $0x90] sm:$0x1] %v85
  %v87 = vld [vmem:[%s53 + $0xa0] sm:$0x1]
  %v88 = vsel %vm56, 0, %v87
  %89 = vst [vmem:[%s53 + $0xa0] sm:$0x1] %v88
  %v90 = vld [vmem:[%s53 + $0xb0] sm:$0x1]
  %v91 = vsel %vm56, 0, %v90
  %92 = vst [vmem:[%s53 + $0xb0] sm:$0x1] %v91
  %v93 = vld [vmem:[%s53 + $0xc0] sm:$0x1]
  %v94 = vsel %vm56, 0, %v93
  %95 = vst [vmem:[%s53 + $0xc0] sm:$0x1] %v94
  %v96 = vld [vmem:[%s53 + $0xd0] sm:$0x1]
  %v97 = vsel %vm56, 0, %v96
  %98 = vst [vmem:[%s53 + $0xd0] sm:$0x1] %v97
  %v99 = vld [vmem:[%s53 + $0xe0] sm:$0x1]
  %v100 = vsel %vm56, 0, %v99
  %101 = vst [vmem:[%s53 + $0xe0] sm:$0x1] %v100
  %v102 = vld [vmem:[%s53 + $0xf0] sm:$0x1]
  %v103 = vsel %vm56, 0, %v102
  %104 = vst [vmem:[%s53 + $0xf0] sm:$0x1] %v103
  %v105 = vld [vmem:[%s53 + $0x120] sm:$0x1]
  %v106 = vsel %vm56, 0, %v105
  %107 = vst [vmem:[%s53 + $0x120] sm:$0x1] %v106
  %v108 = vld [vmem:[%s53 + $0x130] sm:$0x1]
  %v109 = vsel %vm56, 0, %v108
  %110 = vst [vmem:[%s53 + $0x130] sm:$0x1] %v109
  %v111 = vld [vmem:[%s53 + $0x140] sm:$0x1]
  %v112 = vsel %vm56, 0, %v111
  %113 = vst [vmem:[%s53 + $0x140] sm:$0x1] %v112
  %v114 = vld [vmem:[%s53 + $0x150] sm:$0x1]
  %v115 = vsel %vm56, 0, %v114
  %116 = vst [vmem:[%s53 + $0x150] sm:$0x1] %v115
  %v117 = vld [vmem:[%s53 + $0x160] sm:$0x1]
  %v118 = vsel %vm56, 0, %v117
  %119 = vst [vmem:[%s53 + $0x160] sm:$0x1] %v118
  %v120 = vld [vmem:[%s53 + $0x170] sm:$0x1]
  %v121 = vsel %vm56, 0, %v120
  %122 = vst [vmem:[%s53 + $0x170] sm:$0x1] %v121
  %v123 = vld [vmem:[%s53 + $0x180] sm:$0x1]
  %v124 = vsel %vm56, 0, %v123
  %125 = vst [vmem:[%s53 + $0x180] sm:$0x1] %v124
  %v126 = vld [vmem:[%s53 + $0x190] sm:$0x1]
  %v127 = vsel %vm56, 0, %v126
  %128 = vst [vmem:[%s53 + $0x190] sm:$0x1] %v127
  %v129 = vld [vmem:[%s53 + $0x1a0] sm:$0x1]
  %v130 = vsel %vm56, 0, %v129
  %131 = vst [vmem:[%s53 + $0x1a0] sm:$0x1] %v130
  %v132 = vld [vmem:[%s53 + $0x1b0] sm:$0x1]
  %v133 = vsel %vm56, 0, %v132
  %134 = vst [vmem:[%s53 + $0x1b0] sm:$0x1] %v133
  %v135 = vld [vmem:[%s53 + $0x1c0] sm:$0x1]
  %v136 = vsel %vm56, 0, %v135
  %137 = vst [vmem:[%s53 + $0x1c0] sm:$0x1] %v136
  %v138 = vld [vmem:[%s53 + $0x1d0] sm:$0x1]
  %v139 = vsel %vm56, 0, %v138
  %140 = vst [vmem:[%s53 + $0x1d0] sm:$0x1] %v139
  %v141 = vld [vmem:[%s53 + $0x1e0] sm:$0x1]
  %v142 = vsel %vm56, 0, %v141
  %143 = vst [vmem:[%s53 + $0x1e0] sm:$0x1] %v142
  %v144 = vld [vmem:[%s53 + $0x1f0] sm:$0x1]
  %v145 = vsel %vm56, 0, %v144
  %146 = vst [vmem:[%s53 + $0x1f0] sm:$0x1] %v145
  %v147 = vld [vmem:[%s53 + $0x200] sm:$0x1]
  %v148 = vsel %vm56, 0, %v147
  %149 = vst [vmem:[%s53 + $0x200] sm:$0x1] %v148
  %v150 = vld [vmem:[%s53 + $0x210] sm:$0x1]
  %v151 = vsel %vm56, 0, %v150
  %152 = vst [vmem:[%s53 + $0x210] sm:$0x1] %v151
  %vm153 = vsmask.f32 7938
  %vm154 = vmand %vm54, %vm153
  %v155 = vld [vmem:[%s53 + $0x8] sm:$0x1]
  %v156 = vsel %vm154, 0, %v155
  %157 = vst [vmem:[%s53 + $0x8] sm:$0x1] %v156
  %v158 = vld [vmem:[%s53 + $0x18] sm:$0x1]
  %v159 = vsel %vm154, 0, %v158
  %160 = vst [vmem:[%s53 + $0x18] sm:$0x1] %v159
  %v161 = vld [vmem:[%s53 + $0x28] sm:$0x1]
  %v162 = vsel %vm154, 0, %v161
  %163 = vst [vmem:[%s53 + $0x28] sm:$0x1] %v162
  %v164 = vld [vmem:[%s53 + $0x38] sm:$0x1]
  %v165 = vsel %vm154, 0, %v164
  %166 = vst [vmem:[%s53 + $0x38] sm:$0x1] %v165
  %v167 = vld [vmem:[%s53 + $0x48] sm:$0x1]
  %v168 = vsel %vm154, 0, %v167
  %169 = vst [vmem:[%s53 + $0x48] sm:$0x1] %v168
  %v170 = vld [vmem:[%s53 + $0x58] sm:$0x1]
  %v171 = vsel %vm154, 0, %v170
  %172 = vst [vmem:[%s53 + $0x58] sm:$0x1] %v171
  %v173 = vld [vmem:[%s53 + $0x68] sm:$0x1]
  %v174 = vsel %vm154, 0, %v173
  %175 = vst [vmem:[%s53 + $0x68] sm:$0x1] %v174
  %v176 = vld [vmem:[%s53 + $0x78] sm:$0x1]
  %v177 = vsel %vm154, 0, %v176
  %178 = vst [vmem:[%s53 + $0x78] sm:$0x1] %v177
  %v179 = vld [vmem:[%s53 + $0x88] sm:$0x1]
  %v180 = vsel %vm154, 0, %v179
  %181 = vst [vmem:[%s53 + $0x88] sm:$0x1] %v180
  %v182 = vld [vmem:[%s53 + $0x98] sm:$0x1]
  %v183 = vsel %vm154, 0, %v182
  %184 = vst [vmem:[%s53 + $0x98] sm:$0x1] %v183
  %v185 = vld [vmem:[%s53 + $0xa8] sm:$0x1]
  %v186 = vsel %vm154, 0, %v185
  %187 = vst [vmem:[%s53 + $0xa8] sm:$0x1] %v186
  %v188 = vld [vmem:[%s53 + $0xb8] sm:$0x1]
  %v189 = vsel %vm154, 0, %v188
  %190 = vst [vmem:[%s53 + $0xb8] sm:$0x1] %v189
  %v191 = vld [vmem:[%s53 + $0xc8] sm:$0x1]
  %v192 = vsel %vm154, 0, %v191
  %193 = vst [vmem:[%s53 + $0xc8] sm:$0x1] %v192
  %v194 = vld [vmem:[%s53 + $0xd8] sm:$0x1]
  %v195 = vsel %vm154, 0, %v194
  %196 = vst [vmem:[%s53 + $0xd8] sm:$0x1] %v195
  %v197 = vld [vmem:[%s53 + $0xe8] sm:$0x1]
  %v198 = vsel %vm154, 0, %v197
  %199 = vst [vmem:[%s53 + $0xe8] sm:$0x1] %v198
  %v200 = vld [vmem:[%s53 + $0xf8] sm:$0x1]
  %v201 = vsel %vm154, 0, %v200
  %202 = vst [vmem:[%s53 + $0xf8] sm:$0x1] %v201
  %v203 = vld [vmem:[%s53 + $0x128] sm:$0x1]
  %v204 = vsel %vm154, 0, %v203
  %205 = vst [vmem:[%s53 + $0x128] sm:$0x1] %v204
  %v206 = vld [vmem:[%s53 + $0x138] sm:$0x1]
  %v207 = vsel %vm154, 0, %v206
  %208 = vst [vmem:[%s53 + $0x138] sm:$0x1] %v207
  %v209 = vld [vmem:[%s53 + $0x148] sm:$0x1]
  %v210 = vsel %vm154, 0, %v209
  %211 = vst [vmem:[%s53 + $0x148] sm:$0x1] %v210
  %v212 = vld [vmem:[%s53 + $0x158] sm:$0x1]
  %v213 = vsel %vm154, 0, %v212
  %214 = vst [vmem:[%s53 + $0x158] sm:$0x1] %v213
  %v215 = vld [vmem:[%s53 + $0x168] sm:$0x1]
  %v216 = vsel %vm154, 0, %v215
  %217 = vst [vmem:[%s53 + $0x168] sm:$0x1] %v216
  %v218 = vld [vmem:[%s53 + $0x178] sm:$0x1]
  %v219 = vsel %vm154, 0, %v218
  %220 = vst [vmem:[%s53 + $0x178] sm:$0x1] %v219
  %v221 = vld [vmem:[%s53 + $0x188] sm:$0x1]
  %v222 = vsel %vm154, 0, %v221
  %223 = vst [vmem:[%s53 + $0x188] sm:$0x1] %v222
  %v224 = vld [vmem:[%s53 + $0x198] sm:$0x1]
  %v225 = vsel %vm154, 0, %v224
  %226 = vst [vmem:[%s53 + $0x198] sm:$0x1] %v225
  %v227 = vld [vmem:[%s53 + $0x1a8] sm:$0x1]
  %v228 = vsel %vm154, 0, %v227
  %229 = vst [vmem:[%s53 + $0x1a8] sm:$0x1] %v228
  %v230 = vld [vmem:[%s53 + $0x1b8] sm:$0x1]
  %v231 = vsel %vm154, 0, %v230
  %232 = vst [vmem:[%s53 + $0x1b8] sm:$0x1] %v231
  %v233 = vld [vmem:[%s53 + $0x1c8] sm:$0x1]
  %v234 = vsel %vm154, 0, %v233
  %235 = vst [vmem:[%s53 + $0x1c8] sm:$0x1] %v234
  %v236 = vld [vmem:[%s53 + $0x1d8] sm:$0x1]
  %v237 = vsel %vm154, 0, %v236
  %238 = vst [vmem:[%s53 + $0x1d8] sm:$0x1] %v237
  %v239 = vld [vmem:[%s53 + $0x1e8] sm:$0x1]
  %v240 = vsel %vm154, 0, %v239
  %241 = vst [vmem:[%s53 + $0x1e8] sm:$0x1] %v240
  %v242 = vld [vmem:[%s53 + $0x1f8] sm:$0x1]
  %v243 = vsel %vm154, 0, %v242
  %244 = vst [vmem:[%s53 + $0x1f8] sm:$0x1] %v243
  %v245 = vld [vmem:[%s53 + $0x208] sm:$0x1]
  %v246 = vsel %vm154, 0, %v245
  %247 = vst [vmem:[%s53 + $0x208] sm:$0x1] %v246
  %v248 = vld [vmem:[%s53 + $0x218] sm:$0x1]
  %v249 = vsel %vm154, 0, %v248
  %250 = vst [vmem:[%s53 + $0x218] sm:$0x1] %v249
  %v251 = vld [vmem:[%s0] sm:$0xff]
  %v252 = vld [vmem:[%s0 + $0x8] sm:$0xff]
  %v253 = vld [vmem:[%s0 + $0x10] sm:$0xff]
  %v254 = vld [vmem:[%s0 + $0x18] sm:$0xff]
  %v255 = vld [vmem:[%s0 + $0x20] sm:$0xff]
  %v256 = vld [vmem:[%s0 + $0x28] sm:$0xff]
  %v257 = vld [vmem:[%s0 + $0x30] sm:$0xff]
  %v258 = vld [vmem:[%s0 + $0x38] sm:$0xff]
  %v259 = vld [vmem:[%s0 + $0x40] sm:$0xff]
  %v260 = vld [vmem:[%s0 + $0x48] sm:$0xff]
  %v261 = vld [vmem:[%s0 + $0x50] sm:$0xff]
  %v262 = vld [vmem:[%s0 + $0x58] sm:$0xff]
  %v263 = vld [vmem:[%s0 + $0x60] sm:$0xff]
  %v264 = vld [vmem:[%s0 + $0x68] sm:$0xff]
  %v265 = vld [vmem:[%s0 + $0x70] sm:$0xff]
  %v266 = vld [vmem:[%s0 + $0x78] sm:$0xff]
  %v267 = vld [vmem:[%s0 + $0x80] sm:$0xff]
  %v268 = vld [vmem:[%s0 + $0x88] sm:$0xff]
  %v269 = vld [vmem:[%s0 + $0x90] sm:$0xff]
  %v270 = vld [vmem:[%s0 + $0x98] sm:$0xff]
  %v271 = vld [vmem:[%s0 + $0xa0] sm:$0xff]
  %v272 = vld [vmem:[%s0 + $0xa8] sm:$0xff]
  %v273 = vld [vmem:[%s0 + $0xb0] sm:$0xff]
  %v274 = vld [vmem:[%s0 + $0xb8] sm:$0xff]
  %v275 = vld [vmem:[%s0 + $0xc0] sm:$0xff]
  %v276 = vld [vmem:[%s0 + $0xc8] sm:$0xff]
  %v277 = vld [vmem:[%s0 + $0xd0] sm:$0xff]
  %v278 = vld [vmem:[%s0 + $0xd8] sm:$0xff]
  %v279 = vld [vmem:[%s0 + $0xe0] sm:$0xff]
  %v280 = vld [vmem:[%s0 + $0xe8] sm:$0xff]
  %v281 = vld [vmem:[%s0 + $0xf0] sm:$0xff]
  %v282 = vld [vmem:[%s0 + $0xf8] sm:$0xff]
  %v283 = vld [vmem:[%s0 + $0x100] sm:$0xff]
  %v284 = vld [vmem:[%s0 + $0x108] sm:$0xff]
  %v285 = vld [vmem:[%s0 + $0x110] sm:$0xff]
  %v286 = vld [vmem:[%s0 + $0x118] sm:$0xff]
  %v287 = vld [vmem:[%s0 + $0x120] sm:$0xff]
  %v288 = vld [vmem:[%s0 + $0x128] sm:$0xff]
  %v289 = vld [vmem:[%s0 + $0x130] sm:$0xff]
  %v290 = vld [vmem:[%s0 + $0x138] sm:$0xff]
  %v291 = vld [vmem:[%s0 + $0x140] sm:$0xff]
  %v292 = vld [vmem:[%s0 + $0x148] sm:$0xff]
  %v293 = vld [vmem:[%s0 + $0x150] sm:$0xff]
  %v294 = vld [vmem:[%s0 + $0x158] sm:$0xff]
  %v295 = vld [vmem:[%s0 + $0x160] sm:$0xff]
  %v296 = vld [vmem:[%s0 + $0x168] sm:$0xff]
  %v297 = vld [vmem:[%s0 + $0x170] sm:$0xff]
  %v298 = vld [vmem:[%s0 + $0x178] sm:$0xff]
  %v299 = vld [vmem:[%s0 + $0x180] sm:$0xff]
  %v300 = vld [vmem:[%s0 + $0x188] sm:$0xff]
  %v301 = vld [vmem:[%s0 + $0x190] sm:$0xff]
  %v302 = vld [vmem:[%s0 + $0x198] sm:$0xff]
  %v303 = vld [vmem:[%s0 + $0x1a0] sm:$0xff]
  %v304 = vld [vmem:[%s0 + $0x1a8] sm:$0xff]
  %v305 = vld [vmem:[%s0 + $0x1b0] sm:$0xff]
  %v306 = vld [vmem:[%s0 + $0x1b8] sm:$0xff]
  %v307 = vld [vmem:[%s0 + $0x1c0] sm:$0xff]
  %v308 = vld [vmem:[%s0 + $0x1c8] sm:$0xff]
  %v309 = vld [vmem:[%s0 + $0x1d0] sm:$0xff]
  %v310 = vld [vmem:[%s0 + $0x1d8] sm:$0xff]
  %v311 = vld [vmem:[%s0 + $0x1e0] sm:$0xff]
  %v312 = vld [vmem:[%s0 + $0x1e8] sm:$0xff]
  %v313 = vld [vmem:[%s0 + $0x1f0] sm:$0xff]
  %v314 = vld [vmem:[%s0 + $0x1f8] sm:$0xff]
  %v315 = vpack.c.bf16 %v251, %v251
  %v316 = vpack.c.bf16 %v252, %v252
  %v317 = vpack.c.bf16 %v253, %v253
  %v318 = vpack.c.bf16 %v254, %v254
  %v319 = vpack.c.bf16 %v255, %v255
  %v320 = vpack.c.bf16 %v256, %v256
  %v321 = vpack.c.bf16 %v257, %v257
  %v322 = vpack.c.bf16 %v258, %v258
  %v323 = vpack.c.bf16 %v259, %v259
  %v324 = vpack.c.bf16 %v260, %v260
  %v325 = vpack.c.bf16 %v261, %v261
  %v326 = vpack.c.bf16 %v262, %v262
  %v327 = vpack.c.bf16 %v263, %v263
  %v328 = vpack.c.bf16 %v264, %v264
  %v329 = vpack.c.bf16 %v265, %v265
  %v330 = vpack.c.bf16 %v266, %v266
  %v331 = vpack.c.bf16 %v267, %v267
  %v332 = vpack.c.bf16 %v268, %v268
  %v333 = vpack.c.bf16 %v269, %v269
  %v334 = vpack.c.bf16 %v270, %v270
  %v335 = vpack.c.bf16 %v271, %v271
  %v336 = vpack.c.bf16 %v272, %v272
  %v337 = vpack.c.bf16 %v273, %v273
  %v338 = vpack.c.bf16 %v274, %v274
  %v339 = vpack.c.bf16 %v275, %v275
  %v340 = vpack.c.bf16 %v276, %v276
  %v341 = vpack.c.bf16 %v277, %v277
  %v342 = vpack.c.bf16 %v278, %v278
  %v343 = vpack.c.bf16 %v279, %v279
  %v344 = vpack.c.bf16 %v280, %v280
  %v345 = vpack.c.bf16 %v281, %v281
  %v346 = vpack.c.bf16 %v282, %v282
  %v347 = vpack.c.bf16 %v283, %v283
  %v348 = vpack.c.bf16 %v284, %v284
  %v349 = vpack.c.bf16 %v285, %v285
  %v350 = vpack.c.bf16 %v286, %v286
  %v351 = vpack.c.bf16 %v287, %v287
  %v352 = vpack.c.bf16 %v288, %v288
  %v353 = vpack.c.bf16 %v289, %v289
  %v354 = vpack.c.bf16 %v290, %v290
  %v355 = vpack.c.bf16 %v291, %v291
  %v356 = vpack.c.bf16 %v292, %v292
  %v357 = vpack.c.bf16 %v293, %v293
  %v358 = vpack.c.bf16 %v294, %v294
  %v359 = vpack.c.bf16 %v295, %v295
  %v360 = vpack.c.bf16 %v296, %v296
  %v361 = vpack.c.bf16 %v297, %v297
  %v362 = vpack.c.bf16 %v298, %v298
  %v363 = vpack.c.bf16 %v299, %v299
  %v364 = vpack.c.bf16 %v300, %v300
  %v365 = vpack.c.bf16 %v301, %v301
  %v366 = vpack.c.bf16 %v302, %v302
  %v367 = vpack.c.bf16 %v303, %v303
  %v368 = vpack.c.bf16 %v304, %v304
  %v369 = vpack.c.bf16 %v305, %v305
  %v370 = vpack.c.bf16 %v306, %v306
  %v371 = vpack.c.bf16 %v307, %v307
  %v372 = vpack.c.bf16 %v308, %v308
  %v373 = vpack.c.bf16 %v309, %v309
  %v374 = vpack.c.bf16 %v310, %v310
  %v375 = vpack.c.bf16 %v311, %v311
  %v376 = vpack.c.bf16 %v312, %v312
  %v377 = vpack.c.bf16 %v313, %v313
  %v378 = vpack.c.bf16 %v314, %v314
  %vm379 = vsmask.f32 4368
  %vm380 = vmor %vm55, %vm379
  %v382 = vshrl.u32 %v315, 16
  %v384 = vrot.slane %v382, 7
  %v385 = vshll.u32 %v315, 16
  %v387 = vor.u32 %v384, %v385
  %v388 = vrot.slane %v384, 4
  %v390 = vshrl.u32 %v316, 16
  %v392 = vrot.slane %v390, 7
  %v393 = vshll.u32 %v316, 16
  %v395 = vor.u32 %v392, %v393
  %v396 = vsel %vm380, %v388, %v395
  %v397 = vrot.slane %v392, 4
  %v399 = vshrl.u32 %v317, 16
  %v401 = vrot.slane %v399, 7
  %v402 = vshll.u32 %v317, 16
  %v404 = vor.u32 %v401, %v402
  %v405 = vrot.slane %v401, 4
  %v407 = vshrl.u32 %v318, 16
  %v409 = vrot.slane %v407, 7
  %v410 = vshll.u32 %v318, 16
  %v412 = vor.u32 %v409, %v410
  %v413 = vsel %vm380, %v405, %v412
  %v414 = vrot.slane %v409, 4
  %v416 = vshrl.u32 %v319, 16
  %v418 = vrot.slane %v416, 7
  %v419 = vshll.u32 %v319, 16
  %v421 = vor.u32 %v418, %v419
  %v422 = vrot.slane %v418, 4
  %v424 = vshrl.u32 %v320, 16
  %v426 = vrot.slane %v424, 7
  %v427 = vshll.u32 %v320, 16
  %v429 = vor.u32 %v426, %v427
  %v430 = vsel %vm380, %v422, %v429
  %v431 = vrot.slane %v426, 4
  %v433 = vshrl.u32 %v321, 16
  %v435 = vrot.slane %v433, 7
  %v436 = vshll.u32 %v321, 16
  %v438 = vor.u32 %v435, %v436
  %v439 = vrot.slane %v435, 4
  %v441 = vshrl.u32 %v322, 16
  %v443 = vrot.slane %v441, 7
  %v444 = vshll.u32 %v322, 16
  %v446 = vor.u32 %v443, %v444
  %v447 = vsel %vm380, %v439, %v446
  %v448 = vrot.slane %v443, 4
  %v450 = vshrl.u32 %v323, 16
  %v452 = vrot.slane %v450, 7
  %v453 = vshll.u32 %v323, 16
  %v455 = vor.u32 %v452, %v453
  %v456 = vrot.slane %v452, 4
  %v458 = vshrl.u32 %v324, 16
  %v460 = vrot.slane %v458, 7
  %v461 = vshll.u32 %v324, 16
  %v463 = vor.u32 %v460, %v461
  %v464 = vsel %vm380, %v456, %v463
  %v465 = vrot.slane %v460, 4
  %v467 = vshrl.u32 %v325, 16
  %v469 = vrot.slane %v467, 7
  %v470 = vshll.u32 %v325, 16
  %v472 = vor.u32 %v469, %v470
  %v473 = vrot.slane %v469, 4
  %v475 = vshrl.u32 %v326, 16
  %v477 = vrot.slane %v475, 7
  %v478 = vshll.u32 %v326, 16
  %v480 = vor.u32 %v477, %v478
  %v481 = vsel %vm380, %v473, %v480
  %v482 = vrot.slane %v477, 4
  %v484 = vshrl.u32 %v327, 16
  %v486 = vrot.slane %v484, 7
  %v487 = vshll.u32 %v327, 16
  %v489 = vor.u32 %v486, %v487
  %v490 = vrot.slane %v486, 4
  %v492 = vshrl.u32 %v328, 16
  %v494 = vrot.slane %v492, 7
  %v495 = vshll.u32 %v328, 16
  %v497 = vor.u32 %v494, %v495
  %v498 = vsel %vm380, %v490, %v497
  %v499 = vrot.slane %v494, 4
  %v501 = vshrl.u32 %v329, 16
  %v503 = vrot.slane %v501, 7
  %v504 = vshll.u32 %v329, 16
  %v506 = vor.u32 %v503, %v504
  %v507 = vrot.slane %v503, 4
  %v509 = vshrl.u32 %v330, 16
  %v511 = vrot.slane %v509, 7
  %v512 = vshll.u32 %v330, 16
  %v514 = vor.u32 %v511, %v512
  %v515 = vsel %vm380, %v507, %v514
  %v516 = vrot.slane %v511, 4
  %v518 = vshrl.u32 %v331, 16
  %v520 = vrot.slane %v518, 7
  %v521 = vshll.u32 %v331, 16
  %v523 = vor.u32 %v520, %v521
  %v524 = vrot.slane %v520, 4
  %v526 = vshrl.u32 %v332, 16
  %v528 = vrot.slane %v526, 7
  %v529 = vshll.u32 %v332, 16
  %v531 = vor.u32 %v528, %v529
  %v532 = vsel %vm380, %v524, %v531
  %v533 = vrot.slane %v528, 4
  %v535 = vshrl.u32 %v333, 16
  %v537 = vrot.slane %v535, 7
  %v538 = vshll.u32 %v333, 16
  %v540 = vor.u32 %v537, %v538
  %v541 = vrot.slane %v537, 4
  %v543 = vshrl.u32 %v334, 16
  %v545 = vrot.slane %v543, 7
  %v546 = vshll.u32 %v334, 16
  %v548 = vor.u32 %v545, %v546
  %v549 = vsel %vm380, %v541, %v548
  %v550 = vrot.slane %v545, 4
  %v552 = vshrl.u32 %v335, 16
  %v554 = vrot.slane %v552, 7
  %v555 = vshll.u32 %v335, 16
  %v557 = vor.u32 %v554, %v555
  %v558 = vrot.slane %v554, 4
  %v560 = vshrl.u32 %v336, 16
  %v562 = vrot.slane %v560, 7
  %v563 = vshll.u32 %v336, 16
  %v565 = vor.u32 %v562, %v563
  %v566 = vsel %vm380, %v558, %v565
  %v567 = vrot.slane %v562, 4
  %v569 = vshrl.u32 %v337, 16
  %v571 = vrot.slane %v569, 7
  %v572 = vshll.u32 %v337, 16
  %v574 = vor.u32 %v571, %v572
  %v575 = vrot.slane %v571, 4
  %v577 = vshrl.u32 %v338, 16
  %v579 = vrot.slane %v577, 7
  %v580 = vshll.u32 %v338, 16
  %v582 = vor.u32 %v579, %v580
  %v583 = vsel %vm380, %v575, %v582
  %v584 = vrot.slane %v579, 4
  %v586 = vshrl.u32 %v339, 16
  %v588 = vrot.slane %v586, 7
  %v589 = vshll.u32 %v339, 16
  %v591 = vor.u32 %v588, %v589
  %v592 = vrot.slane %v588, 4
  %v594 = vshrl.u32 %v340, 16
  %v596 = vrot.slane %v594, 7
  %v597 = vshll.u32 %v340, 16
  %v599 = vor.u32 %v596, %v597
  %v600 = vsel %vm380, %v592, %v599
  %v601 = vrot.slane %v596, 4
  %v603 = vshrl.u32 %v341, 16
  %v605 = vrot.slane %v603, 7
  %v606 = vshll.u32 %v341, 16
  %v608 = vor.u32 %v605, %v606
  %v609 = vrot.slane %v605, 4
  %v611 = vshrl.u32 %v342, 16
  %v613 = vrot.slane %v611, 7
  %v614 = vshll.u32 %v342, 16
  %v616 = vor.u32 %v613, %v614
  %v617 = vsel %vm380, %v609, %v616
  %v618 = vrot.slane %v613, 4
  %v620 = vshrl.u32 %v343, 16
  %v622 = vrot.slane %v620, 7
  %v623 = vshll.u32 %v343, 16
  %v625 = vor.u32 %v622, %v623
  %v626 = vrot.slane %v622, 4
  %v628 = vshrl.u32 %v344, 16
  %v630 = vrot.slane %v628, 7
  %v631 = vshll.u32 %v344, 16
  %v633 = vor.u32 %v630, %v631
  %v634 = vsel %vm380, %v626, %v633
  %v635 = vrot.slane %v630, 4
  %v637 = vshrl.u32 %v345, 16
  %v639 = vrot.slane %v637, 7
  %v640 = vshll.u32 %v345, 16
  %v642 = vor.u32 %v639, %v640
  %v643 = vrot.slane %v639, 4
  %v645 = vshrl.u32 %v346, 16
  %v647 = vrot.slane %v645, 7
  %v648 = vshll.u32 %v346, 16
  %v650 = vor.u32 %v647, %v648
  %v651 = vsel %vm380, %v643, %v650
  %v652 = vrot.slane %v647, 4
  %v654 = vshrl.u32 %v347, 16
  %v656 = vrot.slane %v654, 7
  %v657 = vshll.u32 %v347, 16
  %v659 = vor.u32 %v656, %v657
  %v660 = vrot.slane %v656, 4
  %v662 = vshrl.u32 %v348, 16
  %v664 = vrot.slane %v662, 7
  %v665 = vshll.u32 %v348, 16
  %v667 = vor.u32 %v664, %v665
  %v668 = vsel %vm380, %v660, %v667
  %v669 = vrot.slane %v664, 4
  %v671 = vshrl.u32 %v349, 16
  %v673 = vrot.slane %v671, 7
  %v674 = vshll.u32 %v349, 16
  %v676 = vor.u32 %v673, %v674
  %v677 = vrot.slane %v673, 4
  %v679 = vshrl.u32 %v350, 16
  %v681 = vrot.slane %v679, 7
  %v682 = vshll.u32 %v350, 16
  %v684 = vor.u32 %v681, %v682
  %v685 = vsel %vm380, %v677, %v684
  %v686 = vrot.slane %v681, 4
  %v688 = vshrl.u32 %v351, 16
  %v690 = vrot.slane %v688, 7
  %v691 = vshll.u32 %v351, 16
  %v693 = vor.u32 %v690, %v691
  %v694 = vrot.slane %v690, 4
  %v696 = vshrl.u32 %v352, 16
  %v698 = vrot.slane %v696, 7
  %v699 = vshll.u32 %v352, 16
  %v701 = vor.u32 %v698, %v699
  %v702 = vsel %vm380, %v694, %v701
  %v703 = vrot.slane %v698, 4
  %v705 = vshrl.u32 %v353, 16
  %v707 = vrot.slane %v705, 7
  %v708 = vshll.u32 %v353, 16
  %v710 = vor.u32 %v707, %v708
  %v711 = vrot.slane %v707, 4
  %v713 = vshrl.u32 %v354, 16
  %v715 = vrot.slane %v713, 7
  %v716 = vshll.u32 %v354, 16
  %v718 = vor.u32 %v715, %v716
  %v719 = vsel %vm380, %v711, %v718
  %v720 = vrot.slane %v715, 4
  %v722 = vshrl.u32 %v355, 16
  %v724 = vrot.slane %v722, 7
  %v725 = vshll.u32 %v355, 16
  %v727 = vor.u32 %v724, %v725
  %v728 = vrot.slane %v724, 4
  %v730 = vshrl.u32 %v356, 16
  %v732 = vrot.slane %v730, 7
  %v733 = vshll.u32 %v356, 16
  %v735 = vor.u32 %v732, %v733
  %v736 = vsel %vm380, %v728, %v735
  %v737 = vrot.slane %v732, 4
  %v739 = vshrl.u32 %v357, 16
  %v741 = vrot.slane %v739, 7
  %v742 = vshll.u32 %v357, 16
  %v744 = vor.u32 %v741, %v742
  %v745 = vrot.slane %v741, 4
  %v747 = vshrl.u32 %v358, 16
  %v749 = vrot.slane %v747, 7
  %v750 = vshll.u32 %v358, 16
  %v752 = vor.u32 %v749, %v750
  %v753 = vsel %vm380, %v745, %v752
  %v754 = vrot.slane %v749, 4
  %v756 = vshrl.u32 %v359, 16
  %v758 = vrot.slane %v756, 7
  %v759 = vshll.u32 %v359, 16
  %v761 = vor.u32 %v758, %v759
  %v762 = vrot.slane %v758, 4
  %v764 = vshrl.u32 %v360, 16
  %v766 = vrot.slane %v764, 7
  %v767 = vshll.u32 %v360, 16
  %v769 = vor.u32 %v766, %v767
  %v770 = vsel %vm380, %v762, %v769
  %v771 = vrot.slane %v766, 4
  %v773 = vshrl.u32 %v361, 16
  %v775 = vrot.slane %v773, 7
  %v776 = vshll.u32 %v361, 16
  %v778 = vor.u32 %v775, %v776
  %v779 = vrot.slane %v775, 4
  %v781 = vshrl.u32 %v362, 16
  %v783 = vrot.slane %v781, 7
  %v784 = vshll.u32 %v362, 16
  %v786 = vor.u32 %v783, %v784
  %v787 = vsel %vm380, %v779, %v786
  %v788 = vrot.slane %v783, 4
  %v790 = vshrl.u32 %v363, 16
  %v792 = vrot.slane %v790, 7
  %v793 = vshll.u32 %v363, 16
  %v795 = vor.u32 %v792, %v793
  %v796 = vrot.slane %v792, 4
  %v798 = vshrl.u32 %v364, 16
  %v800 = vrot.slane %v798, 7
  %v801 = vshll.u32 %v364, 16
  %v803 = vor.u32 %v800, %v801
  %v804 = vsel %vm380, %v796, %v803
  %v805 = vrot.slane %v800, 4
  %v807 = vshrl.u32 %v365, 16
  %v809 = vrot.slane %v807, 7
  %v810 = vshll.u32 %v365, 16
  %v812 = vor.u32 %v809, %v810
  %v813 = vrot.slane %v809, 4
  %v815 = vshrl.u32 %v366, 16
  %v817 = vrot.slane %v815, 7
  %v818 = vshll.u32 %v366, 16
  %v820 = vor.u32 %v817, %v818
  %v821 = vsel %vm380, %v813, %v820
  %v822 = vrot.slane %v817, 4
  %v824 = vshrl.u32 %v367, 16
  %v826 = vrot.slane %v824, 7
  %v827 = vshll.u32 %v367, 16
  %v829 = vor.u32 %v826, %v827
  %v830 = vrot.slane %v826, 4
  %v832 = vshrl.u32 %v368, 16
  %v834 = vrot.slane %v832, 7
  %v835 = vshll.u32 %v368, 16
  %v837 = vor.u32 %v834, %v835
  %v838 = vsel %vm380, %v830, %v837
  %v839 = vrot.slane %v834, 4
  %v841 = vshrl.u32 %v369, 16
  %v843 = vrot.slane %v841, 7
  %v844 = vshll.u32 %v369, 16
  %v846 = vor.u32 %v843, %v844
  %v847 = vrot.slane %v843, 4
  %v849 = vshrl.u32 %v370, 16
  %v851 = vrot.slane %v849, 7
  %v852 = vshll.u32 %v370, 16
  %v854 = vor.u32 %v851, %v852
  %v855 = vsel %vm380, %v847, %v854
  %v856 = vrot.slane %v851, 4
  %v858 = vshrl.u32 %v371, 16
  %v860 = vrot.slane %v858, 7
  %v861 = vshll.u32 %v371, 16
  %v863 = vor.u32 %v860, %v861
  %v864 = vrot.slane %v860, 4
  %v866 = vshrl.u32 %v372, 16
  %v868 = vrot.slane %v866, 7
  %v869 = vshll.u32 %v372, 16
  %v871 = vor.u32 %v868, %v869
  %v872 = vsel %vm380, %v864, %v871
  %v873 = vrot.slane %v868, 4
  %v875 = vshrl.u32 %v373, 16
  %v877 = vrot.slane %v875, 7
  %v878 = vshll.u32 %v373, 16
  %v880 = vor.u32 %v877, %v878
  %v881 = vrot.slane %v877, 4
  %v883 = vshrl.u32 %v374, 16
  %v885 = vrot.slane %v883, 7
  %v886 = vshll.u32 %v374, 16
  %v888 = vor.u32 %v885, %v886
  %v889 = vsel %vm380, %v881, %v888
  %v890 = vrot.slane %v885, 4
  %v892 = vshrl.u32 %v375, 16
  %v894 = vrot.slane %v892, 7
  %v895 = vshll.u32 %v375, 16
  %v897 = vor.u32 %v894, %v895
  %v898 = vrot.slane %v894, 4
  %v900 = vshrl.u32 %v376, 16
  %v902 = vrot.slane %v900, 7
  %v903 = vshll.u32 %v376, 16
  %v905 = vor.u32 %v902, %v903
  %v906 = vsel %vm380, %v898, %v905
  %v907 = vrot.slane %v902, 4
  %v909 = vshrl.u32 %v377, 16
  %v911 = vrot.slane %v909, 7
  %v912 = vshll.u32 %v377, 16
  %v914 = vor.u32 %v911, %v912
  %v915 = vrot.slane %v911, 4
  %v917 = vshrl.u32 %v378, 16
  %v919 = vrot.slane %v917, 7
  %v920 = vshll.u32 %v378, 16
  %v922 = vor.u32 %v919, %v920
  %v923 = vsel %vm380, %v915, %v922
  %v924 = vrot.slane %v919, 4
  %vm1021 = vcmask 27648
  %vm1022 = vmand %vm1021, %vm153
  %v1023 = vld [vmem:[%s53] sm:$0xf]
  %v1024 = vsel %vm1022, %v387, %v1023
  %1025 = vst [vmem:[%s53] sm:$0xf] %v1024
  %vm1026 = vcmask 27648
  %1027 = vst.msk [vmem:[%s53 + $0x4] sm:$0xf] %vm1026, %v396
  %vm1028 = vcmask 24576
  %vm1029 = vmand %vm1028, %vm55
  %v1030 = vld [vmem:[%s53 + $0x8] sm:$0x1]
  %v1031 = vsel %vm1029, %v397, %v1030
  %1032 = vst [vmem:[%s53 + $0x8] sm:$0x1] %v1031
  %v1033 = vld [vmem:[%s53 + $0x10] sm:$0xf]
  %v1034 = vsel %vm1022, %v404, %v1033
  %1035 = vst [vmem:[%s53 + $0x10] sm:$0xf] %v1034
  %1036 = vst.msk [vmem:[%s53 + $0x14] sm:$0xf] %vm1026, %v413
  %v1037 = vld [vmem:[%s53 + $0x18] sm:$0x1]
  %v1038 = vsel %vm1029, %v414, %v1037
  %1039 = vst [vmem:[%s53 + $0x18] sm:$0x1] %v1038
  %v1040 = vld [vmem:[%s53 + $0x20] sm:$0xf]
  %v1041 = vsel %vm1022, %v421, %v1040
  %1042 = vst [vmem:[%s53 + $0x20] sm:$0xf] %v1041
  %1043 = vst.msk [vmem:[%s53 + $0x24] sm:$0xf] %vm1026, %v430
  %v1044 = vld [vmem:[%s53 + $0x28] sm:$0x1]
  %v1045 = vsel %vm1029, %v431, %v1044
  %1046 = vst [vmem:[%s53 + $0x28] sm:$0x1] %v1045
  %v1047 = vld [vmem:[%s53 + $0x30] sm:$0xf]
  %v1048 = vsel %vm1022, %v438, %v1047
  %1049 = vst [vmem:[%s53 + $0x30] sm:$0xf] %v1048
  %1050 = vst.msk [vmem:[%s53 + $0x34] sm:$0xf] %vm1026, %v447
  %v1051 = vld [vmem:[%s53 + $0x38] sm:$0x1]
  %v1052 = vsel %vm1029, %v448, %v1051
  %1053 = vst [vmem:[%s53 + $0x38] sm:$0x1] %v1052
  %v1054 = vld [vmem:[%s53 + $0x40] sm:$0xf]
  %v1055 = vsel %vm1022, %v455, %v1054
  %1056 = vst [vmem:[%s53 + $0x40] sm:$0xf] %v1055
  %1057 = vst.msk [vmem:[%s53 + $0x44] sm:$0xf] %vm1026, %v464
  %v1058 = vld [vmem:[%s53 + $0x48] sm:$0x1]
  %v1059 = vsel %vm1029, %v465, %v1058
  %1060 = vst [vmem:[%s53 + $0x48] sm:$0x1] %v1059
  %v1061 = vld [vmem:[%s53 + $0x50] sm:$0xf]
  %v1062 = vsel %vm1022, %v472, %v1061
  %1063 = vst [vmem:[%s53 + $0x50] sm:$0xf] %v1062
  %1064 = vst.msk [vmem:[%s53 + $0x54] sm:$0xf] %vm1026, %v481
  %v1065 = vld [vmem:[%s53 + $0x58] sm:$0x1]
  %v1066 = vsel %vm1029, %v482, %v1065
  %1067 = vst [vmem:[%s53 + $0x58] sm:$0x1] %v1066
  %v1068 = vld [vmem:[%s53 + $0x60] sm:$0xf]
  %v1069 = vsel %vm1022, %v489, %v1068
  %1070 = vst [vmem:[%s53 + $0x60] sm:$0xf] %v1069
  %1071 = vst.msk [vmem:[%s53 + $0x64] sm:$0xf] %vm1026, %v498
  %v1072 = vld [vmem:[%s53 + $0x68] sm:$0x1]
  %v1073 = vsel %vm1029, %v499, %v1072
  %1074 = vst [vmem:[%s53 + $0x68] sm:$0x1] %v1073
  %v1075 = vld [vmem:[%s53 + $0x70] sm:$0xf]
  %v1076 = vsel %vm1022, %v506, %v1075
  %1077 = vst [vmem:[%s53 + $0x70] sm:$0xf] %v1076
  %1078 = vst.msk [vmem:[%s53 + $0x74] sm:$0xf] %vm1026, %v515
  %v1079 = vld [vmem:[%s53 + $0x78] sm:$0x1]
  %v1080 = vsel %vm1029, %v516, %v1079
  %1081 = vst [vmem:[%s53 + $0x78] sm:$0x1] %v1080
  %v1082 = vld [vmem:[%s53 + $0x80] sm:$0xf]
  %v1083 = vsel %vm1022, %v523, %v1082
  %1084 = vst [vmem:[%s53 + $0x80] sm:$0xf] %v1083
  %1085 = vst.msk [vmem:[%s53 + $0x84] sm:$0xf] %vm1026, %v532
  %v1086 = vld [vmem:[%s53 + $0x88] sm:$0x1]
  %v1087 = vsel %vm1029, %v533, %v1086
  %1088 = vst [vmem:[%s53 + $0x88] sm:$0x1] %v1087
  %v1089 = vld [vmem:[%s53 + $0x90] sm:$0xf]
  %v1090 = vsel %vm1022, %v540, %v1089
  %1091 = vst [vmem:[%s53 + $0x90] sm:$0xf] %v1090
  %1092 = vst.msk [vmem:[%s53 + $0x94] sm:$0xf] %vm1026, %v549
  %v1093 = vld [vmem:[%s53 + $0x98] sm:$0x1]
  %v1094 = vsel %vm1029, %v550, %v1093
  %1095 = vst [vmem:[%s53 + $0x98] sm:$0x1] %v1094
  %v1096 = vld [vmem:[%s53 + $0xa0] sm:$0xf]
  %v1097 = vsel %vm1022, %v557, %v1096
  %1098 = vst [vmem:[%s53 + $0xa0] sm:$0xf] %v1097
  %1099 = vst.msk [vmem:[%s53 + $0xa4] sm:$0xf] %vm1026, %v566
  %v1100 = vld [vmem:[%s53 + $0xa8] sm:$0x1]
  %v1101 = vsel %vm1029, %v567, %v1100
  %1102 = vst [vmem:[%s53 + $0xa8] sm:$0x1] %v1101
  %v1103 = vld [vmem:[%s53 + $0xb0] sm:$0xf]
  %v1104 = vsel %vm1022, %v574, %v1103
  %1105 = vst [vmem:[%s53 + $0xb0] sm:$0xf] %v1104
  %1106 = vst.msk [vmem:[%s53 + $0xb4] sm:$0xf] %vm1026, %v583
  %v1107 = vld [vmem:[%s53 + $0xb8] sm:$0x1]
  %v1108 = vsel %vm1029, %v584, %v1107
  %1109 = vst [vmem:[%s53 + $0xb8] sm:$0x1] %v1108
  %v1110 = vld [vmem:[%s53 + $0xc0] sm:$0xf]
  %v1111 = vsel %vm1022, %v591, %v1110
  %1112 = vst [vmem:[%s53 + $0xc0] sm:$0xf] %v1111
  %1113 = vst.msk [vmem:[%s53 + $0xc4] sm:$0xf] %vm1026, %v600
  %v1114 = vld [vmem:[%s53 + $0xc8] sm:$0x1]
  %v1115 = vsel %vm1029, %v601, %v1114
  %1116 = vst [vmem:[%s53 + $0xc8] sm:$0x1] %v1115
  %v1117 = vld [vmem:[%s53 + $0xd0] sm:$0xf]
  %v1118 = vsel %vm1022, %v608, %v1117
  %1119 = vst [vmem:[%s53 + $0xd0] sm:$0xf] %v1118
  %1120 = vst.msk [vmem:[%s53 + $0xd4] sm:$0xf] %vm1026, %v617
  %v1121 = vld [vmem:[%s53 + $0xd8] sm:$0x1]
  %v1122 = vsel %vm1029, %v618, %v1121
  %1123 = vst [vmem:[%s53 + $0xd8] sm:$0x1] %v1122
  %v1124 = vld [vmem:[%s53 + $0xe0] sm:$0xf]
  %v1125 = vsel %vm1022, %v625, %v1124
  %1126 = vst [vmem:[%s53 + $0xe0] sm:$0xf] %v1125
  %1127 = vst.msk [vmem:[%s53 + $0xe4] sm:$0xf] %vm1026, %v634
  %v1128 = vld [vmem:[%s53 + $0xe8] sm:$0x1]
  %v1129 = vsel %vm1029, %v635, %v1128
  %1130 = vst [vmem:[%s53 + $0xe8] sm:$0x1] %v1129
  %v1131 = vld [vmem:[%s53 + $0xf0] sm:$0xf]
  %v1132 = vsel %vm1022, %v642, %v1131
  %1133 = vst [vmem:[%s53 + $0xf0] sm:$0xf] %v1132
  %1134 = vst.msk [vmem:[%s53 + $0xf4] sm:$0xf] %vm1026, %v651
  %v1135 = vld [vmem:[%s53 + $0xf8] sm:$0x1]
  %v1136 = vsel %vm1029, %v652, %v1135
  %1137 = vst [vmem:[%s53 + $0xf8] sm:$0x1] %v1136
  %v1138 = vld [vmem:[%s53 + $0x120] sm:$0xf]
  %v1139 = vsel %vm1022, %v659, %v1138
  %1140 = vst [vmem:[%s53 + $0x120] sm:$0xf] %v1139
  %1141 = vst.msk [vmem:[%s53 + $0x124] sm:$0xf] %vm1026, %v668
  %v1142 = vld [vmem:[%s53 + $0x128] sm:$0x1]
  %v1143 = vsel %vm1029, %v669, %v1142
  %1144 = vst [vmem:[%s53 + $0x128] sm:$0x1] %v1143
  %v1145 = vld [vmem:[%s53 + $0x130] sm:$0xf]
  %v1146 = vsel %vm1022, %v676, %v1145
  %1147 = vst [vmem:[%s53 + $0x130] sm:$0xf] %v1146
  %1148 = vst.msk [vmem:[%s53 + $0x134] sm:$0xf] %vm1026, %v685
  %v1149 = vld [vmem:[%s53 + $0x138] sm:$0x1]
  %v1150 = vsel %vm1029, %v686, %v1149
  %1151 = vst [vmem:[%s53 + $0x138] sm:$0x1] %v1150
  %v1152 = vld [vmem:[%s53 + $0x140] sm:$0xf]
  %v1153 = vsel %vm1022, %v693, %v1152
  %1154 = vst [vmem:[%s53 + $0x140] sm:$0xf] %v1153
  %1155 = vst.msk [vmem:[%s53 + $0x144] sm:$0xf] %vm1026, %v702
  %v1156 = vld [vmem:[%s53 + $0x148] sm:$0x1]
  %v1157 = vsel %vm1029, %v703, %v1156
  %1158 = vst [vmem:[%s53 + $0x148] sm:$0x1] %v1157
  %v1159 = vld [vmem:[%s53 + $0x150] sm:$0xf]
  %v1160 = vsel %vm1022, %v710, %v1159
  %1161 = vst [vmem:[%s53 + $0x150] sm:$0xf] %v1160
  %1162 = vst.msk [vmem:[%s53 + $0x154] sm:$0xf] %vm1026, %v719
  %v1163 = vld [vmem:[%s53 + $0x158] sm:$0x1]
  %v1164 = vsel %vm1029, %v720, %v1163
  %1165 = vst [vmem:[%s53 + $0x158] sm:$0x1] %v1164
  %v1166 = vld [vmem:[%s53 + $0x160] sm:$0xf]
  %v1167 = vsel %vm1022, %v727, %v1166
  %1168 = vst [vmem:[%s53 + $0x160] sm:$0xf] %v1167
  %1169 = vst.msk [vmem:[%s53 + $0x164] sm:$0xf] %vm1026, %v736
  %v1170 = vld [vmem:[%s53 + $0x168] sm:$0x1]
  %v1171 = vsel %vm1029, %v737, %v1170
  %1172 = vst [vmem:[%s53 + $0x168] sm:$0x1] %v1171
  %v1173 = vld [vmem:[%s53 + $0x170] sm:$0xf]
  %v1174 = vsel %vm1022, %v744, %v1173
  %1175 = vst [vmem:[%s53 + $0x170] sm:$0xf] %v1174
  %1176 = vst.msk [vmem:[%s53 + $0x174] sm:$0xf] %vm1026, %v753
  %v1177 = vld [vmem:[%s53 + $0x178] sm:$0x1]
  %v1178 = vsel %vm1029, %v754, %v1177
  %1179 = vst [vmem:[%s53 + $0x178] sm:$0x1] %v1178
  %v1180 = vld [vmem:[%s53 + $0x180] sm:$0xf]
  %v1181 = vsel %vm1022, %v761, %v1180
  %1182 = vst [vmem:[%s53 + $0x180] sm:$0xf] %v1181
  %1183 = vst.msk [vmem:[%s53 + $0x184] sm:$0xf] %vm1026, %v770
  %v1184 = vld [vmem:[%s53 + $0x188] sm:$0x1]
  %v1185 = vsel %vm1029, %v771, %v1184
  %1186 = vst [vmem:[%s53 + $0x188] sm:$0x1] %v1185
  %v1187 = vld [vmem:[%s53 + $0x190] sm:$0xf]
  %v1188 = vsel %vm1022, %v778, %v1187
  %1189 = vst [vmem:[%s53 + $0x190] sm:$0xf] %v1188
  %1190 = vst.msk [vmem:[%s53 + $0x194] sm:$0xf] %vm1026, %v787
  %v1191 = vld [vmem:[%s53 + $0x198] sm:$0x1]
  %v1192 = vsel %vm1029, %v788, %v1191
  %1193 = vst [vmem:[%s53 + $0x198] sm:$0x1] %v1192
  %v1194 = vld [vmem:[%s53 + $0x1a0] sm:$0xf]
  %v1195 = vsel %vm1022, %v795, %v1194
  %1196 = vst [vmem:[%s53 + $0x1a0] sm:$0xf] %v1195
  %1197 = vst.msk [vmem:[%s53 + $0x1a4] sm:$0xf] %vm1026, %v804
  %v1198 = vld [vmem:[%s53 + $0x1a8] sm:$0x1]
  %v1199 = vsel %vm1029, %v805, %v1198
  %1200 = vst [vmem:[%s53 + $0x1a8] sm:$0x1] %v1199
  %v1201 = vld [vmem:[%s53 + $0x1b0] sm:$0xf]
  %v1202 = vsel %vm1022, %v812, %v1201
  %1203 = vst [vmem:[%s53 + $0x1b0] sm:$0xf] %v1202
  %1204 = vst.msk [vmem:[%s53 + $0x1b4] sm:$0xf] %vm1026, %v821
  %v1205 = vld [vmem:[%s53 + $0x1b8] sm:$0x1]
  %v1206 = vsel %vm1029, %v822, %v1205
  %1207 = vst [vmem:[%s53 + $0x1b8] sm:$0x1] %v1206
  %v1208 = vld [vmem:[%s53 + $0x1c0] sm:$0xf]
  %v1209 = vsel %vm1022, %v829, %v1208
  %1210 = vst [vmem:[%s53 + $0x1c0] sm:$0xf] %v1209
  %1211 = vst.msk [vmem:[%s53 + $0x1c4] sm:$0xf] %vm1026, %v838
  %v1212 = vld [vmem:[%s53 + $0x1c8] sm:$0x1]
  %v1213 = vsel %vm1029, %v839, %v1212
  %1214 = vst [vmem:[%s53 + $0x1c8] sm:$0x1] %v1213
  %v1215 = vld [vmem:[%s53 + $0x1d0] sm:$0xf]
  %v1216 = vsel %vm1022, %v846, %v1215
  %1217 = vst [vmem:[%s53 + $0x1d0] sm:$0xf] %v1216
  %1218 = vst.msk [vmem:[%s53 + $0x1d4] sm:$0xf] %vm1026, %v855
  %v1219 = vld [vmem:[%s53 + $0x1d8] sm:$0x1]
  %v1220 = vsel %vm1029, %v856, %v1219
  %1221 = vst [vmem:[%s53 + $0x1d8] sm:$0x1] %v1220
  %v1222 = vld [vmem:[%s53 + $0x1e0] sm:$0xf]
  %v1223 = vsel %vm1022, %v863, %v1222
  %1224 = vst [vmem:[%s53 + $0x1e0] sm:$0xf] %v1223
  %1225 = vst.msk [vmem:[%s53 + $0x1e4] sm:$0xf] %vm1026, %v872
  %v1226 = vld [vmem:[%s53 + $0x1e8] sm:$0x1]
  %v1227 = vsel %vm1029, %v873, %v1226
  %1228 = vst [vmem:[%s53 + $0x1e8] sm:$0x1] %v1227
  %v1229 = vld [vmem:[%s53 + $0x1f0] sm:$0xf]
  %v1230 = vsel %vm1022, %v880, %v1229
  %1231 = vst [vmem:[%s53 + $0x1f0] sm:$0xf] %v1230
  %1232 = vst.msk [vmem:[%s53 + $0x1f4] sm:$0xf] %vm1026, %v889
  %v1233 = vld [vmem:[%s53 + $0x1f8] sm:$0x1]
  %v1234 = vsel %vm1029, %v890, %v1233
  %1235 = vst [vmem:[%s53 + $0x1f8] sm:$0x1] %v1234
  %v1236 = vld [vmem:[%s53 + $0x200] sm:$0xf]
  %v1237 = vsel %vm1022, %v897, %v1236
  %1238 = vst [vmem:[%s53 + $0x200] sm:$0xf] %v1237
  %1239 = vst.msk [vmem:[%s53 + $0x204] sm:$0xf] %vm1026, %v906
  %v1240 = vld [vmem:[%s53 + $0x208] sm:$0x1]
  %v1241 = vsel %vm1029, %v907, %v1240
  %1242 = vst [vmem:[%s53 + $0x208] sm:$0x1] %v1241
  %v1243 = vld [vmem:[%s53 + $0x210] sm:$0xf]
  %v1244 = vsel %vm1022, %v914, %v1243
  %1245 = vst [vmem:[%s53 + $0x210] sm:$0xf] %v1244
  %1246 = vst.msk [vmem:[%s53 + $0x214] sm:$0xf] %vm1026, %v923
  %v1247 = vld [vmem:[%s53 + $0x218] sm:$0x1]
  %v1248 = vsel %vm1029, %v924, %v1247
  %1249 = vst [vmem:[%s53 + $0x218] sm:$0x1] %v1248
  %v1250 = vld [vmem:[#allocation2] sm:$0xf]
  %v1251 = vld [vmem:[#allocation2 + $0x4] sm:$0xf]
  %v1252 = vld [vmem:[#allocation2 + $0x10] sm:$0xf]
  %v1253 = vld [vmem:[#allocation2 + $0x14] sm:$0xf]
  %v1254 = vld [vmem:[#allocation2 + $0x20] sm:$0xf]
  %v1255 = vld [vmem:[#allocation2 + $0x24] sm:$0xf]
  %v1256 = vld [vmem:[#allocation2 + $0x30] sm:$0xf]
  %v1257 = vld [vmem:[#allocation2 + $0x34] sm:$0xf]
  %v1258 = vld [vmem:[#allocation2 + $0x40] sm:$0xf]
  %v1259 = vld [vmem:[#allocation2 + $0x44] sm:$0xf]
  %v1260 = vld [vmem:[#allocation2 + $0x50] sm:$0xf]
  %v1261 = vld [vmem:[#allocation2 + $0x54] sm:$0xf]
  %v1262 = vld [vmem:[#allocation2 + $0x60] sm:$0xf]
  %v1263 = vld [vmem:[#allocation2 + $0x64] sm:$0xf]
  %v1264 = vld [vmem:[#allocation2 + $0x70] sm:$0xf]
  %v1265 = vld [vmem:[#allocation2 + $0x74] sm:$0xf]
  %v1266 = vld [vmem:[#allocation2 + $0x80] sm:$0xf]
  %v1267 = vld [vmem:[#allocation2 + $0x84] sm:$0xf]
  %v1268 = vld [vmem:[#allocation2 + $0x90] sm:$0xf]
  %v1269 = vld [vmem:[#allocation2 + $0x94] sm:$0xf]
  %v1270 = vld [vmem:[#allocation2 + $0xa0] sm:$0xf]
  %v1271 = vld [vmem:[#allocation2 + $0xa4] sm:$0xf]
  %v1272 = vld [vmem:[#allocation2 + $0xb0] sm:$0xf]
  %v1273 = vld [vmem:[#allocation2 + $0xb4] sm:$0xf]
  %v1274 = vld [vmem:[#allocation2 + $0xc0] sm:$0xf]
  %v1275 = vld [vmem:[#allocation2 + $0xc4] sm:$0xf]
  %v1276 = vld [vmem:[#allocation2 + $0xd0] sm:$0xf]
  %v1277 = vld [vmem:[#allocation2 + $0xd4] sm:$0xf]
  %v1278 = vld [vmem:[#allocation2 + $0xe0] sm:$0xf]
  %v1279 = vld [vmem:[#allocation2 + $0xe4] sm:$0xf]
  %v1280 = vld [vmem:[#allocation2 + $0xf0] sm:$0xf]
  %v1281 = vld [vmem:[#allocation2 + $0xf4] sm:$0xf]
  %v1282 = vld [vmem:[#allocation2 + $0x120] sm:$0xf]
  %v1283 = vld [vmem:[#allocation2 + $0x124] sm:$0xf]
  %v1284 = vld [vmem:[#allocation2 + $0x130] sm:$0xf]
  %v1285 = vld [vmem:[#allocation2 + $0x134] sm:$0xf]
  %v1286 = vld [vmem:[#allocation2 + $0x140] sm:$0xf]
  %v1287 = vld [vmem:[#allocation2 + $0x144] sm:$0xf]
  %v1288 = vld [vmem:[#allocation2 + $0x150] sm:$0xf]
  %v1289 = vld [vmem:[#allocation2 + $0x154] sm:$0xf]
  %v1290 = vld [vmem:[#allocation2 + $0x160] sm:$0xf]
  %v1291 = vld [vmem:[#allocation2 + $0x164] sm:$0xf]
  %v1292 = vld [vmem:[#allocation2 + $0x170] sm:$0xf]
  %v1293 = vld [vmem:[#allocation2 + $0x174] sm:$0xf]
  %v1294 = vld [vmem:[#allocation2 + $0x180] sm:$0xf]
  %v1295 = vld [vmem:[#allocation2 + $0x184] sm:$0xf]
  %v1296 = vld [vmem:[#allocation2 + $0x190] sm:$0xf]
  %v1297 = vld [vmem:[#allocation2 + $0x194] sm:$0xf]
  %v1298 = vld [vmem:[#allocation2 + $0x1a0] sm:$0xf]
  %v1299 = vld [vmem:[#allocation2 + $0x1a4] sm:$0xf]
  %v1300 = vld [vmem:[#allocation2 + $0x1b0] sm:$0xf]
  %v1301 = vld [vmem:[#allocation2 + $0x1b4] sm:$0xf]
  %v1302 = vld [vmem:[#allocation2 + $0x1c0] sm:$0xf]
  %v1303 = vld [vmem:[#allocation2 + $0x1c4] sm:$0xf]
  %v1304 = vld [vmem:[#allocation2 + $0x1d0] sm:$0xf]
  %v1305 = vld [vmem:[#allocation2 + $0x1d4] sm:$0xf]
  %v1306 = vld [vmem:[#allocation2 + $0x1e0] sm:$0xf]
  %v1307 = vld [vmem:[#allocation2 + $0x1e4] sm:$0xf]
  %v1308 = vld [vmem:[#allocation2 + $0x1f0] sm:$0xf]
  %v1309 = vld [vmem:[#allocation2 + $0x1f4] sm:$0xf]
  %v1310 = vld [vmem:[#allocation2 + $0x200] sm:$0xf]
  %v1311 = vld [vmem:[#allocation2 + $0x204] sm:$0xf]
  %v1312 = vld [vmem:[#allocation2 + $0x210] sm:$0xf]
  %v1313 = vld [vmem:[#allocation2 + $0x214] sm:$0xf]
  %v1314 = vld [vmem:[#allocation2 + $0x8] sm:$0x1]
  %v1315 = vld [vmem:[#allocation2 + $0x18] sm:$0x1]
  %v1316 = vld [vmem:[#allocation2 + $0x28] sm:$0x1]
  %v1317 = vld [vmem:[#allocation2 + $0x38] sm:$0x1]
  %v1318 = vld [vmem:[#allocation2 + $0x48] sm:$0x1]
  %v1319 = vld [vmem:[#allocation2 + $0x58] sm:$0x1]
  %v1320 = vld [vmem:[#allocation2 + $0x68] sm:$0x1]
  %v1321 = vld [vmem:[#allocation2 + $0x78] sm:$0x1]
  %v1322 = vld [vmem:[#allocation2 + $0x88] sm:$0x1]
  %v1323 = vld [vmem:[#allocation2 + $0x98] sm:$0x1]
  %v1324 = vld [vmem:[#allocation2 + $0xa8] sm:$0x1]
  %v1325 = vld [vmem:[#allocation2 + $0xb8] sm:$0x1]
  %v1326 = vld [vmem:[#allocation2 + $0xc8] sm:$0x1]
  %v1327 = vld [vmem:[#allocation2 + $0xd8] sm:$0x1]
  %v1328 = vld [vmem:[#allocation2 + $0xe8] sm:$0x1]
  %v1329 = vld [vmem:[#allocation2 + $0xf8] sm:$0x1]
  %v1330 = vld [vmem:[#allocation2 + $0x128] sm:$0x1]
  %v1331 = vld [vmem:[#allocation2 + $0x138] sm:$0x1]
  %v1332 = vld [vmem:[#allocation2 + $0x148] sm:$0x1]
  %v1333 = vld [vmem:[#allocation2 + $0x158] sm:$0x1]
  %v1334 = vld [vmem:[#allocation2 + $0x168] sm:$0x1]
  %v1335 = vld [vmem:[#allocation2 + $0x178] sm:$0x1]
  %v1336 = vld [vmem:[#allocation2 + $0x188] sm:$0x1]
  %v1337 = vld [vmem:[#allocation2 + $0x198] sm:$0x1]
  %v1338 = vld [vmem:[#allocation2 + $0x1a8] sm:$0x1]
  %v1339 = vld [vmem:[#allocation2 + $0x1b8] sm:$0x1]
  %v1340 = vld [vmem:[#allocation2 + $0x1c8] sm:$0x1]
  %v1341 = vld [vmem:[#allocation2 + $0x1d8] sm:$0x1]
  %v1342 = vld [vmem:[#allocation2 + $0x1e8] sm:$0x1]
  %v1343 = vld [vmem:[#allocation2 + $0x1f8] sm:$0x1]
  %v1344 = vld [vmem:[#allocation2 + $0x208] sm:$0x1]
  %v1345 = vld [vmem:[#allocation2 + $0x218] sm:$0x1]
  %v1346 = vld [vmem:[#allocation2] sm:$0xe]
  %v1347 = vld [vmem:[#allocation2 + $0x10] sm:$0xe]
  %v1348 = vld [vmem:[#allocation2 + $0x20] sm:$0xe]
  %v1349 = vld [vmem:[#allocation2 + $0x30] sm:$0xe]
  %v1350 = vld [vmem:[#allocation2 + $0x40] sm:$0xe]
  %v1351 = vld [vmem:[#allocation2 + $0x50] sm:$0xe]
  %v1352 = vld [vmem:[#allocation2 + $0x60] sm:$0xe]
  %v1353 = vld [vmem:[#allocation2 + $0x70] sm:$0xe]
  %v1354 = vld [vmem:[#allocation2 + $0x80] sm:$0xe]
  %v1355 = vld [vmem:[#allocation2 + $0x90] sm:$0xe]
  %v1356 = vld [vmem:[#allocation2 + $0xa0] sm:$0xe]
  %v1357 = vld [vmem:[#allocation2 + $0xb0] sm:$0xe]
  %v1358 = vld [vmem:[#allocation2 + $0xc0] sm:$0xe]
  %v1359 = vld [vmem:[#allocation2 + $0xd0] sm:$0xe]
  %v1360 = vld [vmem:[#allocation2 + $0xe0] sm:$0xe]
  %v1361 = vld [vmem:[#allocation2 + $0xf0] sm:$0xe]
  %v1362 = vld [vmem:[#allocation2 + $0x120] sm:$0xe]
  %v1363 = vld [vmem:[#allocation2 + $0x130] sm:$0xe]
  %v1364 = vld [vmem:[#allocation2 + $0x140] sm:$0xe]
  %v1365 = vld [vmem:[#allocation2 + $0x150] sm:$0xe]
  %v1366 = vld [vmem:[#allocation2 + $0x160] sm:$0xe]
  %v1367 = vld [vmem:[#allocation2 + $0x170] sm:$0xe]
  %v1368 = vld [vmem:[#allocation2 + $0x180] sm:$0xe]
  %v1369 = vld [vmem:[#allocation2 + $0x190] sm:$0xe]
  %v1370 = vld [vmem:[#allocation2 + $0x1a0] sm:$0xe]
  %v1371 = vld [vmem:[#allocation2 + $0x1b0] sm:$0xe]
  %v1372 = vld [vmem:[#allocation2 + $0x1c0] sm:$0xe]
  %v1373 = vld [vmem:[#allocation2 + $0x1d0] sm:$0xe]
  %v1374 = vld [vmem:[#allocation2 + $0x1e0] sm:$0xe]
  %v1375 = vld [vmem:[#allocation2 + $0x1f0] sm:$0xe]
  %v1376 = vld [vmem:[#allocation2 + $0x200] sm:$0xe]
  %v1377 = vld [vmem:[#allocation2 + $0x210] sm:$0xe]
  %v1378 = vld [vmem:[%s53] sm:$0xf]
  %v1379 = vld [vmem:[%s53 + $0x4] sm:$0xf]
  %v1380 = vld [vmem:[%s53 + $0x10] sm:$0xf]
  %v1381 = vld [vmem:[%s53 + $0x14] sm:$0xf]
  %v1382 = vld [vmem:[%s53 + $0x20] sm:$0xf]
  %v1383 = vld [vmem:[%s53 + $0x24] sm:$0xf]
  %v1384 = vld [vmem:[%s53 + $0x30] sm:$0xf]
  %v1385 = vld [vmem:[%s53 + $0x34] sm:$0xf]
  %v1386 = vld [vmem:[%s53 + $0x40] sm:$0xf]
  %v1387 = vld [vmem:[%s53 + $0x44] sm:$0xf]
  %v1388 = vld [vmem:[%s53 + $0x50] sm:$0xf]
  %v1389 = vld [vmem:[%s53 + $0x54] sm:$0xf]
  %v1390 = vld [vmem:[%s53 + $0x60] sm:$0xf]
  %v1391 = vld [vmem:[%s53 + $0x64] sm:$0xf]
  %v1392 = vld [vmem:[%s53 + $0x70] sm:$0xf]
  %v1393 = vld [vmem:[%s53 + $0x74] sm:$0xf]
  %v1394 = vld [vmem:[%s53 + $0x80] sm:$0xf]
  %v1395 = vld [vmem:[%s53 + $0x84] sm:$0xf]
  %v1396 = vld [vmem:[%s53 + $0x90] sm:$0xf]
  %v1397 = vld [vmem:[%s53 + $0x94] sm:$0xf]
  %v1398 = vld [vmem:[%s53 + $0xa0] sm:$0xf]
  %v1399 = vld [vmem:[%s53 + $0xa4] sm:$0xf]
  %v1400 = vld [vmem:[%s53 + $0xb0] sm:$0xf]
  %v1401 = vld [vmem:[%s53 + $0xb4] sm:$0xf]
  %v1402 = vld [vmem:[%s53 + $0xc0] sm:$0xf]
  %v1403 = vld [vmem:[%s53 + $0xc4] sm:$0xf]
  %v1404 = vld [vmem:[%s53 + $0xd0] sm:$0xf]
  %v1405 = vld [vmem:[%s53 + $0xd4] sm:$0xf]
  %v1406 = vld [vmem:[%s53 + $0xe0] sm:$0xf]
  %v1407 = vld [vmem:[%s53 + $0xe4] sm:$0xf]
  %v1408 = vld [vmem:[%s53 + $0xf0] sm:$0xf]
  %v1409 = vld [vmem:[%s53 + $0xf4] sm:$0xf]
  %v1410 = vld [vmem:[%s53 + $0x120] sm:$0xf]
  %v1411 = vld [vmem:[%s53 + $0x124] sm:$0xf]
  %v1412 = vld [vmem:[%s53 + $0x130] sm:$0xf]
  %v1413 = vld [vmem:[%s53 + $0x134] sm:$0xf]
  %v1414 = vld [vmem:[%s53 + $0x140] sm:$0xf]
  %v1415 = vld [vmem:[%s53 + $0x144] sm:$0xf]
  %v1416 = vld [vmem:[%s53 + $0x150] sm:$0xf]
  %v1417 = vld [vmem:[%s53 + $0x154] sm:$0xf]
  %v1418 = vld [vmem:[%s53 + $0x160] sm:$0xf]
  %v1419 = vld [vmem:[%s53 + $0x164] sm:$0xf]
  %v1420 = vld [vmem:[%s53 + $0x170] sm:$0xf]
  %v1421 = vld [vmem:[%s53 + $0x174] sm:$0xf]
  %v1422 = vld [vmem:[%s53 + $0x180] sm:$0xf]
  %v1423 = vld [vmem:[%s53 + $0x184] sm:$0xf]
  %v1424 = vld [vmem:[%s53 + $0x190] sm:$0xf]
  %v1425 = vld [vmem:[%s53 + $0x194] sm:$0xf]
  %v1426 = vld [vmem:[%s53 + $0x1a0] sm:$0xf]
  %v1427 = vld [vmem:[%s53 + $0x1a4] sm:$0xf]
  %v1428 = vld [vmem:[%s53 + $0x1b0] sm:$0xf]
  %v1429 = vld [vmem:[%s53 + $0x1b4] sm:$0xf]
  %v1430 = vld [vmem:[%s53 + $0x1c0] sm:$0xf]
  %v1431 = vld [vmem:[%s53 + $0x1c4] sm:$0xf]
  %v1432 = vld [vmem:[%s53 + $0x1d0] sm:$0xf]
  %v1433 = vld [vmem:[%s53 + $0x1d4] sm:$0xf]
  %v1434 = vld [vmem:[%s53 + $0x1e0] sm:$0xf]
  %v1435 = vld [vmem:[%s53 + $0x1e4] sm:$0xf]
  %v1436 = vld [vmem:[%s53 + $0x1f0] sm:$0xf]
  %v1437 = vld [vmem:[%s53 + $0x1f4] sm:$0xf]
  %v1438 = vld [vmem:[%s53 + $0x200] sm:$0xf]
  %v1439 = vld [vmem:[%s53 + $0x204] sm:$0xf]
  %v1440 = vld [vmem:[%s53 + $0x210] sm:$0xf]
  %v1441 = vld [vmem:[%s53 + $0x214] sm:$0xf]
  %v1442 = vld [vmem:[%s53 + $0x8] sm:$0x1]
  %v1443 = vld [vmem:[%s53 + $0x18] sm:$0x1]
  %v1444 = vld [vmem:[%s53 + $0x28] sm:$0x1]
  %v1445 = vld [vmem:[%s53 + $0x38] sm:$0x1]
  %v1446 = vld [vmem:[%s53 + $0x48] sm:$0x1]
  %v1447 = vld [vmem:[%s53 + $0x58] sm:$0x1]
  %v1448 = vld [vmem:[%s53 + $0x68] sm:$0x1]
  %v1449 = vld [vmem:[%s53 + $0x78] sm:$0x1]
  %v1450 = vld [vmem:[%s53 + $0x88] sm:$0x1]
  %v1451 = vld [vmem:[%s53 + $0x98] sm:$0x1]
  %v1452 = vld [vmem:[%s53 + $0xa8] sm:$0x1]
  %v1453 = vld [vmem:[%s53 + $0xb8] sm:$0x1]
  %v1454 = vld [vmem:[%s53 + $0xc8] sm:$0x1]
  %v1455 = vld [vmem:[%s53 + $0xd8] sm:$0x1]
  %v1456 = vld [vmem:[%s53 + $0xe8] sm:$0x1]
  %v1457 = vld [vmem:[%s53 + $0xf8] sm:$0x1]
  %v1458 = vld [vmem:[%s53 + $0x128] sm:$0x1]
  %v1459 = vld [vmem:[%s53 + $0x138] sm:$0x1]
  %v1460 = vld [vmem:[%s53 + $0x148] sm:$0x1]
  %v1461 = vld [vmem:[%s53 + $0x158] sm:$0x1]
  %v1462 = vld [vmem:[%s53 + $0x168] sm:$0x1]
  %v1463 = vld [vmem:[%s53 + $0x178] sm:$0x1]
  %v1464 = vld [vmem:[%s53 + $0x188] sm:$0x1]
  %v1465 = vld [vmem:[%s53 + $0x198] sm:$0x1]
  %v1466 = vld [vmem:[%s53 + $0x1a8] sm:$0x1]
  %v1467 = vld [vmem:[%s53 + $0x1b8] sm:$0x1]
  %v1468 = vld [vmem:[%s53 + $0x1c8] sm:$0x1]
  %v1469 = vld [vmem:[%s53 + $0x1d8] sm:$0x1]
  %v1470 = vld [vmem:[%s53 + $0x1e8] sm:$0x1]
  %v1471 = vld [vmem:[%s53 + $0x1f8] sm:$0x1]
  %v1472 = vld [vmem:[%s53 + $0x208] sm:$0x1]
  %v1473 = vld [vmem:[%s53 + $0x218] sm:$0x1]
  %v1474 = vld [vmem:[%s53] sm:$0xe]
  %v1475 = vld [vmem:[%s53 + $0x10] sm:$0xe]
  %v1476 = vld [vmem:[%s53 + $0x20] sm:$0xe]
  %v1477 = vld [vmem:[%s53 + $0x30] sm:$0xe]
  %v1478 = vld [vmem:[%s53 + $0x40] sm:$0xe]
  %v1479 = vld [vmem:[%s53 + $0x50] sm:$0xe]
  %v1480 = vld [vmem:[%s53 + $0x60] sm:$0xe]
  %v1481 = vld [vmem:[%s53 + $0x70] sm:$0xe]
  %v1482 = vld [vmem:[%s53 + $0x80] sm:$0xe]
  %v1483 = vld [vmem:[%s53 + $0x90] sm:$0xe]
  %v1484 = vld [vmem:[%s53 + $0xa0] sm:$0xe]
  %v1485 = vld [vmem:[%s53 + $0xb0] sm:$0xe]
  %v1486 = vld [vmem:[%s53 + $0xc0] sm:$0xe]
  %v1487 = vld [vmem:[%s53 + $0xd0] sm:$0xe]
  %v1488 = vld [vmem:[%s53 + $0xe0] sm:$0xe]
  %v1489 = vld [vmem:[%s53 + $0xf0] sm:$0xe]
  %v1490 = vld [vmem:[%s53 + $0x120] sm:$0xe]
  %v1491 = vld [vmem:[%s53 + $0x130] sm:$0xe]
  %v1492 = vld [vmem:[%s53 + $0x140] sm:$0xe]
  %v1493 = vld [vmem:[%s53 + $0x150] sm:$0xe]
  %v1494 = vld [vmem:[%s53 + $0x160] sm:$0xe]
  %v1495 = vld [vmem:[%s53 + $0x170] sm:$0xe]
  %v1496 = vld [vmem:[%s53 + $0x180] sm:$0xe]
  %v1497 = vld [vmem:[%s53 + $0x190] sm:$0xe]
  %v1498 = vld [vmem:[%s53 + $0x1a0] sm:$0xe]
  %v1499 = vld [vmem:[%s53 + $0x1b0] sm:$0xe]
  %v1500 = vld [vmem:[%s53 + $0x1c0] sm:$0xe]
  %v1501 = vld [vmem:[%s53 + $0x1d0] sm:$0xe]
  %v1502 = vld [vmem:[%s53 + $0x1e0] sm:$0xe]
  %v1503 = vld [vmem:[%s53 + $0x1f0] sm:$0xe]
  %v1504 = vld [vmem:[%s53 + $0x200] sm:$0xe]
  %v1505 = vld [vmem:[%s53 + $0x210] sm:$0xe]
  %s1506 = scalar_lea.vmem [#allocation2], 32
  %v1507 = vld [vmem:[%s1506] sm:$0xf]
  %v1508 = vld [vmem:[%s1506 + $0x4] sm:$0xf]
  %v1509 = vld [vmem:[%s1506 + $0x10] sm:$0xf]
  %v1510 = vld [vmem:[%s1506 + $0x14] sm:$0xf]
  %v1511 = vld [vmem:[%s1506 + $0x20] sm:$0xf]
  %v1512 = vld [vmem:[%s1506 + $0x24] sm:$0xf]
  %v1513 = vld [vmem:[%s1506 + $0x30] sm:$0xf]
  %v1514 = vld [vmem:[%s1506 + $0x34] sm:$0xf]
  %v1515 = vld [vmem:[%s1506 + $0x40] sm:$0xf]
  %v1516 = vld [vmem:[%s1506 + $0x44] sm:$0xf]
  %v1517 = vld [vmem:[%s1506 + $0x50] sm:$0xf]
  %v1518 = vld [vmem:[%s1506 + $0x54] sm:$0xf]
  %v1519 = vld [vmem:[%s1506 + $0x60] sm:$0xf]
  %v1520 = vld [vmem:[%s1506 + $0x64] sm:$0xf]
  %v1521 = vld [vmem:[%s1506 + $0x70] sm:$0xf]
  %v1522 = vld [vmem:[%s1506 + $0x74] sm:$0xf]
  %v1523 = vld [vmem:[%s1506 + $0x80] sm:$0xf]
  %v1524 = vld [vmem:[%s1506 + $0x84] sm:$0xf]
  %v1525 = vld [vmem:[%s1506 + $0x90] sm:$0xf]
  %v1526 = vld [vmem:[%s1506 + $0x94] sm:$0xf]
  %v1527 = vld [vmem:[%s1506 + $0xa0] sm:$0xf]
  %v1528 = vld [vmem:[%s1506 + $0xa4] sm:$0xf]
  %v1529 = vld [vmem:[%s1506 + $0xb0] sm:$0xf]
  %v1530 = vld [vmem:[%s1506 + $0xb4] sm:$0xf]
  %v1531 = vld [vmem:[%s1506 + $0xc0] sm:$0xf]
  %v1532 = vld [vmem:[%s1506 + $0xc4] sm:$0xf]
  %v1533 = vld [vmem:[%s1506 + $0xd0] sm:$0xf]
  %v1534 = vld [vmem:[%s1506 + $0xd4] sm:$0xf]
  %v1535 = vld [vmem:[%s1506 + $0xe0] sm:$0xf]
  %v1536 = vld [vmem:[%s1506 + $0xe4] sm:$0xf]
  %v1537 = vld [vmem:[%s1506 + $0xf0] sm:$0xf]
  %v1538 = vld [vmem:[%s1506 + $0xf4] sm:$0xf]
  %v1539 = vld [vmem:[%s1506 + $0x120] sm:$0xf]
  %v1540 = vld [vmem:[%s1506 + $0x124] sm:$0xf]
  %v1541 = vld [vmem:[%s1506 + $0x130] sm:$0xf]
  %v1542 = vld [vmem:[%s1506 + $0x134] sm:$0xf]
  %v1543 = vld [vmem:[%s1506 + $0x140] sm:$0xf]
  %v1544 = vld [vmem:[%s1506 + $0x144] sm:$0xf]
  %v1545 = vld [vmem:[%s1506 + $0x150] sm:$0xf]
  %v1546 = vld [vmem:[%s1506 + $0x154] sm:$0xf]
  %v1547 = vld [vmem:[%s1506 + $0x160] sm:$0xf]
  %v1548 = vld [vmem:[%s1506 + $0x164] sm:$0xf]
  %v1549 = vld [vmem:[%s1506 + $0x170] sm:$0xf]
  %v1550 = vld [vmem:[%s1506 + $0x174] sm:$0xf]
  %v1551 = vld [vmem:[%s1506 + $0x180] sm:$0xf]
  %v1552 = vld [vmem:[%s1506 + $0x184] sm:$0xf]
  %v1553 = vld [vmem:[%s1506 + $0x190] sm:$0xf]
  %v1554 = vld [vmem:[%s1506 + $0x194] sm:$0xf]
  %v1555 = vld [vmem:[%s1506 + $0x1a0] sm:$0xf]
  %v1556 = vld [vmem:[%s1506 + $0x1a4] sm:$0xf]
  %v1557 = vld [vmem:[%s1506 + $0x1b0] sm:$0xf]
  %v1558 = vld [vmem:[%s1506 + $0x1b4] sm:$0xf]
  %v1559 = vld [vmem:[%s1506 + $0x1c0] sm:$0xf]
  %v1560 = vld [vmem:[%s1506 + $0x1c4] sm:$0xf]
  %v1561 = vld [vmem:[%s1506 + $0x1d0] sm:$0xf]
  %v1562 = vld [vmem:[%s1506 + $0x1d4] sm:$0xf]
  %v1563 = vld [vmem:[%s1506 + $0x1e0] sm:$0xf]
  %v1564 = vld [vmem:[%s1506 + $0x1e4] sm:$0xf]
  %v1565 = vld [vmem:[%s1506 + $0x1f0] sm:$0xf]
  %v1566 = vld [vmem:[%s1506 + $0x1f4] sm:$0xf]
  %v1567 = vld [vmem:[%s1506 + $0x200] sm:$0xf]
  %v1568 = vld [vmem:[%s1506 + $0x204] sm:$0xf]
  %v1569 = vld [vmem:[%s1506 + $0x210] sm:$0xf]
  %v1570 = vld [vmem:[%s1506 + $0x214] sm:$0xf]
  %v1571 = vld [vmem:[%s1506 + $0x8] sm:$0x1]
  %v1572 = vld [vmem:[%s1506 + $0x18] sm:$0x1]
  %v1573 = vld [vmem:[%s1506 + $0x28] sm:$0x1]
  %v1574 = vld [vmem:[%s1506 + $0x38] sm:$0x1]
  %v1575 = vld [vmem:[%s1506 + $0x48] sm:$0x1]
  %v1576 = vld [vmem:[%s1506 + $0x58] sm:$0x1]
  %v1577 = vld [vmem:[%s1506 + $0x68] sm:$0x1]
  %v1578 = vld [vmem:[%s1506 + $0x78] sm:$0x1]
  %v1579 = vld [vmem:[%s1506 + $0x88] sm:$0x1]
  %v1580 = vld [vmem:[%s1506 + $0x98] sm:$0x1]
  %v1581 = vld [vmem:[%s1506 + $0xa8] sm:$0x1]
  %v1582 = vld [vmem:[%s1506 + $0xb8] sm:$0x1]
  %v1583 = vld [vmem:[%s1506 + $0xc8] sm:$0x1]
  %v1584 = vld [vmem:[%s1506 + $0xd8] sm:$0x1]
  %v1585 = vld [vmem:[%s1506 + $0xe8] sm:$0x1]
  %v1586 = vld [vmem:[%s1506 + $0xf8] sm:$0x1]
  %v1587 = vld [vmem:[%s1506 + $0x128] sm:$0x1]
  %v1588 = vld [vmem:[%s1506 + $0x138] sm:$0x1]
  %v1589 = vld [vmem:[%s1506 + $0x148] sm:$0x1]
  %v1590 = vld [vmem:[%s1506 + $0x158] sm:$0x1]
  %v1591 = vld [vmem:[%s1506 + $0x168] sm:$0x1]
  %v1592 = vld [vmem:[%s1506 + $0x178] sm:$0x1]
  %v1593 = vld [vmem:[%s1506 + $0x188] sm:$0x1]
  %v1594 = vld [vmem:[%s1506 + $0x198] sm:$0x1]
  %v1595 = vld [vmem:[%s1506 + $0x1a8] sm:$0x1]
  %v1596 = vld [vmem:[%s1506 + $0x1b8] sm:$0x1]
  %v1597 = vld [vmem:[%s1506 + $0x1c8] sm:$0x1]
  %v1598 = vld [vmem:[%s1506 + $0x1d8] sm:$0x1]
  %v1599 = vld [vmem:[%s1506 + $0x1e8] sm:$0x1]
  %v1600 = vld [vmem:[%s1506 + $0x1f8] sm:$0x1]
  %v1601 = vld [vmem:[%s1506 + $0x208] sm:$0x1]
  %v1602 = vld [vmem:[%s1506 + $0x218] sm:$0x1]
  %v1603 = vld [vmem:[%s1506] sm:$0xe]
  %v1604 = vld [vmem:[%s1506 + $0x10] sm:$0xe]
  %v1605 = vld [vmem:[%s1506 + $0x20] sm:$0xe]
  %v1606 = vld [vmem:[%s1506 + $0x30] sm:$0xe]
  %v1607 = vld [vmem:[%s1506 + $0x40] sm:$0xe]
  %v1608 = vld [vmem:[%s1506 + $0x50] sm:$0xe]
  %v1609 = vld [vmem:[%s1506 + $0x60] sm:$0xe]
  %v1610 = vld [vmem:[%s1506 + $0x70] sm:$0xe]
  %v1611 = vld [vmem:[%s1506 + $0x80] sm:$0xe]
  %v1612 = vld [vmem:[%s1506 + $0x90] sm:$0xe]
  %v1613 = vld [vmem:[%s1506 + $0xa0] sm:$0xe]
  %v1614 = vld [vmem:[%s1506 + $0xb0] sm:$0xe]
  %v1615 = vld [vmem:[%s1506 + $0xc0] sm:$0xe]
  %v1616 = vld [vmem:[%s1506 + $0xd0] sm:$0xe]
  %v1617 = vld [vmem:[%s1506 + $0xe0] sm:$0xe]
  %v1618 = vld [vmem:[%s1506 + $0xf0] sm:$0xe]
  %v1619 = vld [vmem:[%s1506 + $0x120] sm:$0xe]
  %v1620 = vld [vmem:[%s1506 + $0x130] sm:$0xe]
  %v1621 = vld [vmem:[%s1506 + $0x140] sm:$0xe]
  %v1622 = vld [vmem:[%s1506 + $0x150] sm:$0xe]
  %v1623 = vld [vmem:[%s1506 + $0x160] sm:$0xe]
  %v1624 = vld [vmem:[%s1506 + $0x170] sm:$0xe]
  %v1625 = vld [vmem:[%s1506 + $0x180] sm:$0xe]
  %v1626 = vld [vmem:[%s1506 + $0x190] sm:$0xe]
  %v1627 = vld [vmem:[%s1506 + $0x1a0] sm:$0xe]
  %v1628 = vld [vmem:[%s1506 + $0x1b0] sm:$0xe]
  %v1629 = vld [vmem:[%s1506 + $0x1c0] sm:$0xe]
  %v1630 = vld [vmem:[%s1506 + $0x1d0] sm:$0xe]
  %v1631 = vld [vmem:[%s1506 + $0x1e0] sm:$0xe]
  %v1632 = vld [vmem:[%s1506 + $0x1f0] sm:$0xe]
  %v1633 = vld [vmem:[%s1506 + $0x200] sm:$0xe]
  %v1634 = vld [vmem:[%s1506 + $0x210] sm:$0xe]
  %v1699 = vunpack.c.l.b16 %v1250
  %v1700 = vunpack.c.l.b16 %v1251
  %v1701 = vunpack.c.l.b16 %v1252
  %v1702 = vunpack.c.l.b16 %v1253
  %v1703 = vunpack.c.l.b16 %v1254
  %v1704 = vunpack.c.l.b16 %v1255
  %v1705 = vunpack.c.l.b16 %v1256
  %v1706 = vunpack.c.l.b16 %v1257
  %v1707 = vunpack.c.l.b16 %v1258
  %v1708 = vunpack.c.l.b16 %v1259
  %v1709 = vunpack.c.l.b16 %v1260
  %v1710 = vunpack.c.l.b16 %v1261
  %v1711 = vunpack.c.l.b16 %v1262
  %v1712 = vunpack.c.l.b16 %v1263
  %v1713 = vunpack.c.l.b16 %v1264
  %v1714 = vunpack.c.l.b16 %v1265
  %v1715 = vunpack.c.l.b16 %v1266
  %v1716 = vunpack.c.l.b16 %v1267
  %v1717 = vunpack.c.l.b16 %v1268
  %v1718 = vunpack.c.l.b16 %v1269
  %v1719 = vunpack.c.l.b16 %v1270
  %v1720 = vunpack.c.l.b16 %v1271
  %v1721 = vunpack.c.l.b16 %v1272
  %v1722 = vunpack.c.l.b16 %v1273
  %v1723 = vunpack.c.l.b16 %v1274
  %v1724 = vunpack.c.l.b16 %v1275
  %v1725 = vunpack.c.l.b16 %v1276
  %v1726 = vunpack.c.l.b16 %v1277
  %v1727 = vunpack.c.l.b16 %v1278
  %v1728 = vunpack.c.l.b16 %v1279
  %v1729 = vunpack.c.l.b16 %v1280
  %v1730 = vunpack.c.l.b16 %v1281
  %v1731 = vunpack.c.l.b16 %v1282
  %v1732 = vunpack.c.l.b16 %v1283
  %v1733 = vunpack.c.l.b16 %v1284
  %v1734 = vunpack.c.l.b16 %v1285
  %v1735 = vunpack.c.l.b16 %v1286
  %v1736 = vunpack.c.l.b16 %v1287
  %v1737 = vunpack.c.l.b16 %v1288
  %v1738 = vunpack.c.l.b16 %v1289
  %v1739 = vunpack.c.l.b16 %v1290
  %v1740 = vunpack.c.l.b16 %v1291
  %v1741 = vunpack.c.l.b16 %v1292
  %v1742 = vunpack.c.l.b16 %v1293
  %v1743 = vunpack.c.l.b16 %v1294
  %v1744 = vunpack.c.l.b16 %v1295
  %v1745 = vunpack.c.l.b16 %v1296
  %v1746 = vunpack.c.l.b16 %v1297
  %v1747 = vunpack.c.l.b16 %v1298
  %v1748 = vunpack.c.l.b16 %v1299
  %v1749 = vunpack.c.l.b16 %v1300
  %v1750 = vunpack.c.l.b16 %v1301
  %v1751 = vunpack.c.l.b16 %v1302
  %v1752 = vunpack.c.l.b16 %v1303
  %v1753 = vunpack.c.l.b16 %v1304
  %v1754 = vunpack.c.l.b16 %v1305
  %v1755 = vunpack.c.l.b16 %v1306
  %v1756 = vunpack.c.l.b16 %v1307
  %v1757 = vunpack.c.l.b16 %v1308
  %v1758 = vunpack.c.l.b16 %v1309
  %v1759 = vunpack.c.l.b16 %v1310
  %v1760 = vunpack.c.l.b16 %v1311
  %v1761 = vunpack.c.l.b16 %v1312
  %v1762 = vunpack.c.l.b16 %v1313
  %v1763 = vpack.c.b16 %v1700, %v1699
  %v1764 = vpack.c.b16 %v1702, %v1701
  %v1765 = vpack.c.b16 %v1704, %v1703
  %v1766 = vpack.c.b16 %v1706, %v1705
  %v1767 = vpack.c.b16 %v1708, %v1707
  %v1768 = vpack.c.b16 %v1710, %v1709
  %v1769 = vpack.c.b16 %v1712, %v1711
  %v1770 = vpack.c.b16 %v1714, %v1713
  %v1771 = vpack.c.b16 %v1716, %v1715
  %v1772 = vpack.c.b16 %v1718, %v1717
  %v1773 = vpack.c.b16 %v1720, %v1719
  %v1774 = vpack.c.b16 %v1722, %v1721
  %v1775 = vpack.c.b16 %v1724, %v1723
  %v1776 = vpack.c.b16 %v1726, %v1725
  %v1777 = vpack.c.b16 %v1728, %v1727
  %v1778 = vpack.c.b16 %v1730, %v1729
  %v1779 = vpack.c.b16 %v1732, %v1731
  %v1780 = vpack.c.b16 %v1734, %v1733
  %v1781 = vpack.c.b16 %v1736, %v1735
  %v1782 = vpack.c.b16 %v1738, %v1737
  %v1783 = vpack.c.b16 %v1740, %v1739
  %v1784 = vpack.c.b16 %v1742, %v1741
  %v1785 = vpack.c.b16 %v1744, %v1743
  %v1786 = vpack.c.b16 %v1746, %v1745
  %v1787 = vpack.c.b16 %v1748, %v1747
  %v1788 = vpack.c.b16 %v1750, %v1749
  %v1789 = vpack.c.b16 %v1752, %v1751
  %v1790 = vpack.c.b16 %v1754, %v1753
  %v1791 = vpack.c.b16 %v1756, %v1755
  %v1792 = vpack.c.b16 %v1758, %v1757
  %v1793 = vpack.c.b16 %v1760, %v1759
  %v1794 = vpack.c.b16 %v1762, %v1761
  %v1827 = vunpack.c.l.b16 %v1314
  %v1828 = vunpack.c.l.b16 %v1315
  %v1829 = vunpack.c.l.b16 %v1316
  %v1830 = vunpack.c.l.b16 %v1317
  %v1831 = vunpack.c.l.b16 %v1318
  %v1832 = vunpack.c.l.b16 %v1319
  %v1833 = vunpack.c.l.b16 %v1320
  %v1834 = vunpack.c.l.b16 %v1321
  %v1835 = vunpack.c.l.b16 %v1322
  %v1836 = vunpack.c.l.b16 %v1323
  %v1837 = vunpack.c.l.b16 %v1324
  %v1838 = vunpack.c.l.b16 %v1325
  %v1839 = vunpack.c.l.b16 %v1326
  %v1840 = vunpack.c.l.b16 %v1327
  %v1841 = vunpack.c.l.b16 %v1328
  %v1842 = vunpack.c.l.b16 %v1329
  %v1843 = vunpack.c.l.b16 %v1330
  %v1844 = vunpack.c.l.b16 %v1331
  %v1845 = vunpack.c.l.b16 %v1332
  %v1846 = vunpack.c.l.b16 %v1333
  %v1847 = vunpack.c.l.b16 %v1334
  %v1848 = vunpack.c.l.b16 %v1335
  %v1849 = vunpack.c.l.b16 %v1336
  %v1850 = vunpack.c.l.b16 %v1337
  %v1851 = vunpack.c.l.b16 %v1338
  %v1852 = vunpack.c.l.b16 %v1339
  %v1853 = vunpack.c.l.b16 %v1340
  %v1854 = vunpack.c.l.b16 %v1341
  %v1855 = vunpack.c.l.b16 %v1342
  %v1856 = vunpack.c.l.b16 %v1343
  %v1857 = vunpack.c.l.b16 %v1344
  %v1858 = vunpack.c.l.b16 %v1345
  %v1859 = vpack.c.b16 %v1827, %v1827
  %v1860 = vpack.c.b16 %v1828, %v1828
  %v1861 = vpack.c.b16 %v1829, %v1829
  %v1862 = vpack.c.b16 %v1830, %v1830
  %v1863 = vpack.c.b16 %v1831, %v1831
  %v1864 = vpack.c.b16 %v1832, %v1832
  %v1865 = vpack.c.b16 %v1833, %v1833
  %v1866 = vpack.c.b16 %v1834, %v1834
  %v1867 = vpack.c.b16 %v1835, %v1835
  %v1868 = vpack.c.b16 %v1836, %v1836
  %v1869 = vpack.c.b16 %v1837, %v1837
  %v1870 = vpack.c.b16 %v1838, %v1838
  %v1871 = vpack.c.b16 %v1839, %v1839
  %v1872 = vpack.c.b16 %v1840, %v1840
  %v1873 = vpack.c.b16 %v1841, %v1841
  %v1874 = vpack.c.b16 %v1842, %v1842
  %v1875 = vpack.c.b16 %v1843, %v1843
  %v1876 = vpack.c.b16 %v1844, %v1844
  %v1877 = vpack.c.b16 %v1845, %v1845
  %v1878 = vpack.c.b16 %v1846, %v1846
  %v1879 = vpack.c.b16 %v1847, %v1847
  %v1880 = vpack.c.b16 %v1848, %v1848
  %v1881 = vpack.c.b16 %v1849, %v1849
  %v1882 = vpack.c.b16 %v1850, %v1850
  %v1883 = vpack.c.b16 %v1851, %v1851
  %v1884 = vpack.c.b16 %v1852, %v1852
  %v1885 = vpack.c.b16 %v1853, %v1853
  %v1886 = vpack.c.b16 %v1854, %v1854
  %v1887 = vpack.c.b16 %v1855, %v1855
  %v1888 = vpack.c.b16 %v1856, %v1856
  %v1889 = vpack.c.b16 %v1857, %v1857
  %v1890 = vpack.c.b16 %v1858, %v1858
  %vm1891 = vsmask.f32 7424
  %v1893 = vshrl.u32 %v1763, 16
  %v1895 = vshll.u32 %v1763, 16
  %v1897 = vrot.slane %v1895, 1
  %v1898 = vor.u32 %v1893, %v1897
  %v1900 = vshll.u32 %v1859, 16
  %v1902 = vrot.slane %v1900, 1
  %v1903 = vsel %vm1891, %v1898, %v1902
  %v1905 = vshrl.u32 %v1764, 16
  %v1907 = vshll.u32 %v1764, 16
  %v1909 = vrot.slane %v1907, 1
  %v1910 = vor.u32 %v1905, %v1909
  %v1912 = vshll.u32 %v1860, 16
  %v1914 = vrot.slane %v1912, 1
  %v1915 = vsel %vm1891, %v1910, %v1914
  %v1917 = vshrl.u32 %v1765, 16
  %v1919 = vshll.u32 %v1765, 16
  %v1921 = vrot.slane %v1919, 1
  %v1922 = vor.u32 %v1917, %v1921
  %v1924 = vshll.u32 %v1861, 16
  %v1926 = vrot.slane %v1924, 1
  %v1927 = vsel %vm1891, %v1922, %v1926
  %v1929 = vshrl.u32 %v1766, 16
  %v1931 = vshll.u32 %v1766, 16
  %v1933 = vrot.slane %v1931, 1
  %v1934 = vor.u32 %v1929, %v1933
  %v1936 = vshll.u32 %v1862, 16
  %v1938 = vrot.slane %v1936, 1
  %v1939 = vsel %vm1891, %v1934, %v1938
  %v1941 = vshrl.u32 %v1767, 16
  %v1943 = vshll.u32 %v1767, 16
  %v1945 = vrot.slane %v1943, 1
  %v1946 = vor.u32 %v1941, %v1945
  %v1948 = vshll.u32 %v1863, 16
  %v1950 = vrot.slane %v1948, 1
  %v1951 = vsel %vm1891, %v1946, %v1950
  %v1953 = vshrl.u32 %v1768, 16
  %v1955 = vshll.u32 %v1768, 16
  %v1957 = vrot.slane %v1955, 1
  %v1958 = vor.u32 %v1953, %v1957
  %v1960 = vshll.u32 %v1864, 16
  %v1962 = vrot.slane %v1960, 1
  %v1963 = vsel %vm1891, %v1958, %v1962
  %v1965 = vshrl.u32 %v1769, 16
  %v1967 = vshll.u32 %v1769, 16
  %v1969 = vrot.slane %v1967, 1
  %v1970 = vor.u32 %v1965, %v1969
  %v1972 = vshll.u32 %v1865, 16
  %v1974 = vrot.slane %v1972, 1
  %v1975 = vsel %vm1891, %v1970, %v1974
  %v1977 = vshrl.u32 %v1770, 16
  %v1979 = vshll.u32 %v1770, 16
  %v1981 = vrot.slane %v1979, 1
  %v1982 = vor.u32 %v1977, %v1981
  %v1984 = vshll.u32 %v1866, 16
  %v1986 = vrot.slane %v1984, 1
  %v1987 = vsel %vm1891, %v1982, %v1986
  %v1989 = vshrl.u32 %v1771, 16
  %v1991 = vshll.u32 %v1771, 16
  %v1993 = vrot.slane %v1991, 1
  %v1994 = vor.u32 %v1989, %v1993
  %v1996 = vshll.u32 %v1867, 16
  %v1998 = vrot.slane %v1996, 1
  %v1999 = vsel %vm1891, %v1994, %v1998
  %v2001 = vshrl.u32 %v1772, 16
  %v2003 = vshll.u32 %v1772, 16
  %v2005 = vrot.slane %v2003, 1
  %v2006 = vor.u32 %v2001, %v2005
  %v2008 = vshll.u32 %v1868, 16
  %v2010 = vrot.slane %v2008, 1
  %v2011 = vsel %vm1891, %v2006, %v2010
  %v2013 = vshrl.u32 %v1773, 16
  %v2015 = vshll.u32 %v1773, 16
  %v2017 = vrot.slane %v2015, 1
  %v2018 = vor.u32 %v2013, %v2017
  %v2020 = vshll.u32 %v1869, 16
  %v2022 = vrot.slane %v2020, 1
  %v2023 = vsel %vm1891, %v2018, %v2022
  %v2025 = vshrl.u32 %v1774, 16
  %v2027 = vshll.u32 %v1774, 16
  %v2029 = vrot.slane %v2027, 1
  %v2030 = vor.u32 %v2025, %v2029
  %v2032 = vshll.u32 %v1870, 16
  %v2034 = vrot.slane %v2032, 1
  %v2035 = vsel %vm1891, %v2030, %v2034
  %v2037 = vshrl.u32 %v1775, 16
  %v2039 = vshll.u32 %v1775, 16
  %v2041 = vrot.slane %v2039, 1
  %v2042 = vor.u32 %v2037, %v2041
  %v2044 = vshll.u32 %v1871, 16
  %v2046 = vrot.slane %v2044, 1
  %v2047 = vsel %vm1891, %v2042, %v2046
  %v2049 = vshrl.u32 %v1776, 16
  %v2051 = vshll.u32 %v1776, 16
  %v2053 = vrot.slane %v2051, 1
  %v2054 = vor.u32 %v2049, %v2053
  %v2056 = vshll.u32 %v1872, 16
  %v2058 = vrot.slane %v2056, 1
  %v2059 = vsel %vm1891, %v2054, %v2058
  %v2061 = vshrl.u32 %v1777, 16
  %v2063 = vshll.u32 %v1777, 16
  %v2065 = vrot.slane %v2063, 1
  %v2066 = vor.u32 %v2061, %v2065
  %v2068 = vshll.u32 %v1873, 16
  %v2070 = vrot.slane %v2068, 1
  %v2071 = vsel %vm1891, %v2066, %v2070
  %v2073 = vshrl.u32 %v1778, 16
  %v2075 = vshll.u32 %v1778, 16
  %v2077 = vrot.slane %v2075, 1
  %v2078 = vor.u32 %v2073, %v2077
  %v2080 = vshll.u32 %v1874, 16
  %v2082 = vrot.slane %v2080, 1
  %v2083 = vsel %vm1891, %v2078, %v2082
  %v2085 = vshrl.u32 %v1779, 16
  %v2087 = vshll.u32 %v1779, 16
  %v2089 = vrot.slane %v2087, 1
  %v2090 = vor.u32 %v2085, %v2089
  %v2092 = vshll.u32 %v1875, 16
  %v2094 = vrot.slane %v2092, 1
  %v2095 = vsel %vm1891, %v2090, %v2094
  %v2097 = vshrl.u32 %v1780, 16
  %v2099 = vshll.u32 %v1780, 16
  %v2101 = vrot.slane %v2099, 1
  %v2102 = vor.u32 %v2097, %v2101
  %v2104 = vshll.u32 %v1876, 16
  %v2106 = vrot.slane %v2104, 1
  %v2107 = vsel %vm1891, %v2102, %v2106
  %v2109 = vshrl.u32 %v1781, 16
  %v2111 = vshll.u32 %v1781, 16
  %v2113 = vrot.slane %v2111, 1
  %v2114 = vor.u32 %v2109, %v2113
  %v2116 = vshll.u32 %v1877, 16
  %v2118 = vrot.slane %v2116, 1
  %v2119 = vsel %vm1891, %v2114, %v2118
  %v2121 = vshrl.u32 %v1782, 16
  %v2123 = vshll.u32 %v1782, 16
  %v2125 = vrot.slane %v2123, 1
  %v2126 = vor.u32 %v2121, %v2125
  %v2128 = vshll.u32 %v1878, 16
  %v2130 = vrot.slane %v2128, 1
  %v2131 = vsel %vm1891, %v2126, %v2130
  %v2133 = vshrl.u32 %v1783, 16
  %v2135 = vshll.u32 %v1783, 16
  %v2137 = vrot.slane %v2135, 1
  %v2138 = vor.u32 %v2133, %v2137
  %v2140 = vshll.u32 %v1879, 16
  %v2142 = vrot.slane %v2140, 1
  %v2143 = vsel %vm1891, %v2138, %v2142
  %v2145 = vshrl.u32 %v1784, 16
  %v2147 = vshll.u32 %v1784, 16
  %v2149 = vrot.slane %v2147, 1
  %v2150 = vor.u32 %v2145, %v2149
  %v2152 = vshll.u32 %v1880, 16
  %v2154 = vrot.slane %v2152, 1
  %v2155 = vsel %vm1891, %v2150, %v2154
  %v2157 = vshrl.u32 %v1785, 16
  %v2159 = vshll.u32 %v1785, 16
  %v2161 = vrot.slane %v2159, 1
  %v2162 = vor.u32 %v2157, %v2161
  %v2164 = vshll.u32 %v1881, 16
  %v2166 = vrot.slane %v2164, 1
  %v2167 = vsel %vm1891, %v2162, %v2166
  %v2169 = vshrl.u32 %v1786, 16
  %v2171 = vshll.u32 %v1786, 16
  %v2173 = vrot.slane %v2171, 1
  %v2174 = vor.u32 %v2169, %v2173
  %v2176 = vshll.u32 %v1882, 16
  %v2178 = vrot.slane %v2176, 1
  %v2179 = vsel %vm1891, %v2174, %v2178
  %v2181 = vshrl.u32 %v1787, 16
  %v2183 = vshll.u32 %v1787, 16
  %v2185 = vrot.slane %v2183, 1
  %v2186 = vor.u32 %v2181, %v2185
  %v2188 = vshll.u32 %v1883, 16
  %v2190 = vrot.slane %v2188, 1
  %v2191 = vsel %vm1891, %v2186, %v2190
  %v2193 = vshrl.u32 %v1788, 16
  %v2195 = vshll.u32 %v1788, 16
  %v2197 = vrot.slane %v2195, 1
  %v2198 = vor.u32 %v2193, %v2197
  %v2200 = vshll.u32 %v1884, 16
  %v2202 = vrot.slane %v2200, 1
  %v2203 = vsel %vm1891, %v2198, %v2202
  %v2205 = vshrl.u32 %v1789, 16
  %v2207 = vshll.u32 %v1789, 16
  %v2209 = vrot.slane %v2207, 1
  %v2210 = vor.u32 %v2205, %v2209
  %v2212 = vshll.u32 %v1885, 16
  %v2214 = vrot.slane %v2212, 1
  %v2215 = vsel %vm1891, %v2210, %v2214
  %v2217 = vshrl.u32 %v1790, 16
  %v2219 = vshll.u32 %v1790, 16
  %v2221 = vrot.slane %v2219, 1
  %v2222 = vor.u32 %v2217, %v2221
  %v2224 = vshll.u32 %v1886, 16
  %v2226 = vrot.slane %v2224, 1
  %v2227 = vsel %vm1891, %v2222, %v2226
  %v2229 = vshrl.u32 %v1791, 16
  %v2231 = vshll.u32 %v1791, 16
  %v2233 = vrot.slane %v2231, 1
  %v2234 = vor.u32 %v2229, %v2233
  %v2236 = vshll.u32 %v1887, 16
  %v2238 = vrot.slane %v2236, 1
  %v2239 = vsel %vm1891, %v2234, %v2238
  %v2241 = vshrl.u32 %v1792, 16
  %v2243 = vshll.u32 %v1792, 16
  %v2245 = vrot.slane %v2243, 1
  %v2246 = vor.u32 %v2241, %v2245
  %v2248 = vshll.u32 %v1888, 16
  %v2250 = vrot.slane %v2248, 1
  %v2251 = vsel %vm1891, %v2246, %v2250
  %v2253 = vshrl.u32 %v1793, 16
  %v2255 = vshll.u32 %v1793, 16
  %v2257 = vrot.slane %v2255, 1
  %v2258 = vor.u32 %v2253, %v2257
  %v2260 = vshll.u32 %v1889, 16
  %v2262 = vrot.slane %v2260, 1
  %v2263 = vsel %vm1891, %v2258, %v2262
  %v2265 = vshrl.u32 %v1794, 16
  %v2267 = vshll.u32 %v1794, 16
  %v2269 = vrot.slane %v2267, 1
  %v2270 = vor.u32 %v2265, %v2269
  %v2272 = vshll.u32 %v1890, 16
  %v2274 = vrot.slane %v2272, 1
  %v2275 = vsel %vm1891, %v2270, %v2274
  %2276 = vrot.lane.b32.xlu0 %v1903, 4
  %v2277 = vpop.permute.xlu0 %2276
  %2278 = vrot.lane.b32.xlu0 %v1915, 4
  %v2279 = vpop.permute.xlu0 %2278
  %2280 = vrot.lane.b32.xlu0 %v1927, 4
  %v2281 = vpop.permute.xlu0 %2280
  %2282 = vrot.lane.b32.xlu0 %v1939, 4
  %v2283 = vpop.permute.xlu0 %2282
  %2284 = vrot.lane.b32.xlu0 %v1951, 4
  %v2285 = vpop.permute.xlu0 %2284
  %2286 = vrot.lane.b32.xlu0 %v1963, 4
  %v2287 = vpop.permute.xlu0 %2286
  %2288 = vrot.lane.b32.xlu0 %v1975, 4
  %v2289 = vpop.permute.xlu0 %2288
  %2290 = vrot.lane.b32.xlu0 %v1987, 4
  %v2291 = vpop.permute.xlu0 %2290
  %2292 = vrot.lane.b32.xlu0 %v1999, 4
  %v2293 = vpop.permute.xlu0 %2292
  %2294 = vrot.lane.b32.xlu0 %v2011, 4
  %v2295 = vpop.permute.xlu0 %2294
  %2296 = vrot.lane.b32.xlu0 %v2023, 4
  %v2297 = vpop.permute.xlu0 %2296
  %2298 = vrot.lane.b32.xlu0 %v2035, 4
  %v2299 = vpop.permute.xlu0 %2298
  %2300 = vrot.lane.b32.xlu0 %v2047, 4
  %v2301 = vpop.permute.xlu0 %2300
  %2302 = vrot.lane.b32.xlu0 %v2059, 4
  %v2303 = vpop.permute.xlu0 %2302
  %2304 = vrot.lane.b32.xlu0 %v2071, 4
  %v2305 = vpop.permute.xlu0 %2304
  %2306 = vrot.lane.b32.xlu0 %v2083, 4
  %v2307 = vpop.permute.xlu0 %2306
  %2308 = vrot.lane.b32.xlu0 %v2095, 4
  %v2309 = vpop.permute.xlu0 %2308
  %2310 = vrot.lane.b32.xlu0 %v2107, 4
  %v2311 = vpop.permute.xlu0 %2310
  %2312 = vrot.lane.b32.xlu0 %v2119, 4
  %v2313 = vpop.permute.xlu0 %2312
  %2314 = vrot.lane.b32.xlu0 %v2131, 4
  %v2315 = vpop.permute.xlu0 %2314
  %2316 = vrot.lane.b32.xlu0 %v2143, 4
  %v2317 = vpop.permute.xlu0 %2316
  %2318 = vrot.lane.b32.xlu0 %v2155, 4
  %v2319 = vpop.permute.xlu0 %2318
  %2320 = vrot.lane.b32.xlu0 %v2167, 4
  %v2321 = vpop.permute.xlu0 %2320
  %2322 = vrot.lane.b32.xlu0 %v2179, 4
  %v2323 = vpop.permute.xlu0 %2322
  %2324 = vrot.lane.b32.xlu0 %v2191, 4
  %v2325 = vpop.permute.xlu0 %2324
  %2326 = vrot.lane.b32.xlu0 %v2203, 4
  %v2327 = vpop.permute.xlu0 %2326
  %2328 = vrot.lane.b32.xlu0 %v2215, 4
  %v2329 = vpop.permute.xlu0 %2328
  %2330 = vrot.lane.b32.xlu0 %v2227, 4
  %v2331 = vpop.permute.xlu0 %2330
  %2332 = vrot.lane.b32.xlu0 %v2239, 4
  %v2333 = vpop.permute.xlu0 %2332
  %2334 = vrot.lane.b32.xlu0 %v2251, 4
  %v2335 = vpop.permute.xlu0 %2334
  %2336 = vrot.lane.b32.xlu0 %v2263, 4
  %v2337 = vpop.permute.xlu0 %2336
  %2338 = vrot.lane.b32.xlu0 %v2275, 4
  %v2339 = vpop.permute.xlu0 %2338
  %v2372 = vunpack.c.l.b16 %v1346
  %v2373 = vunpack.c.l.b16 %v1347
  %v2374 = vunpack.c.l.b16 %v1348
  %v2375 = vunpack.c.l.b16 %v1349
  %v2376 = vunpack.c.l.b16 %v1350
  %v2377 = vunpack.c.l.b16 %v1351
  %v2378 = vunpack.c.l.b16 %v1352
  %v2379 = vunpack.c.l.b16 %v1353
  %v2380 = vunpack.c.l.b16 %v1354
  %v2381 = vunpack.c.l.b16 %v1355
  %v2382 = vunpack.c.l.b16 %v1356
  %v2383 = vunpack.c.l.b16 %v1357
  %v2384 = vunpack.c.l.b16 %v1358
  %v2385 = vunpack.c.l.b16 %v1359
  %v2386 = vunpack.c.l.b16 %v1360
  %v2387 = vunpack.c.l.b16 %v1361
  %v2388 = vunpack.c.l.b16 %v1362
  %v2389 = vunpack.c.l.b16 %v1363
  %v2390 = vunpack.c.l.b16 %v1364
  %v2391 = vunpack.c.l.b16 %v1365
  %v2392 = vunpack.c.l.b16 %v1366
  %v2393 = vunpack.c.l.b16 %v1367
  %v2394 = vunpack.c.l.b16 %v1368
  %v2395 = vunpack.c.l.b16 %v1369
  %v2396 = vunpack.c.l.b16 %v1370
  %v2397 = vunpack.c.l.b16 %v1371
  %v2398 = vunpack.c.l.b16 %v1372
  %v2399 = vunpack.c.l.b16 %v1373
  %v2400 = vunpack.c.l.b16 %v1374
  %v2401 = vunpack.c.l.b16 %v1375
  %v2402 = vunpack.c.l.b16 %v1376
  %v2403 = vunpack.c.l.b16 %v1377
  %v2404 = vpack.c.b16 %v1700, %v2372
  %v2405 = vpack.c.b16 %v1702, %v2373
  %v2406 = vpack.c.b16 %v1704, %v2374
  %v2407 = vpack.c.b16 %v1706, %v2375
  %v2408 = vpack.c.b16 %v1708, %v2376
  %v2409 = vpack.c.b16 %v1710, %v2377
  %v2410 = vpack.c.b16 %v1712, %v2378
  %v2411 = vpack.c.b16 %v1714, %v2379
  %v2412 = vpack.c.b16 %v1716, %v2380
  %v2413 = vpack.c.b16 %v1718, %v2381
  %v2414 = vpack.c.b16 %v1720, %v2382
  %v2415 = vpack.c.b16 %v1722, %v2383
  %v2416 = vpack.c.b16 %v1724, %v2384
  %v2417 = vpack.c.b16 %v1726, %v2385
  %v2418 = vpack.c.b16 %v1728, %v2386
  %v2419 = vpack.c.b16 %v1730, %v2387
  %v2420 = vpack.c.b16 %v1732, %v2388
  %v2421 = vpack.c.b16 %v1734, %v2389
  %v2422 = vpack.c.b16 %v1736, %v2390
  %v2423 = vpack.c.b16 %v1738, %v2391
  %v2424 = vpack.c.b16 %v1740, %v2392
  %v2425 = vpack.c.b16 %v1742, %v2393
  %v2426 = vpack.c.b16 %v1744, %v2394
  %v2427 = vpack.c.b16 %v1746, %v2395
  %v2428 = vpack.c.b16 %v1748, %v2396
  %v2429 = vpack.c.b16 %v1750, %v2397
  %v2430 = vpack.c.b16 %v1752, %v2398
  %v2431 = vpack.c.b16 %v1754, %v2399
  %v2432 = vpack.c.b16 %v1756, %v2400
  %v2433 = vpack.c.b16 %v1758, %v2401
  %v2434 = vpack.c.b16 %v1760, %v2402
  %v2435 = vpack.c.b16 %v1762, %v2403
  %vm2436 = vcmask 1046528
  %v2437 = vrot.slane %v2404, 1
  %v2438 = vrot.slane %v1859, 1
  %v2439 = vsel %vm2436, %v2437, %v2438
  %v2440 = vrot.slane %v2405, 1
  %v2441 = vrot.slane %v1860, 1
  %v2442 = vsel %vm2436, %v2440, %v2441
  %v2443 = vrot.slane %v2406, 1
  %v2444 = vrot.slane %v1861, 1
  %v2445 = vsel %vm2436, %v2443, %v2444
  %v2446 = vrot.slane %v2407, 1
  %v2447 = vrot.slane %v1862, 1
  %v2448 = vsel %vm2436, %v2446, %v2447
  %v2449 = vrot.slane %v2408, 1
  %v2450 = vrot.slane %v1863, 1
  %v2451 = vsel %vm2436, %v2449, %v2450
  %v2452 = vrot.slane %v2409, 1
  %v2453 = vrot.slane %v1864, 1
  %v2454 = vsel %vm2436, %v2452, %v2453
  %v2455 = vrot.slane %v2410, 1
  %v2456 = vrot.slane %v1865, 1
  %v2457 = vsel %vm2436, %v2455, %v2456
  %v2458 = vrot.slane %v2411, 1
  %v2459 = vrot.slane %v1866, 1
  %v2460 = vsel %vm2436, %v2458, %v2459
  %v2461 = vrot.slane %v2412, 1
  %v2462 = vrot.slane %v1867, 1
  %v2463 = vsel %vm2436, %v2461, %v2462
  %v2464 = vrot.slane %v2413, 1
  %v2465 = vrot.slane %v1868, 1
  %v2466 = vsel %vm2436, %v2464, %v2465
  %v2467 = vrot.slane %v2414, 1
  %v2468 = vrot.slane %v1869, 1
  %v2469 = vsel %vm2436, %v2467, %v2468
  %v2470 = vrot.slane %v2415, 1
  %v2471 = vrot.slane %v1870, 1
  %v2472 = vsel %vm2436, %v2470, %v2471
  %v2473 = vrot.slane %v2416, 1
  %v2474 = vrot.slane %v1871, 1
  %v2475 = vsel %vm2436, %v2473, %v2474
  %v2476 = vrot.slane %v2417, 1
  %v2477 = vrot.slane %v1872, 1
  %v2478 = vsel %vm2436, %v2476, %v2477
  %v2479 = vrot.slane %v2418, 1
  %v2480 = vrot.slane %v1873, 1
  %v2481 = vsel %vm2436, %v2479, %v2480
  %v2482 = vrot.slane %v2419, 1
  %v2483 = vrot.slane %v1874, 1
  %v2484 = vsel %vm2436, %v2482, %v2483
  %v2485 = vrot.slane %v2420, 1
  %v2486 = vrot.slane %v1875, 1
  %v2487 = vsel %vm2436, %v2485, %v2486
  %v2488 = vrot.slane %v2421, 1
  %v2489 = vrot.slane %v1876, 1
  %v2490 = vsel %vm2436, %v2488, %v2489
  %v2491 = vrot.slane %v2422, 1
  %v2492 = vrot.slane %v1877, 1
  %v2493 = vsel %vm2436, %v2491, %v2492
  %v2494 = vrot.slane %v2423, 1
  %v2495 = vrot.slane %v1878, 1
  %v2496 = vsel %vm2436, %v2494, %v2495
  %v2497 = vrot.slane %v2424, 1
  %v2498 = vrot.slane %v1879, 1
  %v2499 = vsel %vm2436, %v2497, %v2498
  %v2500 = vrot.slane %v2425, 1
  %v2501 = vrot.slane %v1880, 1
  %v2502 = vsel %vm2436, %v2500, %v2501
  %v2503 = vrot.slane %v2426, 1
  %v2504 = vrot.slane %v1881, 1
  %v2505 = vsel %vm2436, %v2503, %v2504
  %v2506 = vrot.slane %v2427, 1
  %v2507 = vrot.slane %v1882, 1
  %v2508 = vsel %vm2436, %v2506, %v2507
  %v2509 = vrot.slane %v2428, 1
  %v2510 = vrot.slane %v1883, 1
  %v2511 = vsel %vm2436, %v2509, %v2510
  %v2512 = vrot.slane %v2429, 1
  %v2513 = vrot.slane %v1884, 1
  %v2514 = vsel %vm2436, %v2512, %v2513
  %v2515 = vrot.slane %v2430, 1
  %v2516 = vrot.slane %v1885, 1
  %v2517 = vsel %vm2436, %v2515, %v2516
  %v2518 = vrot.slane %v2431, 1
  %v2519 = vrot.slane %v1886, 1
  %v2520 = vsel %vm2436, %v2518, %v2519
  %v2521 = vrot.slane %v2432, 1
  %v2522 = vrot.slane %v1887, 1
  %v2523 = vsel %vm2436, %v2521, %v2522
  %v2524 = vrot.slane %v2433, 1
  %v2525 = vrot.slane %v1888, 1
  %v2526 = vsel %vm2436, %v2524, %v2525
  %v2527 = vrot.slane %v2434, 1
  %v2528 = vrot.slane %v1889, 1
  %v2529 = vsel %vm2436, %v2527, %v2528
  %v2530 = vrot.slane %v2435, 1
  %v2531 = vrot.slane %v1890, 1
  %v2532 = vsel %vm2436, %v2530, %v2531
  %2533 = vrot.lane.b32.xlu0 %v2439, 8
  %v2534 = vpop.permute.xlu0 %2533
  %2535 = vrot.lane.b32.xlu0 %v2442, 8
  %v2536 = vpop.permute.xlu0 %2535
  %2537 = vrot.lane.b32.xlu0 %v2445, 8
  %v2538 = vpop.permute.xlu0 %2537
  %2539 = vrot.lane.b32.xlu0 %v2448, 8
  %v2540 = vpop.permute.xlu0 %2539
  %2541 = vrot.lane.b32.xlu0 %v2451, 8
  %v2542 = vpop.permute.xlu0 %2541
  %2543 = vrot.lane.b32.xlu0 %v2454, 8
  %v2544 = vpop.permute.xlu0 %2543
  %2545 = vrot.lane.b32.xlu0 %v2457, 8
  %v2546 = vpop.permute.xlu0 %2545
  %2547 = vrot.lane.b32.xlu0 %v2460, 8
  %v2548 = vpop.permute.xlu0 %2547
  %2549 = vrot.lane.b32.xlu0 %v2463, 8
  %v2550 = vpop.permute.xlu0 %2549
  %2551 = vrot.lane.b32.xlu0 %v2466, 8
  %v2552 = vpop.permute.xlu0 %2551
  %2553 = vrot.lane.b32.xlu0 %v2469, 8
  %v2554 = vpop.permute.xlu0 %2553
  %2555 = vrot.lane.b32.xlu0 %v2472, 8
  %v2556 = vpop.permute.xlu0 %2555
  %2557 = vrot.lane.b32.xlu0 %v2475, 8
  %v2558 = vpop.permute.xlu0 %2557
  %2559 = vrot.lane.b32.xlu0 %v2478, 8
  %v2560 = vpop.permute.xlu0 %2559
  %2561 = vrot.lane.b32.xlu0 %v2481, 8
  %v2562 = vpop.permute.xlu0 %2561
  %2563 = vrot.lane.b32.xlu0 %v2484, 8
  %v2564 = vpop.permute.xlu0 %2563
  %2565 = vrot.lane.b32.xlu0 %v2487, 8
  %v2566 = vpop.permute.xlu0 %2565
  %2567 = vrot.lane.b32.xlu0 %v2490, 8
  %v2568 = vpop.permute.xlu0 %2567
  %2569 = vrot.lane.b32.xlu0 %v2493, 8
  %v2570 = vpop.permute.xlu0 %2569
  %2571 = vrot.lane.b32.xlu0 %v2496, 8
  %v2572 = vpop.permute.xlu0 %2571
  %2573 = vrot.lane.b32.xlu0 %v2499, 8
  %v2574 = vpop.permute.xlu0 %2573
  %2575 = vrot.lane.b32.xlu0 %v2502, 8
  %v2576 = vpop.permute.xlu0 %2575
  %2577 = vrot.lane.b32.xlu0 %v2505, 8
  %v2578 = vpop.permute.xlu0 %2577
  %2579 = vrot.lane.b32.xlu0 %v2508, 8
  %v2580 = vpop.permute.xlu0 %2579
  %2581 = vrot.lane.b32.xlu0 %v2511, 8
  %v2582 = vpop.permute.xlu0 %2581
  %2583 = vrot.lane.b32.xlu0 %v2514, 8
  %v2584 = vpop.permute.xlu0 %2583
  %2585 = vrot.lane.b32.xlu0 %v2517, 8
  %v2586 = vpop.permute.xlu0 %2585
  %2587 = vrot.lane.b32.xlu0 %v2520, 8
  %v2588 = vpop.permute.xlu0 %2587
  %2589 = vrot.lane.b32.xlu0 %v2523, 8
  %v2590 = vpop.permute.xlu0 %2589
  %2591 = vrot.lane.b32.xlu0 %v2526, 8
  %v2592 = vpop.permute.xlu0 %2591
  %2593 = vrot.lane.b32.xlu0 %v2529, 8
  %v2594 = vpop.permute.xlu0 %2593
  %2595 = vrot.lane.b32.xlu0 %v2532, 8
  %v2596 = vpop.permute.xlu0 %2595
  %v2661 = vunpack.c.l.b16 %v1378
  %v2662 = vunpack.c.l.b16 %v1379
  %v2663 = vunpack.c.l.b16 %v1380
  %v2664 = vunpack.c.l.b16 %v1381
  %v2665 = vunpack.c.l.b16 %v1382
  %v2666 = vunpack.c.l.b16 %v1383
  %v2667 = vunpack.c.l.b16 %v1384
  %v2668 = vunpack.c.l.b16 %v1385
  %v2669 = vunpack.c.l.b16 %v1386
  %v2670 = vunpack.c.l.b16 %v1387
  %v2671 = vunpack.c.l.b16 %v1388
  %v2672 = vunpack.c.l.b16 %v1389
  %v2673 = vunpack.c.l.b16 %v1390
  %v2674 = vunpack.c.l.b16 %v1391
  %v2675 = vunpack.c.l.b16 %v1392
  %v2676 = vunpack.c.l.b16 %v1393
  %v2677 = vunpack.c.l.b16 %v1394
  %v2678 = vunpack.c.l.b16 %v1395
  %v2679 = vunpack.c.l.b16 %v1396
  %v2680 = vunpack.c.l.b16 %v1397
  %v2681 = vunpack.c.l.b16 %v1398
  %v2682 = vunpack.c.l.b16 %v1399
  %v2683 = vunpack.c.l.b16 %v1400
  %v2684 = vunpack.c.l.b16 %v1401
  %v2685 = vunpack.c.l.b16 %v1402
  %v2686 = vunpack.c.l.b16 %v1403
  %v2687 = vunpack.c.l.b16 %v1404
  %v2688 = vunpack.c.l.b16 %v1405
  %v2689 = vunpack.c.l.b16 %v1406
  %v2690 = vunpack.c.l.b16 %v1407
  %v2691 = vunpack.c.l.b16 %v1408
  %v2692 = vunpack.c.l.b16 %v1409
  %v2693 = vunpack.c.l.b16 %v1410
  %v2694 = vunpack.c.l.b16 %v1411
  %v2695 = vunpack.c.l.b16 %v1412
  %v2696 = vunpack.c.l.b16 %v1413
  %v2697 = vunpack.c.l.b16 %v1414
  %v2698 = vunpack.c.l.b16 %v1415
  %v2699 = vunpack.c.l.b16 %v1416
  %v2700 = vunpack.c.l.b16 %v1417
  %v2701 = vunpack.c.l.b16 %v1418
  %v2702 = vunpack.c.l.b16 %v1419
  %v2703 = vunpack.c.l.b16 %v1420
  %v2704 = vunpack.c.l.b16 %v1421
  %v2705 = vunpack.c.l.b16 %v1422
  %v2706 = vunpack.c.l.b16 %v1423
  %v2707 = vunpack.c.l.b16 %v1424
  %v2708 = vunpack.c.l.b16 %v1425
  %v2709 = vunpack.c.l.b16 %v1426
  %v2710 = vunpack.c.l.b16 %v1427
  %v2711 = vunpack.c.l.b16 %v1428
  %v2712 = vunpack.c.l.b16 %v1429
  %v2713 = vunpack.c.l.b16 %v1430
  %v2714 = vunpack.c.l.b16 %v1431
  %v2715 = vunpack.c.l.b16 %v1432
  %v2716 = vunpack.c.l.b16 %v1433
  %v2717 = vunpack.c.l.b16 %v1434
  %v2718 = vunpack.c.l.b16 %v1435
  %v2719 = vunpack.c.l.b16 %v1436
  %v2720 = vunpack.c.l.b16 %v1437
  %v2721 = vunpack.c.l.b16 %v1438
  %v2722 = vunpack.c.l.b16 %v1439
  %v2723 = vunpack.c.l.b16 %v1440
  %v2724 = vunpack.c.l.b16 %v1441
  %v2725 = vpack.c.b16 %v2662, %v2661
  %v2726 = vpack.c.b16 %v2664, %v2663
  %v2727 = vpack.c.b16 %v2666, %v2665
  %v2728 = vpack.c.b16 %v2668, %v2667
  %v2729 = vpack.c.b16 %v2670, %v2669
  %v2730 = vpack.c.b16 %v2672, %v2671
  %v2731 = vpack.c.b16 %v2674, %v2673
  %v2732 = vpack.c.b16 %v2676, %v2675
  %v2733 = vpack.c.b16 %v2678, %v2677
  %v2734 = vpack.c.b16 %v2680, %v2679
  %v2735 = vpack.c.b16 %v2682, %v2681
  %v2736 = vpack.c.b16 %v2684, %v2683
  %v2737 = vpack.c.b16 %v2686, %v2685
  %v2738 = vpack.c.b16 %v2688, %v2687
  %v2739 = vpack.c.b16 %v2690, %v2689
  %v2740 = vpack.c.b16 %v2692, %v2691
  %v2741 = vpack.c.b16 %v2694, %v2693
  %v2742 = vpack.c.b16 %v2696, %v2695
  %v2743 = vpack.c.b16 %v2698, %v2697
  %v2744 = vpack.c.b16 %v2700, %v2699
  %v2745 = vpack.c.b16 %v2702, %v2701
  %v2746 = vpack.c.b16 %v2704, %v2703
  %v2747 = vpack.c.b16 %v2706, %v2705
  %v2748 = vpack.c.b16 %v2708, %v2707
  %v2749 = vpack.c.b16 %v2710, %v2709
  %v2750 = vpack.c.b16 %v2712, %v2711
  %v2751 = vpack.c.b16 %v2714, %v2713
  %v2752 = vpack.c.b16 %v2716, %v2715
  %v2753 = vpack.c.b16 %v2718, %v2717
  %v2754 = vpack.c.b16 %v2720, %v2719
  %v2755 = vpack.c.b16 %v2722, %v2721
  %v2756 = vpack.c.b16 %v2724, %v2723
  %2757 = vrot.lane.b32.xlu0 %v2725, 12
  %v2758 = vpop.permute.xlu0 %2757
  %2759 = vrot.lane.b32.xlu0 %v2726, 12
  %v2760 = vpop.permute.xlu0 %2759
  %2761 = vrot.lane.b32.xlu0 %v2727, 12
  %v2762 = vpop.permute.xlu0 %2761
  %2763 = vrot.lane.b32.xlu0 %v2728, 12
  %v2764 = vpop.permute.xlu0 %2763
  %2765 = vrot.lane.b32.xlu0 %v2729, 12
  %v2766 = vpop.permute.xlu0 %2765
  %2767 = vrot.lane.b32.xlu0 %v2730, 12
  %v2768 = vpop.permute.xlu0 %2767
  %2769 = vrot.lane.b32.xlu0 %v2731, 12
  %v2770 = vpop.permute.xlu0 %2769
  %2771 = vrot.lane.b32.xlu0 %v2732, 12
  %v2772 = vpop.permute.xlu0 %2771
  %2773 = vrot.lane.b32.xlu0 %v2733, 12
  %v2774 = vpop.permute.xlu0 %2773
  %2775 = vrot.lane.b32.xlu0 %v2734, 12
  %v2776 = vpop.permute.xlu0 %2775
  %2777 = vrot.lane.b32.xlu0 %v2735, 12
  %v2778 = vpop.permute.xlu0 %2777
  %2779 = vrot.lane.b32.xlu0 %v2736, 12
  %v2780 = vpop.permute.xlu0 %2779
  %2781 = vrot.lane.b32.xlu0 %v2737, 12
  %v2782 = vpop.permute.xlu0 %2781
  %2783 = vrot.lane.b32.xlu0 %v2738, 12
  %v2784 = vpop.permute.xlu0 %2783
  %2785 = vrot.lane.b32.xlu0 %v2739, 12
  %v2786 = vpop.permute.xlu0 %2785
  %2787 = vrot.lane.b32.xlu0 %v2740, 12
  %v2788 = vpop.permute.xlu0 %2787
  %2789 = vrot.lane.b32.xlu0 %v2741, 12
  %v2790 = vpop.permute.xlu0 %2789
  %2791 = vrot.lane.b32.xlu0 %v2742, 12
  %v2792 = vpop.permute.xlu0 %2791
  %2793 = vrot.lane.b32.xlu0 %v2743, 12
  %v2794 = vpop.permute.xlu0 %2793
  %2795 = vrot.lane.b32.xlu0 %v2744, 12
  %v2796 = vpop.permute.xlu0 %2795
  %2797 = vrot.lane.b32.xlu0 %v2745, 12
  %v2798 = vpop.permute.xlu0 %2797
  %2799 = vrot.lane.b32.xlu0 %v2746, 12
  %v2800 = vpop.permute.xlu0 %2799
  %2801 = vrot.lane.b32.xlu0 %v2747, 12
  %v2802 = vpop.permute.xlu0 %2801
  %2803 = vrot.lane.b32.xlu0 %v2748, 12
  %v2804 = vpop.permute.xlu0 %2803
  %2805 = vrot.lane.b32.xlu0 %v2749, 12
  %v2806 = vpop.permute.xlu0 %2805
  %2807 = vrot.lane.b32.xlu0 %v2750, 12
  %v2808 = vpop.permute.xlu0 %2807
  %2809 = vrot.lane.b32.xlu0 %v2751, 12
  %v2810 = vpop.permute.xlu0 %2809
  %2811 = vrot.lane.b32.xlu0 %v2752, 12
  %v2812 = vpop.permute.xlu0 %2811
  %2813 = vrot.lane.b32.xlu0 %v2753, 12
  %v2814 = vpop.permute.xlu0 %2813
  %2815 = vrot.lane.b32.xlu0 %v2754, 12
  %v2816 = vpop.permute.xlu0 %2815
  %2817 = vrot.lane.b32.xlu0 %v2755, 12
  %v2818 = vpop.permute.xlu0 %2817
  %2819 = vrot.lane.b32.xlu0 %v2756, 12
  %v2820 = vpop.permute.xlu0 %2819
  %v2853 = vunpack.c.l.b16 %v1442
  %v2854 = vunpack.c.l.b16 %v1443
  %v2855 = vunpack.c.l.b16 %v1444
  %v2856 = vunpack.c.l.b16 %v1445
  %v2857 = vunpack.c.l.b16 %v1446
  %v2858 = vunpack.c.l.b16 %v1447
  %v2859 = vunpack.c.l.b16 %v1448
  %v2860 = vunpack.c.l.b16 %v1449
  %v2861 = vunpack.c.l.b16 %v1450
  %v2862 = vunpack.c.l.b16 %v1451
  %v2863 = vunpack.c.l.b16 %v1452
  %v2864 = vunpack.c.l.b16 %v1453
  %v2865 = vunpack.c.l.b16 %v1454
  %v2866 = vunpack.c.l.b16 %v1455
  %v2867 = vunpack.c.l.b16 %v1456
  %v2868 = vunpack.c.l.b16 %v1457
  %v2869 = vunpack.c.l.b16 %v1458
  %v2870 = vunpack.c.l.b16 %v1459
  %v2871 = vunpack.c.l.b16 %v1460
  %v2872 = vunpack.c.l.b16 %v1461
  %v2873 = vunpack.c.l.b16 %v1462
  %v2874 = vunpack.c.l.b16 %v1463
  %v2875 = vunpack.c.l.b16 %v1464
  %v2876 = vunpack.c.l.b16 %v1465
  %v2877 = vunpack.c.l.b16 %v1466
  %v2878 = vunpack.c.l.b16 %v1467
  %v2879 = vunpack.c.l.b16 %v1468
  %v2880 = vunpack.c.l.b16 %v1469
  %v2881 = vunpack.c.l.b16 %v1470
  %v2882 = vunpack.c.l.b16 %v1471
  %v2883 = vunpack.c.l.b16 %v1472
  %v2884 = vunpack.c.l.b16 %v1473
  %v2885 = vpack.c.b16 %v2853, %v2853
  %v2886 = vpack.c.b16 %v2854, %v2854
  %v2887 = vpack.c.b16 %v2855, %v2855
  %v2888 = vpack.c.b16 %v2856, %v2856
  %v2889 = vpack.c.b16 %v2857, %v2857
  %v2890 = vpack.c.b16 %v2858, %v2858
  %v2891 = vpack.c.b16 %v2859, %v2859
  %v2892 = vpack.c.b16 %v2860, %v2860
  %v2893 = vpack.c.b16 %v2861, %v2861
  %v2894 = vpack.c.b16 %v2862, %v2862
  %v2895 = vpack.c.b16 %v2863, %v2863
  %v2896 = vpack.c.b16 %v2864, %v2864
  %v2897 = vpack.c.b16 %v2865, %v2865
  %v2898 = vpack.c.b16 %v2866, %v2866
  %v2899 = vpack.c.b16 %v2867, %v2867
  %v2900 = vpack.c.b16 %v2868, %v2868
  %v2901 = vpack.c.b16 %v2869, %v2869
  %v2902 = vpack.c.b16 %v2870, %v2870
  %v2903 = vpack.c.b16 %v2871, %v2871
  %v2904 = vpack.c.b16 %v2872, %v2872
  %v2905 = vpack.c.b16 %v2873, %v2873
  %v2906 = vpack.c.b16 %v2874, %v2874
  %v2907 = vpack.c.b16 %v2875, %v2875
  %v2908 = vpack.c.b16 %v2876, %v2876
  %v2909 = vpack.c.b16 %v2877, %v2877
  %v2910 = vpack.c.b16 %v2878, %v2878
  %v2911 = vpack.c.b16 %v2879, %v2879
  %v2912 = vpack.c.b16 %v2880, %v2880
  %v2913 = vpack.c.b16 %v2881, %v2881
  %v2914 = vpack.c.b16 %v2882, %v2882
  %v2915 = vpack.c.b16 %v2883, %v2883
  %v2916 = vpack.c.b16 %v2884, %v2884
  %v2918 = vshrl.u32 %v2725, 16
  %v2920 = vshll.u32 %v2725, 16
  %v2922 = vrot.slane %v2920, 1
  %v2923 = vor.u32 %v2918, %v2922
  %v2925 = vshll.u32 %v2885, 16
  %v2927 = vrot.slane %v2925, 1
  %v2928 = vsel %vm1891, %v2923, %v2927
  %v2930 = vshrl.u32 %v2726, 16
  %v2932 = vshll.u32 %v2726, 16
  %v2934 = vrot.slane %v2932, 1
  %v2935 = vor.u32 %v2930, %v2934
  %v2937 = vshll.u32 %v2886, 16
  %v2939 = vrot.slane %v2937, 1
  %v2940 = vsel %vm1891, %v2935, %v2939
  %v2942 = vshrl.u32 %v2727, 16
  %v2944 = vshll.u32 %v2727, 16
  %v2946 = vrot.slane %v2944, 1
  %v2947 = vor.u32 %v2942, %v2946
  %v2949 = vshll.u32 %v2887, 16
  %v2951 = vrot.slane %v2949, 1
  %v2952 = vsel %vm1891, %v2947, %v2951
  %v2954 = vshrl.u32 %v2728, 16
  %v2956 = vshll.u32 %v2728, 16
  %v2958 = vrot.slane %v2956, 1
  %v2959 = vor.u32 %v2954, %v2958
  %v2961 = vshll.u32 %v2888, 16
  %v2963 = vrot.slane %v2961, 1
  %v2964 = vsel %vm1891, %v2959, %v2963
  %v2966 = vshrl.u32 %v2729, 16
  %v2968 = vshll.u32 %v2729, 16
  %v2970 = vrot.slane %v2968, 1
  %v2971 = vor.u32 %v2966, %v2970
  %v2973 = vshll.u32 %v2889, 16
  %v2975 = vrot.slane %v2973, 1
  %v2976 = vsel %vm1891, %v2971, %v2975
  %v2978 = vshrl.u32 %v2730, 16
  %v2980 = vshll.u32 %v2730, 16
  %v2982 = vrot.slane %v2980, 1
  %v2983 = vor.u32 %v2978, %v2982
  %v2985 = vshll.u32 %v2890, 16
  %v2987 = vrot.slane %v2985, 1
  %v2988 = vsel %vm1891, %v2983, %v2987
  %v2990 = vshrl.u32 %v2731, 16
  %v2992 = vshll.u32 %v2731, 16
  %v2994 = vrot.slane %v2992, 1
  %v2995 = vor.u32 %v2990, %v2994
  %v2997 = vshll.u32 %v2891, 16
  %v2999 = vrot.slane %v2997, 1
  %v3000 = vsel %vm1891, %v2995, %v2999
  %v3002 = vshrl.u32 %v2732, 16
  %v3004 = vshll.u32 %v2732, 16
  %v3006 = vrot.slane %v3004, 1
  %v3007 = vor.u32 %v3002, %v3006
  %v3009 = vshll.u32 %v2892, 16
  %v3011 = vrot.slane %v3009, 1
  %v3012 = vsel %vm1891, %v3007, %v3011
  %v3014 = vshrl.u32 %v2733, 16
  %v3016 = vshll.u32 %v2733, 16
  %v3018 = vrot.slane %v3016, 1
  %v3019 = vor.u32 %v3014, %v3018
  %v3021 = vshll.u32 %v2893, 16
  %v3023 = vrot.slane %v3021, 1
  %v3024 = vsel %vm1891, %v3019, %v3023
  %v3026 = vshrl.u32 %v2734, 16
  %v3028 = vshll.u32 %v2734, 16
  %v3030 = vrot.slane %v3028, 1
  %v3031 = vor.u32 %v3026, %v3030
  %v3033 = vshll.u32 %v2894, 16
  %v3035 = vrot.slane %v3033, 1
  %v3036 = vsel %vm1891, %v3031, %v3035
  %v3038 = vshrl.u32 %v2735, 16
  %v3040 = vshll.u32 %v2735, 16
  %v3042 = vrot.slane %v3040, 1
  %v3043 = vor.u32 %v3038, %v3042
  %v3045 = vshll.u32 %v2895, 16
  %v3047 = vrot.slane %v3045, 1
  %v3048 = vsel %vm1891, %v3043, %v3047
  %v3050 = vshrl.u32 %v2736, 16
  %v3052 = vshll.u32 %v2736, 16
  %v3054 = vrot.slane %v3052, 1
  %v3055 = vor.u32 %v3050, %v3054
  %v3057 = vshll.u32 %v2896, 16
  %v3059 = vrot.slane %v3057, 1
  %v3060 = vsel %vm1891, %v3055, %v3059
  %v3062 = vshrl.u32 %v2737, 16
  %v3064 = vshll.u32 %v2737, 16
  %v3066 = vrot.slane %v3064, 1
  %v3067 = vor.u32 %v3062, %v3066
  %v3069 = vshll.u32 %v2897, 16
  %v3071 = vrot.slane %v3069, 1
  %v3072 = vsel %vm1891, %v3067, %v3071
  %v3074 = vshrl.u32 %v2738, 16
  %v3076 = vshll.u32 %v2738, 16
  %v3078 = vrot.slane %v3076, 1
  %v3079 = vor.u32 %v3074, %v3078
  %v3081 = vshll.u32 %v2898, 16
  %v3083 = vrot.slane %v3081, 1
  %v3084 = vsel %vm1891, %v3079, %v3083
  %v3086 = vshrl.u32 %v2739, 16
  %v3088 = vshll.u32 %v2739, 16
  %v3090 = vrot.slane %v3088, 1
  %v3091 = vor.u32 %v3086, %v3090
  %v3093 = vshll.u32 %v2899, 16
  %v3095 = vrot.slane %v3093, 1
  %v3096 = vsel %vm1891, %v3091, %v3095
  %v3098 = vshrl.u32 %v2740, 16
  %v3100 = vshll.u32 %v2740, 16
  %v3102 = vrot.slane %v3100, 1
  %v3103 = vor.u32 %v3098, %v3102
  %v3105 = vshll.u32 %v2900, 16
  %v3107 = vrot.slane %v3105, 1
  %v3108 = vsel %vm1891, %v3103, %v3107
  %v3110 = vshrl.u32 %v2741, 16
  %v3112 = vshll.u32 %v2741, 16
  %v3114 = vrot.slane %v3112, 1
  %v3115 = vor.u32 %v3110, %v3114
  %v3117 = vshll.u32 %v2901, 16
  %v3119 = vrot.slane %v3117, 1
  %v3120 = vsel %vm1891, %v3115, %v3119
  %v3122 = vshrl.u32 %v2742, 16
  %v3124 = vshll.u32 %v2742, 16
  %v3126 = vrot.slane %v3124, 1
  %v3127 = vor.u32 %v3122, %v3126
  %v3129 = vshll.u32 %v2902, 16
  %v3131 = vrot.slane %v3129, 1
  %v3132 = vsel %vm1891, %v3127, %v3131
  %v3134 = vshrl.u32 %v2743, 16
  %v3136 = vshll.u32 %v2743, 16
  %v3138 = vrot.slane %v3136, 1
  %v3139 = vor.u32 %v3134, %v3138
  %v3141 = vshll.u32 %v2903, 16
  %v3143 = vrot.slane %v3141, 1
  %v3144 = vsel %vm1891, %v3139, %v3143
  %v3146 = vshrl.u32 %v2744, 16
  %v3148 = vshll.u32 %v2744, 16
  %v3150 = vrot.slane %v3148, 1
  %v3151 = vor.u32 %v3146, %v3150
  %v3153 = vshll.u32 %v2904, 16
  %v3155 = vrot.slane %v3153, 1
  %v3156 = vsel %vm1891, %v3151, %v3155
  %v3158 = vshrl.u32 %v2745, 16
  %v3160 = vshll.u32 %v2745, 16
  %v3162 = vrot.slane %v3160, 1
  %v3163 = vor.u32 %v3158, %v3162
  %v3165 = vshll.u32 %v2905, 16
  %v3167 = vrot.slane %v3165, 1
  %v3168 = vsel %vm1891, %v3163, %v3167
  %v3170 = vshrl.u32 %v2746, 16
  %v3172 = vshll.u32 %v2746, 16
  %v3174 = vrot.slane %v3172, 1
  %v3175 = vor.u32 %v3170, %v3174
  %v3177 = vshll.u32 %v2906, 16
  %v3179 = vrot.slane %v3177, 1
  %v3180 = vsel %vm1891, %v3175, %v3179
  %v3182 = vshrl.u32 %v2747, 16
  %v3184 = vshll.u32 %v2747, 16
  %v3186 = vrot.slane %v3184, 1
  %v3187 = vor.u32 %v3182, %v3186
  %v3189 = vshll.u32 %v2907, 16
  %v3191 = vrot.slane %v3189, 1
  %v3192 = vsel %vm1891, %v3187, %v3191
  %v3194 = vshrl.u32 %v2748, 16
  %v3196 = vshll.u32 %v2748, 16
  %v3198 = vrot.slane %v3196, 1
  %v3199 = vor.u32 %v3194, %v3198
  %v3201 = vshll.u32 %v2908, 16
  %v3203 = vrot.slane %v3201, 1
  %v3204 = vsel %vm1891, %v3199, %v3203
  %v3206 = vshrl.u32 %v2749, 16
  %v3208 = vshll.u32 %v2749, 16
  %v3210 = vrot.slane %v3208, 1
  %v3211 = vor.u32 %v3206, %v3210
  %v3213 = vshll.u32 %v2909, 16
  %v3215 = vrot.slane %v3213, 1
  %v3216 = vsel %vm1891, %v3211, %v3215
  %v3218 = vshrl.u32 %v2750, 16
  %v3220 = vshll.u32 %v2750, 16
  %v3222 = vrot.slane %v3220, 1
  %v3223 = vor.u32 %v3218, %v3222
  %v3225 = vshll.u32 %v2910, 16
  %v3227 = vrot.slane %v3225, 1
  %v3228 = vsel %vm1891, %v3223, %v3227
  %v3230 = vshrl.u32 %v2751, 16
  %v3232 = vshll.u32 %v2751, 16
  %v3234 = vrot.slane %v3232, 1
  %v3235 = vor.u32 %v3230, %v3234
  %v3237 = vshll.u32 %v2911, 16
  %v3239 = vrot.slane %v3237, 1
  %v3240 = vsel %vm1891, %v3235, %v3239
  %v3242 = vshrl.u32 %v2752, 16
  %v3244 = vshll.u32 %v2752, 16
  %v3246 = vrot.slane %v3244, 1
  %v3247 = vor.u32 %v3242, %v3246
  %v3249 = vshll.u32 %v2912, 16
  %v3251 = vrot.slane %v3249, 1
  %v3252 = vsel %vm1891, %v3247, %v3251
  %v3254 = vshrl.u32 %v2753, 16
  %v3256 = vshll.u32 %v2753, 16
  %v3258 = vrot.slane %v3256, 1
  %v3259 = vor.u32 %v3254, %v3258
  %v3261 = vshll.u32 %v2913, 16
  %v3263 = vrot.slane %v3261, 1
  %v3264 = vsel %vm1891, %v3259, %v3263
  %v3266 = vshrl.u32 %v2754, 16
  %v3268 = vshll.u32 %v2754, 16
  %v3270 = vrot.slane %v3268, 1
  %v3271 = vor.u32 %v3266, %v3270
  %v3273 = vshll.u32 %v2914, 16
  %v3275 = vrot.slane %v3273, 1
  %v3276 = vsel %vm1891, %v3271, %v3275
  %v3278 = vshrl.u32 %v2755, 16
  %v3280 = vshll.u32 %v2755, 16
  %v3282 = vrot.slane %v3280, 1
  %v3283 = vor.u32 %v3278, %v3282
  %v3285 = vshll.u32 %v2915, 16
  %v3287 = vrot.slane %v3285, 1
  %v3288 = vsel %vm1891, %v3283, %v3287
  %v3290 = vshrl.u32 %v2756, 16
  %v3292 = vshll.u32 %v2756, 16
  %v3294 = vrot.slane %v3292, 1
  %v3295 = vor.u32 %v3290, %v3294
  %v3297 = vshll.u32 %v2916, 16
  %v3299 = vrot.slane %v3297, 1
  %v3300 = vsel %vm1891, %v3295, %v3299
  %3301 = vrot.lane.b32.xlu0 %v2928, 16
  %v3302 = vpop.permute.xlu0 %3301
  %3303 = vrot.lane.b32.xlu0 %v2940, 16
  %v3304 = vpop.permute.xlu0 %3303
  %3305 = vrot.lane.b32.xlu0 %v2952, 16
  %v3306 = vpop.permute.xlu0 %3305
  %3307 = vrot.lane.b32.xlu0 %v2964, 16
  %v3308 = vpop.permute.xlu0 %3307
  %3309 = vrot.lane.b32.xlu0 %v2976, 16
  %v3310 = vpop.permute.xlu0 %3309
  %3311 = vrot.lane.b32.xlu0 %v2988, 16
  %v3312 = vpop.permute.xlu0 %3311
  %3313 = vrot.lane.b32.xlu0 %v3000, 16
  %v3314 = vpop.permute.xlu0 %3313
  %3315 = vrot.lane.b32.xlu0 %v3012, 16
  %v3316 = vpop.permute.xlu0 %3315
  %3317 = vrot.lane.b32.xlu0 %v3024, 16
  %v3318 = vpop.permute.xlu0 %3317
  %3319 = vrot.lane.b32.xlu0 %v3036, 16
  %v3320 = vpop.permute.xlu0 %3319
  %3321 = vrot.lane.b32.xlu0 %v3048, 16
  %v3322 = vpop.permute.xlu0 %3321
  %3323 = vrot.lane.b32.xlu0 %v3060, 16
  %v3324 = vpop.permute.xlu0 %3323
  %3325 = vrot.lane.b32.xlu0 %v3072, 16
  %v3326 = vpop.permute.xlu0 %3325
  %3327 = vrot.lane.b32.xlu0 %v3084, 16
  %v3328 = vpop.permute.xlu0 %3327
  %3329 = vrot.lane.b32.xlu0 %v3096, 16
  %v3330 = vpop.permute.xlu0 %3329
  %3331 = vrot.lane.b32.xlu0 %v3108, 16
  %v3332 = vpop.permute.xlu0 %3331
  %3333 = vrot.lane.b32.xlu0 %v3120, 16
  %v3334 = vpop.permute.xlu0 %3333
  %3335 = vrot.lane.b32.xlu0 %v3132, 16
  %v3336 = vpop.permute.xlu0 %3335
  %3337 = vrot.lane.b32.xlu0 %v3144, 16
  %v3338 = vpop.permute.xlu0 %3337
  %3339 = vrot.lane.b32.xlu0 %v3156, 16
  %v3340 = vpop.permute.xlu0 %3339
  %3341 = vrot.lane.b32.xlu0 %v3168, 16
  %v3342 = vpop.permute.xlu0 %3341
  %3343 = vrot.lane.b32.xlu0 %v3180, 16
  %v3344 = vpop.permute.xlu0 %3343
  %3345 = vrot.lane.b32.xlu0 %v3192, 16
  %v3346 = vpop.permute.xlu0 %3345
  %3347 = vrot.lane.b32.xlu0 %v3204, 16
  %v3348 = vpop.permute.xlu0 %3347
  %3349 = vrot.lane.b32.xlu0 %v3216, 16
  %v3350 = vpop.permute.xlu0 %3349
  %3351 = vrot.lane.b32.xlu0 %v3228, 16
  %v3352 = vpop.permute.xlu0 %3351
  %3353 = vrot.lane.b32.xlu0 %v3240, 16
  %v3354 = vpop.permute.xlu0 %3353
  %3355 = vrot.lane.b32.xlu0 %v3252, 16
  %v3356 = vpop.permute.xlu0 %3355
  %3357 = vrot.lane.b32.xlu0 %v3264, 16
  %v3358 = vpop.permute.xlu0 %3357
  %3359 = vrot.lane.b32.xlu0 %v3276, 16
  %v3360 = vpop.permute.xlu0 %3359
  %3361 = vrot.lane.b32.xlu0 %v3288, 16
  %v3362 = vpop.permute.xlu0 %3361
  %3363 = vrot.lane.b32.xlu0 %v3300, 16
  %v3364 = vpop.permute.xlu0 %3363
  %v3397 = vunpack.c.l.b16 %v1474
  %v3398 = vunpack.c.l.b16 %v1475
  %v3399 = vunpack.c.l.b16 %v1476
  %v3400 = vunpack.c.l.b16 %v1477
  %v3401 = vunpack.c.l.b16 %v1478
  %v3402 = vunpack.c.l.b16 %v1479
  %v3403 = vunpack.c.l.b16 %v1480
  %v3404 = vunpack.c.l.b16 %v1481
  %v3405 = vunpack.c.l.b16 %v1482
  %v3406 = vunpack.c.l.b16 %v1483
  %v3407 = vunpack.c.l.b16 %v1484
  %v3408 = vunpack.c.l.b16 %v1485
  %v3409 = vunpack.c.l.b16 %v1486
  %v3410 = vunpack.c.l.b16 %v1487
  %v3411 = vunpack.c.l.b16 %v1488
  %v3412 = vunpack.c.l.b16 %v1489
  %v3413 = vunpack.c.l.b16 %v1490
  %v3414 = vunpack.c.l.b16 %v1491
  %v3415 = vunpack.c.l.b16 %v1492
  %v3416 = vunpack.c.l.b16 %v1493
  %v3417 = vunpack.c.l.b16 %v1494
  %v3418 = vunpack.c.l.b16 %v1495
  %v3419 = vunpack.c.l.b16 %v1496
  %v3420 = vunpack.c.l.b16 %v1497
  %v3421 = vunpack.c.l.b16 %v1498
  %v3422 = vunpack.c.l.b16 %v1499
  %v3423 = vunpack.c.l.b16 %v1500
  %v3424 = vunpack.c.l.b16 %v1501
  %v3425 = vunpack.c.l.b16 %v1502
  %v3426 = vunpack.c.l.b16 %v1503
  %v3427 = vunpack.c.l.b16 %v1504
  %v3428 = vunpack.c.l.b16 %v1505
  %v3429 = vpack.c.b16 %v2662, %v3397
  %v3430 = vpack.c.b16 %v2664, %v3398
  %v3431 = vpack.c.b16 %v2666, %v3399
  %v3432 = vpack.c.b16 %v2668, %v3400
  %v3433 = vpack.c.b16 %v2670, %v3401
  %v3434 = vpack.c.b16 %v2672, %v3402
  %v3435 = vpack.c.b16 %v2674, %v3403
  %v3436 = vpack.c.b16 %v2676, %v3404
  %v3437 = vpack.c.b16 %v2678, %v3405
  %v3438 = vpack.c.b16 %v2680, %v3406
  %v3439 = vpack.c.b16 %v2682, %v3407
  %v3440 = vpack.c.b16 %v2684, %v3408
  %v3441 = vpack.c.b16 %v2686, %v3409
  %v3442 = vpack.c.b16 %v2688, %v3410
  %v3443 = vpack.c.b16 %v2690, %v3411
  %v3444 = vpack.c.b16 %v2692, %v3412
  %v3445 = vpack.c.b16 %v2694, %v3413
  %v3446 = vpack.c.b16 %v2696, %v3414
  %v3447 = vpack.c.b16 %v2698, %v3415
  %v3448 = vpack.c.b16 %v2700, %v3416
  %v3449 = vpack.c.b16 %v2702, %v3417
  %v3450 = vpack.c.b16 %v2704, %v3418
  %v3451 = vpack.c.b16 %v2706, %v3419
  %v3452 = vpack.c.b16 %v2708, %v3420
  %v3453 = vpack.c.b16 %v2710, %v3421
  %v3454 = vpack.c.b16 %v2712, %v3422
  %v3455 = vpack.c.b16 %v2714, %v3423
  %v3456 = vpack.c.b16 %v2716, %v3424
  %v3457 = vpack.c.b16 %v2718, %v3425
  %v3458 = vpack.c.b16 %v2720, %v3426
  %v3459 = vpack.c.b16 %v2722, %v3427
  %v3460 = vpack.c.b16 %v2724, %v3428
  %v3461 = vrot.slane %v3429, 1
  %v3462 = vrot.slane %v2885, 1
  %v3463 = vsel %vm2436, %v3461, %v3462
  %v3464 = vrot.slane %v3430, 1
  %v3465 = vrot.slane %v2886, 1
  %v3466 = vsel %vm2436, %v3464, %v3465
  %v3467 = vrot.slane %v3431, 1
  %v3468 = vrot.slane %v2887, 1
  %v3469 = vsel %vm2436, %v3467, %v3468
  %v3470 = vrot.slane %v3432, 1
  %v3471 = vrot.slane %v2888, 1
  %v3472 = vsel %vm2436, %v3470, %v3471
  %v3473 = vrot.slane %v3433, 1
  %v3474 = vrot.slane %v2889, 1
  %v3475 = vsel %vm2436, %v3473, %v3474
  %v3476 = vrot.slane %v3434, 1
  %v3477 = vrot.slane %v2890, 1
  %v3478 = vsel %vm2436, %v3476, %v3477
  %v3479 = vrot.slane %v3435, 1
  %v3480 = vrot.slane %v2891, 1
  %v3481 = vsel %vm2436, %v3479, %v3480
  %v3482 = vrot.slane %v3436, 1
  %v3483 = vrot.slane %v2892, 1
  %v3484 = vsel %vm2436, %v3482, %v3483
  %v3485 = vrot.slane %v3437, 1
  %v3486 = vrot.slane %v2893, 1
  %v3487 = vsel %vm2436, %v3485, %v3486
  %v3488 = vrot.slane %v3438, 1
  %v3489 = vrot.slane %v2894, 1
  %v3490 = vsel %vm2436, %v3488, %v3489
  %v3491 = vrot.slane %v3439, 1
  %v3492 = vrot.slane %v2895, 1
  %v3493 = vsel %vm2436, %v3491, %v3492
  %v3494 = vrot.slane %v3440, 1
  %v3495 = vrot.slane %v2896, 1
  %v3496 = vsel %vm2436, %v3494, %v3495
  %v3497 = vrot.slane %v3441, 1
  %v3498 = vrot.slane %v2897, 1
  %v3499 = vsel %vm2436, %v3497, %v3498
  %v3500 = vrot.slane %v3442, 1
  %v3501 = vrot.slane %v2898, 1
  %v3502 = vsel %vm2436, %v3500, %v3501
  %v3503 = vrot.slane %v3443, 1
  %v3504 = vrot.slane %v2899, 1
  %v3505 = vsel %vm2436, %v3503, %v3504
  %v3506 = vrot.slane %v3444, 1
  %v3507 = vrot.slane %v2900, 1
  %v3508 = vsel %vm2436, %v3506, %v3507
  %v3509 = vrot.slane %v3445, 1
  %v3510 = vrot.slane %v2901, 1
  %v3511 = vsel %vm2436, %v3509, %v3510
  %v3512 = vrot.slane %v3446, 1
  %v3513 = vrot.slane %v2902, 1
  %v3514 = vsel %vm2436, %v3512, %v3513
  %v3515 = vrot.slane %v3447, 1
  %v3516 = vrot.slane %v2903, 1
  %v3517 = vsel %vm2436, %v3515, %v3516
  %v3518 = vrot.slane %v3448, 1
  %v3519 = vrot.slane %v2904, 1
  %v3520 = vsel %vm2436, %v3518, %v3519
  %v3521 = vrot.slane %v3449, 1
  %v3522 = vrot.slane %v2905, 1
  %v3523 = vsel %vm2436, %v3521, %v3522
  %v3524 = vrot.slane %v3450, 1
  %v3525 = vrot.slane %v2906, 1
  %v3526 = vsel %vm2436, %v3524, %v3525
  %v3527 = vrot.slane %v3451, 1
  %v3528 = vrot.slane %v2907, 1
  %v3529 = vsel %vm2436, %v3527, %v3528
  %v3530 = vrot.slane %v3452, 1
  %v3531 = vrot.slane %v2908, 1
  %v3532 = vsel %vm2436, %v3530, %v3531
  %v3533 = vrot.slane %v3453, 1
  %v3534 = vrot.slane %v2909, 1
  %v3535 = vsel %vm2436, %v3533, %v3534
  %v3536 = vrot.slane %v3454, 1
  %v3537 = vrot.slane %v2910, 1
  %v3538 = vsel %vm2436, %v3536, %v3537
  %v3539 = vrot.slane %v3455, 1
  %v3540 = vrot.slane %v2911, 1
  %v3541 = vsel %vm2436, %v3539, %v3540
  %v3542 = vrot.slane %v3456, 1
  %v3543 = vrot.slane %v2912, 1
  %v3544 = vsel %vm2436, %v3542, %v3543
  %v3545 = vrot.slane %v3457, 1
  %v3546 = vrot.slane %v2913, 1
  %v3547 = vsel %vm2436, %v3545, %v3546
  %v3548 = vrot.slane %v3458, 1
  %v3549 = vrot.slane %v2914, 1
  %v3550 = vsel %vm2436, %v3548, %v3549
  %v3551 = vrot.slane %v3459, 1
  %v3552 = vrot.slane %v2915, 1
  %v3553 = vsel %vm2436, %v3551, %v3552
  %v3554 = vrot.slane %v3460, 1
  %v3555 = vrot.slane %v2916, 1
  %v3556 = vsel %vm2436, %v3554, %v3555
  %3557 = vrot.lane.b32.xlu0 %v3463, 20
  %v3558 = vpop.permute.xlu0 %3557
  %3559 = vrot.lane.b32.xlu0 %v3466, 20
  %v3560 = vpop.permute.xlu0 %3559
  %3561 = vrot.lane.b32.xlu0 %v3469, 20
  %v3562 = vpop.permute.xlu0 %3561
  %3563 = vrot.lane.b32.xlu0 %v3472, 20
  %v3564 = vpop.permute.xlu0 %3563
  %3565 = vrot.lane.b32.xlu0 %v3475, 20
  %v3566 = vpop.permute.xlu0 %3565
  %3567 = vrot.lane.b32.xlu0 %v3478, 20
  %v3568 = vpop.permute.xlu0 %3567
  %3569 = vrot.lane.b32.xlu0 %v3481, 20
  %v3570 = vpop.permute.xlu0 %3569
  %3571 = vrot.lane.b32.xlu0 %v3484, 20
  %v3572 = vpop.permute.xlu0 %3571
  %3573 = vrot.lane.b32.xlu0 %v3487, 20
  %v3574 = vpop.permute.xlu0 %3573
  %3575 = vrot.lane.b32.xlu0 %v3490, 20
  %v3576 = vpop.permute.xlu0 %3575
  %3577 = vrot.lane.b32.xlu0 %v3493, 20
  %v3578 = vpop.permute.xlu0 %3577
  %3579 = vrot.lane.b32.xlu0 %v3496, 20
  %v3580 = vpop.permute.xlu0 %3579
  %3581 = vrot.lane.b32.xlu0 %v3499, 20
  %v3582 = vpop.permute.xlu0 %3581
  %3583 = vrot.lane.b32.xlu0 %v3502, 20
  %v3584 = vpop.permute.xlu0 %3583
  %3585 = vrot.lane.b32.xlu0 %v3505, 20
  %v3586 = vpop.permute.xlu0 %3585
  %3587 = vrot.lane.b32.xlu0 %v3508, 20
  %v3588 = vpop.permute.xlu0 %3587
  %3589 = vrot.lane.b32.xlu0 %v3511, 20
  %v3590 = vpop.permute.xlu0 %3589
  %3591 = vrot.lane.b32.xlu0 %v3514, 20
  %v3592 = vpop.permute.xlu0 %3591
  %3593 = vrot.lane.b32.xlu0 %v3517, 20
  %v3594 = vpop.permute.xlu0 %3593
  %3595 = vrot.lane.b32.xlu0 %v3520, 20
  %v3596 = vpop.permute.xlu0 %3595
  %3597 = vrot.lane.b32.xlu0 %v3523, 20
  %v3598 = vpop.permute.xlu0 %3597
  %3599 = vrot.lane.b32.xlu0 %v3526, 20
  %v3600 = vpop.permute.xlu0 %3599
  %3601 = vrot.lane.b32.xlu0 %v3529, 20
  %v3602 = vpop.permute.xlu0 %3601
  %3603 = vrot.lane.b32.xlu0 %v3532, 20
  %v3604 = vpop.permute.xlu0 %3603
  %3605 = vrot.lane.b32.xlu0 %v3535, 20
  %v3606 = vpop.permute.xlu0 %3605
  %3607 = vrot.lane.b32.xlu0 %v3538, 20
  %v3608 = vpop.permute.xlu0 %3607
  %3609 = vrot.lane.b32.xlu0 %v3541, 20
  %v3610 = vpop.permute.xlu0 %3609
  %3611 = vrot.lane.b32.xlu0 %v3544, 20
  %v3612 = vpop.permute.xlu0 %3611
  %3613 = vrot.lane.b32.xlu0 %v3547, 20
  %v3614 = vpop.permute.xlu0 %3613
  %3615 = vrot.lane.b32.xlu0 %v3550, 20
  %v3616 = vpop.permute.xlu0 %3615
  %3617 = vrot.lane.b32.xlu0 %v3553, 20
  %v3618 = vpop.permute.xlu0 %3617
  %3619 = vrot.lane.b32.xlu0 %v3556, 20
  %v3620 = vpop.permute.xlu0 %3619
  %v3685 = vunpack.c.l.b16 %v1507
  %v3686 = vunpack.c.l.b16 %v1508
  %v3687 = vunpack.c.l.b16 %v1509
  %v3688 = vunpack.c.l.b16 %v1510
  %v3689 = vunpack.c.l.b16 %v1511
  %v3690 = vunpack.c.l.b16 %v1512
  %v3691 = vunpack.c.l.b16 %v1513
  %v3692 = vunpack.c.l.b16 %v1514
  %v3693 = vunpack.c.l.b16 %v1515
  %v3694 = vunpack.c.l.b16 %v1516
  %v3695 = vunpack.c.l.b16 %v1517
  %v3696 = vunpack.c.l.b16 %v1518
  %v3697 = vunpack.c.l.b16 %v1519
  %v3698 = vunpack.c.l.b16 %v1520
  %v3699 = vunpack.c.l.b16 %v1521
  %v3700 = vunpack.c.l.b16 %v1522
  %v3701 = vunpack.c.l.b16 %v1523
  %v3702 = vunpack.c.l.b16 %v1524
  %v3703 = vunpack.c.l.b16 %v1525
  %v3704 = vunpack.c.l.b16 %v1526
  %v3705 = vunpack.c.l.b16 %v1527
  %v3706 = vunpack.c.l.b16 %v1528
  %v3707 = vunpack.c.l.b16 %v1529
  %v3708 = vunpack.c.l.b16 %v1530
  %v3709 = vunpack.c.l.b16 %v1531
  %v3710 = vunpack.c.l.b16 %v1532
  %v3711 = vunpack.c.l.b16 %v1533
  %v3712 = vunpack.c.l.b16 %v1534
  %v3713 = vunpack.c.l.b16 %v1535
  %v3714 = vunpack.c.l.b16 %v1536
  %v3715 = vunpack.c.l.b16 %v1537
  %v3716 = vunpack.c.l.b16 %v1538
  %v3717 = vunpack.c.l.b16 %v1539
  %v3718 = vunpack.c.l.b16 %v1540
  %v3719 = vunpack.c.l.b16 %v1541
  %v3720 = vunpack.c.l.b16 %v1542
  %v3721 = vunpack.c.l.b16 %v1543
  %v3722 = vunpack.c.l.b16 %v1544
  %v3723 = vunpack.c.l.b16 %v1545
  %v3724 = vunpack.c.l.b16 %v1546
  %v3725 = vunpack.c.l.b16 %v1547
  %v3726 = vunpack.c.l.b16 %v1548
  %v3727 = vunpack.c.l.b16 %v1549
  %v3728 = vunpack.c.l.b16 %v1550
  %v3729 = vunpack.c.l.b16 %v1551
  %v3730 = vunpack.c.l.b16 %v1552
  %v3731 = vunpack.c.l.b16 %v1553
  %v3732 = vunpack.c.l.b16 %v1554
  %v3733 = vunpack.c.l.b16 %v1555
  %v3734 = vunpack.c.l.b16 %v1556
  %v3735 = vunpack.c.l.b16 %v1557
  %v3736 = vunpack.c.l.b16 %v1558
  %v3737 = vunpack.c.l.b16 %v1559
  %v3738 = vunpack.c.l.b16 %v1560
  %v3739 = vunpack.c.l.b16 %v1561
  %v3740 = vunpack.c.l.b16 %v1562
  %v3741 = vunpack.c.l.b16 %v1563
  %v3742 = vunpack.c.l.b16 %v1564
  %v3743 = vunpack.c.l.b16 %v1565
  %v3744 = vunpack.c.l.b16 %v1566
  %v3745 = vunpack.c.l.b16 %v1567
  %v3746 = vunpack.c.l.b16 %v1568
  %v3747 = vunpack.c.l.b16 %v1569
  %v3748 = vunpack.c.l.b16 %v1570
  %v3749 = vpack.c.b16 %v3686, %v3685
  %v3750 = vpack.c.b16 %v3688, %v3687
  %v3751 = vpack.c.b16 %v3690, %v3689
  %v3752 = vpack.c.b16 %v3692, %v3691
  %v3753 = vpack.c.b16 %v3694, %v3693
  %v3754 = vpack.c.b16 %v3696, %v3695
  %v3755 = vpack.c.b16 %v3698, %v3697
  %v3756 = vpack.c.b16 %v3700, %v3699
  %v3757 = vpack.c.b16 %v3702, %v3701
  %v3758 = vpack.c.b16 %v3704, %v3703
  %v3759 = vpack.c.b16 %v3706, %v3705
  %v3760 = vpack.c.b16 %v3708, %v3707
  %v3761 = vpack.c.b16 %v3710, %v3709
  %v3762 = vpack.c.b16 %v3712, %v3711
  %v3763 = vpack.c.b16 %v3714, %v3713
  %v3764 = vpack.c.b16 %v3716, %v3715
  %v3765 = vpack.c.b16 %v3718, %v3717
  %v3766 = vpack.c.b16 %v3720, %v3719
  %v3767 = vpack.c.b16 %v3722, %v3721
  %v3768 = vpack.c.b16 %v3724, %v3723
  %v3769 = vpack.c.b16 %v3726, %v3725
  %v3770 = vpack.c.b16 %v3728, %v3727
  %v3771 = vpack.c.b16 %v3730, %v3729
  %v3772 = vpack.c.b16 %v3732, %v3731
  %v3773 = vpack.c.b16 %v3734, %v3733
  %v3774 = vpack.c.b16 %v3736, %v3735
  %v3775 = vpack.c.b16 %v3738, %v3737
  %v3776 = vpack.c.b16 %v3740, %v3739
  %v3777 = vpack.c.b16 %v3742, %v3741
  %v3778 = vpack.c.b16 %v3744, %v3743
  %v3779 = vpack.c.b16 %v3746, %v3745
  %v3780 = vpack.c.b16 %v3748, %v3747
  %3781 = vrot.lane.b32.xlu0 %v3749, 24
  %v3782 = vpop.permute.xlu0 %3781
  %3783 = vrot.lane.b32.xlu0 %v3750, 24
  %v3784 = vpop.permute.xlu0 %3783
  %3785 = vrot.lane.b32.xlu0 %v3751, 24
  %v3786 = vpop.permute.xlu0 %3785
  %3787 = vrot.lane.b32.xlu0 %v3752, 24
  %v3788 = vpop.permute.xlu0 %3787
  %3789 = vrot.lane.b32.xlu0 %v3753, 24
  %v3790 = vpop.permute.xlu0 %3789
  %3791 = vrot.lane.b32.xlu0 %v3754, 24
  %v3792 = vpop.permute.xlu0 %3791
  %3793 = vrot.lane.b32.xlu0 %v3755, 24
  %v3794 = vpop.permute.xlu0 %3793
  %3795 = vrot.lane.b32.xlu0 %v3756, 24
  %v3796 = vpop.permute.xlu0 %3795
  %3797 = vrot.lane.b32.xlu0 %v3757, 24
  %v3798 = vpop.permute.xlu0 %3797
  %3799 = vrot.lane.b32.xlu0 %v3758, 24
  %v3800 = vpop.permute.xlu0 %3799
  %3801 = vrot.lane.b32.xlu0 %v3759, 24
  %v3802 = vpop.permute.xlu0 %3801
  %3803 = vrot.lane.b32.xlu0 %v3760, 24
  %v3804 = vpop.permute.xlu0 %3803
  %3805 = vrot.lane.b32.xlu0 %v3761, 24
  %v3806 = vpop.permute.xlu0 %3805
  %3807 = vrot.lane.b32.xlu0 %v3762, 24
  %v3808 = vpop.permute.xlu0 %3807
  %3809 = vrot.lane.b32.xlu0 %v3763, 24
  %v3810 = vpop.permute.xlu0 %3809
  %3811 = vrot.lane.b32.xlu0 %v3764, 24
  %v3812 = vpop.permute.xlu0 %3811
  %3813 = vrot.lane.b32.xlu0 %v3765, 24
  %v3814 = vpop.permute.xlu0 %3813
  %3815 = vrot.lane.b32.xlu0 %v3766, 24
  %v3816 = vpop.permute.xlu0 %3815
  %3817 = vrot.lane.b32.xlu0 %v3767, 24
  %v3818 = vpop.permute.xlu0 %3817
  %3819 = vrot.lane.b32.xlu0 %v3768, 24
  %v3820 = vpop.permute.xlu0 %3819
  %3821 = vrot.lane.b32.xlu0 %v3769, 24
  %v3822 = vpop.permute.xlu0 %3821
  %3823 = vrot.lane.b32.xlu0 %v3770, 24
  %v3824 = vpop.permute.xlu0 %3823
  %3825 = vrot.lane.b32.xlu0 %v3771, 24
  %v3826 = vpop.permute.xlu0 %3825
  %3827 = vrot.lane.b32.xlu0 %v3772, 24
  %v3828 = vpop.permute.xlu0 %3827
  %3829 = vrot.lane.b32.xlu0 %v3773, 24
  %v3830 = vpop.permute.xlu0 %3829
  %3831 = vrot.lane.b32.xlu0 %v3774, 24
  %v3832 = vpop.permute.xlu0 %3831
  %3833 = vrot.lane.b32.xlu0 %v3775, 24
  %v3834 = vpop.permute.xlu0 %3833
  %3835 = vrot.lane.b32.xlu0 %v3776, 24
  %v3836 = vpop.permute.xlu0 %3835
  %3837 = vrot.lane.b32.xlu0 %v3777, 24
  %v3838 = vpop.permute.xlu0 %3837
  %3839 = vrot.lane.b32.xlu0 %v3778, 24
  %v3840 = vpop.permute.xlu0 %3839
  %3841 = vrot.lane.b32.xlu0 %v3779, 24
  %v3842 = vpop.permute.xlu0 %3841
  %3843 = vrot.lane.b32.xlu0 %v3780, 24
  %v3844 = vpop.permute.xlu0 %3843
  %v3877 = vunpack.c.l.b16 %v1571
  %v3878 = vunpack.c.l.b16 %v1572
  %v3879 = vunpack.c.l.b16 %v1573
  %v3880 = vunpack.c.l.b16 %v1574
  %v3881 = vunpack.c.l.b16 %v1575
  %v3882 = vunpack.c.l.b16 %v1576
  %v3883 = vunpack.c.l.b16 %v1577
  %v3884 = vunpack.c.l.b16 %v1578
  %v3885 = vunpack.c.l.b16 %v1579
  %v3886 = vunpack.c.l.b16 %v1580
  %v3887 = vunpack.c.l.b16 %v1581
  %v3888 = vunpack.c.l.b16 %v1582
  %v3889 = vunpack.c.l.b16 %v1583
  %v3890 = vunpack.c.l.b16 %v1584
  %v3891 = vunpack.c.l.b16 %v1585
  %v3892 = vunpack.c.l.b16 %v1586
  %v3893 = vunpack.c.l.b16 %v1587
  %v3894 = vunpack.c.l.b16 %v1588
  %v3895 = vunpack.c.l.b16 %v1589
  %v3896 = vunpack.c.l.b16 %v1590
  %v3897 = vunpack.c.l.b16 %v1591
  %v3898 = vunpack.c.l.b16 %v1592
  %v3899 = vunpack.c.l.b16 %v1593
  %v3900 = vunpack.c.l.b16 %v1594
  %v3901 = vunpack.c.l.b16 %v1595
  %v3902 = vunpack.c.l.b16 %v1596
  %v3903 = vunpack.c.l.b16 %v1597
  %v3904 = vunpack.c.l.b16 %v1598
  %v3905 = vunpack.c.l.b16 %v1599
  %v3906 = vunpack.c.l.b16 %v1600
  %v3907 = vunpack.c.l.b16 %v1601
  %v3908 = vunpack.c.l.b16 %v1602
  %v3909 = vpack.c.b16 %v3877, %v3877
  %v3910 = vpack.c.b16 %v3878, %v3878
  %v3911 = vpack.c.b16 %v3879, %v3879
  %v3912 = vpack.c.b16 %v3880, %v3880
  %v3913 = vpack.c.b16 %v3881, %v3881
  %v3914 = vpack.c.b16 %v3882, %v3882
  %v3915 = vpack.c.b16 %v3883, %v3883
  %v3916 = vpack.c.b16 %v3884, %v3884
  %v3917 = vpack.c.b16 %v3885, %v3885
  %v3918 = vpack.c.b16 %v3886, %v3886
  %v3919 = vpack.c.b16 %v3887, %v3887
  %v3920 = vpack.c.b16 %v3888, %v3888
  %v3921 = vpack.c.b16 %v3889, %v3889
  %v3922 = vpack.c.b16 %v3890, %v3890
  %v3923 = vpack.c.b16 %v3891, %v3891
  %v3924 = vpack.c.b16 %v3892, %v3892
  %v3925 = vpack.c.b16 %v3893, %v3893
  %v3926 = vpack.c.b16 %v3894, %v3894
  %v3927 = vpack.c.b16 %v3895, %v3895
  %v3928 = vpack.c.b16 %v3896, %v3896
  %v3929 = vpack.c.b16 %v3897, %v3897
  %v3930 = vpack.c.b16 %v3898, %v3898
  %v3931 = vpack.c.b16 %v3899, %v3899
  %v3932 = vpack.c.b16 %v3900, %v3900
  %v3933 = vpack.c.b16 %v3901, %v3901
  %v3934 = vpack.c.b16 %v3902, %v3902
  %v3935 = vpack.c.b16 %v3903, %v3903
  %v3936 = vpack.c.b16 %v3904, %v3904
  %v3937 = vpack.c.b16 %v3905, %v3905
  %v3938 = vpack.c.b16 %v3906, %v3906
  %v3939 = vpack.c.b16 %v3907, %v3907
  %v3940 = vpack.c.b16 %v3908, %v3908
  %v3942 = vshrl.u32 %v3749, 16
  %v3944 = vshll.u32 %v3749, 16
  %v3946 = vrot.slane %v3944, 1
  %v3947 = vor.u32 %v3942, %v3946
  %v3949 = vshll.u32 %v3909, 16
  %v3951 = vrot.slane %v3949, 1
  %v3952 = vsel %vm1891, %v3947, %v3951
  %v3954 = vshrl.u32 %v3750, 16
  %v3956 = vshll.u32 %v3750, 16
  %v3958 = vrot.slane %v3956, 1
  %v3959 = vor.u32 %v3954, %v3958
  %v3961 = vshll.u32 %v3910, 16
  %v3963 = vrot.slane %v3961, 1
  %v3964 = vsel %vm1891, %v3959, %v3963
  %v3966 = vshrl.u32 %v3751, 16
  %v3968 = vshll.u32 %v3751, 16
  %v3970 = vrot.slane %v3968, 1
  %v3971 = vor.u32 %v3966, %v3970
  %v3973 = vshll.u32 %v3911, 16
  %v3975 = vrot.slane %v3973, 1
  %v3976 = vsel %vm1891, %v3971, %v3975
  %v3978 = vshrl.u32 %v3752, 16
  %v3980 = vshll.u32 %v3752, 16
  %v3982 = vrot.slane %v3980, 1
  %v3983 = vor.u32 %v3978, %v3982
  %v3985 = vshll.u32 %v3912, 16
  %v3987 = vrot.slane %v3985, 1
  %v3988 = vsel %vm1891, %v3983, %v3987
  %v3990 = vshrl.u32 %v3753, 16
  %v3992 = vshll.u32 %v3753, 16
  %v3994 = vrot.slane %v3992, 1
  %v3995 = vor.u32 %v3990, %v3994
  %v3997 = vshll.u32 %v3913, 16
  %v3999 = vrot.slane %v3997, 1
  %v4000 = vsel %vm1891, %v3995, %v3999
  %v4002 = vshrl.u32 %v3754, 16
  %v4004 = vshll.u32 %v3754, 16
  %v4006 = vrot.slane %v4004, 1
  %v4007 = vor.u32 %v4002, %v4006
  %v4009 = vshll.u32 %v3914, 16
  %v4011 = vrot.slane %v4009, 1
  %v4012 = vsel %vm1891, %v4007, %v4011
  %v4014 = vshrl.u32 %v3755, 16
  %v4016 = vshll.u32 %v3755, 16
  %v4018 = vrot.slane %v4016, 1
  %v4019 = vor.u32 %v4014, %v4018
  %v4021 = vshll.u32 %v3915, 16
  %v4023 = vrot.slane %v4021, 1
  %v4024 = vsel %vm1891, %v4019, %v4023
  %v4026 = vshrl.u32 %v3756, 16
  %v4028 = vshll.u32 %v3756, 16
  %v4030 = vrot.slane %v4028, 1
  %v4031 = vor.u32 %v4026, %v4030
  %v4033 = vshll.u32 %v3916, 16
  %v4035 = vrot.slane %v4033, 1
  %v4036 = vsel %vm1891, %v4031, %v4035
  %v4038 = vshrl.u32 %v3757, 16
  %v4040 = vshll.u32 %v3757, 16
  %v4042 = vrot.slane %v4040, 1
  %v4043 = vor.u32 %v4038, %v4042
  %v4045 = vshll.u32 %v3917, 16
  %v4047 = vrot.slane %v4045, 1
  %v4048 = vsel %vm1891, %v4043, %v4047
  %v4050 = vshrl.u32 %v3758, 16
  %v4052 = vshll.u32 %v3758, 16
  %v4054 = vrot.slane %v4052, 1
  %v4055 = vor.u32 %v4050, %v4054
  %v4057 = vshll.u32 %v3918, 16
  %v4059 = vrot.slane %v4057, 1
  %v4060 = vsel %vm1891, %v4055, %v4059
  %v4062 = vshrl.u32 %v3759, 16
  %v4064 = vshll.u32 %v3759, 16
  %v4066 = vrot.slane %v4064, 1
  %v4067 = vor.u32 %v4062, %v4066
  %v4069 = vshll.u32 %v3919, 16
  %v4071 = vrot.slane %v4069, 1
  %v4072 = vsel %vm1891, %v4067, %v4071
  %v4074 = vshrl.u32 %v3760, 16
  %v4076 = vshll.u32 %v3760, 16
  %v4078 = vrot.slane %v4076, 1
  %v4079 = vor.u32 %v4074, %v4078
  %v4081 = vshll.u32 %v3920, 16
  %v4083 = vrot.slane %v4081, 1
  %v4084 = vsel %vm1891, %v4079, %v4083
  %v4086 = vshrl.u32 %v3761, 16
  %v4088 = vshll.u32 %v3761, 16
  %v4090 = vrot.slane %v4088, 1
  %v4091 = vor.u32 %v4086, %v4090
  %v4093 = vshll.u32 %v3921, 16
  %v4095 = vrot.slane %v4093, 1
  %v4096 = vsel %vm1891, %v4091, %v4095
  %v4098 = vshrl.u32 %v3762, 16
  %v4100 = vshll.u32 %v3762, 16
  %v4102 = vrot.slane %v4100, 1
  %v4103 = vor.u32 %v4098, %v4102
  %v4105 = vshll.u32 %v3922, 16
  %v4107 = vrot.slane %v4105, 1
  %v4108 = vsel %vm1891, %v4103, %v4107
  %v4110 = vshrl.u32 %v3763, 16
  %v4112 = vshll.u32 %v3763, 16
  %v4114 = vrot.slane %v4112, 1
  %v4115 = vor.u32 %v4110, %v4114
  %v4117 = vshll.u32 %v3923, 16
  %v4119 = vrot.slane %v4117, 1
  %v4120 = vsel %vm1891, %v4115, %v4119
  %v4122 = vshrl.u32 %v3764, 16
  %v4124 = vshll.u32 %v3764, 16
  %v4126 = vrot.slane %v4124, 1
  %v4127 = vor.u32 %v4122, %v4126
  %v4129 = vshll.u32 %v3924, 16
  %v4131 = vrot.slane %v4129, 1
  %v4132 = vsel %vm1891, %v4127, %v4131
  %v4134 = vshrl.u32 %v3765, 16
  %v4136 = vshll.u32 %v3765, 16
  %v4138 = vrot.slane %v4136, 1
  %v4139 = vor.u32 %v4134, %v4138
  %v4141 = vshll.u32 %v3925, 16
  %v4143 = vrot.slane %v4141, 1
  %v4144 = vsel %vm1891, %v4139, %v4143
  %v4146 = vshrl.u32 %v3766, 16
  %v4148 = vshll.u32 %v3766, 16
  %v4150 = vrot.slane %v4148, 1
  %v4151 = vor.u32 %v4146, %v4150
  %v4153 = vshll.u32 %v3926, 16
  %v4155 = vrot.slane %v4153, 1
  %v4156 = vsel %vm1891, %v4151, %v4155
  %v4158 = vshrl.u32 %v3767, 16
  %v4160 = vshll.u32 %v3767, 16
  %v4162 = vrot.slane %v4160, 1
  %v4163 = vor.u32 %v4158, %v4162
  %v4165 = vshll.u32 %v3927, 16
  %v4167 = vrot.slane %v4165, 1
  %v4168 = vsel %vm1891, %v4163, %v4167
  %v4170 = vshrl.u32 %v3768, 16
  %v4172 = vshll.u32 %v3768, 16
  %v4174 = vrot.slane %v4172, 1
  %v4175 = vor.u32 %v4170, %v4174
  %v4177 = vshll.u32 %v3928, 16
  %v4179 = vrot.slane %v4177, 1
  %v4180 = vsel %vm1891, %v4175, %v4179
  %v4182 = vshrl.u32 %v3769, 16
  %v4184 = vshll.u32 %v3769, 16
  %v4186 = vrot.slane %v4184, 1
  %v4187 = vor.u32 %v4182, %v4186
  %v4189 = vshll.u32 %v3929, 16
  %v4191 = vrot.slane %v4189, 1
  %v4192 = vsel %vm1891, %v4187, %v4191
  %v4194 = vshrl.u32 %v3770, 16
  %v4196 = vshll.u32 %v3770, 16
  %v4198 = vrot.slane %v4196, 1
  %v4199 = vor.u32 %v4194, %v4198
  %v4201 = vshll.u32 %v3930, 16
  %v4203 = vrot.slane %v4201, 1
  %v4204 = vsel %vm1891, %v4199, %v4203
  %v4206 = vshrl.u32 %v3771, 16
  %v4208 = vshll.u32 %v3771, 16
  %v4210 = vrot.slane %v4208, 1
  %v4211 = vor.u32 %v4206, %v4210
  %v4213 = vshll.u32 %v3931, 16
  %v4215 = vrot.slane %v4213, 1
  %v4216 = vsel %vm1891, %v4211, %v4215
  %v4218 = vshrl.u32 %v3772, 16
  %v4220 = vshll.u32 %v3772, 16
  %v4222 = vrot.slane %v4220, 1
  %v4223 = vor.u32 %v4218, %v4222
  %v4225 = vshll.u32 %v3932, 16
  %v4227 = vrot.slane %v4225, 1
  %v4228 = vsel %vm1891, %v4223, %v4227
  %v4230 = vshrl.u32 %v3773, 16
  %v4232 = vshll.u32 %v3773, 16
  %v4234 = vrot.slane %v4232, 1
  %v4235 = vor.u32 %v4230, %v4234
  %v4237 = vshll.u32 %v3933, 16
  %v4239 = vrot.slane %v4237, 1
  %v4240 = vsel %vm1891, %v4235, %v4239
  %v4242 = vshrl.u32 %v3774, 16
  %v4244 = vshll.u32 %v3774, 16
  %v4246 = vrot.slane %v4244, 1
  %v4247 = vor.u32 %v4242, %v4246
  %v4249 = vshll.u32 %v3934, 16
  %v4251 = vrot.slane %v4249, 1
  %v4252 = vsel %vm1891, %v4247, %v4251
  %v4254 = vshrl.u32 %v3775, 16
  %v4256 = vshll.u32 %v3775, 16
  %v4258 = vrot.slane %v4256, 1
  %v4259 = vor.u32 %v4254, %v4258
  %v4261 = vshll.u32 %v3935, 16
  %v4263 = vrot.slane %v4261, 1
  %v4264 = vsel %vm1891, %v4259, %v4263
  %v4266 = vshrl.u32 %v3776, 16
  %v4268 = vshll.u32 %v3776, 16
  %v4270 = vrot.slane %v4268, 1
  %v4271 = vor.u32 %v4266, %v4270
  %v4273 = vshll.u32 %v3936, 16
  %v4275 = vrot.slane %v4273, 1
  %v4276 = vsel %vm1891, %v4271, %v4275
  %v4278 = vshrl.u32 %v3777, 16
  %v4280 = vshll.u32 %v3777, 16
  %v4282 = vrot.slane %v4280, 1
  %v4283 = vor.u32 %v4278, %v4282
  %v4285 = vshll.u32 %v3937, 16
  %v4287 = vrot.slane %v4285, 1
  %v4288 = vsel %vm1891, %v4283, %v4287
  %v4290 = vshrl.u32 %v3778, 16
  %v4292 = vshll.u32 %v3778, 16
  %v4294 = vrot.slane %v4292, 1
  %v4295 = vor.u32 %v4290, %v4294
  %v4297 = vshll.u32 %v3938, 16
  %v4299 = vrot.slane %v4297, 1
  %v4300 = vsel %vm1891, %v4295, %v4299
  %v4302 = vshrl.u32 %v3779, 16
  %v4304 = vshll.u32 %v3779, 16
  %v4306 = vrot.slane %v4304, 1
  %v4307 = vor.u32 %v4302, %v4306
  %v4309 = vshll.u32 %v3939, 16
  %v4311 = vrot.slane %v4309, 1
  %v4312 = vsel %vm1891, %v4307, %v4311
  %v4314 = vshrl.u32 %v3780, 16
  %v4316 = vshll.u32 %v3780, 16
  %v4318 = vrot.slane %v4316, 1
  %v4319 = vor.u32 %v4314, %v4318
  %v4321 = vshll.u32 %v3940, 16
  %v4323 = vrot.slane %v4321, 1
  %v4324 = vsel %vm1891, %v4319, %v4323
  %4325 = vrot.lane.b32.xlu0 %v3952, 28
  %v4326 = vpop.permute.xlu0 %4325
  %4327 = vrot.lane.b32.xlu0 %v3964, 28
  %v4328 = vpop.permute.xlu0 %4327
  %4329 = vrot.lane.b32.xlu0 %v3976, 28
  %v4330 = vpop.permute.xlu0 %4329
  %4331 = vrot.lane.b32.xlu0 %v3988, 28
  %v4332 = vpop.permute.xlu0 %4331
  %4333 = vrot.lane.b32.xlu0 %v4000, 28
  %v4334 = vpop.permute.xlu0 %4333
  %4335 = vrot.lane.b32.xlu0 %v4012, 28
  %v4336 = vpop.permute.xlu0 %4335
  %4337 = vrot.lane.b32.xlu0 %v4024, 28
  %v4338 = vpop.permute.xlu0 %4337
  %4339 = vrot.lane.b32.xlu0 %v4036, 28
  %v4340 = vpop.permute.xlu0 %4339
  %4341 = vrot.lane.b32.xlu0 %v4048, 28
  %v4342 = vpop.permute.xlu0 %4341
  %4343 = vrot.lane.b32.xlu0 %v4060, 28
  %v4344 = vpop.permute.xlu0 %4343
  %4345 = vrot.lane.b32.xlu0 %v4072, 28
  %v4346 = vpop.permute.xlu0 %4345
  %4347 = vrot.lane.b32.xlu0 %v4084, 28
  %v4348 = vpop.permute.xlu0 %4347
  %4349 = vrot.lane.b32.xlu0 %v4096, 28
  %v4350 = vpop.permute.xlu0 %4349
  %4351 = vrot.lane.b32.xlu0 %v4108, 28
  %v4352 = vpop.permute.xlu0 %4351
  %4353 = vrot.lane.b32.xlu0 %v4120, 28
  %v4354 = vpop.permute.xlu0 %4353
  %4355 = vrot.lane.b32.xlu0 %v4132, 28
  %v4356 = vpop.permute.xlu0 %4355
  %4357 = vrot.lane.b32.xlu0 %v4144, 28
  %v4358 = vpop.permute.xlu0 %4357
  %4359 = vrot.lane.b32.xlu0 %v4156, 28
  %v4360 = vpop.permute.xlu0 %4359
  %4361 = vrot.lane.b32.xlu0 %v4168, 28
  %v4362 = vpop.permute.xlu0 %4361
  %4363 = vrot.lane.b32.xlu0 %v4180, 28
  %v4364 = vpop.permute.xlu0 %4363
  %4365 = vrot.lane.b32.xlu0 %v4192, 28
  %v4366 = vpop.permute.xlu0 %4365
  %4367 = vrot.lane.b32.xlu0 %v4204, 28
  %v4368 = vpop.permute.xlu0 %4367
  %4369 = vrot.lane.b32.xlu0 %v4216, 28
  %v4370 = vpop.permute.xlu0 %4369
  %4371 = vrot.lane.b32.xlu0 %v4228, 28
  %v4372 = vpop.permute.xlu0 %4371
  %4373 = vrot.lane.b32.xlu0 %v4240, 28
  %v4374 = vpop.permute.xlu0 %4373
  %4375 = vrot.lane.b32.xlu0 %v4252, 28
  %v4376 = vpop.permute.xlu0 %4375
  %4377 = vrot.lane.b32.xlu0 %v4264, 28
  %v4378 = vpop.permute.xlu0 %4377
  %4379 = vrot.lane.b32.xlu0 %v4276, 28
  %v4380 = vpop.permute.xlu0 %4379
  %4381 = vrot.lane.b32.xlu0 %v4288, 28
  %v4382 = vpop.permute.xlu0 %4381
  %4383 = vrot.lane.b32.xlu0 %v4300, 28
  %v4384 = vpop.permute.xlu0 %4383
  %4385 = vrot.lane.b32.xlu0 %v4312, 28
  %v4386 = vpop.permute.xlu0 %4385
  %4387 = vrot.lane.b32.xlu0 %v4324, 28
  %v4388 = vpop.permute.xlu0 %4387
  %v4421 = vunpack.c.l.b16 %v1603
  %v4422 = vunpack.c.l.b16 %v1604
  %v4423 = vunpack.c.l.b16 %v1605
  %v4424 = vunpack.c.l.b16 %v1606
  %v4425 = vunpack.c.l.b16 %v1607
  %v4426 = vunpack.c.l.b16 %v1608
  %v4427 = vunpack.c.l.b16 %v1609
  %v4428 = vunpack.c.l.b16 %v1610
  %v4429 = vunpack.c.l.b16 %v1611
  %v4430 = vunpack.c.l.b16 %v1612
  %v4431 = vunpack.c.l.b16 %v1613
  %v4432 = vunpack.c.l.b16 %v1614
  %v4433 = vunpack.c.l.b16 %v1615
  %v4434 = vunpack.c.l.b16 %v1616
  %v4435 = vunpack.c.l.b16 %v1617
  %v4436 = vunpack.c.l.b16 %v1618
  %v4437 = vunpack.c.l.b16 %v1619
  %v4438 = vunpack.c.l.b16 %v1620
  %v4439 = vunpack.c.l.b16 %v1621
  %v4440 = vunpack.c.l.b16 %v1622
  %v4441 = vunpack.c.l.b16 %v1623
  %v4442 = vunpack.c.l.b16 %v1624
  %v4443 = vunpack.c.l.b16 %v1625
  %v4444 = vunpack.c.l.b16 %v1626
  %v4445 = vunpack.c.l.b16 %v1627
  %v4446 = vunpack.c.l.b16 %v1628
  %v4447 = vunpack.c.l.b16 %v1629
  %v4448 = vunpack.c.l.b16 %v1630
  %v4449 = vunpack.c.l.b16 %v1631
  %v4450 = vunpack.c.l.b16 %v1632
  %v4451 = vunpack.c.l.b16 %v1633
  %v4452 = vunpack.c.l.b16 %v1634
  %v4453 = vpack.c.b16 %v3686, %v4421
  %v4454 = vpack.c.b16 %v3688, %v4422
  %v4455 = vpack.c.b16 %v3690, %v4423
  %v4456 = vpack.c.b16 %v3692, %v4424
  %v4457 = vpack.c.b16 %v3694, %v4425
  %v4458 = vpack.c.b16 %v3696, %v4426
  %v4459 = vpack.c.b16 %v3698, %v4427
  %v4460 = vpack.c.b16 %v3700, %v4428
  %v4461 = vpack.c.b16 %v3702, %v4429
  %v4462 = vpack.c.b16 %v3704, %v4430
  %v4463 = vpack.c.b16 %v3706, %v4431
  %v4464 = vpack.c.b16 %v3708, %v4432
  %v4465 = vpack.c.b16 %v3710, %v4433
  %v4466 = vpack.c.b16 %v3712, %v4434
  %v4467 = vpack.c.b16 %v3714, %v4435
  %v4468 = vpack.c.b16 %v3716, %v4436
  %v4469 = vpack.c.b16 %v3718, %v4437
  %v4470 = vpack.c.b16 %v3720, %v4438
  %v4471 = vpack.c.b16 %v3722, %v4439
  %v4472 = vpack.c.b16 %v3724, %v4440
  %v4473 = vpack.c.b16 %v3726, %v4441
  %v4474 = vpack.c.b16 %v3728, %v4442
  %v4475 = vpack.c.b16 %v3730, %v4443
  %v4476 = vpack.c.b16 %v3732, %v4444
  %v4477 = vpack.c.b16 %v3734, %v4445
  %v4478 = vpack.c.b16 %v3736, %v4446
  %v4479 = vpack.c.b16 %v3738, %v4447
  %v4480 = vpack.c.b16 %v3740, %v4448
  %v4481 = vpack.c.b16 %v3742, %v4449
  %v4482 = vpack.c.b16 %v3744, %v4450
  %v4483 = vpack.c.b16 %v3746, %v4451
  %v4484 = vpack.c.b16 %v3748, %v4452
  %v4485 = vrot.slane %v4453, 1
  %v4486 = vrot.slane %v3909, 1
  %v4487 = vsel %vm2436, %v4485, %v4486
  %v4488 = vrot.slane %v4454, 1
  %v4489 = vrot.slane %v3910, 1
  %v4490 = vsel %vm2436, %v4488, %v4489
  %v4491 = vrot.slane %v4455, 1
  %v4492 = vrot.slane %v3911, 1
  %v4493 = vsel %vm2436, %v4491, %v4492
  %v4494 = vrot.slane %v4456, 1
  %v4495 = vrot.slane %v3912, 1
  %v4496 = vsel %vm2436, %v4494, %v4495
  %v4497 = vrot.slane %v4457, 1
  %v4498 = vrot.slane %v3913, 1
  %v4499 = vsel %vm2436, %v4497, %v4498
  %v4500 = vrot.slane %v4458, 1
  %v4501 = vrot.slane %v3914, 1
  %v4502 = vsel %vm2436, %v4500, %v4501
  %v4503 = vrot.slane %v4459, 1
  %v4504 = vrot.slane %v3915, 1
  %v4505 = vsel %vm2436, %v4503, %v4504
  %v4506 = vrot.slane %v4460, 1
  %v4507 = vrot.slane %v3916, 1
  %v4508 = vsel %vm2436, %v4506, %v4507
  %v4509 = vrot.slane %v4461, 1
  %v4510 = vrot.slane %v3917, 1
  %v4511 = vsel %vm2436, %v4509, %v4510
  %v4512 = vrot.slane %v4462, 1
  %v4513 = vrot.slane %v3918, 1
  %v4514 = vsel %vm2436, %v4512, %v4513
  %v4515 = vrot.slane %v4463, 1
  %v4516 = vrot.slane %v3919, 1
  %v4517 = vsel %vm2436, %v4515, %v4516
  %v4518 = vrot.slane %v4464, 1
  %v4519 = vrot.slane %v3920, 1
  %v4520 = vsel %vm2436, %v4518, %v4519
  %v4521 = vrot.slane %v4465, 1
  %v4522 = vrot.slane %v3921, 1
  %v4523 = vsel %vm2436, %v4521, %v4522
  %v4524 = vrot.slane %v4466, 1
  %v4525 = vrot.slane %v3922, 1
  %v4526 = vsel %vm2436, %v4524, %v4525
  %v4527 = vrot.slane %v4467, 1
  %v4528 = vrot.slane %v3923, 1
  %v4529 = vsel %vm2436, %v4527, %v4528
  %v4530 = vrot.slane %v4468, 1
  %v4531 = vrot.slane %v3924, 1
  %v4532 = vsel %vm2436, %v4530, %v4531
  %v4533 = vrot.slane %v4469, 1
  %v4534 = vrot.slane %v3925, 1
  %v4535 = vsel %vm2436, %v4533, %v4534
  %v4536 = vrot.slane %v4470, 1
  %v4537 = vrot.slane %v3926, 1
  %v4538 = vsel %vm2436, %v4536, %v4537
  %v4539 = vrot.slane %v4471, 1
  %v4540 = vrot.slane %v3927, 1
  %v4541 = vsel %vm2436, %v4539, %v4540
  %v4542 = vrot.slane %v4472, 1
  %v4543 = vrot.slane %v3928, 1
  %v4544 = vsel %vm2436, %v4542, %v4543
  %v4545 = vrot.slane %v4473, 1
  %v4546 = vrot.slane %v3929, 1
  %v4547 = vsel %vm2436, %v4545, %v4546
  %v4548 = vrot.slane %v4474, 1
  %v4549 = vrot.slane %v3930, 1
  %v4550 = vsel %vm2436, %v4548, %v4549
  %v4551 = vrot.slane %v4475, 1
  %v4552 = vrot.slane %v3931, 1
  %v4553 = vsel %vm2436, %v4551, %v4552
  %v4554 = vrot.slane %v4476, 1
  %v4555 = vrot.slane %v3932, 1
  %v4556 = vsel %vm2436, %v4554, %v4555
  %v4557 = vrot.slane %v4477, 1
  %v4558 = vrot.slane %v3933, 1
  %v4559 = vsel %vm2436, %v4557, %v4558
  %v4560 = vrot.slane %v4478, 1
  %v4561 = vrot.slane %v3934, 1
  %v4562 = vsel %vm2436, %v4560, %v4561
  %v4563 = vrot.slane %v4479, 1
  %v4564 = vrot.slane %v3935, 1
  %v4565 = vsel %vm2436, %v4563, %v4564
  %v4566 = vrot.slane %v4480, 1
  %v4567 = vrot.slane %v3936, 1
  %v4568 = vsel %vm2436, %v4566, %v4567
  %v4569 = vrot.slane %v4481, 1
  %v4570 = vrot.slane %v3937, 1
  %v4571 = vsel %vm2436, %v4569, %v4570
  %v4572 = vrot.slane %v4482, 1
  %v4573 = vrot.slane %v3938, 1
  %v4574 = vsel %vm2436, %v4572, %v4573
  %v4575 = vrot.slane %v4483, 1
  %v4576 = vrot.slane %v3939, 1
  %v4577 = vsel %vm2436, %v4575, %v4576
  %v4578 = vrot.slane %v4484, 1
  %v4579 = vrot.slane %v3940, 1
  %v4580 = vsel %vm2436, %v4578, %v4579
  %4581 = vrot.lane.b32.xlu0 %v4487, 32
  %v4582 = vpop.permute.xlu0 %4581
  %4583 = vrot.lane.b32.xlu0 %v4490, 32
  %v4584 = vpop.permute.xlu0 %4583
  %4585 = vrot.lane.b32.xlu0 %v4493, 32
  %v4586 = vpop.permute.xlu0 %4585
  %4587 = vrot.lane.b32.xlu0 %v4496, 32
  %v4588 = vpop.permute.xlu0 %4587
  %4589 = vrot.lane.b32.xlu0 %v4499, 32
  %v4590 = vpop.permute.xlu0 %4589
  %4591 = vrot.lane.b32.xlu0 %v4502, 32
  %v4592 = vpop.permute.xlu0 %4591
  %4593 = vrot.lane.b32.xlu0 %v4505, 32
  %v4594 = vpop.permute.xlu0 %4593
  %4595 = vrot.lane.b32.xlu0 %v4508, 32
  %v4596 = vpop.permute.xlu0 %4595
  %4597 = vrot.lane.b32.xlu0 %v4511, 32
  %v4598 = vpop.permute.xlu0 %4597
  %4599 = vrot.lane.b32.xlu0 %v4514, 32
  %v4600 = vpop.permute.xlu0 %4599
  %4601 = vrot.lane.b32.xlu0 %v4517, 32
  %v4602 = vpop.permute.xlu0 %4601
  %4603 = vrot.lane.b32.xlu0 %v4520, 32
  %v4604 = vpop.permute.xlu0 %4603
  %4605 = vrot.lane.b32.xlu0 %v4523, 32
  %v4606 = vpop.permute.xlu0 %4605
  %4607 = vrot.lane.b32.xlu0 %v4526, 32
  %v4608 = vpop.permute.xlu0 %4607
  %4609 = vrot.lane.b32.xlu0 %v4529, 32
  %v4610 = vpop.permute.xlu0 %4609
  %4611 = vrot.lane.b32.xlu0 %v4532, 32
  %v4612 = vpop.permute.xlu0 %4611
  %4613 = vrot.lane.b32.xlu0 %v4535, 32
  %v4614 = vpop.permute.xlu0 %4613
  %4615 = vrot.lane.b32.xlu0 %v4538, 32
  %v4616 = vpop.permute.xlu0 %4615
  %4617 = vrot.lane.b32.xlu0 %v4541, 32
  %v4618 = vpop.permute.xlu0 %4617
  %4619 = vrot.lane.b32.xlu0 %v4544, 32
  %v4620 = vpop.permute.xlu0 %4619
  %4621 = vrot.lane.b32.xlu0 %v4547, 32
  %v4622 = vpop.permute.xlu0 %4621
  %4623 = vrot.lane.b32.xlu0 %v4550, 32
  %v4624 = vpop.permute.xlu0 %4623
  %4625 = vrot.lane.b32.xlu0 %v4553, 32
  %v4626 = vpop.permute.xlu0 %4625
  %4627 = vrot.lane.b32.xlu0 %v4556, 32
  %v4628 = vpop.permute.xlu0 %4627
  %4629 = vrot.lane.b32.xlu0 %v4559, 32
  %v4630 = vpop.permute.xlu0 %4629
  %4631 = vrot.lane.b32.xlu0 %v4562, 32
  %v4632 = vpop.permute.xlu0 %4631
  %4633 = vrot.lane.b32.xlu0 %v4565, 32
  %v4634 = vpop.permute.xlu0 %4633
  %4635 = vrot.lane.b32.xlu0 %v4568, 32
  %v4636 = vpop.permute.xlu0 %4635
  %4637 = vrot.lane.b32.xlu0 %v4571, 32
  %v4638 = vpop.permute.xlu0 %4637
  %4639 = vrot.lane.b32.xlu0 %v4574, 32
  %v4640 = vpop.permute.xlu0 %4639
  %4641 = vrot.lane.b32.xlu0 %v4577, 32
  %v4642 = vpop.permute.xlu0 %4641
  %4643 = vrot.lane.b32.xlu0 %v4580, 32
  %v4644 = vpop.permute.xlu0 %4643
  %vm4645 = vcmask 31744
  %v4647 = vsel %vm4645, %v1763, %v2277
  %v4649 = vsel %vm4645, %v1764, %v2279
  %v4651 = vsel %vm4645, %v1765, %v2281
  %v4653 = vsel %vm4645, %v1766, %v2283
  %v4655 = vsel %vm4645, %v1767, %v2285
  %v4657 = vsel %vm4645, %v1768, %v2287
  %v4659 = vsel %vm4645, %v1769, %v2289
  %v4661 = vsel %vm4645, %v1770, %v2291
  %v4663 = vsel %vm4645, %v1771, %v2293
  %v4665 = vsel %vm4645, %v1772, %v2295
  %v4667 = vsel %vm4645, %v1773, %v2297
  %v4669 = vsel %vm4645, %v1774, %v2299
  %v4671 = vsel %vm4645, %v1775, %v2301
  %v4673 = vsel %vm4645, %v1776, %v2303
  %v4675 = vsel %vm4645, %v1777, %v2305
  %v4677 = vsel %vm4645, %v1778, %v2307
  %v4679 = vsel %vm4645, %v1779, %v2309
  %v4681 = vsel %vm4645, %v1780, %v2311
  %v4683 = vsel %vm4645, %v1781, %v2313
  %v4685 = vsel %vm4645, %v1782, %v2315
  %v4687 = vsel %vm4645, %v1783, %v2317
  %v4689 = vsel %vm4645, %v1784, %v2319
  %v4691 = vsel %vm4645, %v1785, %v2321
  %v4693 = vsel %vm4645, %v1786, %v2323
  %v4695 = vsel %vm4645, %v1787, %v2325
  %v4697 = vsel %vm4645, %v1788, %v2327
  %v4699 = vsel %vm4645, %v1789, %v2329
  %v4701 = vsel %vm4645, %v1790, %v2331
  %v4703 = vsel %vm4645, %v1791, %v2333
  %v4705 = vsel %vm4645, %v1792, %v2335
  %v4707 = vsel %vm4645, %v1793, %v2337
  %v4709 = vsel %vm4645, %v1794, %v2339
  %vm4710 = vcmask 64512
  %v4712 = vsel %vm4710, %v4647, %v2534
  %v4714 = vsel %vm4710, %v4649, %v2536
  %v4716 = vsel %vm4710, %v4651, %v2538
  %v4718 = vsel %vm4710, %v4653, %v2540
  %v4720 = vsel %vm4710, %v4655, %v2542
  %v4722 = vsel %vm4710, %v4657, %v2544
  %v4724 = vsel %vm4710, %v4659, %v2546
  %v4726 = vsel %vm4710, %v4661, %v2548
  %v4728 = vsel %vm4710, %v4663, %v2550
  %v4730 = vsel %vm4710, %v4665, %v2552
  %v4732 = vsel %vm4710, %v4667, %v2554
  %v4734 = vsel %vm4710, %v4669, %v2556
  %v4736 = vsel %vm4710, %v4671, %v2558
  %v4738 = vsel %vm4710, %v4673, %v2560
  %v4740 = vsel %vm4710, %v4675, %v2562
  %v4742 = vsel %vm4710, %v4677, %v2564
  %v4744 = vsel %vm4710, %v4679, %v2566
  %v4746 = vsel %vm4710, %v4681, %v2568
  %v4748 = vsel %vm4710, %v4683, %v2570
  %v4750 = vsel %vm4710, %v4685, %v2572
  %v4752 = vsel %vm4710, %v4687, %v2574
  %v4754 = vsel %vm4710, %v4689, %v2576
  %v4756 = vsel %vm4710, %v4691, %v2578
  %v4758 = vsel %vm4710, %v4693, %v2580
  %v4760 = vsel %vm4710, %v4695, %v2582
  %v4762 = vsel %vm4710, %v4697, %v2584
  %v4764 = vsel %vm4710, %v4699, %v2586
  %v4766 = vsel %vm4710, %v4701, %v2588
  %v4768 = vsel %vm4710, %v4703, %v2590
  %v4770 = vsel %vm4710, %v4705, %v2592
  %v4772 = vsel %vm4710, %v4707, %v2594
  %v4774 = vsel %vm4710, %v4709, %v2596
  %vm4775 = vcmask 97280
  %v4777 = vsel %vm4775, %v4712, %v2758
  %v4779 = vsel %vm4775, %v4714, %v2760
  %v4781 = vsel %vm4775, %v4716, %v2762
  %v4783 = vsel %vm4775, %v4718, %v2764
  %v4785 = vsel %vm4775, %v4720, %v2766
  %v4787 = vsel %vm4775, %v4722, %v2768
  %v4789 = vsel %vm4775, %v4724, %v2770
  %v4791 = vsel %vm4775, %v4726, %v2772
  %v4793 = vsel %vm4775, %v4728, %v2774
  %v4795 = vsel %vm4775, %v4730, %v2776
  %v4797 = vsel %vm4775, %v4732, %v2778
  %v4799 = vsel %vm4775, %v4734, %v2780
  %v4801 = vsel %vm4775, %v4736, %v2782
  %v4803 = vsel %vm4775, %v4738, %v2784
  %v4805 = vsel %vm4775, %v4740, %v2786
  %v4807 = vsel %vm4775, %v4742, %v2788
  %v4809 = vsel %vm4775, %v4744, %v2790
  %v4811 = vsel %vm4775, %v4746, %v2792
  %v4813 = vsel %vm4775, %v4748, %v2794
  %v4815 = vsel %vm4775, %v4750, %v2796
  %v4817 = vsel %vm4775, %v4752, %v2798
  %v4819 = vsel %vm4775, %v4754, %v2800
  %v4821 = vsel %vm4775, %v4756, %v2802
  %v4823 = vsel %vm4775, %v4758, %v2804
  %v4825 = vsel %vm4775, %v4760, %v2806
  %v4827 = vsel %vm4775, %v4762, %v2808
  %v4829 = vsel %vm4775, %v4764, %v2810
  %v4831 = vsel %vm4775, %v4766, %v2812
  %v4833 = vsel %vm4775, %v4768, %v2814
  %v4835 = vsel %vm4775, %v4770, %v2816
  %v4837 = vsel %vm4775, %v4772, %v2818
  %v4839 = vsel %vm4775, %v4774, %v2820
  %vm4840 = vcmask 130048
  %v4842 = vsel %vm4840, %v4777, %v3302
  %v4844 = vsel %vm4840, %v4779, %v3304
  %v4846 = vsel %vm4840, %v4781, %v3306
  %v4848 = vsel %vm4840, %v4783, %v3308
  %v4850 = vsel %vm4840, %v4785, %v3310
  %v4852 = vsel %vm4840, %v4787, %v3312
  %v4854 = vsel %vm4840, %v4789, %v3314
  %v4856 = vsel %vm4840, %v4791, %v3316
  %v4858 = vsel %vm4840, %v4793, %v3318
  %v4860 = vsel %vm4840, %v4795, %v3320
  %v4862 = vsel %vm4840, %v4797, %v3322
  %v4864 = vsel %vm4840, %v4799, %v3324
  %v4866 = vsel %vm4840, %v4801, %v3326
  %v4868 = vsel %vm4840, %v4803, %v3328
  %v4870 = vsel %vm4840, %v4805, %v3330
  %v4872 = vsel %vm4840, %v4807, %v3332
  %v4874 = vsel %vm4840, %v4809, %v3334
  %v4876 = vsel %vm4840, %v4811, %v3336
  %v4878 = vsel %vm4840, %v4813, %v3338
  %v4880 = vsel %vm4840, %v4815, %v3340
  %v4882 = vsel %vm4840, %v4817, %v3342
  %v4884 = vsel %vm4840, %v4819, %v3344
  %v4886 = vsel %vm4840, %v4821, %v3346
  %v4888 = vsel %vm4840, %v4823, %v3348
  %v4890 = vsel %vm4840, %v4825, %v3350
  %v4892 = vsel %vm4840, %v4827, %v3352
  %v4894 = vsel %vm4840, %v4829, %v3354
  %v4896 = vsel %vm4840, %v4831, %v3356
  %v4898 = vsel %vm4840, %v4833, %v3358
  %v4900 = vsel %vm4840, %v4835, %v3360
  %v4902 = vsel %vm4840, %v4837, %v3362
  %v4904 = vsel %vm4840, %v4839, %v3364
  %vm4905 = vcmask 162816
  %v4907 = vsel %vm4905, %v4842, %v3558
  %v4909 = vsel %vm4905, %v4844, %v3560
  %v4911 = vsel %vm4905, %v4846, %v3562
  %v4913 = vsel %vm4905, %v4848, %v3564
  %v4915 = vsel %vm4905, %v4850, %v3566
  %v4917 = vsel %vm4905, %v4852, %v3568
  %v4919 = vsel %vm4905, %v4854, %v3570
  %v4921 = vsel %vm4905, %v4856, %v3572
  %v4923 = vsel %vm4905, %v4858, %v3574
  %v4925 = vsel %vm4905, %v4860, %v3576
  %v4927 = vsel %vm4905, %v4862, %v3578
  %v4929 = vsel %vm4905, %v4864, %v3580
  %v4931 = vsel %vm4905, %v4866, %v3582
  %v4933 = vsel %vm4905, %v4868, %v3584
  %v4935 = vsel %vm4905, %v4870, %v3586
  %v4937 = vsel %vm4905, %v4872, %v3588
  %v4939 = vsel %vm4905, %v4874, %v3590
  %v4941 = vsel %vm4905, %v4876, %v3592
  %v4943 = vsel %vm4905, %v4878, %v3594
  %v4945 = vsel %vm4905, %v4880, %v3596
  %v4947 = vsel %vm4905, %v4882, %v3598
  %v4949 = vsel %vm4905, %v4884, %v3600
  %v4951 = vsel %vm4905, %v4886, %v3602
  %v4953 = vsel %vm4905, %v4888, %v3604
  %v4955 = vsel %vm4905, %v4890, %v3606
  %v4957 = vsel %vm4905, %v4892, %v3608
  %v4959 = vsel %vm4905, %v4894, %v3610
  %v4961 = vsel %vm4905, %v4896, %v3612
  %v4963 = vsel %vm4905, %v4898, %v3614
  %v4965 = vsel %vm4905, %v4900, %v3616
  %v4967 = vsel %vm4905, %v4902, %v3618
  %v4969 = vsel %vm4905, %v4904, %v3620
  %vm4970 = vcmask 195584
  %v4972 = vsel %vm4970, %v4907, %v3782
  %v4974 = vsel %vm4970, %v4909, %v3784
  %v4976 = vsel %vm4970, %v4911, %v3786
  %v4978 = vsel %vm4970, %v4913, %v3788
  %v4980 = vsel %vm4970, %v4915, %v3790
  %v4982 = vsel %vm4970, %v4917, %v3792
  %v4984 = vsel %vm4970, %v4919, %v3794
  %v4986 = vsel %vm4970, %v4921, %v3796
  %v4988 = vsel %vm4970, %v4923, %v3798
  %v4990 = vsel %vm4970, %v4925, %v3800
  %v4992 = vsel %vm4970, %v4927, %v3802
  %v4994 = vsel %vm4970, %v4929, %v3804
  %v4996 = vsel %vm4970, %v4931, %v3806
  %v4998 = vsel %vm4970, %v4933, %v3808
  %v5000 = vsel %vm4970, %v4935, %v3810
  %v5002 = vsel %vm4970, %v4937, %v3812
  %v5004 = vsel %vm4970, %v4939, %v3814
  %v5006 = vsel %vm4970, %v4941, %v3816
  %v5008 = vsel %vm4970, %v4943, %v3818
  %v5010 = vsel %vm4970, %v4945, %v3820
  %v5012 = vsel %vm4970, %v4947, %v3822
  %v5014 = vsel %vm4970, %v4949, %v3824
  %v5016 = vsel %vm4970, %v4951, %v3826
  %v5018 = vsel %vm4970, %v4953, %v3828
  %v5020 = vsel %vm4970, %v4955, %v3830
  %v5022 = vsel %vm4970, %v4957, %v3832
  %v5024 = vsel %vm4970, %v4959, %v3834
  %v5026 = vsel %vm4970, %v4961, %v3836
  %v5028 = vsel %vm4970, %v4963, %v3838
  %v5030 = vsel %vm4970, %v4965, %v3840
  %v5032 = vsel %vm4970, %v4967, %v3842
  %v5034 = vsel %vm4970, %v4969, %v3844
  %vm5035 = vcmask 228352
  %v5037 = vsel %vm5035, %v4972, %v4326
  %v5039 = vsel %vm5035, %v4974, %v4328
  %v5041 = vsel %vm5035, %v4976, %v4330
  %v5043 = vsel %vm5035, %v4978, %v4332
  %v5045 = vsel %vm5035, %v4980, %v4334
  %v5047 = vsel %vm5035, %v4982, %v4336
  %v5049 = vsel %vm5035, %v4984, %v4338
  %v5051 = vsel %vm5035, %v4986, %v4340
  %v5053 = vsel %vm5035, %v4988, %v4342
  %v5055 = vsel %vm5035, %v4990, %v4344
  %v5057 = vsel %vm5035, %v4992, %v4346
  %v5059 = vsel %vm5035, %v4994, %v4348
  %v5061 = vsel %vm5035, %v4996, %v4350
  %v5063 = vsel %vm5035, %v4998, %v4352
  %v5065 = vsel %vm5035, %v5000, %v4354
  %v5067 = vsel %vm5035, %v5002, %v4356
  %v5069 = vsel %vm5035, %v5004, %v4358
  %v5071 = vsel %vm5035, %v5006, %v4360
  %v5073 = vsel %vm5035, %v5008, %v4362
  %v5075 = vsel %vm5035, %v5010, %v4364
  %v5077 = vsel %vm5035, %v5012, %v4366
  %v5079 = vsel %vm5035, %v5014, %v4368
  %v5081 = vsel %vm5035, %v5016, %v4370
  %v5083 = vsel %vm5035, %v5018, %v4372
  %v5085 = vsel %vm5035, %v5020, %v4374
  %v5087 = vsel %vm5035, %v5022, %v4376
  %v5089 = vsel %vm5035, %v5024, %v4378
  %v5091 = vsel %vm5035, %v5026, %v4380
  %v5093 = vsel %vm5035, %v5028, %v4382
  %v5095 = vsel %vm5035, %v5030, %v4384
  %v5097 = vsel %vm5035, %v5032, %v4386
  %v5099 = vsel %vm5035, %v5034, %v4388
  %vm5100 = vcmask 261120
  %v5102 = vsel %vm5100, %v5037, %v4582
  %v5104 = vsel %vm5100, %v5039, %v4584
  %v5106 = vsel %vm5100, %v5041, %v4586
  %v5108 = vsel %vm5100, %v5043, %v4588
  %v5110 = vsel %vm5100, %v5045, %v4590
  %v5112 = vsel %vm5100, %v5047, %v4592
  %v5114 = vsel %vm5100, %v5049, %v4594
  %v5116 = vsel %vm5100, %v5051, %v4596
  %v5118 = vsel %vm5100, %v5053, %v4598
  %v5120 = vsel %vm5100, %v5055, %v4600
  %v5122 = vsel %vm5100, %v5057, %v4602
  %v5124 = vsel %vm5100, %v5059, %v4604
  %v5126 = vsel %vm5100, %v5061, %v4606
  %v5128 = vsel %vm5100, %v5063, %v4608
  %v5130 = vsel %vm5100, %v5065, %v4610
  %v5132 = vsel %vm5100, %v5067, %v4612
  %v5134 = vsel %vm5100, %v5069, %v4614
  %v5136 = vsel %vm5100, %v5071, %v4616
  %v5138 = vsel %vm5100, %v5073, %v4618
  %v5140 = vsel %vm5100, %v5075, %v4620
  %v5142 = vsel %vm5100, %v5077, %v4622
  %v5144 = vsel %vm5100, %v5079, %v4624
  %v5146 = vsel %vm5100, %v5081, %v4626
  %v5148 = vsel %vm5100, %v5083, %v4628
  %v5150 = vsel %vm5100, %v5085, %v4630
  %v5152 = vsel %vm5100, %v5087, %v4632
  %v5154 = vsel %vm5100, %v5089, %v4634
  %v5156 = vsel %vm5100, %v5091, %v4636
  %v5158 = vsel %vm5100, %v5093, %v4638
  %v5160 = vsel %vm5100, %v5095, %v4640
  %v5162 = vsel %vm5100, %v5097, %v4642
  %v5164 = vsel %vm5100, %v5099, %v4644
  %vm5165 = vcmask 293888
  %v5167 = vsel %vm5165, %v5102, 0
  %v5169 = vsel %vm5165, %v5104, 0
  %v5171 = vsel %vm5165, %v5106, 0
  %v5173 = vsel %vm5165, %v5108, 0
  %v5175 = vsel %vm5165, %v5110, 0
  %v5177 = vsel %vm5165, %v5112, 0
  %v5179 = vsel %vm5165, %v5114, 0
  %v5181 = vsel %vm5165, %v5116, 0
  %v5183 = vsel %vm5165, %v5118, 0
  %v5185 = vsel %vm5165, %v5120, 0
  %v5187 = vsel %vm5165, %v5122, 0
  %v5189 = vsel %vm5165, %v5124, 0
  %v5191 = vsel %vm5165, %v5126, 0
  %v5193 = vsel %vm5165, %v5128, 0
  %v5195 = vsel %vm5165, %v5130, 0
  %v5197 = vsel %vm5165, %v5132, 0
  %v5199 = vsel %vm5165, %v5134, 0
  %v5201 = vsel %vm5165, %v5136, 0
  %v5203 = vsel %vm5165, %v5138, 0
  %v5205 = vsel %vm5165, %v5140, 0
  %v5207 = vsel %vm5165, %v5142, 0
  %v5209 = vsel %vm5165, %v5144, 0
  %v5211 = vsel %vm5165, %v5146, 0
  %v5213 = vsel %vm5165, %v5148, 0
  %v5215 = vsel %vm5165, %v5150, 0
  %v5217 = vsel %vm5165, %v5152, 0
  %v5219 = vsel %vm5165, %v5154, 0
  %v5221 = vsel %vm5165, %v5156, 0
  %v5223 = vsel %vm5165, %v5158, 0
  %v5225 = vsel %vm5165, %v5160, 0
  %v5227 = vsel %vm5165, %v5162, 0
  %v5229 = vsel %vm5165, %v5164, 0
  %v5231 = vld [vmem:[%s1] sm:$0xf]
  %v5232 = vld [vmem:[%s1 + $0x4] sm:$0xf]
  %v5233 = vld [vmem:[%s1 + $0x8] sm:$0xf]
  %v5234 = vld [vmem:[%s1 + $0xc] sm:$0xf]
  %v5235 = vld [vmem:[%s1 + $0x10] sm:$0xf]
  %v5236 = vld [vmem:[%s1 + $0x14] sm:$0xf]
  %v5237 = vld [vmem:[%s1 + $0x18] sm:$0xf]
  %v5238 = vld [vmem:[%s1 + $0x1c] sm:$0xf]
  %v5239 = vld [vmem:[%s1 + $0x20] sm:$0xf]
  %v5240 = vld [vmem:[%s1 + $0x24] sm:$0xf]
  %v5241 = vld [vmem:[%s1 + $0x28] sm:$0xf]
  %v5242 = vld [vmem:[%s1 + $0x2c] sm:$0xf]
  %v5243 = vld [vmem:[%s1 + $0x30] sm:$0xf]
  %v5244 = vld [vmem:[%s1 + $0x34] sm:$0xf]
  %v5245 = vld [vmem:[%s1 + $0x38] sm:$0xf]
  %v5246 = vld [vmem:[%s1 + $0x3c] sm:$0xf]
  %v5263 = vunpack.c.l.b16 %v5231
  %v5264 = vunpack.c.l.b16 %v5232
  %v5265 = vunpack.c.l.b16 %v5233
  %v5266 = vunpack.c.l.b16 %v5234
  %v5267 = vunpack.c.l.b16 %v5235
  %v5268 = vunpack.c.l.b16 %v5236
  %v5269 = vunpack.c.l.b16 %v5237
  %v5270 = vunpack.c.l.b16 %v5238
  %v5271 = vunpack.c.l.b16 %v5239
  %v5272 = vunpack.c.l.b16 %v5240
  %v5273 = vunpack.c.l.b16 %v5241
  %v5274 = vunpack.c.l.b16 %v5242
  %v5275 = vunpack.c.l.b16 %v5243
  %v5276 = vunpack.c.l.b16 %v5244
  %v5277 = vunpack.c.l.b16 %v5245
  %v5278 = vunpack.c.l.b16 %v5246
  %v5279 = vpack.c.b16 %v5264, %v5263
  %v5280 = vpack.c.b16 %v5266, %v5265
  %v5281 = vpack.c.b16 %v5268, %v5267
  %v5282 = vpack.c.b16 %v5270, %v5269
  %v5283 = vpack.c.b16 %v5272, %v5271
  %v5284 = vpack.c.b16 %v5274, %v5273
  %v5285 = vpack.c.b16 %v5276, %v5275
  %v5286 = vpack.c.b16 %v5278, %v5277
  %5295 = vmatpush.bf16.msra.mxu0 %v5286
  %5296 = vmatpush.bf16.msra.mxu0 %v5285
  %5297 = vmatpush.bf16.msra.mxu0 %v5284
  %5298 = vmatpush.bf16.msra.mxu0 %v5283
  %5299 = vmatpush.bf16.msra.mxu0 %v5282
  %5300 = vmatpush.bf16.msra.mxu0 %v5281
  %5301 = vmatpush.bf16.msra.mxu0 %v5280
  %5302 = vmatpush.bf16.msra.mxu0 %v5279
  %5303 = vmatmul.bf16.gmra.mxu0 %v5167
  %v5304 = vpop.f32.mrf.mxu0
  %v5305 = vadd.f32 0.0, %v5304
  %v5306 = vpop.f32.mrf.mxu0
  %v5307 = vadd.f32 0.0, %v5306
  %5308 = vmatmul.bf16.gmra.mxu0 %v5169
  %v5309 = vpop.f32.mrf.mxu0
  %v5310 = vadd.f32 0.0, %v5309
  %v5311 = vpop.f32.mrf.mxu0
  %v5312 = vadd.f32 0.0, %v5311
  %5313 = vmatmul.bf16.gmra.mxu0 %v5171
  %v5314 = vpop.f32.mrf.mxu0
  %v5315 = vadd.f32 0.0, %v5314
  %v5316 = vpop.f32.mrf.mxu0
  %v5317 = vadd.f32 0.0, %v5316
  %5318 = vmatmul.bf16.gmra.mxu0 %v5173
  %v5319 = vpop.f32.mrf.mxu0
  %v5320 = vadd.f32 0.0, %v5319
  %v5321 = vpop.f32.mrf.mxu0
  %v5322 = vadd.f32 0.0, %v5321
  %5323 = vmatmul.bf16.gmra.mxu0 %v5175
  %v5324 = vpop.f32.mrf.mxu0
  %v5325 = vadd.f32 0.0, %v5324
  %v5326 = vpop.f32.mrf.mxu0
  %v5327 = vadd.f32 0.0, %v5326
  %5328 = vmatmul.bf16.gmra.mxu0 %v5177
  %v5329 = vpop.f32.mrf.mxu0
  %v5330 = vadd.f32 0.0, %v5329
  %v5331 = vpop.f32.mrf.mxu0
  %v5332 = vadd.f32 0.0, %v5331
  %5333 = vmatmul.bf16.gmra.mxu0 %v5179
  %v5334 = vpop.f32.mrf.mxu0
  %v5335 = vadd.f32 0.0, %v5334
  %v5336 = vpop.f32.mrf.mxu0
  %v5337 = vadd.f32 0.0, %v5336
  %5338 = vmatmul.bf16.gmra.mxu0 %v5181
  %v5339 = vpop.f32.mrf.mxu0
  %v5340 = vadd.f32 0.0, %v5339
  %v5341 = vpop.f32.mrf.mxu0
  %v5342 = vadd.f32 0.0, %v5341
  %5343 = vmatmul.bf16.gmra.mxu0 %v5183
  %v5344 = vpop.f32.mrf.mxu0
  %v5345 = vadd.f32 0.0, %v5344
  %v5346 = vpop.f32.mrf.mxu0
  %v5347 = vadd.f32 0.0, %v5346
  %5348 = vmatmul.bf16.gmra.mxu0 %v5185
  %v5349 = vpop.f32.mrf.mxu0
  %v5350 = vadd.f32 0.0, %v5349
  %v5351 = vpop.f32.mrf.mxu0
  %v5352 = vadd.f32 0.0, %v5351
  %5353 = vmatmul.bf16.gmra.mxu0 %v5187
  %v5354 = vpop.f32.mrf.mxu0
  %v5355 = vadd.f32 0.0, %v5354
  %v5356 = vpop.f32.mrf.mxu0
  %v5357 = vadd.f32 0.0, %v5356
  %5358 = vmatmul.bf16.gmra.mxu0 %v5189
  %v5359 = vpop.f32.mrf.mxu0
  %v5360 = vadd.f32 0.0, %v5359
  %v5361 = vpop.f32.mrf.mxu0
  %v5362 = vadd.f32 0.0, %v5361
  %5363 = vmatmul.bf16.gmra.mxu0 %v5191
  %v5364 = vpop.f32.mrf.mxu0
  %v5365 = vadd.f32 0.0, %v5364
  %v5366 = vpop.f32.mrf.mxu0
  %v5367 = vadd.f32 0.0, %v5366
  %5368 = vmatmul.bf16.gmra.mxu0 %v5193
  %v5369 = vpop.f32.mrf.mxu0
  %v5370 = vadd.f32 0.0, %v5369
  %v5371 = vpop.f32.mrf.mxu0
  %v5372 = vadd.f32 0.0, %v5371
  %5373 = vmatmul.bf16.gmra.mxu0 %v5195
  %v5374 = vpop.f32.mrf.mxu0
  %v5375 = vadd.f32 0.0, %v5374
  %v5376 = vpop.f32.mrf.mxu0
  %v5377 = vadd.f32 0.0, %v5376
  %5378 = vmatmul.bf16.gmra.mxu0 %v5197
  %v5379 = vpop.f32.mrf.mxu0
  %v5380 = vadd.f32 0.0, %v5379
  %v5381 = vpop.f32.mrf.mxu0
  %v5382 = vadd.f32 0.0, %v5381
  %5383 = vmatmul.bf16.gmra.mxu0 %v5199
  %v5384 = vpop.f32.mrf.mxu0
  %v5385 = vadd.f32 0.0, %v5384
  %v5386 = vpop.f32.mrf.mxu0
  %v5387 = vadd.f32 0.0, %v5386
  %5388 = vmatmul.bf16.gmra.mxu0 %v5201
  %v5389 = vpop.f32.mrf.mxu0
  %v5390 = vadd.f32 0.0, %v5389
  %v5391 = vpop.f32.mrf.mxu0
  %v5392 = vadd.f32 0.0, %v5391
  %5393 = vmatmul.bf16.gmra.mxu0 %v5203
  %v5394 = vpop.f32.mrf.mxu0
  %v5395 = vadd.f32 0.0, %v5394
  %v5396 = vpop.f32.mrf.mxu0
  %v5397 = vadd.f32 0.0, %v5396
  %5398 = vmatmul.bf16.gmra.mxu0 %v5205
  %v5399 = vpop.f32.mrf.mxu0
  %v5400 = vadd.f32 0.0, %v5399
  %v5401 = vpop.f32.mrf.mxu0
  %v5402 = vadd.f32 0.0, %v5401
  %5403 = vmatmul.bf16.gmra.mxu0 %v5207
  %v5404 = vpop.f32.mrf.mxu0
  %v5405 = vadd.f32 0.0, %v5404
  %v5406 = vpop.f32.mrf.mxu0
  %v5407 = vadd.f32 0.0, %v5406
  %5408 = vmatmul.bf16.gmra.mxu0 %v5209
  %v5409 = vpop.f32.mrf.mxu0
  %v5410 = vadd.f32 0.0, %v5409
  %v5411 = vpop.f32.mrf.mxu0
  %v5412 = vadd.f32 0.0, %v5411
  %5413 = vmatmul.bf16.gmra.mxu0 %v5211
  %v5414 = vpop.f32.mrf.mxu0
  %v5415 = vadd.f32 0.0, %v5414
  %v5416 = vpop.f32.mrf.mxu0
  %v5417 = vadd.f32 0.0, %v5416
  %5418 = vmatmul.bf16.gmra.mxu0 %v5213
  %v5419 = vpop.f32.mrf.mxu0
  %v5420 = vadd.f32 0.0, %v5419
  %v5421 = vpop.f32.mrf.mxu0
  %v5422 = vadd.f32 0.0, %v5421
  %5423 = vmatmul.bf16.gmra.mxu0 %v5215
  %v5424 = vpop.f32.mrf.mxu0
  %v5425 = vadd.f32 0.0, %v5424
  %v5426 = vpop.f32.mrf.mxu0
  %v5427 = vadd.f32 0.0, %v5426
  %5428 = vmatmul.bf16.gmra.mxu0 %v5217
  %v5429 = vpop.f32.mrf.mxu0
  %v5430 = vadd.f32 0.0, %v5429
  %v5431 = vpop.f32.mrf.mxu0
  %v5432 = vadd.f32 0.0, %v5431
  %5433 = vmatmul.bf16.gmra.mxu0 %v5219
  %v5434 = vpop.f32.mrf.mxu0
  %v5435 = vadd.f32 0.0, %v5434
  %v5436 = vpop.f32.mrf.mxu0
  %v5437 = vadd.f32 0.0, %v5436
  %5438 = vmatmul.bf16.gmra.mxu0 %v5221
  %v5439 = vpop.f32.mrf.mxu0
  %v5440 = vadd.f32 0.0, %v5439
  %v5441 = vpop.f32.mrf.mxu0
  %v5442 = vadd.f32 0.0, %v5441
  %5443 = vmatmul.bf16.gmra.mxu0 %v5223
  %v5444 = vpop.f32.mrf.mxu0
  %v5445 = vadd.f32 0.0, %v5444
  %v5446 = vpop.f32.mrf.mxu0
  %v5447 = vadd.f32 0.0, %v5446
  %5448 = vmatmul.bf16.gmra.mxu0 %v5225
  %v5449 = vpop.f32.mrf.mxu0
  %v5450 = vadd.f32 0.0, %v5449
  %v5451 = vpop.f32.mrf.mxu0
  %v5452 = vadd.f32 0.0, %v5451
  %5453 = vmatmul.bf16.gmra.mxu0 %v5227
  %v5454 = vpop.f32.mrf.mxu0
  %v5455 = vadd.f32 0.0, %v5454
  %v5456 = vpop.f32.mrf.mxu0
  %v5457 = vadd.f32 0.0, %v5456
  %5458 = vmatmul.bf16.gmra.mxu0 %v5229
  %v5459 = vpop.f32.mrf.mxu0
  %v5460 = vadd.f32 0.0, %v5459
  %v5461 = vpop.f32.mrf.mxu0
  %v5462 = vadd.f32 0.0, %v5461
  %5463 = vdwg.mxu0
  %v5464 = vld [vmem:[%s2] sm:$0x1]
  %v5465 = vld [vmem:[%s3] sm:$0x1]
  %v5466 = vadd.f32 %v5305, %v5307
  %v5467 = vadd.f32 %v5466, %v5310
  %v5468 = vadd.f32 %v5467, %v5312
  %v5469 = vadd.f32 %v5468, %v5315
  %v5470 = vadd.f32 %v5469, %v5317
  %v5471 = vadd.f32 %v5470, %v5320
  %v5472 = vadd.f32 %v5471, %v5322
  %v5473 = vadd.f32 %v5472, %v5325
  %v5474 = vadd.f32 %v5473, %v5327
  %v5475 = vadd.f32 %v5474, %v5330
  %v5476 = vadd.f32 %v5475, %v5332
  %v5477 = vadd.f32 %v5476, %v5335
  %v5478 = vadd.f32 %v5477, %v5337
  %v5479 = vadd.f32 %v5478, %v5340
  %v5480 = vadd.f32 %v5479, %v5342
  %v5481 = vadd.f32 %v5480, %v5345
  %v5482 = vadd.f32 %v5481, %v5347
  %v5483 = vadd.f32 %v5482, %v5350
  %v5484 = vadd.f32 %v5483, %v5352
  %v5485 = vadd.f32 %v5484, %v5355
  %v5486 = vadd.f32 %v5485, %v5357
  %v5487 = vadd.f32 %v5486, %v5360
  %v5488 = vadd.f32 %v5487, %v5362
  %v5489 = vadd.f32 %v5488, %v5365
  %v5490 = vadd.f32 %v5489, %v5367
  %v5491 = vadd.f32 %v5490, %v5370
  %v5492 = vadd.f32 %v5491, %v5372
  %v5493 = vadd.f32 %v5492, %v5375
  %v5494 = vadd.f32 %v5493, %v5377
  %v5495 = vadd.f32 %v5494, %v5380
  %v5496 = vadd.f32 %v5495, %v5382
  %v5497 = vadd.f32 %v5496, %v5385
  %v5498 = vadd.f32 %v5497, %v5387
  %v5499 = vadd.f32 %v5498, %v5390
  %v5500 = vadd.f32 %v5499, %v5392
  %v5501 = vadd.f32 %v5500, %v5395
  %v5502 = vadd.f32 %v5501, %v5397
  %v5503 = vadd.f32 %v5502, %v5400
  %v5504 = vadd.f32 %v5503, %v5402
  %v5505 = vadd.f32 %v5504, %v5405
  %v5506 = vadd.f32 %v5505, %v5407
  %v5507 = vadd.f32 %v5506, %v5410
  %v5508 = vadd.f32 %v5507, %v5412
  %v5509 = vadd.f32 %v5508, %v5415
  %v5510 = vadd.f32 %v5509, %v5417
  %v5511 = vadd.f32 %v5510, %v5420
  %v5512 = vadd.f32 %v5511, %v5422
  %v5513 = vadd.f32 %v5512, %v5425
  %v5514 = vadd.f32 %v5513, %v5427
  %v5515 = vadd.f32 %v5514, %v5430
  %v5516 = vadd.f32 %v5515, %v5432
  %v5517 = vadd.f32 %v5516, %v5435
  %v5518 = vadd.f32 %v5517, %v5437
  %v5519 = vadd.f32 %v5518, %v5440
  %v5520 = vadd.f32 %v5519, %v5442
  %v5521 = vadd.f32 %v5520, %v5445
  %v5522 = vadd.f32 %v5521, %v5447
  %v5523 = vadd.f32 %v5522, %v5450
  %v5524 = vadd.f32 %v5523, %v5452
  %v5525 = vadd.f32 %v5524, %v5455
  %v5526 = vadd.f32 %v5525, %v5457
  %v5527 = vadd.f32 %v5526, %v5460
  %v5528 = vadd.f32 %v5527, %v5462
  %v5529 = vrot.slane %v5528, 4
  %v5530 = vadd.f32 %v5528, %v5529
  %v5531 = vrot.slane %v5530, 2
  %v5532 = vadd.f32 %v5530, %v5531
  %v5533 = vrot.slane %v5532, 1
  %v5534 = vadd.f32 %v5532, %v5533
  %v5535 = vmul.f32 %v5534, 0.001953125
  %v5536 = vsub.f32 %v5305, %v5535
  %v5537 = vsub.f32 %v5307, %v5535
  %v5538 = vsub.f32 %v5310, %v5535
  %v5539 = vsub.f32 %v5312, %v5535
  %v5540 = vsub.f32 %v5315, %v5535
  %v5541 = vsub.f32 %v5317, %v5535
  %v5542 = vsub.f32 %v5320, %v5535
  %v5543 = vsub.f32 %v5322, %v5535
  %v5544 = vsub.f32 %v5325, %v5535
  %v5545 = vsub.f32 %v5327, %v5535
  %v5546 = vsub.f32 %v5330, %v5535
  %v5547 = vsub.f32 %v5332, %v5535
  %v5548 = vsub.f32 %v5335, %v5535
  %v5549 = vsub.f32 %v5337, %v5535
  %v5550 = vsub.f32 %v5340, %v5535
  %v5551 = vsub.f32 %v5342, %v5535
  %v5552 = vsub.f32 %v5345, %v5535
  %v5553 = vsub.f32 %v5347, %v5535
  %v5554 = vsub.f32 %v5350, %v5535
  %v5555 = vsub.f32 %v5352, %v5535
  %v5556 = vsub.f32 %v5355, %v5535
  %v5557 = vsub.f32 %v5357, %v5535
  %v5558 = vsub.f32 %v5360, %v5535
  %v5559 = vsub.f32 %v5362, %v5535
  %v5560 = vsub.f32 %v5365, %v5535
  %v5561 = vsub.f32 %v5367, %v5535
  %v5562 = vsub.f32 %v5370, %v5535
  %v5563 = vsub.f32 %v5372, %v5535
  %v5564 = vsub.f32 %v5375, %v5535
  %v5565 = vsub.f32 %v5377, %v5535
  %v5566 = vsub.f32 %v5380, %v5535
  %v5567 = vsub.f32 %v5382, %v5535
  %v5568 = vsub.f32 %v5385, %v5535
  %v5569 = vsub.f32 %v5387, %v5535
  %v5570 = vsub.f32 %v5390, %v5535
  %v5571 = vsub.f32 %v5392, %v5535
  %v5572 = vsub.f32 %v5395, %v5535
  %v5573 = vsub.f32 %v5397, %v5535
  %v5574 = vsub.f32 %v5400, %v5535
  %v5575 = vsub.f32 %v5402, %v5535
  %v5576 = vsub.f32 %v5405, %v5535
  %v5577 = vsub.f32 %v5407, %v5535
  %v5578 = vsub.f32 %v5410, %v5535
  %v5579 = vsub.f32 %v5412, %v5535
  %v5580 = vsub.f32 %v5415, %v5535
  %v5581 = vsub.f32 %v5417, %v5535
  %v5582 = vsub.f32 %v5420, %v5535
  %v5583 = vsub.f32 %v5422, %v5535
  %v5584 = vsub.f32 %v5425, %v5535
  %v5585 = vsub.f32 %v5427, %v5535
  %v5586 = vsub.f32 %v5430, %v5535
  %v5587 = vsub.f32 %v5432, %v5535
  %v5588 = vsub.f32 %v5435, %v5535
  %v5589 = vsub.f32 %v5437, %v5535
  %v5590 = vsub.f32 %v5440, %v5535
  %v5591 = vsub.f32 %v5442, %v5535
  %v5592 = vsub.f32 %v5445, %v5535
  %v5593 = vsub.f32 %v5447, %v5535
  %v5594 = vsub.f32 %v5450, %v5535
  %v5595 = vsub.f32 %v5452, %v5535
  %v5596 = vsub.f32 %v5455, %v5535
  %v5597 = vsub.f32 %v5457, %v5535
  %v5598 = vsub.f32 %v5460, %v5535
  %v5599 = vsub.f32 %v5462, %v5535
  %v5600 = vmul.f32 %v5536, %v5536
  %v5601 = vmul.f32 %v5537, %v5537
  %v5602 = vmul.f32 %v5538, %v5538
  %v5603 = vmul.f32 %v5539, %v5539
  %v5604 = vmul.f32 %v5540, %v5540
  %v5605 = vmul.f32 %v5541, %v5541
  %v5606 = vmul.f32 %v5542, %v5542
  %v5607 = vmul.f32 %v5543, %v5543
  %v5608 = vmul.f32 %v5544, %v5544
  %v5609 = vmul.f32 %v5545, %v5545
  %v5610 = vmul.f32 %v5546, %v5546
  %v5611 = vmul.f32 %v5547, %v5547
  %v5612 = vmul.f32 %v5548, %v5548
  %v5613 = vmul.f32 %v5549, %v5549
  %v5614 = vmul.f32 %v5550, %v5550
  %v5615 = vmul.f32 %v5551, %v5551
  %v5616 = vmul.f32 %v5552, %v5552
  %v5617 = vmul.f32 %v5553, %v5553
  %v5618 = vmul.f32 %v5554, %v5554
  %v5619 = vmul.f32 %v5555, %v5555
  %v5620 = vmul.f32 %v5556, %v5556
  %v5621 = vmul.f32 %v5557, %v5557
  %v5622 = vmul.f32 %v5558, %v5558
  %v5623 = vmul.f32 %v5559, %v5559
  %v5624 = vmul.f32 %v5560, %v5560
  %v5625 = vmul.f32 %v5561, %v5561
  %v5626 = vmul.f32 %v5562, %v5562
  %v5627 = vmul.f32 %v5563, %v5563
  %v5628 = vmul.f32 %v5564, %v5564
  %v5629 = vmul.f32 %v5565, %v5565
  %v5630 = vmul.f32 %v5566, %v5566
  %v5631 = vmul.f32 %v5567, %v5567
  %v5632 = vmul.f32 %v5568, %v5568
  %v5633 = vmul.f32 %v5569, %v5569
  %v5634 = vmul.f32 %v5570, %v5570
  %v5635 = vmul.f32 %v5571, %v5571
  %v5636 = vmul.f32 %v5572, %v5572
  %v5637 = vmul.f32 %v5573, %v5573
  %v5638 = vmul.f32 %v5574, %v5574
  %v5639 = vmul.f32 %v5575, %v5575
  %v5640 = vmul.f32 %v5576, %v5576
  %v5641 = vmul.f32 %v5577, %v5577
  %v5642 = vmul.f32 %v5578, %v5578
  %v5643 = vmul.f32 %v5579, %v5579
  %v5644 = vmul.f32 %v5580, %v5580
  %v5645 = vmul.f32 %v5581, %v5581
  %v5646 = vmul.f32 %v5582, %v5582
  %v5647 = vmul.f32 %v5583, %v5583
  %v5648 = vmul.f32 %v5584, %v5584
  %v5649 = vmul.f32 %v5585, %v5585
  %v5650 = vmul.f32 %v5586, %v5586
  %v5651 = vmul.f32 %v5587, %v5587
  %v5652 = vmul.f32 %v5588, %v5588
  %v5653 = vmul.f32 %v5589, %v5589
  %v5654 = vmul.f32 %v5590, %v5590
  %v5655 = vmul.f32 %v5591, %v5591
  %v5656 = vmul.f32 %v5592, %v5592
  %v5657 = vmul.f32 %v5593, %v5593
  %v5658 = vmul.f32 %v5594, %v5594
  %v5659 = vmul.f32 %v5595, %v5595
  %v5660 = vmul.f32 %v5596, %v5596
  %v5661 = vmul.f32 %v5597, %v5597
  %v5662 = vmul.f32 %v5598, %v5598
  %v5663 = vmul.f32 %v5599, %v5599
  %v5664 = vadd.f32 %v5600, %v5601
  %v5665 = vadd.f32 %v5664, %v5602
  %v5666 = vadd.f32 %v5665, %v5603
  %v5667 = vadd.f32 %v5666, %v5604
  %v5668 = vadd.f32 %v5667, %v5605
  %v5669 = vadd.f32 %v5668, %v5606
  %v5670 = vadd.f32 %v5669, %v5607
  %v5671 = vadd.f32 %v5670, %v5608
  %v5672 = vadd.f32 %v5671, %v5609
  %v5673 = vadd.f32 %v5672, %v5610
  %v5674 = vadd.f32 %v5673, %v5611
  %v5675 = vadd.f32 %v5674, %v5612
  %v5676 = vadd.f32 %v5675, %v5613
  %v5677 = vadd.f32 %v5676, %v5614
  %v5678 = vadd.f32 %v5677, %v5615
  %v5679 = vadd.f32 %v5678, %v5616
  %v5680 = vadd.f32 %v5679, %v5617
  %v5681 = vadd.f32 %v5680, %v5618
  %v5682 = vadd.f32 %v5681, %v5619
  %v5683 = vadd.f32 %v5682, %v5620
  %v5684 = vadd.f32 %v5683, %v5621
  %v5685 = vadd.f32 %v5684, %v5622
  %v5686 = vadd.f32 %v5685, %v5623
  %v5687 = vadd.f32 %v5686, %v5624
  %v5688 = vadd.f32 %v5687, %v5625
  %v5689 = vadd.f32 %v5688, %v5626
  %v5690 = vadd.f32 %v5689, %v5627
  %v5691 = vadd.f32 %v5690, %v5628
  %v5692 = vadd.f32 %v5691, %v5629
  %v5693 = vadd.f32 %v5692, %v5630
  %v5694 = vadd.f32 %v5693, %v5631
  %v5695 = vadd.f32 %v5694, %v5632
  %v5696 = vadd.f32 %v5695, %v5633
  %v5697 = vadd.f32 %v5696, %v5634
  %v5698 = vadd.f32 %v5697, %v5635
  %v5699 = vadd.f32 %v5698, %v5636
  %v5700 = vadd.f32 %v5699, %v5637
  %v5701 = vadd.f32 %v5700, %v5638
  %v5702 = vadd.f32 %v5701, %v5639
  %v5703 = vadd.f32 %v5702, %v5640
  %v5704 = vadd.f32 %v5703, %v5641
  %v5705 = vadd.f32 %v5704, %v5642
  %v5706 = vadd.f32 %v5705, %v5643
  %v5707 = vadd.f32 %v5706, %v5644
  %v5708 = vadd.f32 %v5707, %v5645
  %v5709 = vadd.f32 %v5708, %v5646
  %v5710 = vadd.f32 %v5709, %v5647
  %v5711 = vadd.f32 %v5710, %v5648
  %v5712 = vadd.f32 %v5711, %v5649
  %v5713 = vadd.f32 %v5712, %v5650
  %v5714 = vadd.f32 %v5713, %v5651
  %v5715 = vadd.f32 %v5714, %v5652
  %v5716 = vadd.f32 %v5715, %v5653
  %v5717 = vadd.f32 %v5716, %v5654
  %v5718 = vadd.f32 %v5717, %v5655
  %v5719 = vadd.f32 %v5718, %v5656
  %v5720 = vadd.f32 %v5719, %v5657
  %v5721 = vadd.f32 %v5720, %v5658
  %v5722 = vadd.f32 %v5721, %v5659
  %v5723 = vadd.f32 %v5722, %v5660
  %v5724 = vadd.f32 %v5723, %v5661
  %v5725 = vadd.f32 %v5724, %v5662
  %v5726 = vadd.f32 %v5725, %v5663
  %v5727 = vrot.slane %v5726, 4
  %v5728 = vadd.f32 %v5726, %v5727
  %v5729 = vrot.slane %v5728, 2
  %v5730 = vadd.f32 %v5728, %v5729
  %v5731 = vrot.slane %v5730, 1
  %v5732 = vadd.f32 %v5730, %v5731
  %v5733 = vmul.f32 %v5732, 0.001953125
  %v5734 = vadd.f32 %v5733, 1e-05
  %v5735 = vrsqrt.pop %v5734
  %v5736 = vmul.f32 %v5735, %v5734
  %v5737 = vmul.f32 %v5736, %v5735
  %v5738 = vmul.f32 0.5, %v5737
  %v5739 = vsub.f32 1.5, %v5738
  %v5740 = vmul.f32 %v5735, %v5739
  %vm5741 = vweird.f32 %v5734
  %vm5742 = vweird.f32 %v5735
  %vm5743 = vmor %vm5741, %vm5742
  %v5744 = vsel %vm5743, %v5735, %v5740
  %v5745 = vmul.f32 %v5744, %v5464
  %v5746 = vperm.slane %v5745, 0
  %v5747 = vmul.f32 %v5536, %v5746
  %v5748 = vmul.f32 %v5537, %v5746
  %v5749 = vmul.f32 %v5538, %v5746
  %v5750 = vmul.f32 %v5539, %v5746
  %v5751 = vmul.f32 %v5540, %v5746
  %v5752 = vmul.f32 %v5541, %v5746
  %v5753 = vmul.f32 %v5542, %v5746
  %v5754 = vmul.f32 %v5543, %v5746
  %v5755 = vmul.f32 %v5544, %v5746
  %v5756 = vmul.f32 %v5545, %v5746
  %v5757 = vmul.f32 %v5546, %v5746
  %v5758 = vmul.f32 %v5547, %v5746
  %v5759 = vmul.f32 %v5548, %v5746
  %v5760 = vmul.f32 %v5549, %v5746
  %v5761 = vmul.f32 %v5550, %v5746
  %v5762 = vmul.f32 %v5551, %v5746
  %v5763 = vmul.f32 %v5552, %v5746
  %v5764 = vmul.f32 %v5553, %v5746
  %v5765 = vmul.f32 %v5554, %v5746
  %v5766 = vmul.f32 %v5555, %v5746
  %v5767 = vmul.f32 %v5556, %v5746
  %v5768 = vmul.f32 %v5557, %v5746
  %v5769 = vmul.f32 %v5558, %v5746
  %v5770 = vmul.f32 %v5559, %v5746
  %v5771 = vmul.f32 %v5560, %v5746
  %v5772 = vmul.f32 %v5561, %v5746
  %v5773 = vmul.f32 %v5562, %v5746
  %v5774 = vmul.f32 %v5563, %v5746
  %v5775 = vmul.f32 %v5564, %v5746
  %v5776 = vmul.f32 %v5565, %v5746
  %v5777 = vmul.f32 %v5566, %v5746
  %v5778 = vmul.f32 %v5567, %v5746
  %v5779 = vmul.f32 %v5568, %v5746
  %v5780 = vmul.f32 %v5569, %v5746
  %v5781 = vmul.f32 %v5570, %v5746
  %v5782 = vmul.f32 %v5571, %v5746
  %v5783 = vmul.f32 %v5572, %v5746
  %v5784 = vmul.f32 %v5573, %v5746
  %v5785 = vmul.f32 %v5574, %v5746
  %v5786 = vmul.f32 %v5575, %v5746
  %v5787 = vmul.f32 %v5576, %v5746
  %v5788 = vmul.f32 %v5577, %v5746
  %v5789 = vmul.f32 %v5578, %v5746
  %v5790 = vmul.f32 %v5579, %v5746
  %v5791 = vmul.f32 %v5580, %v5746
  %v5792 = vmul.f32 %v5581, %v5746
  %v5793 = vmul.f32 %v5582, %v5746
  %v5794 = vmul.f32 %v5583, %v5746
  %v5795 = vmul.f32 %v5584, %v5746
  %v5796 = vmul.f32 %v5585, %v5746
  %v5797 = vmul.f32 %v5586, %v5746
  %v5798 = vmul.f32 %v5587, %v5746
  %v5799 = vmul.f32 %v5588, %v5746
  %v5800 = vmul.f32 %v5589, %v5746
  %v5801 = vmul.f32 %v5590, %v5746
  %v5802 = vmul.f32 %v5591, %v5746
  %v5803 = vmul.f32 %v5592, %v5746
  %v5804 = vmul.f32 %v5593, %v5746
  %v5805 = vmul.f32 %v5594, %v5746
  %v5806 = vmul.f32 %v5595, %v5746
  %v5807 = vmul.f32 %v5596, %v5746
  %v5808 = vmul.f32 %v5597, %v5746
  %v5809 = vmul.f32 %v5598, %v5746
  %v5810 = vmul.f32 %v5599, %v5746
  %v5812 = vperm.slane %v5465, 0
  %v5814 = vadd.f32 %v5747, %v5812
  %v5815 = vadd.f32 %v5748, %v5812
  %v5816 = vadd.f32 %v5749, %v5812
  %v5817 = vadd.f32 %v5750, %v5812
  %v5818 = vadd.f32 %v5751, %v5812
  %v5819 = vadd.f32 %v5752, %v5812
  %v5820 = vadd.f32 %v5753, %v5812
  %v5821 = vadd.f32 %v5754, %v5812
  %v5822 = vadd.f32 %v5755, %v5812
  %v5823 = vadd.f32 %v5756, %v5812
  %v5824 = vadd.f32 %v5757, %v5812
  %v5825 = vadd.f32 %v5758, %v5812
  %v5826 = vadd.f32 %v5759, %v5812
  %v5827 = vadd.f32 %v5760, %v5812
  %v5828 = vadd.f32 %v5761, %v5812
  %v5829 = vadd.f32 %v5762, %v5812
  %v5830 = vadd.f32 %v5763, %v5812
  %v5831 = vadd.f32 %v5764, %v5812
  %v5832 = vadd.f32 %v5765, %v5812
  %v5833 = vadd.f32 %v5766, %v5812
  %v5834 = vadd.f32 %v5767, %v5812
  %v5835 = vadd.f32 %v5768, %v5812
  %v5836 = vadd.f32 %v5769, %v5812
  %v5837 = vadd.f32 %v5770, %v5812
  %v5838 = vadd.f32 %v5771, %v5812
  %v5839 = vadd.f32 %v5772, %v5812
  %v5840 = vadd.f32 %v5773, %v5812
  %v5841 = vadd.f32 %v5774, %v5812
  %v5842 = vadd.f32 %v5775, %v5812
  %v5843 = vadd.f32 %v5776, %v5812
  %v5844 = vadd.f32 %v5777, %v5812
  %v5845 = vadd.f32 %v5778, %v5812
  %v5846 = vadd.f32 %v5779, %v5812
  %v5847 = vadd.f32 %v5780, %v5812
  %v5848 = vadd.f32 %v5781, %v5812
  %v5849 = vadd.f32 %v5782, %v5812
  %v5850 = vadd.f32 %v5783, %v5812
  %v5851 = vadd.f32 %v5784, %v5812
  %v5852 = vadd.f32 %v5785, %v5812
  %v5853 = vadd.f32 %v5786, %v5812
  %v5854 = vadd.f32 %v5787, %v5812
  %v5855 = vadd.f32 %v5788, %v5812
  %v5856 = vadd.f32 %v5789, %v5812
  %v5857 = vadd.f32 %v5790, %v5812
  %v5858 = vadd.f32 %v5791, %v5812
  %v5859 = vadd.f32 %v5792, %v5812
  %v5860 = vadd.f32 %v5793, %v5812
  %v5861 = vadd.f32 %v5794, %v5812
  %v5862 = vadd.f32 %v5795, %v5812
  %v5863 = vadd.f32 %v5796, %v5812
  %v5864 = vadd.f32 %v5797, %v5812
  %v5865 = vadd.f32 %v5798, %v5812
  %v5866 = vadd.f32 %v5799, %v5812
  %v5867 = vadd.f32 %v5800, %v5812
  %v5868 = vadd.f32 %v5801, %v5812
  %v5869 = vadd.f32 %v5802, %v5812
  %v5870 = vadd.f32 %v5803, %v5812
  %v5871 = vadd.f32 %v5804, %v5812
  %v5872 = vadd.f32 %v5805, %v5812
  %v5873 = vadd.f32 %v5806, %v5812
  %v5874 = vadd.f32 %v5807, %v5812
  %v5875 = vadd.f32 %v5808, %v5812
  %v5876 = vadd.f32 %v5809, %v5812
  %v5877 = vadd.f32 %v5810, %v5812
  %v5878 = vmax.f32 %v5814, 0.0
  %v5879 = vmax.f32 %v5815, 0.0
  %v5880 = vmax.f32 %v5816, 0.0
  %v5881 = vmax.f32 %v5817, 0.0
  %v5882 = vmax.f32 %v5818, 0.0
  %v5883 = vmax.f32 %v5819, 0.0
  %v5884 = vmax.f32 %v5820, 0.0
  %v5885 = vmax.f32 %v5821, 0.0
  %v5886 = vmax.f32 %v5822, 0.0
  %v5887 = vmax.f32 %v5823, 0.0
  %v5888 = vmax.f32 %v5824, 0.0
  %v5889 = vmax.f32 %v5825, 0.0
  %v5890 = vmax.f32 %v5826, 0.0
  %v5891 = vmax.f32 %v5827, 0.0
  %v5892 = vmax.f32 %v5828, 0.0
  %v5893 = vmax.f32 %v5829, 0.0
  %v5894 = vmax.f32 %v5830, 0.0
  %v5895 = vmax.f32 %v5831, 0.0
  %v5896 = vmax.f32 %v5832, 0.0
  %v5897 = vmax.f32 %v5833, 0.0
  %v5898 = vmax.f32 %v5834, 0.0
  %v5899 = vmax.f32 %v5835, 0.0
  %v5900 = vmax.f32 %v5836, 0.0
  %v5901 = vmax.f32 %v5837, 0.0
  %v5902 = vmax.f32 %v5838, 0.0
  %v5903 = vmax.f32 %v5839, 0.0
  %v5904 = vmax.f32 %v5840, 0.0
  %v5905 = vmax.f32 %v5841, 0.0
  %v5906 = vmax.f32 %v5842, 0.0
  %v5907 = vmax.f32 %v5843, 0.0
  %v5908 = vmax.f32 %v5844, 0.0
  %v5909 = vmax.f32 %v5845, 0.0
  %v5910 = vmax.f32 %v5846, 0.0
  %v5911 = vmax.f32 %v5847, 0.0
  %v5912 = vmax.f32 %v5848, 0.0
  %v5913 = vmax.f32 %v5849, 0.0
  %v5914 = vmax.f32 %v5850, 0.0
  %v5915 = vmax.f32 %v5851, 0.0
  %v5916 = vmax.f32 %v5852, 0.0
  %v5917 = vmax.f32 %v5853, 0.0
  %v5918 = vmax.f32 %v5854, 0.0
  %v5919 = vmax.f32 %v5855, 0.0
  %v5920 = vmax.f32 %v5856, 0.0
  %v5921 = vmax.f32 %v5857, 0.0
  %v5922 = vmax.f32 %v5858, 0.0
  %v5923 = vmax.f32 %v5859, 0.0
  %v5924 = vmax.f32 %v5860, 0.0
  %v5925 = vmax.f32 %v5861, 0.0
  %v5926 = vmax.f32 %v5862, 0.0
  %v5927 = vmax.f32 %v5863, 0.0
  %v5928 = vmax.f32 %v5864, 0.0
  %v5929 = vmax.f32 %v5865, 0.0
  %v5930 = vmax.f32 %v5866, 0.0
  %v5931 = vmax.f32 %v5867, 0.0
  %v5932 = vmax.f32 %v5868, 0.0
  %v5933 = vmax.f32 %v5869, 0.0
  %v5934 = vmax.f32 %v5870, 0.0
  %v5935 = vmax.f32 %v5871, 0.0
  %v5936 = vmax.f32 %v5872, 0.0
  %v5937 = vmax.f32 %v5873, 0.0
  %v5938 = vmax.f32 %v5874, 0.0
  %v5939 = vmax.f32 %v5875, 0.0
  %v5940 = vmax.f32 %v5876, 0.0
  %v5941 = vmax.f32 %v5877, 0.0
  %v5942 = vld [vmem:[%s7] sm:$0xf]
  %v5943 = vld [vmem:[%s7 + $0x4] sm:$0xf]
  %v5944 = vld [vmem:[%s7 + $0x8] sm:$0xf]
  %v5945 = vld [vmem:[%s7 + $0xc] sm:$0xf]
  %v5946 = vld [vmem:[%s7 + $0x10] sm:$0xf]
  %v5947 = vld [vmem:[%s7 + $0x14] sm:$0xf]
  %v5948 = vld [vmem:[%s7 + $0x18] sm:$0xf]
  %v5949 = vld [vmem:[%s7 + $0x1c] sm:$0xf]
  %v5950 = vld [vmem:[%s7 + $0x20] sm:$0xf]
  %v5951 = vld [vmem:[%s7 + $0x24] sm:$0xf]
  %v5952 = vld [vmem:[%s7 + $0x28] sm:$0xf]
  %v5953 = vld [vmem:[%s7 + $0x2c] sm:$0xf]
  %v5954 = vld [vmem:[%s7 + $0x30] sm:$0xf]
  %v5955 = vld [vmem:[%s7 + $0x34] sm:$0xf]
  %v5956 = vld [vmem:[%s7 + $0x38] sm:$0xf]
  %v5957 = vld [vmem:[%s7 + $0x3c] sm:$0xf]
  %v5974 = vunpack.c.l.b16 %v5942
  %v5975 = vunpack.c.l.b16 %v5943
  %v5976 = vunpack.c.l.b16 %v5944
  %v5977 = vunpack.c.l.b16 %v5945
  %v5978 = vunpack.c.l.b16 %v5946
  %v5979 = vunpack.c.l.b16 %v5947
  %v5980 = vunpack.c.l.b16 %v5948
  %v5981 = vunpack.c.l.b16 %v5949
  %v5982 = vunpack.c.l.b16 %v5950
  %v5983 = vunpack.c.l.b16 %v5951
  %v5984 = vunpack.c.l.b16 %v5952
  %v5985 = vunpack.c.l.b16 %v5953
  %v5986 = vunpack.c.l.b16 %v5954
  %v5987 = vunpack.c.l.b16 %v5955
  %v5988 = vunpack.c.l.b16 %v5956
  %v5989 = vunpack.c.l.b16 %v5957
  %v5990 = vpack.c.b16 %v5975, %v5974
  %v5991 = vpack.c.b16 %v5977, %v5976
  %v5992 = vpack.c.b16 %v5979, %v5978
  %v5993 = vpack.c.b16 %v5981, %v5980
  %v5994 = vpack.c.b16 %v5983, %v5982
  %v5995 = vpack.c.b16 %v5985, %v5984
  %v5996 = vpack.c.b16 %v5987, %v5986
  %v5997 = vpack.c.b16 %v5989, %v5988
  %6006 = vmatpush.bf16.msra.mxu0 %v5997
  %6007 = vmatpush.bf16.msra.mxu0 %v5996
  %6008 = vmatpush.bf16.msra.mxu0 %v5995
  %6009 = vmatpush.bf16.msra.mxu0 %v5994
  %6010 = vmatpush.bf16.msra.mxu0 %v5993
  %6011 = vmatpush.bf16.msra.mxu0 %v5992
  %6012 = vmatpush.bf16.msra.mxu0 %v5991
  %6013 = vmatpush.bf16.msra.mxu0 %v5990
  %6014 = vmatmul.bf16.gmra.mxu0 %v5167
  %v6015 = vpop.f32.mrf.mxu0
  %v6016 = vadd.f32 0.0, %v6015
  %v6017 = vpop.f32.mrf.mxu0
  %v6018 = vadd.f32 0.0, %v6017
  %6019 = vmatmul.bf16.gmra.mxu0 %v5169
  %v6020 = vpop.f32.mrf.mxu0
  %v6021 = vadd.f32 0.0, %v6020
  %v6022 = vpop.f32.mrf.mxu0
  %v6023 = vadd.f32 0.0, %v6022
  %6024 = vmatmul.bf16.gmra.mxu0 %v5171
  %v6025 = vpop.f32.mrf.mxu0
  %v6026 = vadd.f32 0.0, %v6025
  %v6027 = vpop.f32.mrf.mxu0
  %v6028 = vadd.f32 0.0, %v6027
  %6029 = vmatmul.bf16.gmra.mxu0 %v5173
  %v6030 = vpop.f32.mrf.mxu0
  %v6031 = vadd.f32 0.0, %v6030
  %v6032 = vpop.f32.mrf.mxu0
  %v6033 = vadd.f32 0.0, %v6032
  %6034 = vmatmul.bf16.gmra.mxu0 %v5175
  %v6035 = vpop.f32.mrf.mxu0
  %v6036 = vadd.f32 0.0, %v6035
  %v6037 = vpop.f32.mrf.mxu0
  %v6038 = vadd.f32 0.0, %v6037
  %6039 = vmatmul.bf16.gmra.mxu0 %v5177
  %v6040 = vpop.f32.mrf.mxu0
  %v6041 = vadd.f32 0.0, %v6040
  %v6042 = vpop.f32.mrf.mxu0
  %v6043 = vadd.f32 0.0, %v6042
  %6044 = vmatmul.bf16.gmra.mxu0 %v5179
  %v6045 = vpop.f32.mrf.mxu0
  %v6046 = vadd.f32 0.0, %v6045
  %v6047 = vpop.f32.mrf.mxu0
  %v6048 = vadd.f32 0.0, %v6047
  %6049 = vmatmul.bf16.gmra.mxu0 %v5181
  %v6050 = vpop.f32.mrf.mxu0
  %v6051 = vadd.f32 0.0, %v6050
  %v6052 = vpop.f32.mrf.mxu0
  %v6053 = vadd.f32 0.0, %v6052
  %6054 = vmatmul.bf16.gmra.mxu0 %v5183
  %v6055 = vpop.f32.mrf.mxu0
  %v6056 = vadd.f32 0.0, %v6055
  %v6057 = vpop.f32.mrf.mxu0
  %v6058 = vadd.f32 0.0, %v6057
  %6059 = vmatmul.bf16.gmra.mxu0 %v5185
  %v6060 = vpop.f32.mrf.mxu0
  %v6061 = vadd.f32 0.0, %v6060
  %v6062 = vpop.f32.mrf.mxu0
  %v6063 = vadd.f32 0.0, %v6062
  %6064 = vmatmul.bf16.gmra.mxu0 %v5187
  %v6065 = vpop.f32.mrf.mxu0
  %v6066 = vadd.f32 0.0, %v6065
  %v6067 = vpop.f32.mrf.mxu0
  %v6068 = vadd.f32 0.0, %v6067
  %6069 = vmatmul.bf16.gmra.mxu0 %v5189
  %v6070 = vpop.f32.mrf.mxu0
  %v6071 = vadd.f32 0.0, %v6070
  %v6072 = vpop.f32.mrf.mxu0
  %v6073 = vadd.f32 0.0, %v6072
  %6074 = vmatmul.bf16.gmra.mxu0 %v5191
  %v6075 = vpop.f32.mrf.mxu0
  %v6076 = vadd.f32 0.0, %v6075
  %v6077 = vpop.f32.mrf.mxu0
  %v6078 = vadd.f32 0.0, %v6077
  %6079 = vmatmul.bf16.gmra.mxu0 %v5193
  %v6080 = vpop.f32.mrf.mxu0
  %v6081 = vadd.f32 0.0, %v6080
  %v6082 = vpop.f32.mrf.mxu0
  %v6083 = vadd.f32 0.0, %v6082
  %6084 = vmatmul.bf16.gmra.mxu0 %v5195
  %v6085 = vpop.f32.mrf.mxu0
  %v6086 = vadd.f32 0.0, %v6085
  %v6087 = vpop.f32.mrf.mxu0
  %v6088 = vadd.f32 0.0, %v6087
  %6089 = vmatmul.bf16.gmra.mxu0 %v5197
  %v6090 = vpop.f32.mrf.mxu0
  %v6091 = vadd.f32 0.0, %v6090
  %v6092 = vpop.f32.mrf.mxu0
  %v6093 = vadd.f32 0.0, %v6092
  %6094 = vmatmul.bf16.gmra.mxu0 %v5199
  %v6095 = vpop.f32.mrf.mxu0
  %v6096 = vadd.f32 0.0, %v6095
  %v6097 = vpop.f32.mrf.mxu0
  %v6098 = vadd.f32 0.0, %v6097
  %6099 = vmatmul.bf16.gmra.mxu0 %v5201
  %v6100 = vpop.f32.mrf.mxu0
  %v6101 = vadd.f32 0.0, %v6100
  %v6102 = vpop.f32.mrf.mxu0
  %v6103 = vadd.f32 0.0, %v6102
  %6104 = vmatmul.bf16.gmra.mxu0 %v5203
  %v6105 = vpop.f32.mrf.mxu0
  %v6106 = vadd.f32 0.0, %v6105
  %v6107 = vpop.f32.mrf.mxu0
  %v6108 = vadd.f32 0.0, %v6107
  %6109 = vmatmul.bf16.gmra.mxu0 %v5205
  %v6110 = vpop.f32.mrf.mxu0
  %v6111 = vadd.f32 0.0, %v6110
  %v6112 = vpop.f32.mrf.mxu0
  %v6113 = vadd.f32 0.0, %v6112
  %6114 = vmatmul.bf16.gmra.mxu0 %v5207
  %v6115 = vpop.f32.mrf.mxu0
  %v6116 = vadd.f32 0.0, %v6115
  %v6117 = vpop.f32.mrf.mxu0
  %v6118 = vadd.f32 0.0, %v6117
  %6119 = vmatmul.bf16.gmra.mxu0 %v5209
  %v6120 = vpop.f32.mrf.mxu0
  %v6121 = vadd.f32 0.0, %v6120
  %v6122 = vpop.f32.mrf.mxu0
  %v6123 = vadd.f32 0.0, %v6122
  %6124 = vmatmul.bf16.gmra.mxu0 %v5211
  %v6125 = vpop.f32.mrf.mxu0
  %v6126 = vadd.f32 0.0, %v6125
  %v6127 = vpop.f32.mrf.mxu0
  %v6128 = vadd.f32 0.0, %v6127
  %6129 = vmatmul.bf16.gmra.mxu0 %v5213
  %v6130 = vpop.f32.mrf.mxu0
  %v6131 = vadd.f32 0.0, %v6130
  %v6132 = vpop.f32.mrf.mxu0
  %v6133 = vadd.f32 0.0, %v6132
  %6134 = vmatmul.bf16.gmra.mxu0 %v5215
  %v6135 = vpop.f32.mrf.mxu0
  %v6136 = vadd.f32 0.0, %v6135
  %v6137 = vpop.f32.mrf.mxu0
  %v6138 = vadd.f32 0.0, %v6137
  %6139 = vmatmul.bf16.gmra.mxu0 %v5217
  %v6140 = vpop.f32.mrf.mxu0
  %v6141 = vadd.f32 0.0, %v6140
  %v6142 = vpop.f32.mrf.mxu0
  %v6143 = vadd.f32 0.0, %v6142
  %6144 = vmatmul.bf16.gmra.mxu0 %v5219
  %v6145 = vpop.f32.mrf.mxu0
  %v6146 = vadd.f32 0.0, %v6145
  %v6147 = vpop.f32.mrf.mxu0
  %v6148 = vadd.f32 0.0, %v6147
  %6149 = vmatmul.bf16.gmra.mxu0 %v5221
  %v6150 = vpop.f32.mrf.mxu0
  %v6151 = vadd.f32 0.0, %v6150
  %v6152 = vpop.f32.mrf.mxu0
  %v6153 = vadd.f32 0.0, %v6152
  %6154 = vmatmul.bf16.gmra.mxu0 %v5223
  %v6155 = vpop.f32.mrf.mxu0
  %v6156 = vadd.f32 0.0, %v6155
  %v6157 = vpop.f32.mrf.mxu0
  %v6158 = vadd.f32 0.0, %v6157
  %6159 = vmatmul.bf16.gmra.mxu0 %v5225
  %v6160 = vpop.f32.mrf.mxu0
  %v6161 = vadd.f32 0.0, %v6160
  %v6162 = vpop.f32.mrf.mxu0
  %v6163 = vadd.f32 0.0, %v6162
  %6164 = vmatmul.bf16.gmra.mxu0 %v5227
  %v6165 = vpop.f32.mrf.mxu0
  %v6166 = vadd.f32 0.0, %v6165
  %v6167 = vpop.f32.mrf.mxu0
  %v6168 = vadd.f32 0.0, %v6167
  %6169 = vmatmul.bf16.gmra.mxu0 %v5229
  %v6170 = vpop.f32.mrf.mxu0
  %v6171 = vadd.f32 0.0, %v6170
  %v6172 = vpop.f32.mrf.mxu0
  %v6173 = vadd.f32 0.0, %v6172
  %6174 = vdwg.mxu0
  %v6175 = vld [vmem:[%s8] sm:$0x1]
  %v6176 = vld [vmem:[%s9] sm:$0x1]
  %v6177 = vadd.f32 %v6016, %v6018
  %v6178 = vadd.f32 %v6177, %v6021
  %v6179 = vadd.f32 %v6178, %v6023
  %v6180 = vadd.f32 %v6179, %v6026
  %v6181 = vadd.f32 %v6180, %v6028
  %v6182 = vadd.f32 %v6181, %v6031
  %v6183 = vadd.f32 %v6182, %v6033
  %v6184 = vadd.f32 %v6183, %v6036
  %v6185 = vadd.f32 %v6184, %v6038
  %v6186 = vadd.f32 %v6185, %v6041
  %v6187 = vadd.f32 %v6186, %v6043
  %v6188 = vadd.f32 %v6187, %v6046
  %v6189 = vadd.f32 %v6188, %v6048
  %v6190 = vadd.f32 %v6189, %v6051
  %v6191 = vadd.f32 %v6190, %v6053
  %v6192 = vadd.f32 %v6191, %v6056
  %v6193 = vadd.f32 %v6192, %v6058
  %v6194 = vadd.f32 %v6193, %v6061
  %v6195 = vadd.f32 %v6194, %v6063
  %v6196 = vadd.f32 %v6195, %v6066
  %v6197 = vadd.f32 %v6196, %v6068
  %v6198 = vadd.f32 %v6197, %v6071
  %v6199 = vadd.f32 %v6198, %v6073
  %v6200 = vadd.f32 %v6199, %v6076
  %v6201 = vadd.f32 %v6200, %v6078
  %v6202 = vadd.f32 %v6201, %v6081
  %v6203 = vadd.f32 %v6202, %v6083
  %v6204 = vadd.f32 %v6203, %v6086
  %v6205 = vadd.f32 %v6204, %v6088
  %v6206 = vadd.f32 %v6205, %v6091
  %v6207 = vadd.f32 %v6206, %v6093
  %v6208 = vadd.f32 %v6207, %v6096
  %v6209 = vadd.f32 %v6208, %v6098
  %v6210 = vadd.f32 %v6209, %v6101
  %v6211 = vadd.f32 %v6210, %v6103
  %v6212 = vadd.f32 %v6211, %v6106
  %v6213 = vadd.f32 %v6212, %v6108
  %v6214 = vadd.f32 %v6213, %v6111
  %v6215 = vadd.f32 %v6214, %v6113
  %v6216 = vadd.f32 %v6215, %v6116
  %v6217 = vadd.f32 %v6216, %v6118
  %v6218 = vadd.f32 %v6217, %v6121
  %v6219 = vadd.f32 %v6218, %v6123
  %v6220 = vadd.f32 %v6219, %v6126
  %v6221 = vadd.f32 %v6220, %v6128
  %v6222 = vadd.f32 %v6221, %v6131
  %v6223 = vadd.f32 %v6222, %v6133
  %v6224 = vadd.f32 %v6223, %v6136
  %v6225 = vadd.f32 %v6224, %v6138
  %v6226 = vadd.f32 %v6225, %v6141
  %v6227 = vadd.f32 %v6226, %v6143
  %v6228 = vadd.f32 %v6227, %v6146
  %v6229 = vadd.f32 %v6228, %v6148
  %v6230 = vadd.f32 %v6229, %v6151
  %v6231 = vadd.f32 %v6230, %v6153
  %v6232 = vadd.f32 %v6231, %v6156
  %v6233 = vadd.f32 %v6232, %v6158
  %v6234 = vadd.f32 %v6233, %v6161
  %v6235 = vadd.f32 %v6234, %v6163
  %v6236 = vadd.f32 %v6235, %v6166
  %v6237 = vadd.f32 %v6236, %v6168
  %v6238 = vadd.f32 %v6237, %v6171
  %v6239 = vadd.f32 %v6238, %v6173
  %v6240 = vrot.slane %v6239, 4
  %v6241 = vadd.f32 %v6239, %v6240
  %v6242 = vrot.slane %v6241, 2
  %v6243 = vadd.f32 %v6241, %v6242
  %v6244 = vrot.slane %v6243, 1
  %v6245 = vadd.f32 %v6243, %v6244
  %v6246 = vmul.f32 %v6245, 0.001953125
  %v6247 = vsub.f32 %v6016, %v6246
  %v6248 = vsub.f32 %v6018, %v6246
  %v6249 = vsub.f32 %v6021, %v6246
  %v6250 = vsub.f32 %v6023, %v6246
  %v6251 = vsub.f32 %v6026, %v6246
  %v6252 = vsub.f32 %v6028, %v6246
  %v6253 = vsub.f32 %v6031, %v6246
  %v6254 = vsub.f32 %v6033, %v6246
  %v6255 = vsub.f32 %v6036, %v6246
  %v6256 = vsub.f32 %v6038, %v6246
  %v6257 = vsub.f32 %v6041, %v6246
  %v6258 = vsub.f32 %v6043, %v6246
  %v6259 = vsub.f32 %v6046, %v6246
  %v6260 = vsub.f32 %v6048, %v6246
  %v6261 = vsub.f32 %v6051, %v6246
  %v6262 = vsub.f32 %v6053, %v6246
  %v6263 = vsub.f32 %v6056, %v6246
  %v6264 = vsub.f32 %v6058, %v6246
  %v6265 = vsub.f32 %v6061, %v6246
  %v6266 = vsub.f32 %v6063, %v6246
  %v6267 = vsub.f32 %v6066, %v6246
  %v6268 = vsub.f32 %v6068, %v6246
  %v6269 = vsub.f32 %v6071, %v6246
  %v6270 = vsub.f32 %v6073, %v6246
  %v6271 = vsub.f32 %v6076, %v6246
  %v6272 = vsub.f32 %v6078, %v6246
  %v6273 = vsub.f32 %v6081, %v6246
  %v6274 = vsub.f32 %v6083, %v6246
  %v6275 = vsub.f32 %v6086, %v6246
  %v6276 = vsub.f32 %v6088, %v6246
  %v6277 = vsub.f32 %v6091, %v6246
  %v6278 = vsub.f32 %v6093, %v6246
  %v6279 = vsub.f32 %v6096, %v6246
  %v6280 = vsub.f32 %v6098, %v6246
  %v6281 = vsub.f32 %v6101, %v6246
  %v6282 = vsub.f32 %v6103, %v6246
  %v6283 = vsub.f32 %v6106, %v6246
  %v6284 = vsub.f32 %v6108, %v6246
  %v6285 = vsub.f32 %v6111, %v6246
  %v6286 = vsub.f32 %v6113, %v6246
  %v6287 = vsub.f32 %v6116, %v6246
  %v6288 = vsub.f32 %v6118, %v6246
  %v6289 = vsub.f32 %v6121, %v6246
  %v6290 = vsub.f32 %v6123, %v6246
  %v6291 = vsub.f32 %v6126, %v6246
  %v6292 = vsub.f32 %v6128, %v6246
  %v6293 = vsub.f32 %v6131, %v6246
  %v6294 = vsub.f32 %v6133, %v6246
  %v6295 = vsub.f32 %v6136, %v6246
  %v6296 = vsub.f32 %v6138, %v6246
  %v6297 = vsub.f32 %v6141, %v6246
  %v6298 = vsub.f32 %v6143, %v6246
  %v6299 = vsub.f32 %v6146, %v6246
  %v6300 = vsub.f32 %v6148, %v6246
  %v6301 = vsub.f32 %v6151, %v6246
  %v6302 = vsub.f32 %v6153, %v6246
  %v6303 = vsub.f32 %v6156, %v6246
  %v6304 = vsub.f32 %v6158, %v6246
  %v6305 = vsub.f32 %v6161, %v6246
  %v6306 = vsub.f32 %v6163, %v6246
  %v6307 = vsub.f32 %v6166, %v6246
  %v6308 = vsub.f32 %v6168, %v6246
  %v6309 = vsub.f32 %v6171, %v6246
  %v6310 = vsub.f32 %v6173, %v6246
  %v6311 = vmul.f32 %v6247, %v6247
  %v6312 = vmul.f32 %v6248, %v6248
  %v6313 = vmul.f32 %v6249, %v6249
  %v6314 = vmul.f32 %v6250, %v6250
  %v6315 = vmul.f32 %v6251, %v6251
  %v6316 = vmul.f32 %v6252, %v6252
  %v6317 = vmul.f32 %v6253, %v6253
  %v6318 = vmul.f32 %v6254, %v6254
  %v6319 = vmul.f32 %v6255, %v6255
  %v6320 = vmul.f32 %v6256, %v6256
  %v6321 = vmul.f32 %v6257, %v6257
  %v6322 = vmul.f32 %v6258, %v6258
  %v6323 = vmul.f32 %v6259, %v6259
  %v6324 = vmul.f32 %v6260, %v6260
  %v6325 = vmul.f32 %v6261, %v6261
  %v6326 = vmul.f32 %v6262, %v6262
  %v6327 = vmul.f32 %v6263, %v6263
  %v6328 = vmul.f32 %v6264, %v6264
  %v6329 = vmul.f32 %v6265, %v6265
  %v6330 = vmul.f32 %v6266, %v6266
  %v6331 = vmul.f32 %v6267, %v6267
  %v6332 = vmul.f32 %v6268, %v6268
  %v6333 = vmul.f32 %v6269, %v6269
  %v6334 = vmul.f32 %v6270, %v6270
  %v6335 = vmul.f32 %v6271, %v6271
  %v6336 = vmul.f32 %v6272, %v6272
  %v6337 = vmul.f32 %v6273, %v6273
  %v6338 = vmul.f32 %v6274, %v6274
  %v6339 = vmul.f32 %v6275, %v6275
  %v6340 = vmul.f32 %v6276, %v6276
  %v6341 = vmul.f32 %v6277, %v6277
  %v6342 = vmul.f32 %v6278, %v6278
  %v6343 = vmul.f32 %v6279, %v6279
  %v6344 = vmul.f32 %v6280, %v6280
  %v6345 = vmul.f32 %v6281, %v6281
  %v6346 = vmul.f32 %v6282, %v6282
  %v6347 = vmul.f32 %v6283, %v6283
  %v6348 = vmul.f32 %v6284, %v6284
  %v6349 = vmul.f32 %v6285, %v6285
  %v6350 = vmul.f32 %v6286, %v6286
  %v6351 = vmul.f32 %v6287, %v6287
  %v6352 = vmul.f32 %v6288, %v6288
  %v6353 = vmul.f32 %v6289, %v6289
  %v6354 = vmul.f32 %v6290, %v6290
  %v6355 = vmul.f32 %v6291, %v6291
  %v6356 = vmul.f32 %v6292, %v6292
  %v6357 = vmul.f32 %v6293, %v6293
  %v6358 = vmul.f32 %v6294, %v6294
  %v6359 = vmul.f32 %v6295, %v6295
  %v6360 = vmul.f32 %v6296, %v6296
  %v6361 = vmul.f32 %v6297, %v6297
  %v6362 = vmul.f32 %v6298, %v6298
  %v6363 = vmul.f32 %v6299, %v6299
  %v6364 = vmul.f32 %v6300, %v6300
  %v6365 = vmul.f32 %v6301, %v6301
  %v6366 = vmul.f32 %v6302, %v6302
  %v6367 = vmul.f32 %v6303, %v6303
  %v6368 = vmul.f32 %v6304, %v6304
  %v6369 = vmul.f32 %v6305, %v6305
  %v6370 = vmul.f32 %v6306, %v6306
  %v6371 = vmul.f32 %v6307, %v6307
  %v6372 = vmul.f32 %v6308, %v6308
  %v6373 = vmul.f32 %v6309, %v6309
  %v6374 = vmul.f32 %v6310, %v6310
  %v6375 = vadd.f32 %v6311, %v6312
  %v6376 = vadd.f32 %v6375, %v6313
  %v6377 = vadd.f32 %v6376, %v6314
  %v6378 = vadd.f32 %v6377, %v6315
  %v6379 = vadd.f32 %v6378, %v6316
  %v6380 = vadd.f32 %v6379, %v6317
  %v6381 = vadd.f32 %v6380, %v6318
  %v6382 = vadd.f32 %v6381, %v6319
  %v6383 = vadd.f32 %v6382, %v6320
  %v6384 = vadd.f32 %v6383, %v6321
  %v6385 = vadd.f32 %v6384, %v6322
  %v6386 = vadd.f32 %v6385, %v6323
  %v6387 = vadd.f32 %v6386, %v6324
  %v6388 = vadd.f32 %v6387, %v6325
  %v6389 = vadd.f32 %v6388, %v6326
  %v6390 = vadd.f32 %v6389, %v6327
  %v6391 = vadd.f32 %v6390, %v6328
  %v6392 = vadd.f32 %v6391, %v6329
  %v6393 = vadd.f32 %v6392, %v6330
  %v6394 = vadd.f32 %v6393, %v6331
  %v6395 = vadd.f32 %v6394, %v6332
  %v6396 = vadd.f32 %v6395, %v6333
  %v6397 = vadd.f32 %v6396, %v6334
  %v6398 = vadd.f32 %v6397, %v6335
  %v6399 = vadd.f32 %v6398, %v6336
  %v6400 = vadd.f32 %v6399, %v6337
  %v6401 = vadd.f32 %v6400, %v6338
  %v6402 = vadd.f32 %v6401, %v6339
  %v6403 = vadd.f32 %v6402, %v6340
  %v6404 = vadd.f32 %v6403, %v6341
  %v6405 = vadd.f32 %v6404, %v6342
  %v6406 = vadd.f32 %v6405, %v6343
  %v6407 = vadd.f32 %v6406, %v6344
  %v6408 = vadd.f32 %v6407, %v6345
  %v6409 = vadd.f32 %v6408, %v6346
  %v6410 = vadd.f32 %v6409, %v6347
  %v6411 = vadd.f32 %v6410, %v6348
  %v6412 = vadd.f32 %v6411, %v6349
  %v6413 = vadd.f32 %v6412, %v6350
  %v6414 = vadd.f32 %v6413, %v6351
  %v6415 = vadd.f32 %v6414, %v6352
  %v6416 = vadd.f32 %v6415, %v6353
  %v6417 = vadd.f32 %v6416, %v6354
  %v6418 = vadd.f32 %v6417, %v6355
  %v6419 = vadd.f32 %v6418, %v6356
  %v6420 = vadd.f32 %v6419, %v6357
  %v6421 = vadd.f32 %v6420, %v6358
  %v6422 = vadd.f32 %v6421, %v6359
  %v6423 = vadd.f32 %v6422, %v6360
  %v6424 = vadd.f32 %v6423, %v6361
  %v6425 = vadd.f32 %v6424, %v6362
  %v6426 = vadd.f32 %v6425, %v6363
  %v6427 = vadd.f32 %v6426, %v6364
  %v6428 = vadd.f32 %v6427, %v6365
  %v6429 = vadd.f32 %v6428, %v6366
  %v6430 = vadd.f32 %v6429, %v6367
  %v6431 = vadd.f32 %v6430, %v6368
  %v6432 = vadd.f32 %v6431, %v6369
  %v6433 = vadd.f32 %v6432, %v6370
  %v6434 = vadd.f32 %v6433, %v6371
  %v6435 = vadd.f32 %v6434, %v6372
  %v6436 = vadd.f32 %v6435, %v6373
  %v6437 = vadd.f32 %v6436, %v6374
  %v6438 = vrot.slane %v6437, 4
  %v6439 = vadd.f32 %v6437, %v6438
  %v6440 = vrot.slane %v6439, 2
  %v6441 = vadd.f32 %v6439, %v6440
  %v6442 = vrot.slane %v6441, 1
  %v6443 = vadd.f32 %v6441, %v6442
  %v6444 = vmul.f32 %v6443, 0.001953125
  %v6445 = vadd.f32 %v6444, 1e-05
  %v6446 = vrsqrt.pop %v6445
  %v6447 = vmul.f32 %v6446, %v6445
  %v6448 = vmul.f32 %v6447, %v6446
  %v6449 = vmul.f32 0.5, %v6448
  %v6450 = vsub.f32 1.5, %v6449
  %v6451 = vmul.f32 %v6446, %v6450
  %vm6452 = vweird.f32 %v6445
  %vm6453 = vweird.f32 %v6446
  %vm6454 = vmor %vm6452, %vm6453
  %v6455 = vsel %vm6454, %v6446, %v6451
  %v6456 = vmul.f32 %v6455, %v6175
  %v6457 = vperm.slane %v6456, 0
  %v6458 = vmul.f32 %v6247, %v6457
  %v6459 = vmul.f32 %v6248, %v6457
  %v6460 = vmul.f32 %v6249, %v6457
  %v6461 = vmul.f32 %v6250, %v6457
  %v6462 = vmul.f32 %v6251, %v6457
  %v6463 = vmul.f32 %v6252, %v6457
  %v6464 = vmul.f32 %v6253, %v6457
  %v6465 = vmul.f32 %v6254, %v6457
  %v6466 = vmul.f32 %v6255, %v6457
  %v6467 = vmul.f32 %v6256, %v6457
  %v6468 = vmul.f32 %v6257, %v6457
  %v6469 = vmul.f32 %v6258, %v6457
  %v6470 = vmul.f32 %v6259, %v6457
  %v6471 = vmul.f32 %v6260, %v6457
  %v6472 = vmul.f32 %v6261, %v6457
  %v6473 = vmul.f32 %v6262, %v6457
  %v6474 = vmul.f32 %v6263, %v6457
  %v6475 = vmul.f32 %v6264, %v6457
  %v6476 = vmul.f32 %v6265, %v6457
  %v6477 = vmul.f32 %v6266, %v6457
  %v6478 = vmul.f32 %v6267, %v6457
  %v6479 = vmul.f32 %v6268, %v6457
  %v6480 = vmul.f32 %v6269, %v6457
  %v6481 = vmul.f32 %v6270, %v6457
  %v6482 = vmul.f32 %v6271, %v6457
  %v6483 = vmul.f32 %v6272, %v6457
  %v6484 = vmul.f32 %v6273, %v6457
  %v6485 = vmul.f32 %v6274, %v6457
  %v6486 = vmul.f32 %v6275, %v6457
  %v6487 = vmul.f32 %v6276, %v6457
  %v6488 = vmul.f32 %v6277, %v6457
  %v6489 = vmul.f32 %v6278, %v6457
  %v6490 = vmul.f32 %v6279, %v6457
  %v6491 = vmul.f32 %v6280, %v6457
  %v6492 = vmul.f32 %v6281, %v6457
  %v6493 = vmul.f32 %v6282, %v6457
  %v6494 = vmul.f32 %v6283, %v6457
  %v6495 = vmul.f32 %v6284, %v6457
  %v6496 = vmul.f32 %v6285, %v6457
  %v6497 = vmul.f32 %v6286, %v6457
  %v6498 = vmul.f32 %v6287, %v6457
  %v6499 = vmul.f32 %v6288, %v6457
  %v6500 = vmul.f32 %v6289, %v6457
  %v6501 = vmul.f32 %v6290, %v6457
  %v6502 = vmul.f32 %v6291, %v6457
  %v6503 = vmul.f32 %v6292, %v6457
  %v6504 = vmul.f32 %v6293, %v6457
  %v6505 = vmul.f32 %v6294, %v6457
  %v6506 = vmul.f32 %v6295, %v6457
  %v6507 = vmul.f32 %v6296, %v6457
  %v6508 = vmul.f32 %v6297, %v6457
  %v6509 = vmul.f32 %v6298, %v6457
  %v6510 = vmul.f32 %v6299, %v6457
  %v6511 = vmul.f32 %v6300, %v6457
  %v6512 = vmul.f32 %v6301, %v6457
  %v6513 = vmul.f32 %v6302, %v6457
  %v6514 = vmul.f32 %v6303, %v6457
  %v6515 = vmul.f32 %v6304, %v6457
  %v6516 = vmul.f32 %v6305, %v6457
  %v6517 = vmul.f32 %v6306, %v6457
  %v6518 = vmul.f32 %v6307, %v6457
  %v6519 = vmul.f32 %v6308, %v6457
  %v6520 = vmul.f32 %v6309, %v6457
  %v6521 = vmul.f32 %v6310, %v6457
  %v6523 = vperm.slane %v6176, 0
  %v6525 = vadd.f32 %v6458, %v6523
  %v6526 = vadd.f32 %v6459, %v6523
  %v6527 = vadd.f32 %v6460, %v6523
  %v6528 = vadd.f32 %v6461, %v6523
  %v6529 = vadd.f32 %v6462, %v6523
  %v6530 = vadd.f32 %v6463, %v6523
  %v6531 = vadd.f32 %v6464, %v6523
  %v6532 = vadd.f32 %v6465, %v6523
  %v6533 = vadd.f32 %v6466, %v6523
  %v6534 = vadd.f32 %v6467, %v6523
  %v6535 = vadd.f32 %v6468, %v6523
  %v6536 = vadd.f32 %v6469, %v6523
  %v6537 = vadd.f32 %v6470, %v6523
  %v6538 = vadd.f32 %v6471, %v6523
  %v6539 = vadd.f32 %v6472, %v6523
  %v6540 = vadd.f32 %v6473, %v6523
  %v6541 = vadd.f32 %v6474, %v6523
  %v6542 = vadd.f32 %v6475, %v6523
  %v6543 = vadd.f32 %v6476, %v6523
  %v6544 = vadd.f32 %v6477, %v6523
  %v6545 = vadd.f32 %v6478, %v6523
  %v6546 = vadd.f32 %v6479, %v6523
  %v6547 = vadd.f32 %v6480, %v6523
  %v6548 = vadd.f32 %v6481, %v6523
  %v6549 = vadd.f32 %v6482, %v6523
  %v6550 = vadd.f32 %v6483, %v6523
  %v6551 = vadd.f32 %v6484, %v6523
  %v6552 = vadd.f32 %v6485, %v6523
  %v6553 = vadd.f32 %v6486, %v6523
  %v6554 = vadd.f32 %v6487, %v6523
  %v6555 = vadd.f32 %v6488, %v6523
  %v6556 = vadd.f32 %v6489, %v6523
  %v6557 = vadd.f32 %v6490, %v6523
  %v6558 = vadd.f32 %v6491, %v6523
  %v6559 = vadd.f32 %v6492, %v6523
  %v6560 = vadd.f32 %v6493, %v6523
  %v6561 = vadd.f32 %v6494, %v6523
  %v6562 = vadd.f32 %v6495, %v6523
  %v6563 = vadd.f32 %v6496, %v6523
  %v6564 = vadd.f32 %v6497, %v6523
  %v6565 = vadd.f32 %v6498, %v6523
  %v6566 = vadd.f32 %v6499, %v6523
  %v6567 = vadd.f32 %v6500, %v6523
  %v6568 = vadd.f32 %v6501, %v6523
  %v6569 = vadd.f32 %v6502, %v6523
  %v6570 = vadd.f32 %v6503, %v6523
  %v6571 = vadd.f32 %v6504, %v6523
  %v6572 = vadd.f32 %v6505, %v6523
  %v6573 = vadd.f32 %v6506, %v6523
  %v6574 = vadd.f32 %v6507, %v6523
  %v6575 = vadd.f32 %v6508, %v6523
  %v6576 = vadd.f32 %v6509, %v6523
  %v6577 = vadd.f32 %v6510, %v6523
  %v6578 = vadd.f32 %v6511, %v6523
  %v6579 = vadd.f32 %v6512, %v6523
  %v6580 = vadd.f32 %v6513, %v6523
  %v6581 = vadd.f32 %v6514, %v6523
  %v6582 = vadd.f32 %v6515, %v6523
  %v6583 = vadd.f32 %v6516, %v6523
  %v6584 = vadd.f32 %v6517, %v6523
  %v6585 = vadd.f32 %v6518, %v6523
  %v6586 = vadd.f32 %v6519, %v6523
  %v6587 = vadd.f32 %v6520, %v6523
  %v6588 = vadd.f32 %v6521, %v6523
  %v6589 = vpack.c.bf16 %v5878, %v5878
  %v6590 = vpack.c.bf16 %v5879, %v5879
  %v6591 = vpack.c.bf16 %v5880, %v5880
  %v6592 = vpack.c.bf16 %v5881, %v5881
  %v6593 = vpack.c.bf16 %v5882, %v5882
  %v6594 = vpack.c.bf16 %v5883, %v5883
  %v6595 = vpack.c.bf16 %v5884, %v5884
  %v6596 = vpack.c.bf16 %v5885, %v5885
  %v6597 = vpack.c.bf16 %v5886, %v5886
  %v6598 = vpack.c.bf16 %v5887, %v5887
  %v6599 = vpack.c.bf16 %v5888, %v5888
  %v6600 = vpack.c.bf16 %v5889, %v5889
  %v6601 = vpack.c.bf16 %v5890, %v5890
  %v6602 = vpack.c.bf16 %v5891, %v5891
  %v6603 = vpack.c.bf16 %v5892, %v5892
  %v6604 = vpack.c.bf16 %v5893, %v5893
  %v6605 = vpack.c.bf16 %v5894, %v5894
  %v6606 = vpack.c.bf16 %v5895, %v5895
  %v6607 = vpack.c.bf16 %v5896, %v5896
  %v6608 = vpack.c.bf16 %v5897, %v5897
  %v6609 = vpack.c.bf16 %v5898, %v5898
  %v6610 = vpack.c.bf16 %v5899, %v5899
  %v6611 = vpack.c.bf16 %v5900, %v5900
  %v6612 = vpack.c.bf16 %v5901, %v5901
  %v6613 = vpack.c.bf16 %v5902, %v5902
  %v6614 = vpack.c.bf16 %v5903, %v5903
  %v6615 = vpack.c.bf16 %v5904, %v5904
  %v6616 = vpack.c.bf16 %v5905, %v5905
  %v6617 = vpack.c.bf16 %v5906, %v5906
  %v6618 = vpack.c.bf16 %v5907, %v5907
  %v6619 = vpack.c.bf16 %v5908, %v5908
  %v6620 = vpack.c.bf16 %v5909, %v5909
  %v6621 = vpack.c.bf16 %v5910, %v5910
  %v6622 = vpack.c.bf16 %v5911, %v5911
  %v6623 = vpack.c.bf16 %v5912, %v5912
  %v6624 = vpack.c.bf16 %v5913, %v5913
  %v6625 = vpack.c.bf16 %v5914, %v5914
  %v6626 = vpack.c.bf16 %v5915, %v5915
  %v6627 = vpack.c.bf16 %v5916, %v5916
  %v6628 = vpack.c.bf16 %v5917, %v5917
  %v6629 = vpack.c.bf16 %v5918, %v5918
  %v6630 = vpack.c.bf16 %v5919, %v5919
  %v6631 = vpack.c.bf16 %v5920, %v5920
  %v6632 = vpack.c.bf16 %v5921, %v5921
  %v6633 = vpack.c.bf16 %v5922, %v5922
  %v6634 = vpack.c.bf16 %v5923, %v5923
  %v6635 = vpack.c.bf16 %v5924, %v5924
  %v6636 = vpack.c.bf16 %v5925, %v5925
  %v6637 = vpack.c.bf16 %v5926, %v5926
  %v6638 = vpack.c.bf16 %v5927, %v5927
  %v6639 = vpack.c.bf16 %v5928, %v5928
  %v6640 = vpack.c.bf16 %v5929, %v5929
  %v6641 = vpack.c.bf16 %v5930, %v5930
  %v6642 = vpack.c.bf16 %v5931, %v5931
  %v6643 = vpack.c.bf16 %v5932, %v5932
  %v6644 = vpack.c.bf16 %v5933, %v5933
  %v6645 = vpack.c.bf16 %v5934, %v5934
  %v6646 = vpack.c.bf16 %v5935, %v5935
  %v6647 = vpack.c.bf16 %v5936, %v5936
  %v6648 = vpack.c.bf16 %v5937, %v5937
  %v6649 = vpack.c.bf16 %v5938, %v5938
  %v6650 = vpack.c.bf16 %v5939, %v5939
  %v6651 = vpack.c.bf16 %v5940, %v5940
  %v6652 = vpack.c.bf16 %v5941, %v5941
  %v6654 = vshrl.u32 %v6589, 16
  %v6656 = vrot.slane %v6654, 7
  %v6657 = vshll.u32 %v6589, 16
  %v6659 = vor.u32 %v6656, %v6657
  %v6660 = vrot.slane %v6656, 4
  %v6662 = vshrl.u32 %v6590, 16
  %v6664 = vrot.slane %v6662, 7
  %v6665 = vshll.u32 %v6590, 16
  %v6667 = vor.u32 %v6664, %v6665
  %v6668 = vsel %vm380, %v6660, %v6667
  %v6669 = vrot.slane %v6664, 4
  %v6671 = vshrl.u32 %v6591, 16
  %v6673 = vrot.slane %v6671, 7
  %v6674 = vshll.u32 %v6591, 16
  %v6676 = vor.u32 %v6673, %v6674
  %v6677 = vrot.slane %v6673, 4
  %v6679 = vshrl.u32 %v6592, 16
  %v6681 = vrot.slane %v6679, 7
  %v6682 = vshll.u32 %v6592, 16
  %v6684 = vor.u32 %v6681, %v6682
  %v6685 = vsel %vm380, %v6677, %v6684
  %v6686 = vrot.slane %v6681, 4
  %v6688 = vshrl.u32 %v6593, 16
  %v6690 = vrot.slane %v6688, 7
  %v6691 = vshll.u32 %v6593, 16
  %v6693 = vor.u32 %v6690, %v6691
  %v6694 = vrot.slane %v6690, 4
  %v6696 = vshrl.u32 %v6594, 16
  %v6698 = vrot.slane %v6696, 7
  %v6699 = vshll.u32 %v6594, 16
  %v6701 = vor.u32 %v6698, %v6699
  %v6702 = vsel %vm380, %v6694, %v6701
  %v6703 = vrot.slane %v6698, 4
  %v6705 = vshrl.u32 %v6595, 16
  %v6707 = vrot.slane %v6705, 7
  %v6708 = vshll.u32 %v6595, 16
  %v6710 = vor.u32 %v6707, %v6708
  %v6711 = vrot.slane %v6707, 4
  %v6713 = vshrl.u32 %v6596, 16
  %v6715 = vrot.slane %v6713, 7
  %v6716 = vshll.u32 %v6596, 16
  %v6718 = vor.u32 %v6715, %v6716
  %v6719 = vsel %vm380, %v6711, %v6718
  %v6720 = vrot.slane %v6715, 4
  %v6722 = vshrl.u32 %v6597, 16
  %v6724 = vrot.slane %v6722, 7
  %v6725 = vshll.u32 %v6597, 16
  %v6727 = vor.u32 %v6724, %v6725
  %v6728 = vrot.slane %v6724, 4
  %v6730 = vshrl.u32 %v6598, 16
  %v6732 = vrot.slane %v6730, 7
  %v6733 = vshll.u32 %v6598, 16
  %v6735 = vor.u32 %v6732, %v6733
  %v6736 = vsel %vm380, %v6728, %v6735
  %v6737 = vrot.slane %v6732, 4
  %v6739 = vshrl.u32 %v6599, 16
  %v6741 = vrot.slane %v6739, 7
  %v6742 = vshll.u32 %v6599, 16
  %v6744 = vor.u32 %v6741, %v6742
  %v6745 = vrot.slane %v6741, 4
  %v6747 = vshrl.u32 %v6600, 16
  %v6749 = vrot.slane %v6747, 7
  %v6750 = vshll.u32 %v6600, 16
  %v6752 = vor.u32 %v6749, %v6750
  %v6753 = vsel %vm380, %v6745, %v6752
  %v6754 = vrot.slane %v6749, 4
  %v6756 = vshrl.u32 %v6601, 16
  %v6758 = vrot.slane %v6756, 7
  %v6759 = vshll.u32 %v6601, 16
  %v6761 = vor.u32 %v6758, %v6759
  %v6762 = vrot.slane %v6758, 4
  %v6764 = vshrl.u32 %v6602, 16
  %v6766 = vrot.slane %v6764, 7
  %v6767 = vshll.u32 %v6602, 16
  %v6769 = vor.u32 %v6766, %v6767
  %v6770 = vsel %vm380, %v6762, %v6769
  %v6771 = vrot.slane %v6766, 4
  %v6773 = vshrl.u32 %v6603, 16
  %v6775 = vrot.slane %v6773, 7
  %v6776 = vshll.u32 %v6603, 16
  %v6778 = vor.u32 %v6775, %v6776
  %v6779 = vrot.slane %v6775, 4
  %v6781 = vshrl.u32 %v6604, 16
  %v6783 = vrot.slane %v6781, 7
  %v6784 = vshll.u32 %v6604, 16
  %v6786 = vor.u32 %v6783, %v6784
  %v6787 = vsel %vm380, %v6779, %v6786
  %v6788 = vrot.slane %v6783, 4
  %v6790 = vshrl.u32 %v6605, 16
  %v6792 = vrot.slane %v6790, 7
  %v6793 = vshll.u32 %v6605, 16
  %v6795 = vor.u32 %v6792, %v6793
  %v6796 = vrot.slane %v6792, 4
  %v6798 = vshrl.u32 %v6606, 16
  %v6800 = vrot.slane %v6798, 7
  %v6801 = vshll.u32 %v6606, 16
  %v6803 = vor.u32 %v6800, %v6801
  %v6804 = vsel %vm380, %v6796, %v6803
  %v6805 = vrot.slane %v6800, 4
  %v6807 = vshrl.u32 %v6607, 16
  %v6809 = vrot.slane %v6807, 7
  %v6810 = vshll.u32 %v6607, 16
  %v6812 = vor.u32 %v6809, %v6810
  %v6813 = vrot.slane %v6809, 4
  %v6815 = vshrl.u32 %v6608, 16
  %v6817 = vrot.slane %v6815, 7
  %v6818 = vshll.u32 %v6608, 16
  %v6820 = vor.u32 %v6817, %v6818
  %v6821 = vsel %vm380, %v6813, %v6820
  %v6822 = vrot.slane %v6817, 4
  %v6824 = vshrl.u32 %v6609, 16
  %v6826 = vrot.slane %v6824, 7
  %v6827 = vshll.u32 %v6609, 16
  %v6829 = vor.u32 %v6826, %v6827
  %v6830 = vrot.slane %v6826, 4
  %v6832 = vshrl.u32 %v6610, 16
  %v6834 = vrot.slane %v6832, 7
  %v6835 = vshll.u32 %v6610, 16
  %v6837 = vor.u32 %v6834, %v6835
  %v6838 = vsel %vm380, %v6830, %v6837
  %v6839 = vrot.slane %v6834, 4
  %v6841 = vshrl.u32 %v6611, 16
  %v6843 = vrot.slane %v6841, 7
  %v6844 = vshll.u32 %v6611, 16
  %v6846 = vor.u32 %v6843, %v6844
  %v6847 = vrot.slane %v6843, 4
  %v6849 = vshrl.u32 %v6612, 16
  %v6851 = vrot.slane %v6849, 7
  %v6852 = vshll.u32 %v6612, 16
  %v6854 = vor.u32 %v6851, %v6852
  %v6855 = vsel %vm380, %v6847, %v6854
  %v6856 = vrot.slane %v6851, 4
  %v6858 = vshrl.u32 %v6613, 16
  %v6860 = vrot.slane %v6858, 7
  %v6861 = vshll.u32 %v6613, 16
  %v6863 = vor.u32 %v6860, %v6861
  %v6864 = vrot.slane %v6860, 4
  %v6866 = vshrl.u32 %v6614, 16
  %v6868 = vrot.slane %v6866, 7
  %v6869 = vshll.u32 %v6614, 16
  %v6871 = vor.u32 %v6868, %v6869
  %v6872 = vsel %vm380, %v6864, %v6871
  %v6873 = vrot.slane %v6868, 4
  %v6875 = vshrl.u32 %v6615, 16
  %v6877 = vrot.slane %v6875, 7
  %v6878 = vshll.u32 %v6615, 16
  %v6880 = vor.u32 %v6877, %v6878
  %v6881 = vrot.slane %v6877, 4
  %v6883 = vshrl.u32 %v6616, 16
  %v6885 = vrot.slane %v6883, 7
  %v6886 = vshll.u32 %v6616, 16
  %v6888 = vor.u32 %v6885, %v6886
  %v6889 = vsel %vm380, %v6881, %v6888
  %v6890 = vrot.slane %v6885, 4
  %v6892 = vshrl.u32 %v6617, 16
  %v6894 = vrot.slane %v6892, 7
  %v6895 = vshll.u32 %v6617, 16
  %v6897 = vor.u32 %v6894, %v6895
  %v6898 = vrot.slane %v6894, 4
  %v6900 = vshrl.u32 %v6618, 16
  %v6902 = vrot.slane %v6900, 7
  %v6903 = vshll.u32 %v6618, 16
  %v6905 = vor.u32 %v6902, %v6903
  %v6906 = vsel %vm380, %v6898, %v6905
  %v6907 = vrot.slane %v6902, 4
  %v6909 = vshrl.u32 %v6619, 16
  %v6911 = vrot.slane %v6909, 7
  %v6912 = vshll.u32 %v6619, 16
  %v6914 = vor.u32 %v6911, %v6912
  %v6915 = vrot.slane %v6911, 4
  %v6917 = vshrl.u32 %v6620, 16
  %v6919 = vrot.slane %v6917, 7
  %v6920 = vshll.u32 %v6620, 16
  %v6922 = vor.u32 %v6919, %v6920
  %v6923 = vsel %vm380, %v6915, %v6922
  %v6924 = vrot.slane %v6919, 4
  %v6926 = vshrl.u32 %v6621, 16
  %v6928 = vrot.slane %v6926, 7
  %v6929 = vshll.u32 %v6621, 16
  %v6931 = vor.u32 %v6928, %v6929
  %v6932 = vrot.slane %v6928, 4
  %v6934 = vshrl.u32 %v6622, 16
  %v6936 = vrot.slane %v6934, 7
  %v6937 = vshll.u32 %v6622, 16
  %v6939 = vor.u32 %v6936, %v6937
  %v6940 = vsel %vm380, %v6932, %v6939
  %v6941 = vrot.slane %v6936, 4
  %v6943 = vshrl.u32 %v6623, 16
  %v6945 = vrot.slane %v6943, 7
  %v6946 = vshll.u32 %v6623, 16
  %v6948 = vor.u32 %v6945, %v6946
  %v6949 = vrot.slane %v6945, 4
  %v6951 = vshrl.u32 %v6624, 16
  %v6953 = vrot.slane %v6951, 7
  %v6954 = vshll.u32 %v6624, 16
  %v6956 = vor.u32 %v6953, %v6954
  %v6957 = vsel %vm380, %v6949, %v6956
  %v6958 = vrot.slane %v6953, 4
  %v6960 = vshrl.u32 %v6625, 16
  %v6962 = vrot.slane %v6960, 7
  %v6963 = vshll.u32 %v6625, 16
  %v6965 = vor.u32 %v6962, %v6963
  %v6966 = vrot.slane %v6962, 4
  %v6968 = vshrl.u32 %v6626, 16
  %v6970 = vrot.slane %v6968, 7
  %v6971 = vshll.u32 %v6626, 16
  %v6973 = vor.u32 %v6970, %v6971
  %v6974 = vsel %vm380, %v6966, %v6973
  %v6975 = vrot.slane %v6970, 4
  %v6977 = vshrl.u32 %v6627, 16
  %v6979 = vrot.slane %v6977, 7
  %v6980 = vshll.u32 %v6627, 16
  %v6982 = vor.u32 %v6979, %v6980
  %v6983 = vrot.slane %v6979, 4
  %v6985 = vshrl.u32 %v6628, 16
  %v6987 = vrot.slane %v6985, 7
  %v6988 = vshll.u32 %v6628, 16
  %v6990 = vor.u32 %v6987, %v6988
  %v6991 = vsel %vm380, %v6983, %v6990
  %v6992 = vrot.slane %v6987, 4
  %v6994 = vshrl.u32 %v6629, 16
  %v6996 = vrot.slane %v6994, 7
  %v6997 = vshll.u32 %v6629, 16
  %v6999 = vor.u32 %v6996, %v6997
  %v7000 = vrot.slane %v6996, 4
  %v7002 = vshrl.u32 %v6630, 16
  %v7004 = vrot.slane %v7002, 7
  %v7005 = vshll.u32 %v6630, 16
  %v7007 = vor.u32 %v7004, %v7005
  %v7008 = vsel %vm380, %v7000, %v7007
  %v7009 = vrot.slane %v7004, 4
  %v7011 = vshrl.u32 %v6631, 16
  %v7013 = vrot.slane %v7011, 7
  %v7014 = vshll.u32 %v6631, 16
  %v7016 = vor.u32 %v7013, %v7014
  %v7017 = vrot.slane %v7013, 4
  %v7019 = vshrl.u32 %v6632, 16
  %v7021 = vrot.slane %v7019, 7
  %v7022 = vshll.u32 %v6632, 16
  %v7024 = vor.u32 %v7021, %v7022
  %v7025 = vsel %vm380, %v7017, %v7024
  %v7026 = vrot.slane %v7021, 4
  %v7028 = vshrl.u32 %v6633, 16
  %v7030 = vrot.slane %v7028, 7
  %v7031 = vshll.u32 %v6633, 16
  %v7033 = vor.u32 %v7030, %v7031
  %v7034 = vrot.slane %v7030, 4
  %v7036 = vshrl.u32 %v6634, 16
  %v7038 = vrot.slane %v7036, 7
  %v7039 = vshll.u32 %v6634, 16
  %v7041 = vor.u32 %v7038, %v7039
  %v7042 = vsel %vm380, %v7034, %v7041
  %v7043 = vrot.slane %v7038, 4
  %v7045 = vshrl.u32 %v6635, 16
  %v7047 = vrot.slane %v7045, 7
  %v7048 = vshll.u32 %v6635, 16
  %v7050 = vor.u32 %v7047, %v7048
  %v7051 = vrot.slane %v7047, 4
  %v7053 = vshrl.u32 %v6636, 16
  %v7055 = vrot.slane %v7053, 7
  %v7056 = vshll.u32 %v6636, 16
  %v7058 = vor.u32 %v7055, %v7056
  %v7059 = vsel %vm380, %v7051, %v7058
  %v7060 = vrot.slane %v7055, 4
  %v7062 = vshrl.u32 %v6637, 16
  %v7064 = vrot.slane %v7062, 7
  %v7065 = vshll.u32 %v6637, 16
  %v7067 = vor.u32 %v7064, %v7065
  %v7068 = vrot.slane %v7064, 4
  %v7070 = vshrl.u32 %v6638, 16
  %v7072 = vrot.slane %v7070, 7
  %v7073 = vshll.u32 %v6638, 16
  %v7075 = vor.u32 %v7072, %v7073
  %v7076 = vsel %vm380, %v7068, %v7075
  %v7077 = vrot.slane %v7072, 4
  %v7079 = vshrl.u32 %v6639, 16
  %v7081 = vrot.slane %v7079, 7
  %v7082 = vshll.u32 %v6639, 16
  %v7084 = vor.u32 %v7081, %v7082
  %v7085 = vrot.slane %v7081, 4
  %v7087 = vshrl.u32 %v6640, 16
  %v7089 = vrot.slane %v7087, 7
  %v7090 = vshll.u32 %v6640, 16
  %v7092 = vor.u32 %v7089, %v7090
  %v7093 = vsel %vm380, %v7085, %v7092
  %v7094 = vrot.slane %v7089, 4
  %v7096 = vshrl.u32 %v6641, 16
  %v7098 = vrot.slane %v7096, 7
  %v7099 = vshll.u32 %v6641, 16
  %v7101 = vor.u32 %v7098, %v7099
  %v7102 = vrot.slane %v7098, 4
  %v7104 = vshrl.u32 %v6642, 16
  %v7106 = vrot.slane %v7104, 7
  %v7107 = vshll.u32 %v6642, 16
  %v7109 = vor.u32 %v7106, %v7107
  %v7110 = vsel %vm380, %v7102, %v7109
  %v7111 = vrot.slane %v7106, 4
  %v7113 = vshrl.u32 %v6643, 16
  %v7115 = vrot.slane %v7113, 7
  %v7116 = vshll.u32 %v6643, 16
  %v7118 = vor.u32 %v7115, %v7116
  %v7119 = vrot.slane %v7115, 4
  %v7121 = vshrl.u32 %v6644, 16
  %v7123 = vrot.slane %v7121, 7
  %v7124 = vshll.u32 %v6644, 16
  %v7126 = vor.u32 %v7123, %v7124
  %v7127 = vsel %vm380, %v7119, %v7126
  %v7128 = vrot.slane %v7123, 4
  %v7130 = vshrl.u32 %v6645, 16
  %v7132 = vrot.slane %v7130, 7
  %v7133 = vshll.u32 %v6645, 16
  %v7135 = vor.u32 %v7132, %v7133
  %v7136 = vrot.slane %v7132, 4
  %v7138 = vshrl.u32 %v6646, 16
  %v7140 = vrot.slane %v7138, 7
  %v7141 = vshll.u32 %v6646, 16
  %v7143 = vor.u32 %v7140, %v7141
  %v7144 = vsel %vm380, %v7136, %v7143
  %v7145 = vrot.slane %v7140, 4
  %v7147 = vshrl.u32 %v6647, 16
  %v7149 = vrot.slane %v7147, 7
  %v7150 = vshll.u32 %v6647, 16
  %v7152 = vor.u32 %v7149, %v7150
  %v7153 = vrot.slane %v7149, 4
  %v7155 = vshrl.u32 %v6648, 16
  %v7157 = vrot.slane %v7155, 7
  %v7158 = vshll.u32 %v6648, 16
  %v7160 = vor.u32 %v7157, %v7158
  %v7161 = vsel %vm380, %v7153, %v7160
  %v7162 = vrot.slane %v7157, 4
  %v7164 = vshrl.u32 %v6649, 16
  %v7166 = vrot.slane %v7164, 7
  %v7167 = vshll.u32 %v6649, 16
  %v7169 = vor.u32 %v7166, %v7167
  %v7170 = vrot.slane %v7166, 4
  %v7172 = vshrl.u32 %v6650, 16
  %v7174 = vrot.slane %v7172, 7
  %v7175 = vshll.u32 %v6650, 16
  %v7177 = vor.u32 %v7174, %v7175
  %v7178 = vsel %vm380, %v7170, %v7177
  %v7179 = vrot.slane %v7174, 4
  %v7181 = vshrl.u32 %v6651, 16
  %v7183 = vrot.slane %v7181, 7
  %v7184 = vshll.u32 %v6651, 16
  %v7186 = vor.u32 %v7183, %v7184
  %v7187 = vrot.slane %v7183, 4
  %v7189 = vshrl.u32 %v6652, 16
  %v7191 = vrot.slane %v7189, 7
  %v7192 = vshll.u32 %v6652, 16
  %v7194 = vor.u32 %v7191, %v7192
  %v7195 = vsel %vm380, %v7187, %v7194
  %v7196 = vrot.slane %v7191, 4
  %vm7293 = vcmask 1043456
  %vm7294 = vmand %vm7293, %vm153
  %v7295 = vsel %vm7294, %v6659, %v1378
  %7296 = vst [vmem:[%s53] sm:$0xf] %v7295
  %7297 = vst [vmem:[%s53 + $0x4] sm:$0xf] %v6668
  %v7298 = vld [vmem:[%s53 + $0x8] sm:$0x1]
  %v7299 = vsel %vm56, %v6669, %v7298
  %7300 = vst [vmem:[%s53 + $0x8] sm:$0x1] %v7299
  %v7301 = vld [vmem:[%s53 + $0x10] sm:$0xf]
  %v7302 = vsel %vm7294, %v6676, %v7301
  %7303 = vst [vmem:[%s53 + $0x10] sm:$0xf] %v7302
  %7304 = vst [vmem:[%s53 + $0x14] sm:$0xf] %v6685
  %v7305 = vld [vmem:[%s53 + $0x18] sm:$0x1]
  %v7306 = vsel %vm56, %v6686, %v7305
  %7307 = vst [vmem:[%s53 + $0x18] sm:$0x1] %v7306
  %v7308 = vld [vmem:[%s53 + $0x20] sm:$0xf]
  %v7309 = vsel %vm7294, %v6693, %v7308
  %7310 = vst [vmem:[%s53 + $0x20] sm:$0xf] %v7309
  %7311 = vst [vmem:[%s53 + $0x24] sm:$0xf] %v6702
  %v7312 = vld [vmem:[%s53 + $0x28] sm:$0x1]
  %v7313 = vsel %vm56, %v6703, %v7312
  %7314 = vst [vmem:[%s53 + $0x28] sm:$0x1] %v7313
  %v7315 = vld [vmem:[%s53 + $0x30] sm:$0xf]
  %v7316 = vsel %vm7294, %v6710, %v7315
  %7317 = vst [vmem:[%s53 + $0x30] sm:$0xf] %v7316
  %7318 = vst [vmem:[%s53 + $0x34] sm:$0xf] %v6719
  %v7319 = vld [vmem:[%s53 + $0x38] sm:$0x1]
  %v7320 = vsel %vm56, %v6720, %v7319
  %7321 = vst [vmem:[%s53 + $0x38] sm:$0x1] %v7320
  %v7322 = vld [vmem:[%s53 + $0x40] sm:$0xf]
  %v7323 = vsel %vm7294, %v6727, %v7322
  %7324 = vst [vmem:[%s53 + $0x40] sm:$0xf] %v7323
  %7325 = vst [vmem:[%s53 + $0x44] sm:$0xf] %v6736
  %v7326 = vld [vmem:[%s53 + $0x48] sm:$0x1]
  %v7327 = vsel %vm56, %v6737, %v7326
  %7328 = vst [vmem:[%s53 + $0x48] sm:$0x1] %v7327
  %v7329 = vld [vmem:[%s53 + $0x50] sm:$0xf]
  %v7330 = vsel %vm7294, %v6744, %v7329
  %7331 = vst [vmem:[%s53 + $0x50] sm:$0xf] %v7330
  %7332 = vst [vmem:[%s53 + $0x54] sm:$0xf] %v6753
  %v7333 = vld [vmem:[%s53 + $0x58] sm:$0x1]
  %v7334 = vsel %vm56, %v6754, %v7333
  %7335 = vst [vmem:[%s53 + $0x58] sm:$0x1] %v7334
  %v7336 = vld [vmem:[%s53 + $0x60] sm:$0xf]
  %v7337 = vsel %vm7294, %v6761, %v7336
  %7338 = vst [vmem:[%s53 + $0x60] sm:$0xf] %v7337
  %7339 = vst [vmem:[%s53 + $0x64] sm:$0xf] %v6770
  %v7340 = vld [vmem:[%s53 + $0x68] sm:$0x1]
  %v7341 = vsel %vm56, %v6771, %v7340
  %7342 = vst [vmem:[%s53 + $0x68] sm:$0x1] %v7341
  %v7343 = vld [vmem:[%s53 + $0x70] sm:$0xf]
  %v7344 = vsel %vm7294, %v6778, %v7343
  %7345 = vst [vmem:[%s53 + $0x70] sm:$0xf] %v7344
  %7346 = vst [vmem:[%s53 + $0x74] sm:$0xf] %v6787
  %v7347 = vld [vmem:[%s53 + $0x78] sm:$0x1]
  %v7348 = vsel %vm56, %v6788, %v7347
  %7349 = vst [vmem:[%s53 + $0x78] sm:$0x1] %v7348
  %v7350 = vld [vmem:[%s53 + $0x80] sm:$0xf]
  %v7351 = vsel %vm7294, %v6795, %v7350
  %7352 = vst [vmem:[%s53 + $0x80] sm:$0xf] %v7351
  %7353 = vst [vmem:[%s53 + $0x84] sm:$0xf] %v6804
  %v7354 = vld [vmem:[%s53 + $0x88] sm:$0x1]
  %v7355 = vsel %vm56, %v6805, %v7354
  %7356 = vst [vmem:[%s53 + $0x88] sm:$0x1] %v7355
  %v7357 = vld [vmem:[%s53 + $0x90] sm:$0xf]
  %v7358 = vsel %vm7294, %v6812, %v7357
  %7359 = vst [vmem:[%s53 + $0x90] sm:$0xf] %v7358
  %7360 = vst [vmem:[%s53 + $0x94] sm:$0xf] %v6821
  %v7361 = vld [vmem:[%s53 + $0x98] sm:$0x1]
  %v7362 = vsel %vm56, %v6822, %v7361
  %7363 = vst [vmem:[%s53 + $0x98] sm:$0x1] %v7362
  %v7364 = vld [vmem:[%s53 + $0xa0] sm:$0xf]
  %v7365 = vsel %vm7294, %v6829, %v7364
  %7366 = vst [vmem:[%s53 + $0xa0] sm:$0xf] %v7365
  %7367 = vst [vmem:[%s53 + $0xa4] sm:$0xf] %v6838
  %v7368 = vld [vmem:[%s53 + $0xa8] sm:$0x1]
  %v7369 = vsel %vm56, %v6839, %v7368
  %7370 = vst [vmem:[%s53 + $0xa8] sm:$0x1] %v7369
  %v7371 = vld [vmem:[%s53 + $0xb0] sm:$0xf]
  %v7372 = vsel %vm7294, %v6846, %v7371
  %7373 = vst [vmem:[%s53 + $0xb0] sm:$0xf] %v7372
  %7374 = vst [vmem:[%s53 + $0xb4] sm:$0xf] %v6855
  %v7375 = vld [vmem:[%s53 + $0xb8] sm:$0x1]
  %v7376 = vsel %vm56, %v6856, %v7375
  %7377 = vst [vmem:[%s53 + $0xb8] sm:$0x1] %v7376
  %v7378 = vld [vmem:[%s53 + $0xc0] sm:$0xf]
  %v7379 = vsel %vm7294, %v6863, %v7378
  %7380 = vst [vmem:[%s53 + $0xc0] sm:$0xf] %v7379
  %7381 = vst [vmem:[%s53 + $0xc4] sm:$0xf] %v6872
  %v7382 = vld [vmem:[%s53 + $0xc8] sm:$0x1]
  %v7383 = vsel %vm56, %v6873, %v7382
  %7384 = vst [vmem:[%s53 + $0xc8] sm:$0x1] %v7383
  %v7385 = vld [vmem:[%s53 + $0xd0] sm:$0xf]
  %v7386 = vsel %vm7294, %v6880, %v7385
  %7387 = vst [vmem:[%s53 + $0xd0] sm:$0xf] %v7386
  %7388 = vst [vmem:[%s53 + $0xd4] sm:$0xf] %v6889
  %v7389 = vld [vmem:[%s53 + $0xd8] sm:$0x1]
  %v7390 = vsel %vm56, %v6890, %v7389
  %7391 = vst [vmem:[%s53 + $0xd8] sm:$0x1] %v7390
  %v7392 = vld [vmem:[%s53 + $0xe0] sm:$0xf]
  %v7393 = vsel %vm7294, %v6897, %v7392
  %7394 = vst [vmem:[%s53 + $0xe0] sm:$0xf] %v7393
  %7395 = vst [vmem:[%s53 + $0xe4] sm:$0xf] %v6906
  %v7396 = vld [vmem:[%s53 + $0xe8] sm:$0x1]
  %v7397 = vsel %vm56, %v6907, %v7396
  %7398 = vst [vmem:[%s53 + $0xe8] sm:$0x1] %v7397
  %v7399 = vld [vmem:[%s53 + $0xf0] sm:$0xf]
  %v7400 = vsel %vm7294, %v6914, %v7399
  %7401 = vst [vmem:[%s53 + $0xf0] sm:$0xf] %v7400
  %7402 = vst [vmem:[%s53 + $0xf4] sm:$0xf] %v6923
  %v7403 = vld [vmem:[%s53 + $0xf8] sm:$0x1]
  %v7404 = vsel %vm56, %v6924, %v7403
  %7405 = vst [vmem:[%s53 + $0xf8] sm:$0x1] %v7404
  %v7406 = vld [vmem:[%s53 + $0x120] sm:$0xf]
  %v7407 = vsel %vm7294, %v6931, %v7406
  %7408 = vst [vmem:[%s53 + $0x120] sm:$0xf] %v7407
  %7409 = vst [vmem:[%s53 + $0x124] sm:$0xf] %v6940
  %v7410 = vld [vmem:[%s53 + $0x128] sm:$0x1]
  %v7411 = vsel %vm56, %v6941, %v7410
  %7412 = vst [vmem:[%s53 + $0x128] sm:$0x1] %v7411
  %v7413 = vld [vmem:[%s53 + $0x130] sm:$0xf]
  %v7414 = vsel %vm7294, %v6948, %v7413
  %7415 = vst [vmem:[%s53 + $0x130] sm:$0xf] %v7414
  %7416 = vst [vmem:[%s53 + $0x134] sm:$0xf] %v6957
  %v7417 = vld [vmem:[%s53 + $0x138] sm:$0x1]
  %v7418 = vsel %vm56, %v6958, %v7417
  %7419 = vst [vmem:[%s53 + $0x138] sm:$0x1] %v7418
  %v7420 = vld [vmem:[%s53 + $0x140] sm:$0xf]
  %v7421 = vsel %vm7294, %v6965, %v7420
  %7422 = vst [vmem:[%s53 + $0x140] sm:$0xf] %v7421
  %7423 = vst [vmem:[%s53 + $0x144] sm:$0xf] %v6974
  %v7424 = vld [vmem:[%s53 + $0x148] sm:$0x1]
  %v7425 = vsel %vm56, %v6975, %v7424
  %7426 = vst [vmem:[%s53 + $0x148] sm:$0x1] %v7425
  %v7427 = vld [vmem:[%s53 + $0x150] sm:$0xf]
  %v7428 = vsel %vm7294, %v6982, %v7427
  %7429 = vst [vmem:[%s53 + $0x150] sm:$0xf] %v7428
  %7430 = vst [vmem:[%s53 + $0x154] sm:$0xf] %v6991
  %v7431 = vld [vmem:[%s53 + $0x158] sm:$0x1]
  %v7432 = vsel %vm56, %v6992, %v7431
  %7433 = vst [vmem:[%s53 + $0x158] sm:$0x1] %v7432
  %v7434 = vld [vmem:[%s53 + $0x160] sm:$0xf]
  %v7435 = vsel %vm7294, %v6999, %v7434
  %7436 = vst [vmem:[%s53 + $0x160] sm:$0xf] %v7435
  %7437 = vst [vmem:[%s53 + $0x164] sm:$0xf] %v7008
  %v7438 = vld [vmem:[%s53 + $0x168] sm:$0x1]
  %v7439 = vsel %vm56, %v7009, %v7438
  %7440 = vst [vmem:[%s53 + $0x168] sm:$0x1] %v7439
  %v7441 = vld [vmem:[%s53 + $0x170] sm:$0xf]
  %v7442 = vsel %vm7294, %v7016, %v7441
  %7443 = vst [vmem:[%s53 + $0x170] sm:$0xf] %v7442
  %7444 = vst [vmem:[%s53 + $0x174] sm:$0xf] %v7025
  %v7445 = vld [vmem:[%s53 + $0x178] sm:$0x1]
  %v7446 = vsel %vm56, %v7026, %v7445
  %7447 = vst [vmem:[%s53 + $0x178] sm:$0x1] %v7446
  %v7448 = vld [vmem:[%s53 + $0x180] sm:$0xf]
  %v7449 = vsel %vm7294, %v7033, %v7448
  %7450 = vst [vmem:[%s53 + $0x180] sm:$0xf] %v7449
  %7451 = vst [vmem:[%s53 + $0x184] sm:$0xf] %v7042
  %v7452 = vld [vmem:[%s53 + $0x188] sm:$0x1]
  %v7453 = vsel %vm56, %v7043, %v7452
  %7454 = vst [vmem:[%s53 + $0x188] sm:$0x1] %v7453
  %v7455 = vld [vmem:[%s53 + $0x190] sm:$0xf]
  %v7456 = vsel %vm7294, %v7050, %v7455
  %7457 = vst [vmem:[%s53 + $0x190] sm:$0xf] %v7456
  %7458 = vst [vmem:[%s53 + $0x194] sm:$0xf] %v7059
  %v7459 = vld [vmem:[%s53 + $0x198] sm:$0x1]
  %v7460 = vsel %vm56, %v7060, %v7459
  %7461 = vst [vmem:[%s53 + $0x198] sm:$0x1] %v7460
  %v7462 = vld [vmem:[%s53 + $0x1a0] sm:$0xf]
  %v7463 = vsel %vm7294, %v7067, %v7462
  %7464 = vst [vmem:[%s53 + $0x1a0] sm:$0xf] %v7463
  %7465 = vst [vmem:[%s53 + $0x1a4] sm:$0xf] %v7076
  %v7466 = vld [vmem:[%s53 + $0x1a8] sm:$0x1]
  %v7467 = vsel %vm56, %v7077, %v7466
  %7468 = vst [vmem:[%s53 + $0x1a8] sm:$0x1] %v7467
  %v7469 = vld [vmem:[%s53 + $0x1b0] sm:$0xf]
  %v7470 = vsel %vm7294, %v7084, %v7469
  %7471 = vst [vmem:[%s53 + $0x1b0] sm:$0xf] %v7470
  %7472 = vst [vmem:[%s53 + $0x1b4] sm:$0xf] %v7093
  %v7473 = vld [vmem:[%s53 + $0x1b8] sm:$0x1]
  %v7474 = vsel %vm56, %v7094, %v7473
  %7475 = vst [vmem:[%s53 + $0x1b8] sm:$0x1] %v7474
  %v7476 = vld [vmem:[%s53 + $0x1c0] sm:$0xf]
  %v7477 = vsel %vm7294, %v7101, %v7476
  %7478 = vst [vmem:[%s53 + $0x1c0] sm:$0xf] %v7477
  %7479 = vst [vmem:[%s53 + $0x1c4] sm:$0xf] %v7110
  %v7480 = vld [vmem:[%s53 + $0x1c8] sm:$0x1]
  %v7481 = vsel %vm56, %v7111, %v7480
  %7482 = vst [vmem:[%s53 + $0x1c8] sm:$0x1] %v7481
  %v7483 = vld [vmem:[%s53 + $0x1d0] sm:$0xf]
  %v7484 = vsel %vm7294, %v7118, %v7483
  %7485 = vst [vmem:[%s53 + $0x1d0] sm:$0xf] %v7484
  %7486 = vst [vmem:[%s53 + $0x1d4] sm:$0xf] %v7127
  %v7487 = vld [vmem:[%s53 + $0x1d8] sm:$0x1]
  %v7488 = vsel %vm56, %v7128, %v7487
  %7489 = vst [vmem:[%s53 + $0x1d8] sm:$0x1] %v7488
  %v7490 = vld [vmem:[%s53 + $0x1e0] sm:$0xf]
  %v7491 = vsel %vm7294, %v7135, %v7490
  %7492 = vst [vmem:[%s53 + $0x1e0] sm:$0xf] %v7491
  %7493 = vst [vmem:[%s53 + $0x1e4] sm:$0xf] %v7144
  %v7494 = vld [vmem:[%s53 + $0x1e8] sm:$0x1]
  %v7495 = vsel %vm56, %v7145, %v7494
  %7496 = vst [vmem:[%s53 + $0x1e8] sm:$0x1] %v7495
  %v7497 = vld [vmem:[%s53 + $0x1f0] sm:$0xf]
  %v7498 = vsel %vm7294, %v7152, %v7497
  %7499 = vst [vmem:[%s53 + $0x1f0] sm:$0xf] %v7498
  %7500 = vst [vmem:[%s53 + $0x1f4] sm:$0xf] %v7161
  %v7501 = vld [vmem:[%s53 + $0x1f8] sm:$0x1]
  %v7502 = vsel %vm56, %v7162, %v7501
  %7503 = vst [vmem:[%s53 + $0x1f8] sm:$0x1] %v7502
  %v7504 = vld [vmem:[%s53 + $0x200] sm:$0xf]
  %v7505 = vsel %vm7294, %v7169, %v7504
  %7506 = vst [vmem:[%s53 + $0x200] sm:$0xf] %v7505
  %7507 = vst [vmem:[%s53 + $0x204] sm:$0xf] %v7178
  %v7508 = vld [vmem:[%s53 + $0x208] sm:$0x1]
  %v7509 = vsel %vm56, %v7179, %v7508
  %7510 = vst [vmem:[%s53 + $0x208] sm:$0x1] %v7509
  %v7511 = vld [vmem:[%s53 + $0x210] sm:$0xf]
  %v7512 = vsel %vm7294, %v7186, %v7511
  %7513 = vst [vmem:[%s53 + $0x210] sm:$0xf] %v7512
  %7514 = vst [vmem:[%s53 + $0x214] sm:$0xf] %v7195
  %v7515 = vld [vmem:[%s53 + $0x218] sm:$0x1]
  %v7516 = vsel %vm56, %v7196, %v7515
  %7517 = vst [vmem:[%s53 + $0x218] sm:$0x1] %v7516
  %v7518 = vld [vmem:[#allocation2] sm:$0xf]
  %v7519 = vld [vmem:[#allocation2 + $0x4] sm:$0xf]
  %v7520 = vld [vmem:[#allocation2 + $0x10] sm:$0xf]
  %v7521 = vld [vmem:[#allocation2 + $0x14] sm:$0xf]
  %v7522 = vld [vmem:[#allocation2 + $0x20] sm:$0xf]
  %v7523 = vld [vmem:[#allocation2 + $0x24] sm:$0xf]
  %v7524 = vld [vmem:[#allocation2 + $0x30] sm:$0xf]
  %v7525 = vld [vmem:[#allocation2 + $0x34] sm:$0xf]
  %v7526 = vld [vmem:[#allocation2 + $0x40] sm:$0xf]
  %v7527 = vld [vmem:[#allocation2 + $0x44] sm:$0xf]
  %v7528 = vld [vmem:[#allocation2 + $0x50] sm:$0xf]
  %v7529 = vld [vmem:[#allocation2 + $0x54] sm:$0xf]
  %v7530 = vld [vmem:[#allocation2 + $0x60] sm:$0xf]
  %v7531 = vld [vmem:[#allocation2 + $0x64] sm:$0xf]
  %v7532 = vld [vmem:[#allocation2 + $0x70] sm:$0xf]
  %v7533 = vld [vmem:[#allocation2 + $0x74] sm:$0xf]
  %v7534 = vld [vmem:[#allocation2 + $0x80] sm:$0xf]
  %v7535 = vld [vmem:[#allocation2 + $0x84] sm:$0xf]
  %v7536 = vld [vmem:[#allocation2 + $0x90] sm:$0xf]
  %v7537 = vld [vmem:[#allocation2 + $0x94] sm:$0xf]
  %v7538 = vld [vmem:[#allocation2 + $0xa0] sm:$0xf]
  %v7539 = vld [vmem:[#allocation2 + $0xa4] sm:$0xf]
  %v7540 = vld [vmem:[#allocation2 + $0xb0] sm:$0xf]
  %v7541 = vld [vmem:[#allocation2 + $0xb4] sm:$0xf]
  %v7542 = vld [vmem:[#allocation2 + $0xc0] sm:$0xf]
  %v7543 = vld [vmem:[#allocation2 + $0xc4] sm:$0xf]
  %v7544 = vld [vmem:[#allocation2 + $0xd0] sm:$0xf]
  %v7545 = vld [vmem:[#allocation2 + $0xd4] sm:$0xf]
  %v7546 = vld [vmem:[#allocation2 + $0xe0] sm:$0xf]
  %v7547 = vld [vmem:[#allocation2 + $0xe4] sm:$0xf]
  %v7548 = vld [vmem:[#allocation2 + $0xf0] sm:$0xf]
  %v7549 = vld [vmem:[#allocation2 + $0xf4] sm:$0xf]
  %v7550 = vld [vmem:[#allocation2 + $0x120] sm:$0xf]
  %v7551 = vld [vmem:[#allocation2 + $0x124] sm:$0xf]
  %v7552 = vld [vmem:[#allocation2 + $0x130] sm:$0xf]
  %v7553 = vld [vmem:[#allocation2 + $0x134] sm:$0xf]
  %v7554 = vld [vmem:[#allocation2 + $0x140] sm:$0xf]
  %v7555 = vld [vmem:[#allocation2 + $0x144] sm:$0xf]
  %v7556 = vld [vmem:[#allocation2 + $0x150] sm:$0xf]
  %v7557 = vld [vmem:[#allocation2 + $0x154] sm:$0xf]
  %v7558 = vld [vmem:[#allocation2 + $0x160] sm:$0xf]
  %v7559 = vld [vmem:[#allocation2 + $0x164] sm:$0xf]
  %v7560 = vld [vmem:[#allocation2 + $0x170] sm:$0xf]
  %v7561 = vld [vmem:[#allocation2 + $0x174] sm:$0xf]
  %v7562 = vld [vmem:[#allocation2 + $0x180] sm:$0xf]
  %v7563 = vld [vmem:[#allocation2 + $0x184] sm:$0xf]
  %v7564 = vld [vmem:[#allocation2 + $0x190] sm:$0xf]
  %v7565 = vld [vmem:[#allocation2 + $0x194] sm:$0xf]
  %v7566 = vld [vmem:[#allocation2 + $0x1a0] sm:$0xf]
  %v7567 = vld [vmem:[#allocation2 + $0x1a4] sm:$0xf]
  %v7568 = vld [vmem:[#allocation2 + $0x1b0] sm:$0xf]
  %v7569 = vld [vmem:[#allocation2 + $0x1b4] sm:$0xf]
  %v7570 = vld [vmem:[#allocation2 + $0x1c0] sm:$0xf]
  %v7571 = vld [vmem:[#allocation2 + $0x1c4] sm:$0xf]
  %v7572 = vld [vmem:[#allocation2 + $0x1d0] sm:$0xf]
  %v7573 = vld [vmem:[#allocation2 + $0x1d4] sm:$0xf]
  %v7574 = vld [vmem:[#allocation2 + $0x1e0] sm:$0xf]
  %v7575 = vld [vmem:[#allocation2 + $0x1e4] sm:$0xf]
  %v7576 = vld [vmem:[#allocation2 + $0x1f0] sm:$0xf]
  %v7577 = vld [vmem:[#allocation2 + $0x1f4] sm:$0xf]
  %v7578 = vld [vmem:[#allocation2 + $0x200] sm:$0xf]
  %v7579 = vld [vmem:[#allocation2 + $0x204] sm:$0xf]
  %v7580 = vld [vmem:[#allocation2 + $0x210] sm:$0xf]
  %v7581 = vld [vmem:[#allocation2 + $0x214] sm:$0xf]
  %v7582 = vld [vmem:[#allocation2 + $0x8] sm:$0x1]
  %v7583 = vld [vmem:[#allocation2 + $0x18] sm:$0x1]
  %v7584 = vld [vmem:[#allocation2 + $0x28] sm:$0x1]
  %v7585 = vld [vmem:[#allocation2 + $0x38] sm:$0x1]
  %v7586 = vld [vmem:[#allocation2 + $0x48] sm:$0x1]
  %v7587 = vld [vmem:[#allocation2 + $0x58] sm:$0x1]
  %v7588 = vld [vmem:[#allocation2 + $0x68] sm:$0x1]
  %v7589 = vld [vmem:[#allocation2 + $0x78] sm:$0x1]
  %v7590 = vld [vmem:[#allocation2 + $0x88] sm:$0x1]
  %v7591 = vld [vmem:[#allocation2 + $0x98] sm:$0x1]
  %v7592 = vld [vmem:[#allocation2 + $0xa8] sm:$0x1]
  %v7593 = vld [vmem:[#allocation2 + $0xb8] sm:$0x1]
  %v7594 = vld [vmem:[#allocation2 + $0xc8] sm:$0x1]
  %v7595 = vld [vmem:[#allocation2 + $0xd8] sm:$0x1]
  %v7596 = vld [vmem:[#allocation2 + $0xe8] sm:$0x1]
  %v7597 = vld [vmem:[#allocation2 + $0xf8] sm:$0x1]
  %v7598 = vld [vmem:[#allocation2 + $0x128] sm:$0x1]
  %v7599 = vld [vmem:[#allocation2 + $0x138] sm:$0x1]
  %v7600 = vld [vmem:[#allocation2 + $0x148] sm:$0x1]
  %v7601 = vld [vmem:[#allocation2 + $0x158] sm:$0x1]
  %v7602 = vld [vmem:[#allocation2 + $0x168] sm:$0x1]
  %v7603 = vld [vmem:[#allocation2 + $0x178] sm:$0x1]
  %v7604 = vld [vmem:[#allocation2 + $0x188] sm:$0x1]
  %v7605 = vld [vmem:[#allocation2 + $0x198] sm:$0x1]
  %v7606 = vld [vmem:[#allocation2 + $0x1a8] sm:$0x1]
  %v7607 = vld [vmem:[#allocation2 + $0x1b8] sm:$0x1]
  %v7608 = vld [vmem:[#allocation2 + $0x1c8] sm:$0x1]
  %v7609 = vld [vmem:[#allocation2 + $0x1d8] sm:$0x1]
  %v7610 = vld [vmem:[#allocation2 + $0x1e8] sm:$0x1]
  %v7611 = vld [vmem:[#allocation2 + $0x1f8] sm:$0x1]
  %v7612 = vld [vmem:[#allocation2 + $0x208] sm:$0x1]
  %v7613 = vld [vmem:[#allocation2 + $0x218] sm:$0x1]
  %v7614 = vld [vmem:[#allocation2] sm:$0xe]
  %v7615 = vld [vmem:[#allocation2 + $0x10] sm:$0xe]
  %v7616 = vld [vmem:[#allocation2 + $0x20] sm:$0xe]
  %v7617 = vld [vmem:[#allocation2 + $0x30] sm:$0xe]
  %v7618 = vld [vmem:[#allocation2 + $0x40] sm:$0xe]
  %v7619 = vld [vmem:[#allocation2 + $0x50] sm:$0xe]
  %v7620 = vld [vmem:[#allocation2 + $0x60] sm:$0xe]
  %v7621 = vld [vmem:[#allocation2 + $0x70] sm:$0xe]
  %v7622 = vld [vmem:[#allocation2 + $0x80] sm:$0xe]
  %v7623 = vld [vmem:[#allocation2 + $0x90] sm:$0xe]
  %v7624 = vld [vmem:[#allocation2 + $0xa0] sm:$0xe]
  %v7625 = vld [vmem:[#allocation2 + $0xb0] sm:$0xe]
  %v7626 = vld [vmem:[#allocation2 + $0xc0] sm:$0xe]
  %v7627 = vld [vmem:[#allocation2 + $0xd0] sm:$0xe]
  %v7628 = vld [vmem:[#allocation2 + $0xe0] sm:$0xe]
  %v7629 = vld [vmem:[#allocation2 + $0xf0] sm:$0xe]
  %v7630 = vld [vmem:[#allocation2 + $0x120] sm:$0xe]
  %v7631 = vld [vmem:[#allocation2 + $0x130] sm:$0xe]
  %v7632 = vld [vmem:[#allocation2 + $0x140] sm:$0xe]
  %v7633 = vld [vmem:[#allocation2 + $0x150] sm:$0xe]
  %v7634 = vld [vmem:[#allocation2 + $0x160] sm:$0xe]
  %v7635 = vld [vmem:[#allocation2 + $0x170] sm:$0xe]
  %v7636 = vld [vmem:[#allocation2 + $0x180] sm:$0xe]
  %v7637 = vld [vmem:[#allocation2 + $0x190] sm:$0xe]
  %v7638 = vld [vmem:[#allocation2 + $0x1a0] sm:$0xe]
  %v7639 = vld [vmem:[#allocation2 + $0x1b0] sm:$0xe]
  %v7640 = vld [vmem:[#allocation2 + $0x1c0] sm:$0xe]
  %v7641 = vld [vmem:[#allocation2 + $0x1d0] sm:$0xe]
  %v7642 = vld [vmem:[#allocation2 + $0x1e0] sm:$0xe]
  %v7643 = vld [vmem:[#allocation2 + $0x1f0] sm:$0xe]
  %v7644 = vld [vmem:[#allocation2 + $0x200] sm:$0xe]
  %v7645 = vld [vmem:[#allocation2 + $0x210] sm:$0xe]
  %v7646 = vld [vmem:[%s53] sm:$0xf]
  %v7647 = vld [vmem:[%s53 + $0x4] sm:$0xf]
  %v7648 = vld [vmem:[%s53 + $0x10] sm:$0xf]
  %v7649 = vld [vmem:[%s53 + $0x14] sm:$0xf]
  %v7650 = vld [vmem:[%s53 + $0x20] sm:$0xf]
  %v7651 = vld [vmem:[%s53 + $0x24] sm:$0xf]
  %v7652 = vld [vmem:[%s53 + $0x30] sm:$0xf]
  %v7653 = vld [vmem:[%s53 + $0x34] sm:$0xf]
  %v7654 = vld [vmem:[%s53 + $0x40] sm:$0xf]
  %v7655 = vld [vmem:[%s53 + $0x44] sm:$0xf]
  %v7656 = vld [vmem:[%s53 + $0x50] sm:$0xf]
  %v7657 = vld [vmem:[%s53 + $0x54] sm:$0xf]
  %v7658 = vld [vmem:[%s53 + $0x60] sm:$0xf]
  %v7659 = vld [vmem:[%s53 + $0x64] sm:$0xf]
  %v7660 = vld [vmem:[%s53 + $0x70] sm:$0xf]
  %v7661 = vld [vmem:[%s53 + $0x74] sm:$0xf]
  %v7662 = vld [vmem:[%s53 + $0x80] sm:$0xf]
  %v7663 = vld [vmem:[%s53 + $0x84] sm:$0xf]
  %v7664 = vld [vmem:[%s53 + $0x90] sm:$0xf]
  %v7665 = vld [vmem:[%s53 + $0x94] sm:$0xf]
  %v7666 = vld [vmem:[%s53 + $0xa0] sm:$0xf]
  %v7667 = vld [vmem:[%s53 + $0xa4] sm:$0xf]
  %v7668 = vld [vmem:[%s53 + $0xb0] sm:$0xf]
  %v7669 = vld [vmem:[%s53 + $0xb4] sm:$0xf]
  %v7670 = vld [vmem:[%s53 + $0xc0] sm:$0xf]
  %v7671 = vld [vmem:[%s53 + $0xc4] sm:$0xf]
  %v7672 = vld [vmem:[%s53 + $0xd0] sm:$0xf]
  %v7673 = vld [vmem:[%s53 + $0xd4] sm:$0xf]
  %v7674 = vld [vmem:[%s53 + $0xe0] sm:$0xf]
  %v7675 = vld [vmem:[%s53 + $0xe4] sm:$0xf]
  %v7676 = vld [vmem:[%s53 + $0xf0] sm:$0xf]
  %v7677 = vld [vmem:[%s53 + $0xf4] sm:$0xf]
  %v7678 = vld [vmem:[%s53 + $0x120] sm:$0xf]
  %v7679 = vld [vmem:[%s53 + $0x124] sm:$0xf]
  %v7680 = vld [vmem:[%s53 + $0x130] sm:$0xf]
  %v7681 = vld [vmem:[%s53 + $0x134] sm:$0xf]
  %v7682 = vld [vmem:[%s53 + $0x140] sm:$0xf]
  %v7683 = vld [vmem:[%s53 + $0x144] sm:$0xf]
  %v7684 = vld [vmem:[%s53 + $0x150] sm:$0xf]
  %v7685 = vld [vmem:[%s53 + $0x154] sm:$0xf]
  %v7686 = vld [vmem:[%s53 + $0x160] sm:$0xf]
  %v7687 = vld [vmem:[%s53 + $0x164] sm:$0xf]
  %v7688 = vld [vmem:[%s53 + $0x170] sm:$0xf]
  %v7689 = vld [vmem:[%s53 + $0x174] sm:$0xf]
  %v7690 = vld [vmem:[%s53 + $0x180] sm:$0xf]
  %v7691 = vld [vmem:[%s53 + $0x184] sm:$0xf]
  %v7692 = vld [vmem:[%s53 + $0x190] sm:$0xf]
  %v7693 = vld [vmem:[%s53 + $0x194] sm:$0xf]
  %v7694 = vld [vmem:[%s53 + $0x1a0] sm:$0xf]
  %v7695 = vld [vmem:[%s53 + $0x1a4] sm:$0xf]
  %v7696 = vld [vmem:[%s53 + $0x1b0] sm:$0xf]
  %v7697 = vld [vmem:[%s53 + $0x1b4] sm:$0xf]
  %v7698 = vld [vmem:[%s53 + $0x1c0] sm:$0xf]
  %v7699 = vld [vmem:[%s53 + $0x1c4] sm:$0xf]
  %v7700 = vld [vmem:[%s53 + $0x1d0] sm:$0xf]
  %v7701 = vld [vmem:[%s53 + $0x1d4] sm:$0xf]
  %v7702 = vld [vmem:[%s53 + $0x1e0] sm:$0xf]
  %v7703 = vld [vmem:[%s53 + $0x1e4] sm:$0xf]
  %v7704 = vld [vmem:[%s53 + $0x1f0] sm:$0xf]
  %v7705 = vld [vmem:[%s53 + $0x1f4] sm:$0xf]
  %v7706 = vld [vmem:[%s53 + $0x200] sm:$0xf]
  %v7707 = vld [vmem:[%s53 + $0x204] sm:$0xf]
  %v7708 = vld [vmem:[%s53 + $0x210] sm:$0xf]
  %v7709 = vld [vmem:[%s53 + $0x214] sm:$0xf]
  %v7710 = vld [vmem:[%s53 + $0x8] sm:$0x1]
  %v7711 = vld [vmem:[%s53 + $0x18] sm:$0x1]
  %v7712 = vld [vmem:[%s53 + $0x28] sm:$0x1]
  %v7713 = vld [vmem:[%s53 + $0x38] sm:$0x1]
  %v7714 = vld [vmem:[%s53 + $0x48] sm:$0x1]
  %v7715 = vld [vmem:[%s53 + $0x58] sm:$0x1]
  %v7716 = vld [vmem:[%s53 + $0x68] sm:$0x1]
  %v7717 = vld [vmem:[%s53 + $0x78] sm:$0x1]
  %v7718 = vld [vmem:[%s53 + $0x88] sm:$0x1]
  %v7719 = vld [vmem:[%s53 + $0x98] sm:$0x1]
  %v7720 = vld [vmem:[%s53 + $0xa8] sm:$0x1]
  %v7721 = vld [vmem:[%s53 + $0xb8] sm:$0x1]
  %v7722 = vld [vmem:[%s53 + $0xc8] sm:$0x1]
  %v7723 = vld [vmem:[%s53 + $0xd8] sm:$0x1]
  %v7724 = vld [vmem:[%s53 + $0xe8] sm:$0x1]
  %v7725 = vld [vmem:[%s53 + $0xf8] sm:$0x1]
  %v7726 = vld [vmem:[%s53 + $0x128] sm:$0x1]
  %v7727 = vld [vmem:[%s53 + $0x138] sm:$0x1]
  %v7728 = vld [vmem:[%s53 + $0x148] sm:$0x1]
  %v7729 = vld [vmem:[%s53 + $0x158] sm:$0x1]
  %v7730 = vld [vmem:[%s53 + $0x168] sm:$0x1]
  %v7731 = vld [vmem:[%s53 + $0x178] sm:$0x1]
  %v7732 = vld [vmem:[%s53 + $0x188] sm:$0x1]
  %v7733 = vld [vmem:[%s53 + $0x198] sm:$0x1]
  %v7734 = vld [vmem:[%s53 + $0x1a8] sm:$0x1]
  %v7735 = vld [vmem:[%s53 + $0x1b8] sm:$0x1]
  %v7736 = vld [vmem:[%s53 + $0x1c8] sm:$0x1]
  %v7737 = vld [vmem:[%s53 + $0x1d8] sm:$0x1]
  %v7738 = vld [vmem:[%s53 + $0x1e8] sm:$0x1]
  %v7739 = vld [vmem:[%s53 + $0x1f8] sm:$0x1]
  %v7740 = vld [vmem:[%s53 + $0x208] sm:$0x1]
  %v7741 = vld [vmem:[%s53 + $0x218] sm:$0x1]
  %v7742 = vld [vmem:[%s53] sm:$0xe]
  %v7743 = vld [vmem:[%s53 + $0x10] sm:$0xe]
  %v7744 = vld [vmem:[%s53 + $0x20] sm:$0xe]
  %v7745 = vld [vmem:[%s53 + $0x30] sm:$0xe]
  %v7746 = vld [vmem:[%s53 + $0x40] sm:$0xe]
  %v7747 = vld [vmem:[%s53 + $0x50] sm:$0xe]
  %v7748 = vld [vmem:[%s53 + $0x60] sm:$0xe]
  %v7749 = vld [vmem:[%s53 + $0x70] sm:$0xe]
  %v7750 = vld [vmem:[%s53 + $0x80] sm:$0xe]
  %v7751 = vld [vmem:[%s53 + $0x90] sm:$0xe]
  %v7752 = vld [vmem:[%s53 + $0xa0] sm:$0xe]
  %v7753 = vld [vmem:[%s53 + $0xb0] sm:$0xe]
  %v7754 = vld [vmem:[%s53 + $0xc0] sm:$0xe]
  %v7755 = vld [vmem:[%s53 + $0xd0] sm:$0xe]
  %v7756 = vld [vmem:[%s53 + $0xe0] sm:$0xe]
  %v7757 = vld [vmem:[%s53 + $0xf0] sm:$0xe]
  %v7758 = vld [vmem:[%s53 + $0x120] sm:$0xe]
  %v7759 = vld [vmem:[%s53 + $0x130] sm:$0xe]
  %v7760 = vld [vmem:[%s53 + $0x140] sm:$0xe]
  %v7761 = vld [vmem:[%s53 + $0x150] sm:$0xe]
  %v7762 = vld [vmem:[%s53 + $0x160] sm:$0xe]
  %v7763 = vld [vmem:[%s53 + $0x170] sm:$0xe]
  %v7764 = vld [vmem:[%s53 + $0x180] sm:$0xe]
  %v7765 = vld [vmem:[%s53 + $0x190] sm:$0xe]
  %v7766 = vld [vmem:[%s53 + $0x1a0] sm:$0xe]
  %v7767 = vld [vmem:[%s53 + $0x1b0] sm:$0xe]
  %v7768 = vld [vmem:[%s53 + $0x1c0] sm:$0xe]
  %v7769 = vld [vmem:[%s53 + $0x1d0] sm:$0xe]
  %v7770 = vld [vmem:[%s53 + $0x1e0] sm:$0xe]
  %v7771 = vld [vmem:[%s53 + $0x1f0] sm:$0xe]
  %v7772 = vld [vmem:[%s53 + $0x200] sm:$0xe]
  %v7773 = vld [vmem:[%s53 + $0x210] sm:$0xe]
  %v7774 = vld [vmem:[%s1506] sm:$0xf]
  %v7775 = vld [vmem:[%s1506 + $0x4] sm:$0xf]
  %v7776 = vld [vmem:[%s1506 + $0x10] sm:$0xf]
  %v7777 = vld [vmem:[%s1506 + $0x14] sm:$0xf]
  %v7778 = vld [vmem:[%s1506 + $0x20] sm:$0xf]
  %v7779 = vld [vmem:[%s1506 + $0x24] sm:$0xf]
  %v7780 = vld [vmem:[%s1506 + $0x30] sm:$0xf]
  %v7781 = vld [vmem:[%s1506 + $0x34] sm:$0xf]
  %v7782 = vld [vmem:[%s1506 + $0x40] sm:$0xf]
  %v7783 = vld [vmem:[%s1506 + $0x44] sm:$0xf]
  %v7784 = vld [vmem:[%s1506 + $0x50] sm:$0xf]
  %v7785 = vld [vmem:[%s1506 + $0x54] sm:$0xf]
  %v7786 = vld [vmem:[%s1506 + $0x60] sm:$0xf]
  %v7787 = vld [vmem:[%s1506 + $0x64] sm:$0xf]
  %v7788 = vld [vmem:[%s1506 + $0x70] sm:$0xf]
  %v7789 = vld [vmem:[%s1506 + $0x74] sm:$0xf]
  %v7790 = vld [vmem:[%s1506 + $0x80] sm:$0xf]
  %v7791 = vld [vmem:[%s1506 + $0x84] sm:$0xf]
  %v7792 = vld [vmem:[%s1506 + $0x90] sm:$0xf]
  %v7793 = vld [vmem:[%s1506 + $0x94] sm:$0xf]
  %v7794 = vld [vmem:[%s1506 + $0xa0] sm:$0xf]
  %v7795 = vld [vmem:[%s1506 + $0xa4] sm:$0xf]
  %v7796 = vld [vmem:[%s1506 + $0xb0] sm:$0xf]
  %v7797 = vld [vmem:[%s1506 + $0xb4] sm:$0xf]
  %v7798 = vld [vmem:[%s1506 + $0xc0] sm:$0xf]
  %v7799 = vld [vmem:[%s1506 + $0xc4] sm:$0xf]
  %v7800 = vld [vmem:[%s1506 + $0xd0] sm:$0xf]
  %v7801 = vld [vmem:[%s1506 + $0xd4] sm:$0xf]
  %v7802 = vld [vmem:[%s1506 + $0xe0] sm:$0xf]
  %v7803 = vld [vmem:[%s1506 + $0xe4] sm:$0xf]
  %v7804 = vld [vmem:[%s1506 + $0xf0] sm:$0xf]
  %v7805 = vld [vmem:[%s1506 + $0xf4] sm:$0xf]
  %v7806 = vld [vmem:[%s1506 + $0x120] sm:$0xf]
  %v7807 = vld [vmem:[%s1506 + $0x124] sm:$0xf]
  %v7808 = vld [vmem:[%s1506 + $0x130] sm:$0xf]
  %v7809 = vld [vmem:[%s1506 + $0x134] sm:$0xf]
  %v7810 = vld [vmem:[%s1506 + $0x140] sm:$0xf]
  %v7811 = vld [vmem:[%s1506 + $0x144] sm:$0xf]
  %v7812 = vld [vmem:[%s1506 + $0x150] sm:$0xf]
  %v7813 = vld [vmem:[%s1506 + $0x154] sm:$0xf]
  %v7814 = vld [vmem:[%s1506 + $0x160] sm:$0xf]
  %v7815 = vld [vmem:[%s1506 + $0x164] sm:$0xf]
  %v7816 = vld [vmem:[%s1506 + $0x170] sm:$0xf]
  %v7817 = vld [vmem:[%s1506 + $0x174] sm:$0xf]
  %v7818 = vld [vmem:[%s1506 + $0x180] sm:$0xf]
  %v7819 = vld [vmem:[%s1506 + $0x184] sm:$0xf]
  %v7820 = vld [vmem:[%s1506 + $0x190] sm:$0xf]
  %v7821 = vld [vmem:[%s1506 + $0x194] sm:$0xf]
  %v7822 = vld [vmem:[%s1506 + $0x1a0] sm:$0xf]
  %v7823 = vld [vmem:[%s1506 + $0x1a4] sm:$0xf]
  %v7824 = vld [vmem:[%s1506 + $0x1b0] sm:$0xf]
  %v7825 = vld [vmem:[%s1506 + $0x1b4] sm:$0xf]
  %v7826 = vld [vmem:[%s1506 + $0x1c0] sm:$0xf]
  %v7827 = vld [vmem:[%s1506 + $0x1c4] sm:$0xf]
  %v7828 = vld [vmem:[%s1506 + $0x1d0] sm:$0xf]
  %v7829 = vld [vmem:[%s1506 + $0x1d4] sm:$0xf]
  %v7830 = vld [vmem:[%s1506 + $0x1e0] sm:$0xf]
  %v7831 = vld [vmem:[%s1506 + $0x1e4] sm:$0xf]
  %v7832 = vld [vmem:[%s1506 + $0x1f0] sm:$0xf]
  %v7833 = vld [vmem:[%s1506 + $0x1f4] sm:$0xf]
  %v7834 = vld [vmem:[%s1506 + $0x200] sm:$0xf]
  %v7835 = vld [vmem:[%s1506 + $0x204] sm:$0xf]
  %v7836 = vld [vmem:[%s1506 + $0x210] sm:$0xf]
  %v7837 = vld [vmem:[%s1506 + $0x214] sm:$0xf]
  %v7838 = vld [vmem:[%s1506 + $0x8] sm:$0x1]
  %v7839 = vld [vmem:[%s1506 + $0x18] sm:$0x1]
  %v7840 = vld [vmem:[%s1506 + $0x28] sm:$0x1]
  %v7841 = vld [vmem:[%s1506 + $0x38] sm:$0x1]
  %v7842 = vld [vmem:[%s1506 + $0x48] sm:$0x1]
  %v7843 = vld [vmem:[%s1506 + $0x58] sm:$0x1]
  %v7844 = vld [vmem:[%s1506 + $0x68] sm:$0x1]
  %v7845 = vld [vmem:[%s1506 + $0x78] sm:$0x1]
  %v7846 = vld [vmem:[%s1506 + $0x88] sm:$0x1]
  %v7847 = vld [vmem:[%s1506 + $0x98] sm:$0x1]
  %v7848 = vld [vmem:[%s1506 + $0xa8] sm:$0x1]
  %v7849 = vld [vmem:[%s1506 + $0xb8] sm:$0x1]
  %v7850 = vld [vmem:[%s1506 + $0xc8] sm:$0x1]
  %v7851 = vld [vmem:[%s1506 + $0xd8] sm:$0x1]
  %v7852 = vld [vmem:[%s1506 + $0xe8] sm:$0x1]
  %v7853 = vld [vmem:[%s1506 + $0xf8] sm:$0x1]
  %v7854 = vld [vmem:[%s1506 + $0x128] sm:$0x1]
  %v7855 = vld [vmem:[%s1506 + $0x138] sm:$0x1]
  %v7856 = vld [vmem:[%s1506 + $0x148] sm:$0x1]
  %v7857 = vld [vmem:[%s1506 + $0x158] sm:$0x1]
  %v7858 = vld [vmem:[%s1506 + $0x168] sm:$0x1]
  %v7859 = vld [vmem:[%s1506 + $0x178] sm:$0x1]
  %v7860 = vld [vmem:[%s1506 + $0x188] sm:$0x1]
  %v7861 = vld [vmem:[%s1506 + $0x198] sm:$0x1]
  %v7862 = vld [vmem:[%s1506 + $0x1a8] sm:$0x1]
  %v7863 = vld [vmem:[%s1506 + $0x1b8] sm:$0x1]
  %v7864 = vld [vmem:[%s1506 + $0x1c8] sm:$0x1]
  %v7865 = vld [vmem:[%s1506 + $0x1d8] sm:$0x1]
  %v7866 = vld [vmem:[%s1506 + $0x1e8] sm:$0x1]
  %v7867 = vld [vmem:[%s1506 + $0x1f8] sm:$0x1]
  %v7868 = vld [vmem:[%s1506 + $0x208] sm:$0x1]
  %v7869 = vld [vmem:[%s1506 + $0x218] sm:$0x1]
  %v7870 = vld [vmem:[%s1506] sm:$0xe]
  %v7871 = vld [vmem:[%s1506 + $0x10] sm:$0xe]
  %v7872 = vld [vmem:[%s1506 + $0x20] sm:$0xe]
  %v7873 = vld [vmem:[%s1506 + $0x30] sm:$0xe]
  %v7874 = vld [vmem:[%s1506 + $0x40] sm:$0xe]
  %v7875 = vld [vmem:[%s1506 + $0x50] sm:$0xe]
  %v7876 = vld [vmem:[%s1506 + $0x60] sm:$0xe]
  %v7877 = vld [vmem:[%s1506 + $0x70] sm:$0xe]
  %v7878 = vld [vmem:[%s1506 + $0x80] sm:$0xe]
  %v7879 = vld [vmem:[%s1506 + $0x90] sm:$0xe]
  %v7880 = vld [vmem:[%s1506 + $0xa0] sm:$0xe]
  %v7881 = vld [vmem:[%s1506 + $0xb0] sm:$0xe]
  %v7882 = vld [vmem:[%s1506 + $0xc0] sm:$0xe]
  %v7883 = vld [vmem:[%s1506 + $0xd0] sm:$0xe]
  %v7884 = vld [vmem:[%s1506 + $0xe0] sm:$0xe]
  %v7885 = vld [vmem:[%s1506 + $0xf0] sm:$0xe]
  %v7886 = vld [vmem:[%s1506 + $0x120] sm:$0xe]
  %v7887 = vld [vmem:[%s1506 + $0x130] sm:$0xe]
  %v7888 = vld [vmem:[%s1506 + $0x140] sm:$0xe]
  %v7889 = vld [vmem:[%s1506 + $0x150] sm:$0xe]
  %v7890 = vld [vmem:[%s1506 + $0x160] sm:$0xe]
  %v7891 = vld [vmem:[%s1506 + $0x170] sm:$0xe]
  %v7892 = vld [vmem:[%s1506 + $0x180] sm:$0xe]
  %v7893 = vld [vmem:[%s1506 + $0x190] sm:$0xe]
  %v7894 = vld [vmem:[%s1506 + $0x1a0] sm:$0xe]
  %v7895 = vld [vmem:[%s1506 + $0x1b0] sm:$0xe]
  %v7896 = vld [vmem:[%s1506 + $0x1c0] sm:$0xe]
  %v7897 = vld [vmem:[%s1506 + $0x1d0] sm:$0xe]
  %v7898 = vld [vmem:[%s1506 + $0x1e0] sm:$0xe]
  %v7899 = vld [vmem:[%s1506 + $0x1f0] sm:$0xe]
  %v7900 = vld [vmem:[%s1506 + $0x200] sm:$0xe]
  %v7901 = vld [vmem:[%s1506 + $0x210] sm:$0xe]
  %v7966 = vunpack.c.l.b16 %v7518
  %v7967 = vunpack.c.l.b16 %v7519
  %v7968 = vunpack.c.l.b16 %v7520
  %v7969 = vunpack.c.l.b16 %v7521
  %v7970 = vunpack.c.l.b16 %v7522
  %v7971 = vunpack.c.l.b16 %v7523
  %v7972 = vunpack.c.l.b16 %v7524
  %v7973 = vunpack.c.l.b16 %v7525
  %v7974 = vunpack.c.l.b16 %v7526
  %v7975 = vunpack.c.l.b16 %v7527
  %v7976 = vunpack.c.l.b16 %v7528
  %v7977 = vunpack.c.l.b16 %v7529
  %v7978 = vunpack.c.l.b16 %v7530
  %v7979 = vunpack.c.l.b16 %v7531
  %v7980 = vunpack.c.l.b16 %v7532
  %v7981 = vunpack.c.l.b16 %v7533
  %v7982 = vunpack.c.l.b16 %v7534
  %v7983 = vunpack.c.l.b16 %v7535
  %v7984 = vunpack.c.l.b16 %v7536
  %v7985 = vunpack.c.l.b16 %v7537
  %v7986 = vunpack.c.l.b16 %v7538
  %v7987 = vunpack.c.l.b16 %v7539
  %v7988 = vunpack.c.l.b16 %v7540
  %v7989 = vunpack.c.l.b16 %v7541
  %v7990 = vunpack.c.l.b16 %v7542
  %v7991 = vunpack.c.l.b16 %v7543
  %v7992 = vunpack.c.l.b16 %v7544
  %v7993 = vunpack.c.l.b16 %v7545
  %v7994 = vunpack.c.l.b16 %v7546
  %v7995 = vunpack.c.l.b16 %v7547
  %v7996 = vunpack.c.l.b16 %v7548
  %v7997 = vunpack.c.l.b16 %v7549
  %v7998 = vunpack.c.l.b16 %v7550
  %v7999 = vunpack.c.l.b16 %v7551
  %v8000 = vunpack.c.l.b16 %v7552
  %v8001 = vunpack.c.l.b16 %v7553
  %v8002 = vunpack.c.l.b16 %v7554
  %v8003 = vunpack.c.l.b16 %v7555
  %v8004 = vunpack.c.l.b16 %v7556
  %v8005 = vunpack.c.l.b16 %v7557
  %v8006 = vunpack.c.l.b16 %v7558
  %v8007 = vunpack.c.l.b16 %v7559
  %v8008 = vunpack.c.l.b16 %v7560
  %v8009 = vunpack.c.l.b16 %v7561
  %v8010 = vunpack.c.l.b16 %v7562
  %v8011 = vunpack.c.l.b16 %v7563
  %v8012 = vunpack.c.l.b16 %v7564
  %v8013 = vunpack.c.l.b16 %v7565
  %v8014 = vunpack.c.l.b16 %v7566
  %v8015 = vunpack.c.l.b16 %v7567
  %v8016 = vunpack.c.l.b16 %v7568
  %v8017 = vunpack.c.l.b16 %v7569
  %v8018 = vunpack.c.l.b16 %v7570
  %v8019 = vunpack.c.l.b16 %v7571
  %v8020 = vunpack.c.l.b16 %v7572
  %v8021 = vunpack.c.l.b16 %v7573
  %v8022 = vunpack.c.l.b16 %v7574
  %v8023 = vunpack.c.l.b16 %v7575
  %v8024 = vunpack.c.l.b16 %v7576
  %v8025 = vunpack.c.l.b16 %v7577
  %v8026 = vunpack.c.l.b16 %v7578
  %v8027 = vunpack.c.l.b16 %v7579
  %v8028 = vunpack.c.l.b16 %v7580
  %v8029 = vunpack.c.l.b16 %v7581
  %v8030 = vpack.c.b16 %v7967, %v7966
  %v8031 = vpack.c.b16 %v7969, %v7968
  %v8032 = vpack.c.b16 %v7971, %v7970
  %v8033 = vpack.c.b16 %v7973, %v7972
  %v8034 = vpack.c.b16 %v7975, %v7974
  %v8035 = vpack.c.b16 %v7977, %v7976
  %v8036 = vpack.c.b16 %v7979, %v7978
  %v8037 = vpack.c.b16 %v7981, %v7980
  %v8038 = vpack.c.b16 %v7983, %v7982
  %v8039 = vpack.c.b16 %v7985, %v7984
  %v8040 = vpack.c.b16 %v7987, %v7986
  %v8041 = vpack.c.b16 %v7989, %v7988
  %v8042 = vpack.c.b16 %v7991, %v7990
  %v8043 = vpack.c.b16 %v7993, %v7992
  %v8044 = vpack.c.b16 %v7995, %v7994
  %v8045 = vpack.c.b16 %v7997, %v7996
  %v8046 = vpack.c.b16 %v7999, %v7998
  %v8047 = vpack.c.b16 %v8001, %v8000
  %v8048 = vpack.c.b16 %v8003, %v8002
  %v8049 = vpack.c.b16 %v8005, %v8004
  %v8050 = vpack.c.b16 %v8007, %v8006
  %v8051 = vpack.c.b16 %v8009, %v8008
  %v8052 = vpack.c.b16 %v8011, %v8010
  %v8053 = vpack.c.b16 %v8013, %v8012
  %v8054 = vpack.c.b16 %v8015, %v8014
  %v8055 = vpack.c.b16 %v8017, %v8016
  %v8056 = vpack.c.b16 %v8019, %v8018
  %v8057 = vpack.c.b16 %v8021, %v8020
  %v8058 = vpack.c.b16 %v8023, %v8022
  %v8059 = vpack.c.b16 %v8025, %v8024
  %v8060 = vpack.c.b16 %v8027, %v8026
  %v8061 = vpack.c.b16 %v8029, %v8028
  %v8094 = vunpack.c.l.b16 %v7582
  %v8095 = vunpack.c.l.b16 %v7583
  %v8096 = vunpack.c.l.b16 %v7584
  %v8097 = vunpack.c.l.b16 %v7585
  %v8098 = vunpack.c.l.b16 %v7586
  %v8099 = vunpack.c.l.b16 %v7587
  %v8100 = vunpack.c.l.b16 %v7588
  %v8101 = vunpack.c.l.b16 %v7589
  %v8102 = vunpack.c.l.b16 %v7590
  %v8103 = vunpack.c.l.b16 %v7591
  %v8104 = vunpack.c.l.b16 %v7592
  %v8105 = vunpack.c.l.b16 %v7593
  %v8106 = vunpack.c.l.b16 %v7594
  %v8107 = vunpack.c.l.b16 %v7595
  %v8108 = vunpack.c.l.b16 %v7596
  %v8109 = vunpack.c.l.b16 %v7597
  %v8110 = vunpack.c.l.b16 %v7598
  %v8111 = vunpack.c.l.b16 %v7599
  %v8112 = vunpack.c.l.b16 %v7600
  %v8113 = vunpack.c.l.b16 %v7601
  %v8114 = vunpack.c.l.b16 %v7602
  %v8115 = vunpack.c.l.b16 %v7603
  %v8116 = vunpack.c.l.b16 %v7604
  %v8117 = vunpack.c.l.b16 %v7605
  %v8118 = vunpack.c.l.b16 %v7606
  %v8119 = vunpack.c.l.b16 %v7607
  %v8120 = vunpack.c.l.b16 %v7608
  %v8121 = vunpack.c.l.b16 %v7609
  %v8122 = vunpack.c.l.b16 %v7610
  %v8123 = vunpack.c.l.b16 %v7611
  %v8124 = vunpack.c.l.b16 %v7612
  %v8125 = vunpack.c.l.b16 %v7613
  %v8126 = vpack.c.b16 %v8094, %v8094
  %v8127 = vpack.c.b16 %v8095, %v8095
  %v8128 = vpack.c.b16 %v8096, %v8096
  %v8129 = vpack.c.b16 %v8097, %v8097
  %v8130 = vpack.c.b16 %v8098, %v8098
  %v8131 = vpack.c.b16 %v8099, %v8099
  %v8132 = vpack.c.b16 %v8100, %v8100
  %v8133 = vpack.c.b16 %v8101, %v8101
  %v8134 = vpack.c.b16 %v8102, %v8102
  %v8135 = vpack.c.b16 %v8103, %v8103
  %v8136 = vpack.c.b16 %v8104, %v8104
  %v8137 = vpack.c.b16 %v8105, %v8105
  %v8138 = vpack.c.b16 %v8106, %v8106
  %v8139 = vpack.c.b16 %v8107, %v8107
  %v8140 = vpack.c.b16 %v8108, %v8108
  %v8141 = vpack.c.b16 %v8109, %v8109
  %v8142 = vpack.c.b16 %v8110, %v8110
  %v8143 = vpack.c.b16 %v8111, %v8111
  %v8144 = vpack.c.b16 %v8112, %v8112
  %v8145 = vpack.c.b16 %v8113, %v8113
  %v8146 = vpack.c.b16 %v8114, %v8114
  %v8147 = vpack.c.b16 %v8115, %v8115
  %v8148 = vpack.c.b16 %v8116, %v8116
  %v8149 = vpack.c.b16 %v8117, %v8117
  %v8150 = vpack.c.b16 %v8118, %v8118
  %v8151 = vpack.c.b16 %v8119, %v8119
  %v8152 = vpack.c.b16 %v8120, %v8120
  %v8153 = vpack.c.b16 %v8121, %v8121
  %v8154 = vpack.c.b16 %v8122, %v8122
  %v8155 = vpack.c.b16 %v8123, %v8123
  %v8156 = vpack.c.b16 %v8124, %v8124
  %v8157 = vpack.c.b16 %v8125, %v8125
  %v8159 = vshrl.u32 %v8030, 16
  %v8161 = vshll.u32 %v8030, 16
  %v8163 = vrot.slane %v8161, 1
  %v8164 = vor.u32 %v8159, %v8163
  %v8166 = vshll.u32 %v8126, 16
  %v8168 = vrot.slane %v8166, 1
  %v8169 = vsel %vm1891, %v8164, %v8168
  %v8171 = vshrl.u32 %v8031, 16
  %v8173 = vshll.u32 %v8031, 16
  %v8175 = vrot.slane %v8173, 1
  %v8176 = vor.u32 %v8171, %v8175
  %v8178 = vshll.u32 %v8127, 16
  %v8180 = vrot.slane %v8178, 1
  %v8181 = vsel %vm1891, %v8176, %v8180
  %v8183 = vshrl.u32 %v8032, 16
  %v8185 = vshll.u32 %v8032, 16
  %v8187 = vrot.slane %v8185, 1
  %v8188 = vor.u32 %v8183, %v8187
  %v8190 = vshll.u32 %v8128, 16
  %v8192 = vrot.slane %v8190, 1
  %v8193 = vsel %vm1891, %v8188, %v8192
  %v8195 = vshrl.u32 %v8033, 16
  %v8197 = vshll.u32 %v8033, 16
  %v8199 = vrot.slane %v8197, 1
  %v8200 = vor.u32 %v8195, %v8199
  %v8202 = vshll.u32 %v8129, 16
  %v8204 = vrot.slane %v8202, 1
  %v8205 = vsel %vm1891, %v8200, %v8204
  %v8207 = vshrl.u32 %v8034, 16
  %v8209 = vshll.u32 %v8034, 16
  %v8211 = vrot.slane %v8209, 1
  %v8212 = vor.u32 %v8207, %v8211
  %v8214 = vshll.u32 %v8130, 16
  %v8216 = vrot.slane %v8214, 1
  %v8217 = vsel %vm1891, %v8212, %v8216
  %v8219 = vshrl.u32 %v8035, 16
  %v8221 = vshll.u32 %v8035, 16
  %v8223 = vrot.slane %v8221, 1
  %v8224 = vor.u32 %v8219, %v8223
  %v8226 = vshll.u32 %v8131, 16
  %v8228 = vrot.slane %v8226, 1
  %v8229 = vsel %vm1891, %v8224, %v8228
  %v8231 = vshrl.u32 %v8036, 16
  %v8233 = vshll.u32 %v8036, 16
  %v8235 = vrot.slane %v8233, 1
  %v8236 = vor.u32 %v8231, %v8235
  %v8238 = vshll.u32 %v8132, 16
  %v8240 = vrot.slane %v8238, 1
  %v8241 = vsel %vm1891, %v8236, %v8240
  %v8243 = vshrl.u32 %v8037, 16
  %v8245 = vshll.u32 %v8037, 16
  %v8247 = vrot.slane %v8245, 1
  %v8248 = vor.u32 %v8243, %v8247
  %v8250 = vshll.u32 %v8133, 16
  %v8252 = vrot.slane %v8250, 1
  %v8253 = vsel %vm1891, %v8248, %v8252
  %v8255 = vshrl.u32 %v8038, 16
  %v8257 = vshll.u32 %v8038, 16
  %v8259 = vrot.slane %v8257, 1
  %v8260 = vor.u32 %v8255, %v8259
  %v8262 = vshll.u32 %v8134, 16
  %v8264 = vrot.slane %v8262, 1
  %v8265 = vsel %vm1891, %v8260, %v8264
  %v8267 = vshrl.u32 %v8039, 16
  %v8269 = vshll.u32 %v8039, 16
  %v8271 = vrot.slane %v8269, 1
  %v8272 = vor.u32 %v8267, %v8271
  %v8274 = vshll.u32 %v8135, 16
  %v8276 = vrot.slane %v8274, 1
  %v8277 = vsel %vm1891, %v8272, %v8276
  %v8279 = vshrl.u32 %v8040, 16
  %v8281 = vshll.u32 %v8040, 16
  %v8283 = vrot.slane %v8281, 1
  %v8284 = vor.u32 %v8279, %v8283
  %v8286 = vshll.u32 %v8136, 16
  %v8288 = vrot.slane %v8286, 1
  %v8289 = vsel %vm1891, %v8284, %v8288
  %v8291 = vshrl.u32 %v8041, 16
  %v8293 = vshll.u32 %v8041, 16
  %v8295 = vrot.slane %v8293, 1
  %v8296 = vor.u32 %v8291, %v8295
  %v8298 = vshll.u32 %v8137, 16
  %v8300 = vrot.slane %v8298, 1
  %v8301 = vsel %vm1891, %v8296, %v8300
  %v8303 = vshrl.u32 %v8042, 16
  %v8305 = vshll.u32 %v8042, 16
  %v8307 = vrot.slane %v8305, 1
  %v8308 = vor.u32 %v8303, %v8307
  %v8310 = vshll.u32 %v8138, 16
  %v8312 = vrot.slane %v8310, 1
  %v8313 = vsel %vm1891, %v8308, %v8312
  %v8315 = vshrl.u32 %v8043, 16
  %v8317 = vshll.u32 %v8043, 16
  %v8319 = vrot.slane %v8317, 1
  %v8320 = vor.u32 %v8315, %v8319
  %v8322 = vshll.u32 %v8139, 16
  %v8324 = vrot.slane %v8322, 1
  %v8325 = vsel %vm1891, %v8320, %v8324
  %v8327 = vshrl.u32 %v8044, 16
  %v8329 = vshll.u32 %v8044, 16
  %v8331 = vrot.slane %v8329, 1
  %v8332 = vor.u32 %v8327, %v8331
  %v8334 = vshll.u32 %v8140, 16
  %v8336 = vrot.slane %v8334, 1
  %v8337 = vsel %vm1891, %v8332, %v8336
  %v8339 = vshrl.u32 %v8045, 16
  %v8341 = vshll.u32 %v8045, 16
  %v8343 = vrot.slane %v8341, 1
  %v8344 = vor.u32 %v8339, %v8343
  %v8346 = vshll.u32 %v8141, 16
  %v8348 = vrot.slane %v8346, 1
  %v8349 = vsel %vm1891, %v8344, %v8348
  %v8351 = vshrl.u32 %v8046, 16
  %v8353 = vshll.u32 %v8046, 16
  %v8355 = vrot.slane %v8353, 1
  %v8356 = vor.u32 %v8351, %v8355
  %v8358 = vshll.u32 %v8142, 16
  %v8360 = vrot.slane %v8358, 1
  %v8361 = vsel %vm1891, %v8356, %v8360
  %v8363 = vshrl.u32 %v8047, 16
  %v8365 = vshll.u32 %v8047, 16
  %v8367 = vrot.slane %v8365, 1
  %v8368 = vor.u32 %v8363, %v8367
  %v8370 = vshll.u32 %v8143, 16
  %v8372 = vrot.slane %v8370, 1
  %v8373 = vsel %vm1891, %v8368, %v8372
  %v8375 = vshrl.u32 %v8048, 16
  %v8377 = vshll.u32 %v8048, 16
  %v8379 = vrot.slane %v8377, 1
  %v8380 = vor.u32 %v8375, %v8379
  %v8382 = vshll.u32 %v8144, 16
  %v8384 = vrot.slane %v8382, 1
  %v8385 = vsel %vm1891, %v8380, %v8384
  %v8387 = vshrl.u32 %v8049, 16
  %v8389 = vshll.u32 %v8049, 16
  %v8391 = vrot.slane %v8389, 1
  %v8392 = vor.u32 %v8387, %v8391
  %v8394 = vshll.u32 %v8145, 16
  %v8396 = vrot.slane %v8394, 1
  %v8397 = vsel %vm1891, %v8392, %v8396
  %v8399 = vshrl.u32 %v8050, 16
  %v8401 = vshll.u32 %v8050, 16
  %v8403 = vrot.slane %v8401, 1
  %v8404 = vor.u32 %v8399, %v8403
  %v8406 = vshll.u32 %v8146, 16
  %v8408 = vrot.slane %v8406, 1
  %v8409 = vsel %vm1891, %v8404, %v8408
  %v8411 = vshrl.u32 %v8051, 16
  %v8413 = vshll.u32 %v8051, 16
  %v8415 = vrot.slane %v8413, 1
  %v8416 = vor.u32 %v8411, %v8415
  %v8418 = vshll.u32 %v8147, 16
  %v8420 = vrot.slane %v8418, 1
  %v8421 = vsel %vm1891, %v8416, %v8420
  %v8423 = vshrl.u32 %v8052, 16
  %v8425 = vshll.u32 %v8052, 16
  %v8427 = vrot.slane %v8425, 1
  %v8428 = vor.u32 %v8423, %v8427
  %v8430 = vshll.u32 %v8148, 16
  %v8432 = vrot.slane %v8430, 1
  %v8433 = vsel %vm1891, %v8428, %v8432
  %v8435 = vshrl.u32 %v8053, 16
  %v8437 = vshll.u32 %v8053, 16
  %v8439 = vrot.slane %v8437, 1
  %v8440 = vor.u32 %v8435, %v8439
  %v8442 = vshll.u32 %v8149, 16
  %v8444 = vrot.slane %v8442, 1
  %v8445 = vsel %vm1891, %v8440, %v8444
  %v8447 = vshrl.u32 %v8054, 16
  %v8449 = vshll.u32 %v8054, 16
  %v8451 = vrot.slane %v8449, 1
  %v8452 = vor.u32 %v8447, %v8451
  %v8454 = vshll.u32 %v8150, 16
  %v8456 = vrot.slane %v8454, 1
  %v8457 = vsel %vm1891, %v8452, %v8456
  %v8459 = vshrl.u32 %v8055, 16
  %v8461 = vshll.u32 %v8055, 16
  %v8463 = vrot.slane %v8461, 1
  %v8464 = vor.u32 %v8459, %v8463
  %v8466 = vshll.u32 %v8151, 16
  %v8468 = vrot.slane %v8466, 1
  %v8469 = vsel %vm1891, %v8464, %v8468
  %v8471 = vshrl.u32 %v8056, 16
  %v8473 = vshll.u32 %v8056, 16
  %v8475 = vrot.slane %v8473, 1
  %v8476 = vor.u32 %v8471, %v8475
  %v8478 = vshll.u32 %v8152, 16
  %v8480 = vrot.slane %v8478, 1
  %v8481 = vsel %vm1891, %v8476, %v8480
  %v8483 = vshrl.u32 %v8057, 16
  %v8485 = vshll.u32 %v8057, 16
  %v8487 = vrot.slane %v8485, 1
  %v8488 = vor.u32 %v8483, %v8487
  %v8490 = vshll.u32 %v8153, 16
  %v8492 = vrot.slane %v8490, 1
  %v8493 = vsel %vm1891, %v8488, %v8492
  %v8495 = vshrl.u32 %v8058, 16
  %v8497 = vshll.u32 %v8058, 16
  %v8499 = vrot.slane %v8497, 1
  %v8500 = vor.u32 %v8495, %v8499
  %v8502 = vshll.u32 %v8154, 16
  %v8504 = vrot.slane %v8502, 1
  %v8505 = vsel %vm1891, %v8500, %v8504
  %v8507 = vshrl.u32 %v8059, 16
  %v8509 = vshll.u32 %v8059, 16
  %v8511 = vrot.slane %v8509, 1
  %v8512 = vor.u32 %v8507, %v8511
  %v8514 = vshll.u32 %v8155, 16
  %v8516 = vrot.slane %v8514, 1
  %v8517 = vsel %vm1891, %v8512, %v8516
  %v8519 = vshrl.u32 %v8060, 16
  %v8521 = vshll.u32 %v8060, 16
  %v8523 = vrot.slane %v8521, 1
  %v8524 = vor.u32 %v8519, %v8523
  %v8526 = vshll.u32 %v8156, 16
  %v8528 = vrot.slane %v8526, 1
  %v8529 = vsel %vm1891, %v8524, %v8528
  %v8531 = vshrl.u32 %v8061, 16
  %v8533 = vshll.u32 %v8061, 16
  %v8535 = vrot.slane %v8533, 1
  %v8536 = vor.u32 %v8531, %v8535
  %v8538 = vshll.u32 %v8157, 16
  %v8540 = vrot.slane %v8538, 1
  %v8541 = vsel %vm1891, %v8536, %v8540
  %8542 = vrot.lane.b32.xlu0 %v8169, 8
  %v8543 = vpop.permute.xlu0 %8542
  %8544 = vrot.lane.b32.xlu0 %v8181, 8
  %v8545 = vpop.permute.xlu0 %8544
  %8546 = vrot.lane.b32.xlu0 %v8193, 8
  %v8547 = vpop.permute.xlu0 %8546
  %8548 = vrot.lane.b32.xlu0 %v8205, 8
  %v8549 = vpop.permute.xlu0 %8548
  %8550 = vrot.lane.b32.xlu0 %v8217, 8
  %v8551 = vpop.permute.xlu0 %8550
  %8552 = vrot.lane.b32.xlu0 %v8229, 8
  %v8553 = vpop.permute.xlu0 %8552
  %8554 = vrot.lane.b32.xlu0 %v8241, 8
  %v8555 = vpop.permute.xlu0 %8554
  %8556 = vrot.lane.b32.xlu0 %v8253, 8
  %v8557 = vpop.permute.xlu0 %8556
  %8558 = vrot.lane.b32.xlu0 %v8265, 8
  %v8559 = vpop.permute.xlu0 %8558
  %8560 = vrot.lane.b32.xlu0 %v8277, 8
  %v8561 = vpop.permute.xlu0 %8560
  %8562 = vrot.lane.b32.xlu0 %v8289, 8
  %v8563 = vpop.permute.xlu0 %8562
  %8564 = vrot.lane.b32.xlu0 %v8301, 8
  %v8565 = vpop.permute.xlu0 %8564
  %8566 = vrot.lane.b32.xlu0 %v8313, 8
  %v8567 = vpop.permute.xlu0 %8566
  %8568 = vrot.lane.b32.xlu0 %v8325, 8
  %v8569 = vpop.permute.xlu0 %8568
  %8570 = vrot.lane.b32.xlu0 %v8337, 8
  %v8571 = vpop.permute.xlu0 %8570
  %8572 = vrot.lane.b32.xlu0 %v8349, 8
  %v8573 = vpop.permute.xlu0 %8572
  %8574 = vrot.lane.b32.xlu0 %v8361, 8
  %v8575 = vpop.permute.xlu0 %8574
  %8576 = vrot.lane.b32.xlu0 %v8373, 8
  %v8577 = vpop.permute.xlu0 %8576
  %8578 = vrot.lane.b32.xlu0 %v8385, 8
  %v8579 = vpop.permute.xlu0 %8578
  %8580 = vrot.lane.b32.xlu0 %v8397, 8
  %v8581 = vpop.permute.xlu0 %8580
  %8582 = vrot.lane.b32.xlu0 %v8409, 8
  %v8583 = vpop.permute.xlu0 %8582
  %8584 = vrot.lane.b32.xlu0 %v8421, 8
  %v8585 = vpop.permute.xlu0 %8584
  %8586 = vrot.lane.b32.xlu0 %v8433, 8
  %v8587 = vpop.permute.xlu0 %8586
  %8588 = vrot.lane.b32.xlu0 %v8445, 8
  %v8589 = vpop.permute.xlu0 %8588
  %8590 = vrot.lane.b32.xlu0 %v8457, 8
  %v8591 = vpop.permute.xlu0 %8590
  %8592 = vrot.lane.b32.xlu0 %v8469, 8
  %v8593 = vpop.permute.xlu0 %8592
  %8594 = vrot.lane.b32.xlu0 %v8481, 8
  %v8595 = vpop.permute.xlu0 %8594
  %8596 = vrot.lane.b32.xlu0 %v8493, 8
  %v8597 = vpop.permute.xlu0 %8596
  %8598 = vrot.lane.b32.xlu0 %v8505, 8
  %v8599 = vpop.permute.xlu0 %8598
  %8600 = vrot.lane.b32.xlu0 %v8517, 8
  %v8601 = vpop.permute.xlu0 %8600
  %8602 = vrot.lane.b32.xlu0 %v8529, 8
  %v8603 = vpop.permute.xlu0 %8602
  %8604 = vrot.lane.b32.xlu0 %v8541, 8
  %v8605 = vpop.permute.xlu0 %8604
  %v8638 = vunpack.c.l.b16 %v7614
  %v8639 = vunpack.c.l.b16 %v7615
  %v8640 = vunpack.c.l.b16 %v7616
  %v8641 = vunpack.c.l.b16 %v7617
  %v8642 = vunpack.c.l.b16 %v7618
  %v8643 = vunpack.c.l.b16 %v7619
  %v8644 = vunpack.c.l.b16 %v7620
  %v8645 = vunpack.c.l.b16 %v7621
  %v8646 = vunpack.c.l.b16 %v7622
  %v8647 = vunpack.c.l.b16 %v7623
  %v8648 = vunpack.c.l.b16 %v7624
  %v8649 = vunpack.c.l.b16 %v7625
  %v8650 = vunpack.c.l.b16 %v7626
  %v8651 = vunpack.c.l.b16 %v7627
  %v8652 = vunpack.c.l.b16 %v7628
  %v8653 = vunpack.c.l.b16 %v7629
  %v8654 = vunpack.c.l.b16 %v7630
  %v8655 = vunpack.c.l.b16 %v7631
  %v8656 = vunpack.c.l.b16 %v7632
  %v8657 = vunpack.c.l.b16 %v7633
  %v8658 = vunpack.c.l.b16 %v7634
  %v8659 = vunpack.c.l.b16 %v7635
  %v8660 = vunpack.c.l.b16 %v7636
  %v8661 = vunpack.c.l.b16 %v7637
  %v8662 = vunpack.c.l.b16 %v7638
  %v8663 = vunpack.c.l.b16 %v7639
  %v8664 = vunpack.c.l.b16 %v7640
  %v8665 = vunpack.c.l.b16 %v7641
  %v8666 = vunpack.c.l.b16 %v7642
  %v8667 = vunpack.c.l.b16 %v7643
  %v8668 = vunpack.c.l.b16 %v7644
  %v8669 = vunpack.c.l.b16 %v7645
  %v8670 = vpack.c.b16 %v7967, %v8638
  %v8671 = vpack.c.b16 %v7969, %v8639
  %v8672 = vpack.c.b16 %v7971, %v8640
  %v8673 = vpack.c.b16 %v7973, %v8641
  %v8674 = vpack.c.b16 %v7975, %v8642
  %v8675 = vpack.c.b16 %v7977, %v8643
  %v8676 = vpack.c.b16 %v7979, %v8644
  %v8677 = vpack.c.b16 %v7981, %v8645
  %v8678 = vpack.c.b16 %v7983, %v8646
  %v8679 = vpack.c.b16 %v7985, %v8647
  %v8680 = vpack.c.b16 %v7987, %v8648
  %v8681 = vpack.c.b16 %v7989, %v8649
  %v8682 = vpack.c.b16 %v7991, %v8650
  %v8683 = vpack.c.b16 %v7993, %v8651
  %v8684 = vpack.c.b16 %v7995, %v8652
  %v8685 = vpack.c.b16 %v7997, %v8653
  %v8686 = vpack.c.b16 %v7999, %v8654
  %v8687 = vpack.c.b16 %v8001, %v8655
  %v8688 = vpack.c.b16 %v8003, %v8656
  %v8689 = vpack.c.b16 %v8005, %v8657
  %v8690 = vpack.c.b16 %v8007, %v8658
  %v8691 = vpack.c.b16 %v8009, %v8659
  %v8692 = vpack.c.b16 %v8011, %v8660
  %v8693 = vpack.c.b16 %v8013, %v8661
  %v8694 = vpack.c.b16 %v8015, %v8662
  %v8695 = vpack.c.b16 %v8017, %v8663
  %v8696 = vpack.c.b16 %v8019, %v8664
  %v8697 = vpack.c.b16 %v8021, %v8665
  %v8698 = vpack.c.b16 %v8023, %v8666
  %v8699 = vpack.c.b16 %v8025, %v8667
  %v8700 = vpack.c.b16 %v8027, %v8668
  %v8701 = vpack.c.b16 %v8029, %v8669
  %v8702 = vrot.slane %v8670, 1
  %v8703 = vrot.slane %v8126, 1
  %v8704 = vsel %vm2436, %v8702, %v8703
  %v8705 = vrot.slane %v8671, 1
  %v8706 = vrot.slane %v8127, 1
  %v8707 = vsel %vm2436, %v8705, %v8706
  %v8708 = vrot.slane %v8672, 1
  %v8709 = vrot.slane %v8128, 1
  %v8710 = vsel %vm2436, %v8708, %v8709
  %v8711 = vrot.slane %v8673, 1
  %v8712 = vrot.slane %v8129, 1
  %v8713 = vsel %vm2436, %v8711, %v8712
  %v8714 = vrot.slane %v8674, 1
  %v8715 = vrot.slane %v8130, 1
  %v8716 = vsel %vm2436, %v8714, %v8715
  %v8717 = vrot.slane %v8675, 1
  %v8718 = vrot.slane %v8131, 1
  %v8719 = vsel %vm2436, %v8717, %v8718
  %v8720 = vrot.slane %v8676, 1
  %v8721 = vrot.slane %v8132, 1
  %v8722 = vsel %vm2436, %v8720, %v8721
  %v8723 = vrot.slane %v8677, 1
  %v8724 = vrot.slane %v8133, 1
  %v8725 = vsel %vm2436, %v8723, %v8724
  %v8726 = vrot.slane %v8678, 1
  %v8727 = vrot.slane %v8134, 1
  %v8728 = vsel %vm2436, %v8726, %v8727
  %v8729 = vrot.slane %v8679, 1
  %v8730 = vrot.slane %v8135, 1
  %v8731 = vsel %vm2436, %v8729, %v8730
  %v8732 = vrot.slane %v8680, 1
  %v8733 = vrot.slane %v8136, 1
  %v8734 = vsel %vm2436, %v8732, %v8733
  %v8735 = vrot.slane %v8681, 1
  %v8736 = vrot.slane %v8137, 1
  %v8737 = vsel %vm2436, %v8735, %v8736
  %v8738 = vrot.slane %v8682, 1
  %v8739 = vrot.slane %v8138, 1
  %v8740 = vsel %vm2436, %v8738, %v8739
  %v8741 = vrot.slane %v8683, 1
  %v8742 = vrot.slane %v8139, 1
  %v8743 = vsel %vm2436, %v8741, %v8742
  %v8744 = vrot.slane %v8684, 1
  %v8745 = vrot.slane %v8140, 1
  %v8746 = vsel %vm2436, %v8744, %v8745
  %v8747 = vrot.slane %v8685, 1
  %v8748 = vrot.slane %v8141, 1
  %v8749 = vsel %vm2436, %v8747, %v8748
  %v8750 = vrot.slane %v8686, 1
  %v8751 = vrot.slane %v8142, 1
  %v8752 = vsel %vm2436, %v8750, %v8751
  %v8753 = vrot.slane %v8687, 1
  %v8754 = vrot.slane %v8143, 1
  %v8755 = vsel %vm2436, %v8753, %v8754
  %v8756 = vrot.slane %v8688, 1
  %v8757 = vrot.slane %v8144, 1
  %v8758 = vsel %vm2436, %v8756, %v8757
  %v8759 = vrot.slane %v8689, 1
  %v8760 = vrot.slane %v8145, 1
  %v8761 = vsel %vm2436, %v8759, %v8760
  %v8762 = vrot.slane %v8690, 1
  %v8763 = vrot.slane %v8146, 1
  %v8764 = vsel %vm2436, %v8762, %v8763
  %v8765 = vrot.slane %v8691, 1
  %v8766 = vrot.slane %v8147, 1
  %v8767 = vsel %vm2436, %v8765, %v8766
  %v8768 = vrot.slane %v8692, 1
  %v8769 = vrot.slane %v8148, 1
  %v8770 = vsel %vm2436, %v8768, %v8769
  %v8771 = vrot.slane %v8693, 1
  %v8772 = vrot.slane %v8149, 1
  %v8773 = vsel %vm2436, %v8771, %v8772
  %v8774 = vrot.slane %v8694, 1
  %v8775 = vrot.slane %v8150, 1
  %v8776 = vsel %vm2436, %v8774, %v8775
  %v8777 = vrot.slane %v8695, 1
  %v8778 = vrot.slane %v8151, 1
  %v8779 = vsel %vm2436, %v8777, %v8778
  %v8780 = vrot.slane %v8696, 1
  %v8781 = vrot.slane %v8152, 1
  %v8782 = vsel %vm2436, %v8780, %v8781
  %v8783 = vrot.slane %v8697, 1
  %v8784 = vrot.slane %v8153, 1
  %v8785 = vsel %vm2436, %v8783, %v8784
  %v8786 = vrot.slane %v8698, 1
  %v8787 = vrot.slane %v8154, 1
  %v8788 = vsel %vm2436, %v8786, %v8787
  %v8789 = vrot.slane %v8699, 1
  %v8790 = vrot.slane %v8155, 1
  %v8791 = vsel %vm2436, %v8789, %v8790
  %v8792 = vrot.slane %v8700, 1
  %v8793 = vrot.slane %v8156, 1
  %v8794 = vsel %vm2436, %v8792, %v8793
  %v8795 = vrot.slane %v8701, 1
  %v8796 = vrot.slane %v8157, 1
  %v8797 = vsel %vm2436, %v8795, %v8796
  %8798 = vrot.lane.b32.xlu0 %v8704, 16
  %v8799 = vpop.permute.xlu0 %8798
  %8800 = vrot.lane.b32.xlu0 %v8707, 16
  %v8801 = vpop.permute.xlu0 %8800
  %8802 = vrot.lane.b32.xlu0 %v8710, 16
  %v8803 = vpop.permute.xlu0 %8802
  %8804 = vrot.lane.b32.xlu0 %v8713, 16
  %v8805 = vpop.permute.xlu0 %8804
  %8806 = vrot.lane.b32.xlu0 %v8716, 16
  %v8807 = vpop.permute.xlu0 %8806
  %8808 = vrot.lane.b32.xlu0 %v8719, 16
  %v8809 = vpop.permute.xlu0 %8808
  %8810 = vrot.lane.b32.xlu0 %v8722, 16
  %v8811 = vpop.permute.xlu0 %8810
  %8812 = vrot.lane.b32.xlu0 %v8725, 16
  %v8813 = vpop.permute.xlu0 %8812
  %8814 = vrot.lane.b32.xlu0 %v8728, 16
  %v8815 = vpop.permute.xlu0 %8814
  %8816 = vrot.lane.b32.xlu0 %v8731, 16
  %v8817 = vpop.permute.xlu0 %8816
  %8818 = vrot.lane.b32.xlu0 %v8734, 16
  %v8819 = vpop.permute.xlu0 %8818
  %8820 = vrot.lane.b32.xlu0 %v8737, 16
  %v8821 = vpop.permute.xlu0 %8820
  %8822 = vrot.lane.b32.xlu0 %v8740, 16
  %v8823 = vpop.permute.xlu0 %8822
  %8824 = vrot.lane.b32.xlu0 %v8743, 16
  %v8825 = vpop.permute.xlu0 %8824
  %8826 = vrot.lane.b32.xlu0 %v8746, 16
  %v8827 = vpop.permute.xlu0 %8826
  %8828 = vrot.lane.b32.xlu0 %v8749, 16
  %v8829 = vpop.permute.xlu0 %8828
  %8830 = vrot.lane.b32.xlu0 %v8752, 16
  %v8831 = vpop.permute.xlu0 %8830
  %8832 = vrot.lane.b32.xlu0 %v8755, 16
  %v8833 = vpop.permute.xlu0 %8832
  %8834 = vrot.lane.b32.xlu0 %v8758, 16
  %v8835 = vpop.permute.xlu0 %8834
  %8836 = vrot.lane.b32.xlu0 %v8761, 16
  %v8837 = vpop.permute.xlu0 %8836
  %8838 = vrot.lane.b32.xlu0 %v8764, 16
  %v8839 = vpop.permute.xlu0 %8838
  %8840 = vrot.lane.b32.xlu0 %v8767, 16
  %v8841 = vpop.permute.xlu0 %8840
  %8842 = vrot.lane.b32.xlu0 %v8770, 16
  %v8843 = vpop.permute.xlu0 %8842
  %8844 = vrot.lane.b32.xlu0 %v8773, 16
  %v8845 = vpop.permute.xlu0 %8844
  %8846 = vrot.lane.b32.xlu0 %v8776, 16
  %v8847 = vpop.permute.xlu0 %8846
  %8848 = vrot.lane.b32.xlu0 %v8779, 16
  %v8849 = vpop.permute.xlu0 %8848
  %8850 = vrot.lane.b32.xlu0 %v8782, 16
  %v8851 = vpop.permute.xlu0 %8850
  %8852 = vrot.lane.b32.xlu0 %v8785, 16
  %v8853 = vpop.permute.xlu0 %8852
  %8854 = vrot.lane.b32.xlu0 %v8788, 16
  %v8855 = vpop.permute.xlu0 %8854
  %8856 = vrot.lane.b32.xlu0 %v8791, 16
  %v8857 = vpop.permute.xlu0 %8856
  %8858 = vrot.lane.b32.xlu0 %v8794, 16
  %v8859 = vpop.permute.xlu0 %8858
  %8860 = vrot.lane.b32.xlu0 %v8797, 16
  %v8861 = vpop.permute.xlu0 %8860
  %v8926 = vunpack.c.l.b16 %v7646
  %v8927 = vunpack.c.l.b16 %v7647
  %v8928 = vunpack.c.l.b16 %v7648
  %v8929 = vunpack.c.l.b16 %v7649
  %v8930 = vunpack.c.l.b16 %v7650
  %v8931 = vunpack.c.l.b16 %v7651
  %v8932 = vunpack.c.l.b16 %v7652
  %v8933 = vunpack.c.l.b16 %v7653
  %v8934 = vunpack.c.l.b16 %v7654
  %v8935 = vunpack.c.l.b16 %v7655
  %v8936 = vunpack.c.l.b16 %v7656
  %v8937 = vunpack.c.l.b16 %v7657
  %v8938 = vunpack.c.l.b16 %v7658
  %v8939 = vunpack.c.l.b16 %v7659
  %v8940 = vunpack.c.l.b16 %v7660
  %v8941 = vunpack.c.l.b16 %v7661
  %v8942 = vunpack.c.l.b16 %v7662
  %v8943 = vunpack.c.l.b16 %v7663
  %v8944 = vunpack.c.l.b16 %v7664
  %v8945 = vunpack.c.l.b16 %v7665
  %v8946 = vunpack.c.l.b16 %v7666
  %v8947 = vunpack.c.l.b16 %v7667
  %v8948 = vunpack.c.l.b16 %v7668
  %v8949 = vunpack.c.l.b16 %v7669
  %v8950 = vunpack.c.l.b16 %v7670
  %v8951 = vunpack.c.l.b16 %v7671
  %v8952 = vunpack.c.l.b16 %v7672
  %v8953 = vunpack.c.l.b16 %v7673
  %v8954 = vunpack.c.l.b16 %v7674
  %v8955 = vunpack.c.l.b16 %v7675
  %v8956 = vunpack.c.l.b16 %v7676
  %v8957 = vunpack.c.l.b16 %v7677
  %v8958 = vunpack.c.l.b16 %v7678
  %v8959 = vunpack.c.l.b16 %v7679
  %v8960 = vunpack.c.l.b16 %v7680
  %v8961 = vunpack.c.l.b16 %v7681
  %v8962 = vunpack.c.l.b16 %v7682
  %v8963 = vunpack.c.l.b16 %v7683
  %v8964 = vunpack.c.l.b16 %v7684
  %v8965 = vunpack.c.l.b16 %v7685
  %v8966 = vunpack.c.l.b16 %v7686
  %v8967 = vunpack.c.l.b16 %v7687
  %v8968 = vunpack.c.l.b16 %v7688
  %v8969 = vunpack.c.l.b16 %v7689
  %v8970 = vunpack.c.l.b16 %v7690
  %v8971 = vunpack.c.l.b16 %v7691
  %v8972 = vunpack.c.l.b16 %v7692
  %v8973 = vunpack.c.l.b16 %v7693
  %v8974 = vunpack.c.l.b16 %v7694
  %v8975 = vunpack.c.l.b16 %v7695
  %v8976 = vunpack.c.l.b16 %v7696
  %v8977 = vunpack.c.l.b16 %v7697
  %v8978 = vunpack.c.l.b16 %v7698
  %v8979 = vunpack.c.l.b16 %v7699
  %v8980 = vunpack.c.l.b16 %v7700
  %v8981 = vunpack.c.l.b16 %v7701
  %v8982 = vunpack.c.l.b16 %v7702
  %v8983 = vunpack.c.l.b16 %v7703
  %v8984 = vunpack.c.l.b16 %v7704
  %v8985 = vunpack.c.l.b16 %v7705
  %v8986 = vunpack.c.l.b16 %v7706
  %v8987 = vunpack.c.l.b16 %v7707
  %v8988 = vunpack.c.l.b16 %v7708
  %v8989 = vunpack.c.l.b16 %v7709
  %v8990 = vpack.c.b16 %v8927, %v8926
  %v8991 = vpack.c.b16 %v8929, %v8928
  %v8992 = vpack.c.b16 %v8931, %v8930
  %v8993 = vpack.c.b16 %v8933, %v8932
  %v8994 = vpack.c.b16 %v8935, %v8934
  %v8995 = vpack.c.b16 %v8937, %v8936
  %v8996 = vpack.c.b16 %v8939, %v8938
  %v8997 = vpack.c.b16 %v8941, %v8940
  %v8998 = vpack.c.b16 %v8943, %v8942
  %v8999 = vpack.c.b16 %v8945, %v8944
  %v9000 = vpack.c.b16 %v8947, %v8946
  %v9001 = vpack.c.b16 %v8949, %v8948
  %v9002 = vpack.c.b16 %v8951, %v8950
  %v9003 = vpack.c.b16 %v8953, %v8952
  %v9004 = vpack.c.b16 %v8955, %v8954
  %v9005 = vpack.c.b16 %v8957, %v8956
  %v9006 = vpack.c.b16 %v8959, %v8958
  %v9007 = vpack.c.b16 %v8961, %v8960
  %v9008 = vpack.c.b16 %v8963, %v8962
  %v9009 = vpack.c.b16 %v8965, %v8964
  %v9010 = vpack.c.b16 %v8967, %v8966
  %v9011 = vpack.c.b16 %v8969, %v8968
  %v9012 = vpack.c.b16 %v8971, %v8970
  %v9013 = vpack.c.b16 %v8973, %v8972
  %v9014 = vpack.c.b16 %v8975, %v8974
  %v9015 = vpack.c.b16 %v8977, %v8976
  %v9016 = vpack.c.b16 %v8979, %v8978
  %v9017 = vpack.c.b16 %v8981, %v8980
  %v9018 = vpack.c.b16 %v8983, %v8982
  %v9019 = vpack.c.b16 %v8985, %v8984
  %v9020 = vpack.c.b16 %v8987, %v8986
  %v9021 = vpack.c.b16 %v8989, %v8988
  %9022 = vrot.lane.b32.xlu0 %v8990, 24
  %v9023 = vpop.permute.xlu0 %9022
  %9024 = vrot.lane.b32.xlu0 %v8991, 24
  %v9025 = vpop.permute.xlu0 %9024
  %9026 = vrot.lane.b32.xlu0 %v8992, 24
  %v9027 = vpop.permute.xlu0 %9026
  %9028 = vrot.lane.b32.xlu0 %v8993, 24
  %v9029 = vpop.permute.xlu0 %9028
  %9030 = vrot.lane.b32.xlu0 %v8994, 24
  %v9031 = vpop.permute.xlu0 %9030
  %9032 = vrot.lane.b32.xlu0 %v8995, 24
  %v9033 = vpop.permute.xlu0 %9032
  %9034 = vrot.lane.b32.xlu0 %v8996, 24
  %v9035 = vpop.permute.xlu0 %9034
  %9036 = vrot.lane.b32.xlu0 %v8997, 24
  %v9037 = vpop.permute.xlu0 %9036
  %9038 = vrot.lane.b32.xlu0 %v8998, 24
  %v9039 = vpop.permute.xlu0 %9038
  %9040 = vrot.lane.b32.xlu0 %v8999, 24
  %v9041 = vpop.permute.xlu0 %9040
  %9042 = vrot.lane.b32.xlu0 %v9000, 24
  %v9043 = vpop.permute.xlu0 %9042
  %9044 = vrot.lane.b32.xlu0 %v9001, 24
  %v9045 = vpop.permute.xlu0 %9044
  %9046 = vrot.lane.b32.xlu0 %v9002, 24
  %v9047 = vpop.permute.xlu0 %9046
  %9048 = vrot.lane.b32.xlu0 %v9003, 24
  %v9049 = vpop.permute.xlu0 %9048
  %9050 = vrot.lane.b32.xlu0 %v9004, 24
  %v9051 = vpop.permute.xlu0 %9050
  %9052 = vrot.lane.b32.xlu0 %v9005, 24
  %v9053 = vpop.permute.xlu0 %9052
  %9054 = vrot.lane.b32.xlu0 %v9006, 24
  %v9055 = vpop.permute.xlu0 %9054
  %9056 = vrot.lane.b32.xlu0 %v9007, 24
  %v9057 = vpop.permute.xlu0 %9056
  %9058 = vrot.lane.b32.xlu0 %v9008, 24
  %v9059 = vpop.permute.xlu0 %9058
  %9060 = vrot.lane.b32.xlu0 %v9009, 24
  %v9061 = vpop.permute.xlu0 %9060
  %9062 = vrot.lane.b32.xlu0 %v9010, 24
  %v9063 = vpop.permute.xlu0 %9062
  %9064 = vrot.lane.b32.xlu0 %v9011, 24
  %v9065 = vpop.permute.xlu0 %9064
  %9066 = vrot.lane.b32.xlu0 %v9012, 24
  %v9067 = vpop.permute.xlu0 %9066
  %9068 = vrot.lane.b32.xlu0 %v9013, 24
  %v9069 = vpop.permute.xlu0 %9068
  %9070 = vrot.lane.b32.xlu0 %v9014, 24
  %v9071 = vpop.permute.xlu0 %9070
  %9072 = vrot.lane.b32.xlu0 %v9015, 24
  %v9073 = vpop.permute.xlu0 %9072
  %9074 = vrot.lane.b32.xlu0 %v9016, 24
  %v9075 = vpop.permute.xlu0 %9074
  %9076 = vrot.lane.b32.xlu0 %v9017, 24
  %v9077 = vpop.permute.xlu0 %9076
  %9078 = vrot.lane.b32.xlu0 %v9018, 24
  %v9079 = vpop.permute.xlu0 %9078
  %9080 = vrot.lane.b32.xlu0 %v9019, 24
  %v9081 = vpop.permute.xlu0 %9080
  %9082 = vrot.lane.b32.xlu0 %v9020, 24
  %v9083 = vpop.permute.xlu0 %9082
  %9084 = vrot.lane.b32.xlu0 %v9021, 24
  %v9085 = vpop.permute.xlu0 %9084
  %v9118 = vunpack.c.l.b16 %v7710
  %v9119 = vunpack.c.l.b16 %v7711
  %v9120 = vunpack.c.l.b16 %v7712
  %v9121 = vunpack.c.l.b16 %v7713
  %v9122 = vunpack.c.l.b16 %v7714
  %v9123 = vunpack.c.l.b16 %v7715
  %v9124 = vunpack.c.l.b16 %v7716
  %v9125 = vunpack.c.l.b16 %v7717
  %v9126 = vunpack.c.l.b16 %v7718
  %v9127 = vunpack.c.l.b16 %v7719
  %v9128 = vunpack.c.l.b16 %v7720
  %v9129 = vunpack.c.l.b16 %v7721
  %v9130 = vunpack.c.l.b16 %v7722
  %v9131 = vunpack.c.l.b16 %v7723
  %v9132 = vunpack.c.l.b16 %v7724
  %v9133 = vunpack.c.l.b16 %v7725
  %v9134 = vunpack.c.l.b16 %v7726
  %v9135 = vunpack.c.l.b16 %v7727
  %v9136 = vunpack.c.l.b16 %v7728
  %v9137 = vunpack.c.l.b16 %v7729
  %v9138 = vunpack.c.l.b16 %v7730
  %v9139 = vunpack.c.l.b16 %v7731
  %v9140 = vunpack.c.l.b16 %v7732
  %v9141 = vunpack.c.l.b16 %v7733
  %v9142 = vunpack.c.l.b16 %v7734
  %v9143 = vunpack.c.l.b16 %v7735
  %v9144 = vunpack.c.l.b16 %v7736
  %v9145 = vunpack.c.l.b16 %v7737
  %v9146 = vunpack.c.l.b16 %v7738
  %v9147 = vunpack.c.l.b16 %v7739
  %v9148 = vunpack.c.l.b16 %v7740
  %v9149 = vunpack.c.l.b16 %v7741
  %v9150 = vpack.c.b16 %v9118, %v9118
  %v9151 = vpack.c.b16 %v9119, %v9119
  %v9152 = vpack.c.b16 %v9120, %v9120
  %v9153 = vpack.c.b16 %v9121, %v9121
  %v9154 = vpack.c.b16 %v9122, %v9122
  %v9155 = vpack.c.b16 %v9123, %v9123
  %v9156 = vpack.c.b16 %v9124, %v9124
  %v9157 = vpack.c.b16 %v9125, %v9125
  %v9158 = vpack.c.b16 %v9126, %v9126
  %v9159 = vpack.c.b16 %v9127, %v9127
  %v9160 = vpack.c.b16 %v9128, %v9128
  %v9161 = vpack.c.b16 %v9129, %v9129
  %v9162 = vpack.c.b16 %v9130, %v9130
  %v9163 = vpack.c.b16 %v9131, %v9131
  %v9164 = vpack.c.b16 %v9132, %v9132
  %v9165 = vpack.c.b16 %v9133, %v9133
  %v9166 = vpack.c.b16 %v9134, %v9134
  %v9167 = vpack.c.b16 %v9135, %v9135
  %v9168 = vpack.c.b16 %v9136, %v9136
  %v9169 = vpack.c.b16 %v9137, %v9137
  %v9170 = vpack.c.b16 %v9138, %v9138
  %v9171 = vpack.c.b16 %v9139, %v9139
  %v9172 = vpack.c.b16 %v9140, %v9140
  %v9173 = vpack.c.b16 %v9141, %v9141
  %v9174 = vpack.c.b16 %v9142, %v9142
  %v9175 = vpack.c.b16 %v9143, %v9143
  %v9176 = vpack.c.b16 %v9144, %v9144
  %v9177 = vpack.c.b16 %v9145, %v9145
  %v9178 = vpack.c.b16 %v9146, %v9146
  %v9179 = vpack.c.b16 %v9147, %v9147
  %v9180 = vpack.c.b16 %v9148, %v9148
  %v9181 = vpack.c.b16 %v9149, %v9149
  %v9183 = vshrl.u32 %v8990, 16
  %v9185 = vshll.u32 %v8990, 16
  %v9187 = vrot.slane %v9185, 1
  %v9188 = vor.u32 %v9183, %v9187
  %v9190 = vshll.u32 %v9150, 16
  %v9192 = vrot.slane %v9190, 1
  %v9193 = vsel %vm1891, %v9188, %v9192
  %v9195 = vshrl.u32 %v8991, 16
  %v9197 = vshll.u32 %v8991, 16
  %v9199 = vrot.slane %v9197, 1
  %v9200 = vor.u32 %v9195, %v9199
  %v9202 = vshll.u32 %v9151, 16
  %v9204 = vrot.slane %v9202, 1
  %v9205 = vsel %vm1891, %v9200, %v9204
  %v9207 = vshrl.u32 %v8992, 16
  %v9209 = vshll.u32 %v8992, 16
  %v9211 = vrot.slane %v9209, 1
  %v9212 = vor.u32 %v9207, %v9211
  %v9214 = vshll.u32 %v9152, 16
  %v9216 = vrot.slane %v9214, 1
  %v9217 = vsel %vm1891, %v9212, %v9216
  %v9219 = vshrl.u32 %v8993, 16
  %v9221 = vshll.u32 %v8993, 16
  %v9223 = vrot.slane %v9221, 1
  %v9224 = vor.u32 %v9219, %v9223
  %v9226 = vshll.u32 %v9153, 16
  %v9228 = vrot.slane %v9226, 1
  %v9229 = vsel %vm1891, %v9224, %v9228
  %v9231 = vshrl.u32 %v8994, 16
  %v9233 = vshll.u32 %v8994, 16
  %v9235 = vrot.slane %v9233, 1
  %v9236 = vor.u32 %v9231, %v9235
  %v9238 = vshll.u32 %v9154, 16
  %v9240 = vrot.slane %v9238, 1
  %v9241 = vsel %vm1891, %v9236, %v9240
  %v9243 = vshrl.u32 %v8995, 16
  %v9245 = vshll.u32 %v8995, 16
  %v9247 = vrot.slane %v9245, 1
  %v9248 = vor.u32 %v9243, %v9247
  %v9250 = vshll.u32 %v9155, 16
  %v9252 = vrot.slane %v9250, 1
  %v9253 = vsel %vm1891, %v9248, %v9252
  %v9255 = vshrl.u32 %v8996, 16
  %v9257 = vshll.u32 %v8996, 16
  %v9259 = vrot.slane %v9257, 1
  %v9260 = vor.u32 %v9255, %v9259
  %v9262 = vshll.u32 %v9156, 16
  %v9264 = vrot.slane %v9262, 1
  %v9265 = vsel %vm1891, %v9260, %v9264
  %v9267 = vshrl.u32 %v8997, 16
  %v9269 = vshll.u32 %v8997, 16
  %v9271 = vrot.slane %v9269, 1
  %v9272 = vor.u32 %v9267, %v9271
  %v9274 = vshll.u32 %v9157, 16
  %v9276 = vrot.slane %v9274, 1
  %v9277 = vsel %vm1891, %v9272, %v9276
  %v9279 = vshrl.u32 %v8998, 16
  %v9281 = vshll.u32 %v8998, 16
  %v9283 = vrot.slane %v9281, 1
  %v9284 = vor.u32 %v9279, %v9283
  %v9286 = vshll.u32 %v9158, 16
  %v9288 = vrot.slane %v9286, 1
  %v9289 = vsel %vm1891, %v9284, %v9288
  %v9291 = vshrl.u32 %v8999, 16
  %v9293 = vshll.u32 %v8999, 16
  %v9295 = vrot.slane %v9293, 1
  %v9296 = vor.u32 %v9291, %v9295
  %v9298 = vshll.u32 %v9159, 16
  %v9300 = vrot.slane %v9298, 1
  %v9301 = vsel %vm1891, %v9296, %v9300
  %v9303 = vshrl.u32 %v9000, 16
  %v9305 = vshll.u32 %v9000, 16
  %v9307 = vrot.slane %v9305, 1
  %v9308 = vor.u32 %v9303, %v9307
  %v9310 = vshll.u32 %v9160, 16
  %v9312 = vrot.slane %v9310, 1
  %v9313 = vsel %vm1891, %v9308, %v9312
  %v9315 = vshrl.u32 %v9001, 16
  %v9317 = vshll.u32 %v9001, 16
  %v9319 = vrot.slane %v9317, 1
  %v9320 = vor.u32 %v9315, %v9319
  %v9322 = vshll.u32 %v9161, 16
  %v9324 = vrot.slane %v9322, 1
  %v9325 = vsel %vm1891, %v9320, %v9324
  %v9327 = vshrl.u32 %v9002, 16
  %v9329 = vshll.u32 %v9002, 16
  %v9331 = vrot.slane %v9329, 1
  %v9332 = vor.u32 %v9327, %v9331
  %v9334 = vshll.u32 %v9162, 16
  %v9336 = vrot.slane %v9334, 1
  %v9337 = vsel %vm1891, %v9332, %v9336
  %v9339 = vshrl.u32 %v9003, 16
  %v9341 = vshll.u32 %v9003, 16
  %v9343 = vrot.slane %v9341, 1
  %v9344 = vor.u32 %v9339, %v9343
  %v9346 = vshll.u32 %v9163, 16
  %v9348 = vrot.slane %v9346, 1
  %v9349 = vsel %vm1891, %v9344, %v9348
  %v9351 = vshrl.u32 %v9004, 16
  %v9353 = vshll.u32 %v9004, 16
  %v9355 = vrot.slane %v9353, 1
  %v9356 = vor.u32 %v9351, %v9355
  %v9358 = vshll.u32 %v9164, 16
  %v9360 = vrot.slane %v9358, 1
  %v9361 = vsel %vm1891, %v9356, %v9360
  %v9363 = vshrl.u32 %v9005, 16
  %v9365 = vshll.u32 %v9005, 16
  %v9367 = vrot.slane %v9365, 1
  %v9368 = vor.u32 %v9363, %v9367
  %v9370 = vshll.u32 %v9165, 16
  %v9372 = vrot.slane %v9370, 1
  %v9373 = vsel %vm1891, %v9368, %v9372
  %v9375 = vshrl.u32 %v9006, 16
  %v9377 = vshll.u32 %v9006, 16
  %v9379 = vrot.slane %v9377, 1
  %v9380 = vor.u32 %v9375, %v9379
  %v9382 = vshll.u32 %v9166, 16
  %v9384 = vrot.slane %v9382, 1
  %v9385 = vsel %vm1891, %v9380, %v9384
  %v9387 = vshrl.u32 %v9007, 16
  %v9389 = vshll.u32 %v9007, 16
  %v9391 = vrot.slane %v9389, 1
  %v9392 = vor.u32 %v9387, %v9391
  %v9394 = vshll.u32 %v9167, 16
  %v9396 = vrot.slane %v9394, 1
  %v9397 = vsel %vm1891, %v9392, %v9396
  %v9399 = vshrl.u32 %v9008, 16
  %v9401 = vshll.u32 %v9008, 16
  %v9403 = vrot.slane %v9401, 1
  %v9404 = vor.u32 %v9399, %v9403
  %v9406 = vshll.u32 %v9168, 16
  %v9408 = vrot.slane %v9406, 1
  %v9409 = vsel %vm1891, %v9404, %v9408
  %v9411 = vshrl.u32 %v9009, 16
  %v9413 = vshll.u32 %v9009, 16
  %v9415 = vrot.slane %v9413, 1
  %v9416 = vor.u32 %v9411, %v9415
  %v9418 = vshll.u32 %v9169, 16
  %v9420 = vrot.slane %v9418, 1
  %v9421 = vsel %vm1891, %v9416, %v9420
  %v9423 = vshrl.u32 %v9010, 16
  %v9425 = vshll.u32 %v9010, 16
  %v9427 = vrot.slane %v9425, 1
  %v9428 = vor.u32 %v9423, %v9427
  %v9430 = vshll.u32 %v9170, 16
  %v9432 = vrot.slane %v9430, 1
  %v9433 = vsel %vm1891, %v9428, %v9432
  %v9435 = vshrl.u32 %v9011, 16
  %v9437 = vshll.u32 %v9011, 16
  %v9439 = vrot.slane %v9437, 1
  %v9440 = vor.u32 %v9435, %v9439
  %v9442 = vshll.u32 %v9171, 16
  %v9444 = vrot.slane %v9442, 1
  %v9445 = vsel %vm1891, %v9440, %v9444
  %v9447 = vshrl.u32 %v9012, 16
  %v9449 = vshll.u32 %v9012, 16
  %v9451 = vrot.slane %v9449, 1
  %v9452 = vor.u32 %v9447, %v9451
  %v9454 = vshll.u32 %v9172, 16
  %v9456 = vrot.slane %v9454, 1
  %v9457 = vsel %vm1891, %v9452, %v9456
  %v9459 = vshrl.u32 %v9013, 16
  %v9461 = vshll.u32 %v9013, 16
  %v9463 = vrot.slane %v9461, 1
  %v9464 = vor.u32 %v9459, %v9463
  %v9466 = vshll.u32 %v9173, 16
  %v9468 = vrot.slane %v9466, 1
  %v9469 = vsel %vm1891, %v9464, %v9468
  %v9471 = vshrl.u32 %v9014, 16
  %v9473 = vshll.u32 %v9014, 16
  %v9475 = vrot.slane %v9473, 1
  %v9476 = vor.u32 %v9471, %v9475
  %v9478 = vshll.u32 %v9174, 16
  %v9480 = vrot.slane %v9478, 1
  %v9481 = vsel %vm1891, %v9476, %v9480
  %v9483 = vshrl.u32 %v9015, 16
  %v9485 = vshll.u32 %v9015, 16
  %v9487 = vrot.slane %v9485, 1
  %v9488 = vor.u32 %v9483, %v9487
  %v9490 = vshll.u32 %v9175, 16
  %v9492 = vrot.slane %v9490, 1
  %v9493 = vsel %vm1891, %v9488, %v9492
  %v9495 = vshrl.u32 %v9016, 16
  %v9497 = vshll.u32 %v9016, 16
  %v9499 = vrot.slane %v9497, 1
  %v9500 = vor.u32 %v9495, %v9499
  %v9502 = vshll.u32 %v9176, 16
  %v9504 = vrot.slane %v9502, 1
  %v9505 = vsel %vm1891, %v9500, %v9504
  %v9507 = vshrl.u32 %v9017, 16
  %v9509 = vshll.u32 %v9017, 16
  %v9511 = vrot.slane %v9509, 1
  %v9512 = vor.u32 %v9507, %v9511
  %v9514 = vshll.u32 %v9177, 16
  %v9516 = vrot.slane %v9514, 1
  %v9517 = vsel %vm1891, %v9512, %v9516
  %v9519 = vshrl.u32 %v9018, 16
  %v9521 = vshll.u32 %v9018, 16
  %v9523 = vrot.slane %v9521, 1
  %v9524 = vor.u32 %v9519, %v9523
  %v9526 = vshll.u32 %v9178, 16
  %v9528 = vrot.slane %v9526, 1
  %v9529 = vsel %vm1891, %v9524, %v9528
  %v9531 = vshrl.u32 %v9019, 16
  %v9533 = vshll.u32 %v9019, 16
  %v9535 = vrot.slane %v9533, 1
  %v9536 = vor.u32 %v9531, %v9535
  %v9538 = vshll.u32 %v9179, 16
  %v9540 = vrot.slane %v9538, 1
  %v9541 = vsel %vm1891, %v9536, %v9540
  %v9543 = vshrl.u32 %v9020, 16
  %v9545 = vshll.u32 %v9020, 16
  %v9547 = vrot.slane %v9545, 1
  %v9548 = vor.u32 %v9543, %v9547
  %v9550 = vshll.u32 %v9180, 16
  %v9552 = vrot.slane %v9550, 1
  %v9553 = vsel %vm1891, %v9548, %v9552
  %v9555 = vshrl.u32 %v9021, 16
  %v9557 = vshll.u32 %v9021, 16
  %v9559 = vrot.slane %v9557, 1
  %v9560 = vor.u32 %v9555, %v9559
  %v9562 = vshll.u32 %v9181, 16
  %v9564 = vrot.slane %v9562, 1
  %v9565 = vsel %vm1891, %v9560, %v9564
  %9566 = vrot.lane.b32.xlu0 %v9193, 32
  %v9567 = vpop.permute.xlu0 %9566
  %9568 = vrot.lane.b32.xlu0 %v9205, 32
  %v9569 = vpop.permute.xlu0 %9568
  %9570 = vrot.lane.b32.xlu0 %v9217, 32
  %v9571 = vpop.permute.xlu0 %9570
  %9572 = vrot.lane.b32.xlu0 %v9229, 32
  %v9573 = vpop.permute.xlu0 %9572
  %9574 = vrot.lane.b32.xlu0 %v9241, 32
  %v9575 = vpop.permute.xlu0 %9574
  %9576 = vrot.lane.b32.xlu0 %v9253, 32
  %v9577 = vpop.permute.xlu0 %9576
  %9578 = vrot.lane.b32.xlu0 %v9265, 32
  %v9579 = vpop.permute.xlu0 %9578
  %9580 = vrot.lane.b32.xlu0 %v9277, 32
  %v9581 = vpop.permute.xlu0 %9580
  %9582 = vrot.lane.b32.xlu0 %v9289, 32
  %v9583 = vpop.permute.xlu0 %9582
  %9584 = vrot.lane.b32.xlu0 %v9301, 32
  %v9585 = vpop.permute.xlu0 %9584
  %9586 = vrot.lane.b32.xlu0 %v9313, 32
  %v9587 = vpop.permute.xlu0 %9586
  %9588 = vrot.lane.b32.xlu0 %v9325, 32
  %v9589 = vpop.permute.xlu0 %9588
  %9590 = vrot.lane.b32.xlu0 %v9337, 32
  %v9591 = vpop.permute.xlu0 %9590
  %9592 = vrot.lane.b32.xlu0 %v9349, 32
  %v9593 = vpop.permute.xlu0 %9592
  %9594 = vrot.lane.b32.xlu0 %v9361, 32
  %v9595 = vpop.permute.xlu0 %9594
  %9596 = vrot.lane.b32.xlu0 %v9373, 32
  %v9597 = vpop.permute.xlu0 %9596
  %9598 = vrot.lane.b32.xlu0 %v9385, 32
  %v9599 = vpop.permute.xlu0 %9598
  %9600 = vrot.lane.b32.xlu0 %v9397, 32
  %v9601 = vpop.permute.xlu0 %9600
  %9602 = vrot.lane.b32.xlu0 %v9409, 32
  %v9603 = vpop.permute.xlu0 %9602
  %9604 = vrot.lane.b32.xlu0 %v9421, 32
  %v9605 = vpop.permute.xlu0 %9604
  %9606 = vrot.lane.b32.xlu0 %v9433, 32
  %v9607 = vpop.permute.xlu0 %9606
  %9608 = vrot.lane.b32.xlu0 %v9445, 32
  %v9609 = vpop.permute.xlu0 %9608
  %9610 = vrot.lane.b32.xlu0 %v9457, 32
  %v9611 = vpop.permute.xlu0 %9610
  %9612 = vrot.lane.b32.xlu0 %v9469, 32
  %v9613 = vpop.permute.xlu0 %9612
  %9614 = vrot.lane.b32.xlu0 %v9481, 32
  %v9615 = vpop.permute.xlu0 %9614
  %9616 = vrot.lane.b32.xlu0 %v9493, 32
  %v9617 = vpop.permute.xlu0 %9616
  %9618 = vrot.lane.b32.xlu0 %v9505, 32
  %v9619 = vpop.permute.xlu0 %9618
  %9620 = vrot.lane.b32.xlu0 %v9517, 32
  %v9621 = vpop.permute.xlu0 %9620
  %9622 = vrot.lane.b32.xlu0 %v9529, 32
  %v9623 = vpop.permute.xlu0 %9622
  %9624 = vrot.lane.b32.xlu0 %v9541, 32
  %v9625 = vpop.permute.xlu0 %9624
  %9626 = vrot.lane.b32.xlu0 %v9553, 32
  %v9627 = vpop.permute.xlu0 %9626
  %9628 = vrot.lane.b32.xlu0 %v9565, 32
  %v9629 = vpop.permute.xlu0 %9628
  %v9662 = vunpack.c.l.b16 %v7742
  %v9663 = vunpack.c.l.b16 %v7743
  %v9664 = vunpack.c.l.b16 %v7744
  %v9665 = vunpack.c.l.b16 %v7745
  %v9666 = vunpack.c.l.b16 %v7746
  %v9667 = vunpack.c.l.b16 %v7747
  %v9668 = vunpack.c.l.b16 %v7748
  %v9669 = vunpack.c.l.b16 %v7749
  %v9670 = vunpack.c.l.b16 %v7750
  %v9671 = vunpack.c.l.b16 %v7751
  %v9672 = vunpack.c.l.b16 %v7752
  %v9673 = vunpack.c.l.b16 %v7753
  %v9674 = vunpack.c.l.b16 %v7754
  %v9675 = vunpack.c.l.b16 %v7755
  %v9676 = vunpack.c.l.b16 %v7756
  %v9677 = vunpack.c.l.b16 %v7757
  %v9678 = vunpack.c.l.b16 %v7758
  %v9679 = vunpack.c.l.b16 %v7759
  %v9680 = vunpack.c.l.b16 %v7760
  %v9681 = vunpack.c.l.b16 %v7761
  %v9682 = vunpack.c.l.b16 %v7762
  %v9683 = vunpack.c.l.b16 %v7763
  %v9684 = vunpack.c.l.b16 %v7764
  %v9685 = vunpack.c.l.b16 %v7765
  %v9686 = vunpack.c.l.b16 %v7766
  %v9687 = vunpack.c.l.b16 %v7767
  %v9688 = vunpack.c.l.b16 %v7768
  %v9689 = vunpack.c.l.b16 %v7769
  %v9690 = vunpack.c.l.b16 %v7770
  %v9691 = vunpack.c.l.b16 %v7771
  %v9692 = vunpack.c.l.b16 %v7772
  %v9693 = vunpack.c.l.b16 %v7773
  %v9694 = vpack.c.b16 %v8927, %v9662
  %v9695 = vpack.c.b16 %v8929, %v9663
  %v9696 = vpack.c.b16 %v8931, %v9664
  %v9697 = vpack.c.b16 %v8933, %v9665
  %v9698 = vpack.c.b16 %v8935, %v9666
  %v9699 = vpack.c.b16 %v8937, %v9667
  %v9700 = vpack.c.b16 %v8939, %v9668
  %v9701 = vpack.c.b16 %v8941, %v9669
  %v9702 = vpack.c.b16 %v8943, %v9670
  %v9703 = vpack.c.b16 %v8945, %v9671
  %v9704 = vpack.c.b16 %v8947, %v9672
  %v9705 = vpack.c.b16 %v8949, %v9673
  %v9706 = vpack.c.b16 %v8951, %v9674
  %v9707 = vpack.c.b16 %v8953, %v9675
  %v9708 = vpack.c.b16 %v8955, %v9676
  %v9709 = vpack.c.b16 %v8957, %v9677
  %v9710 = vpack.c.b16 %v8959, %v9678
  %v9711 = vpack.c.b16 %v8961, %v9679
  %v9712 = vpack.c.b16 %v8963, %v9680
  %v9713 = vpack.c.b16 %v8965, %v9681
  %v9714 = vpack.c.b16 %v8967, %v9682
  %v9715 = vpack.c.b16 %v8969, %v9683
  %v9716 = vpack.c.b16 %v8971, %v9684
  %v9717 = vpack.c.b16 %v8973, %v9685
  %v9718 = vpack.c.b16 %v8975, %v9686
  %v9719 = vpack.c.b16 %v8977, %v9687
  %v9720 = vpack.c.b16 %v8979, %v9688
  %v9721 = vpack.c.b16 %v8981, %v9689
  %v9722 = vpack.c.b16 %v8983, %v9690
  %v9723 = vpack.c.b16 %v8985, %v9691
  %v9724 = vpack.c.b16 %v8987, %v9692
  %v9725 = vpack.c.b16 %v8989, %v9693
  %v9726 = vrot.slane %v9694, 1
  %v9727 = vrot.slane %v9150, 1
  %v9728 = vsel %vm2436, %v9726, %v9727
  %v9729 = vrot.slane %v9695, 1
  %v9730 = vrot.slane %v9151, 1
  %v9731 = vsel %vm2436, %v9729, %v9730
  %v9732 = vrot.slane %v9696, 1
  %v9733 = vrot.slane %v9152, 1
  %v9734 = vsel %vm2436, %v9732, %v9733
  %v9735 = vrot.slane %v9697, 1
  %v9736 = vrot.slane %v9153, 1
  %v9737 = vsel %vm2436, %v9735, %v9736
  %v9738 = vrot.slane %v9698, 1
  %v9739 = vrot.slane %v9154, 1
  %v9740 = vsel %vm2436, %v9738, %v9739
  %v9741 = vrot.slane %v9699, 1
  %v9742 = vrot.slane %v9155, 1
  %v9743 = vsel %vm2436, %v9741, %v9742
  %v9744 = vrot.slane %v9700, 1
  %v9745 = vrot.slane %v9156, 1
  %v9746 = vsel %vm2436, %v9744, %v9745
  %v9747 = vrot.slane %v9701, 1
  %v9748 = vrot.slane %v9157, 1
  %v9749 = vsel %vm2436, %v9747, %v9748
  %v9750 = vrot.slane %v9702, 1
  %v9751 = vrot.slane %v9158, 1
  %v9752 = vsel %vm2436, %v9750, %v9751
  %v9753 = vrot.slane %v9703, 1
  %v9754 = vrot.slane %v9159, 1
  %v9755 = vsel %vm2436, %v9753, %v9754
  %v9756 = vrot.slane %v9704, 1
  %v9757 = vrot.slane %v9160, 1
  %v9758 = vsel %vm2436, %v9756, %v9757
  %v9759 = vrot.slane %v9705, 1
  %v9760 = vrot.slane %v9161, 1
  %v9761 = vsel %vm2436, %v9759, %v9760
  %v9762 = vrot.slane %v9706, 1
  %v9763 = vrot.slane %v9162, 1
  %v9764 = vsel %vm2436, %v9762, %v9763
  %v9765 = vrot.slane %v9707, 1
  %v9766 = vrot.slane %v9163, 1
  %v9767 = vsel %vm2436, %v9765, %v9766
  %v9768 = vrot.slane %v9708, 1
  %v9769 = vrot.slane %v9164, 1
  %v9770 = vsel %vm2436, %v9768, %v9769
  %v9771 = vrot.slane %v9709, 1
  %v9772 = vrot.slane %v9165, 1
  %v9773 = vsel %vm2436, %v9771, %v9772
  %v9774 = vrot.slane %v9710, 1
  %v9775 = vrot.slane %v9166, 1
  %v9776 = vsel %vm2436, %v9774, %v9775
  %v9777 = vrot.slane %v9711, 1
  %v9778 = vrot.slane %v9167, 1
  %v9779 = vsel %vm2436, %v9777, %v9778
  %v9780 = vrot.slane %v9712, 1
  %v9781 = vrot.slane %v9168, 1
  %v9782 = vsel %vm2436, %v9780, %v9781
  %v9783 = vrot.slane %v9713, 1
  %v9784 = vrot.slane %v9169, 1
  %v9785 = vsel %vm2436, %v9783, %v9784
  %v9786 = vrot.slane %v9714, 1
  %v9787 = vrot.slane %v9170, 1
  %v9788 = vsel %vm2436, %v9786, %v9787
  %v9789 = vrot.slane %v9715, 1
  %v9790 = vrot.slane %v9171, 1
  %v9791 = vsel %vm2436, %v9789, %v9790
  %v9792 = vrot.slane %v9716, 1
  %v9793 = vrot.slane %v9172, 1
  %v9794 = vsel %vm2436, %v9792, %v9793
  %v9795 = vrot.slane %v9717, 1
  %v9796 = vrot.slane %v9173, 1
  %v9797 = vsel %vm2436, %v9795, %v9796
  %v9798 = vrot.slane %v9718, 1
  %v9799 = vrot.slane %v9174, 1
  %v9800 = vsel %vm2436, %v9798, %v9799
  %v9801 = vrot.slane %v9719, 1
  %v9802 = vrot.slane %v9175, 1
  %v9803 = vsel %vm2436, %v9801, %v9802
  %v9804 = vrot.slane %v9720, 1
  %v9805 = vrot.slane %v9176, 1
  %v9806 = vsel %vm2436, %v9804, %v9805
  %v9807 = vrot.slane %v9721, 1
  %v9808 = vrot.slane %v9177, 1
  %v9809 = vsel %vm2436, %v9807, %v9808
  %v9810 = vrot.slane %v9722, 1
  %v9811 = vrot.slane %v9178, 1
  %v9812 = vsel %vm2436, %v9810, %v9811
  %v9813 = vrot.slane %v9723, 1
  %v9814 = vrot.slane %v9179, 1
  %v9815 = vsel %vm2436, %v9813, %v9814
  %v9816 = vrot.slane %v9724, 1
  %v9817 = vrot.slane %v9180, 1
  %v9818 = vsel %vm2436, %v9816, %v9817
  %v9819 = vrot.slane %v9725, 1
  %v9820 = vrot.slane %v9181, 1
  %v9821 = vsel %vm2436, %v9819, %v9820
  %9822 = vrot.lane.b32.xlu0 %v9728, 40
  %v9823 = vpop.permute.xlu0 %9822
  %9824 = vrot.lane.b32.xlu0 %v9731, 40
  %v9825 = vpop.permute.xlu0 %9824
  %9826 = vrot.lane.b32.xlu0 %v9734, 40
  %v9827 = vpop.permute.xlu0 %9826
  %9828 = vrot.lane.b32.xlu0 %v9737, 40
  %v9829 = vpop.permute.xlu0 %9828
  %9830 = vrot.lane.b32.xlu0 %v9740, 40
  %v9831 = vpop.permute.xlu0 %9830
  %9832 = vrot.lane.b32.xlu0 %v9743, 40
  %v9833 = vpop.permute.xlu0 %9832
  %9834 = vrot.lane.b32.xlu0 %v9746, 40
  %v9835 = vpop.permute.xlu0 %9834
  %9836 = vrot.lane.b32.xlu0 %v9749, 40
  %v9837 = vpop.permute.xlu0 %9836
  %9838 = vrot.lane.b32.xlu0 %v9752, 40
  %v9839 = vpop.permute.xlu0 %9838
  %9840 = vrot.lane.b32.xlu0 %v9755, 40
  %v9841 = vpop.permute.xlu0 %9840
  %9842 = vrot.lane.b32.xlu0 %v9758, 40
  %v9843 = vpop.permute.xlu0 %9842
  %9844 = vrot.lane.b32.xlu0 %v9761, 40
  %v9845 = vpop.permute.xlu0 %9844
  %9846 = vrot.lane.b32.xlu0 %v9764, 40
  %v9847 = vpop.permute.xlu0 %9846
  %9848 = vrot.lane.b32.xlu0 %v9767, 40
  %v9849 = vpop.permute.xlu0 %9848
  %9850 = vrot.lane.b32.xlu0 %v9770, 40
  %v9851 = vpop.permute.xlu0 %9850
  %9852 = vrot.lane.b32.xlu0 %v9773, 40
  %v9853 = vpop.permute.xlu0 %9852
  %9854 = vrot.lane.b32.xlu0 %v9776, 40
  %v9855 = vpop.permute.xlu0 %9854
  %9856 = vrot.lane.b32.xlu0 %v9779, 40
  %v9857 = vpop.permute.xlu0 %9856
  %9858 = vrot.lane.b32.xlu0 %v9782, 40
  %v9859 = vpop.permute.xlu0 %9858
  %9860 = vrot.lane.b32.xlu0 %v9785, 40
  %v9861 = vpop.permute.xlu0 %9860
  %9862 = vrot.lane.b32.xlu0 %v9788, 40
  %v9863 = vpop.permute.xlu0 %9862
  %9864 = vrot.lane.b32.xlu0 %v9791, 40
  %v9865 = vpop.permute.xlu0 %9864
  %9866 = vrot.lane.b32.xlu0 %v9794, 40
  %v9867 = vpop.permute.xlu0 %9866
  %9868 = vrot.lane.b32.xlu0 %v9797, 40
  %v9869 = vpop.permute.xlu0 %9868
  %9870 = vrot.lane.b32.xlu0 %v9800, 40
  %v9871 = vpop.permute.xlu0 %9870
  %9872 = vrot.lane.b32.xlu0 %v9803, 40
  %v9873 = vpop.permute.xlu0 %9872
  %9874 = vrot.lane.b32.xlu0 %v9806, 40
  %v9875 = vpop.permute.xlu0 %9874
  %9876 = vrot.lane.b32.xlu0 %v9809, 40
  %v9877 = vpop.permute.xlu0 %9876
  %9878 = vrot.lane.b32.xlu0 %v9812, 40
  %v9879 = vpop.permute.xlu0 %9878
  %9880 = vrot.lane.b32.xlu0 %v9815, 40
  %v9881 = vpop.permute.xlu0 %9880
  %9882 = vrot.lane.b32.xlu0 %v9818, 40
  %v9883 = vpop.permute.xlu0 %9882
  %9884 = vrot.lane.b32.xlu0 %v9821, 40
  %v9885 = vpop.permute.xlu0 %9884
  %v9950 = vunpack.c.l.b16 %v7774
  %v9951 = vunpack.c.l.b16 %v7775
  %v9952 = vunpack.c.l.b16 %v7776
  %v9953 = vunpack.c.l.b16 %v7777
  %v9954 = vunpack.c.l.b16 %v7778
  %v9955 = vunpack.c.l.b16 %v7779
  %v9956 = vunpack.c.l.b16 %v7780
  %v9957 = vunpack.c.l.b16 %v7781
  %v9958 = vunpack.c.l.b16 %v7782
  %v9959 = vunpack.c.l.b16 %v7783
  %v9960 = vunpack.c.l.b16 %v7784
  %v9961 = vunpack.c.l.b16 %v7785
  %v9962 = vunpack.c.l.b16 %v7786
  %v9963 = vunpack.c.l.b16 %v7787
  %v9964 = vunpack.c.l.b16 %v7788
  %v9965 = vunpack.c.l.b16 %v7789
  %v9966 = vunpack.c.l.b16 %v7790
  %v9967 = vunpack.c.l.b16 %v7791
  %v9968 = vunpack.c.l.b16 %v7792
  %v9969 = vunpack.c.l.b16 %v7793
  %v9970 = vunpack.c.l.b16 %v7794
  %v9971 = vunpack.c.l.b16 %v7795
  %v9972 = vunpack.c.l.b16 %v7796
  %v9973 = vunpack.c.l.b16 %v7797
  %v9974 = vunpack.c.l.b16 %v7798
  %v9975 = vunpack.c.l.b16 %v7799
  %v9976 = vunpack.c.l.b16 %v7800
  %v9977 = vunpack.c.l.b16 %v7801
  %v9978 = vunpack.c.l.b16 %v7802
  %v9979 = vunpack.c.l.b16 %v7803
  %v9980 = vunpack.c.l.b16 %v7804
  %v9981 = vunpack.c.l.b16 %v7805
  %v9982 = vunpack.c.l.b16 %v7806
  %v9983 = vunpack.c.l.b16 %v7807
  %v9984 = vunpack.c.l.b16 %v7808
  %v9985 = vunpack.c.l.b16 %v7809
  %v9986 = vunpack.c.l.b16 %v7810
  %v9987 = vunpack.c.l.b16 %v7811
  %v9988 = vunpack.c.l.b16 %v7812
  %v9989 = vunpack.c.l.b16 %v7813
  %v9990 = vunpack.c.l.b16 %v7814
  %v9991 = vunpack.c.l.b16 %v7815
  %v9992 = vunpack.c.l.b16 %v7816
  %v9993 = vunpack.c.l.b16 %v7817
  %v9994 = vunpack.c.l.b16 %v7818
  %v9995 = vunpack.c.l.b16 %v7819
  %v9996 = vunpack.c.l.b16 %v7820
  %v9997 = vunpack.c.l.b16 %v7821
  %v9998 = vunpack.c.l.b16 %v7822
  %v9999 = vunpack.c.l.b16 %v7823
  %v10000 = vunpack.c.l.b16 %v7824
  %v10001 = vunpack.c.l.b16 %v7825
  %v10002 = vunpack.c.l.b16 %v7826
  %v10003 = vunpack.c.l.b16 %v7827
  %v10004 = vunpack.c.l.b16 %v7828
  %v10005 = vunpack.c.l.b16 %v7829
  %v10006 = vunpack.c.l.b16 %v7830
  %v10007 = vunpack.c.l.b16 %v7831
  %v10008 = vunpack.c.l.b16 %v7832
  %v10009 = vunpack.c.l.b16 %v7833
  %v10010 = vunpack.c.l.b16 %v7834
  %v10011 = vunpack.c.l.b16 %v7835
  %v10012 = vunpack.c.l.b16 %v7836
  %v10013 = vunpack.c.l.b16 %v7837
  %v10014 = vpack.c.b16 %v9951, %v9950
  %v10015 = vpack.c.b16 %v9953, %v9952
  %v10016 = vpack.c.b16 %v9955, %v9954
  %v10017 = vpack.c.b16 %v9957, %v9956
  %v10018 = vpack.c.b16 %v9959, %v9958
  %v10019 = vpack.c.b16 %v9961, %v9960
  %v10020 = vpack.c.b16 %v9963, %v9962
  %v10021 = vpack.c.b16 %v9965, %v9964
  %v10022 = vpack.c.b16 %v9967, %v9966
  %v10023 = vpack.c.b16 %v9969, %v9968
  %v10024 = vpack.c.b16 %v9971, %v9970
  %v10025 = vpack.c.b16 %v9973, %v9972
  %v10026 = vpack.c.b16 %v9975, %v9974
  %v10027 = vpack.c.b16 %v9977, %v9976
  %v10028 = vpack.c.b16 %v9979, %v9978
  %v10029 = vpack.c.b16 %v9981, %v9980
  %v10030 = vpack.c.b16 %v9983, %v9982
  %v10031 = vpack.c.b16 %v9985, %v9984
  %v10032 = vpack.c.b16 %v9987, %v9986
  %v10033 = vpack.c.b16 %v9989, %v9988
  %v10034 = vpack.c.b16 %v9991, %v9990
  %v10035 = vpack.c.b16 %v9993, %v9992
  %v10036 = vpack.c.b16 %v9995, %v9994
  %v10037 = vpack.c.b16 %v9997, %v9996
  %v10038 = vpack.c.b16 %v9999, %v9998
  %v10039 = vpack.c.b16 %v10001, %v10000
  %v10040 = vpack.c.b16 %v10003, %v10002
  %v10041 = vpack.c.b16 %v10005, %v10004
  %v10042 = vpack.c.b16 %v10007, %v10006
  %v10043 = vpack.c.b16 %v10009, %v10008
  %v10044 = vpack.c.b16 %v10011, %v10010
  %v10045 = vpack.c.b16 %v10013, %v10012
  %10046 = vrot.lane.b32.xlu0 %v10014, 48
  %v10047 = vpop.permute.xlu0 %10046
  %10048 = vrot.lane.b32.xlu0 %v10015, 48
  %v10049 = vpop.permute.xlu0 %10048
  %10050 = vrot.lane.b32.xlu0 %v10016, 48
  %v10051 = vpop.permute.xlu0 %10050
  %10052 = vrot.lane.b32.xlu0 %v10017, 48
  %v10053 = vpop.permute.xlu0 %10052
  %10054 = vrot.lane.b32.xlu0 %v10018, 48
  %v10055 = vpop.permute.xlu0 %10054
  %10056 = vrot.lane.b32.xlu0 %v10019, 48
  %v10057 = vpop.permute.xlu0 %10056
  %10058 = vrot.lane.b32.xlu0 %v10020, 48
  %v10059 = vpop.permute.xlu0 %10058
  %10060 = vrot.lane.b32.xlu0 %v10021, 48
  %v10061 = vpop.permute.xlu0 %10060
  %10062 = vrot.lane.b32.xlu0 %v10022, 48
  %v10063 = vpop.permute.xlu0 %10062
  %10064 = vrot.lane.b32.xlu0 %v10023, 48
  %v10065 = vpop.permute.xlu0 %10064
  %10066 = vrot.lane.b32.xlu0 %v10024, 48
  %v10067 = vpop.permute.xlu0 %10066
  %10068 = vrot.lane.b32.xlu0 %v10025, 48
  %v10069 = vpop.permute.xlu0 %10068
  %10070 = vrot.lane.b32.xlu0 %v10026, 48
  %v10071 = vpop.permute.xlu0 %10070
  %10072 = vrot.lane.b32.xlu0 %v10027, 48
  %v10073 = vpop.permute.xlu0 %10072
  %10074 = vrot.lane.b32.xlu0 %v10028, 48
  %v10075 = vpop.permute.xlu0 %10074
  %10076 = vrot.lane.b32.xlu0 %v10029, 48
  %v10077 = vpop.permute.xlu0 %10076
  %10078 = vrot.lane.b32.xlu0 %v10030, 48
  %v10079 = vpop.permute.xlu0 %10078
  %10080 = vrot.lane.b32.xlu0 %v10031, 48
  %v10081 = vpop.permute.xlu0 %10080
  %10082 = vrot.lane.b32.xlu0 %v10032, 48
  %v10083 = vpop.permute.xlu0 %10082
  %10084 = vrot.lane.b32.xlu0 %v10033, 48
  %v10085 = vpop.permute.xlu0 %10084
  %10086 = vrot.lane.b32.xlu0 %v10034, 48
  %v10087 = vpop.permute.xlu0 %10086
  %10088 = vrot.lane.b32.xlu0 %v10035, 48
  %v10089 = vpop.permute.xlu0 %10088
  %10090 = vrot.lane.b32.xlu0 %v10036, 48
  %v10091 = vpop.permute.xlu0 %10090
  %10092 = vrot.lane.b32.xlu0 %v10037, 48
  %v10093 = vpop.permute.xlu0 %10092
  %10094 = vrot.lane.b32.xlu0 %v10038, 48
  %v10095 = vpop.permute.xlu0 %10094
  %10096 = vrot.lane.b32.xlu0 %v10039, 48
  %v10097 = vpop.permute.xlu0 %10096
  %10098 = vrot.lane.b32.xlu0 %v10040, 48
  %v10099 = vpop.permute.xlu0 %10098
  %10100 = vrot.lane.b32.xlu0 %v10041, 48
  %v10101 = vpop.permute.xlu0 %10100
  %10102 = vrot.lane.b32.xlu0 %v10042, 48
  %v10103 = vpop.permute.xlu0 %10102
  %10104 = vrot.lane.b32.xlu0 %v10043, 48
  %v10105 = vpop.permute.xlu0 %10104
  %10106 = vrot.lane.b32.xlu0 %v10044, 48
  %v10107 = vpop.permute.xlu0 %10106
  %10108 = vrot.lane.b32.xlu0 %v10045, 48
  %v10109 = vpop.permute.xlu0 %10108
  %v10142 = vunpack.c.l.b16 %v7838
  %v10143 = vunpack.c.l.b16 %v7839
  %v10144 = vunpack.c.l.b16 %v7840
  %v10145 = vunpack.c.l.b16 %v7841
  %v10146 = vunpack.c.l.b16 %v7842
  %v10147 = vunpack.c.l.b16 %v7843
  %v10148 = vunpack.c.l.b16 %v7844
  %v10149 = vunpack.c.l.b16 %v7845
  %v10150 = vunpack.c.l.b16 %v7846
  %v10151 = vunpack.c.l.b16 %v7847
  %v10152 = vunpack.c.l.b16 %v7848
  %v10153 = vunpack.c.l.b16 %v7849
  %v10154 = vunpack.c.l.b16 %v7850
  %v10155 = vunpack.c.l.b16 %v7851
  %v10156 = vunpack.c.l.b16 %v7852
  %v10157 = vunpack.c.l.b16 %v7853
  %v10158 = vunpack.c.l.b16 %v7854
  %v10159 = vunpack.c.l.b16 %v7855
  %v10160 = vunpack.c.l.b16 %v7856
  %v10161 = vunpack.c.l.b16 %v7857
  %v10162 = vunpack.c.l.b16 %v7858
  %v10163 = vunpack.c.l.b16 %v7859
  %v10164 = vunpack.c.l.b16 %v7860
  %v10165 = vunpack.c.l.b16 %v7861
  %v10166 = vunpack.c.l.b16 %v7862
  %v10167 = vunpack.c.l.b16 %v7863
  %v10168 = vunpack.c.l.b16 %v7864
  %v10169 = vunpack.c.l.b16 %v7865
  %v10170 = vunpack.c.l.b16 %v7866
  %v10171 = vunpack.c.l.b16 %v7867
  %v10172 = vunpack.c.l.b16 %v7868
  %v10173 = vunpack.c.l.b16 %v7869
  %v10174 = vpack.c.b16 %v10142, %v10142
  %v10175 = vpack.c.b16 %v10143, %v10143
  %v10176 = vpack.c.b16 %v10144, %v10144
  %v10177 = vpack.c.b16 %v10145, %v10145
  %v10178 = vpack.c.b16 %v10146, %v10146
  %v10179 = vpack.c.b16 %v10147, %v10147
  %v10180 = vpack.c.b16 %v10148, %v10148
  %v10181 = vpack.c.b16 %v10149, %v10149
  %v10182 = vpack.c.b16 %v10150, %v10150
  %v10183 = vpack.c.b16 %v10151, %v10151
  %v10184 = vpack.c.b16 %v10152, %v10152
  %v10185 = vpack.c.b16 %v10153, %v10153
  %v10186 = vpack.c.b16 %v10154, %v10154
  %v10187 = vpack.c.b16 %v10155, %v10155
  %v10188 = vpack.c.b16 %v10156, %v10156
  %v10189 = vpack.c.b16 %v10157, %v10157
  %v10190 = vpack.c.b16 %v10158, %v10158
  %v10191 = vpack.c.b16 %v10159, %v10159
  %v10192 = vpack.c.b16 %v10160, %v10160
  %v10193 = vpack.c.b16 %v10161, %v10161
  %v10194 = vpack.c.b16 %v10162, %v10162
  %v10195 = vpack.c.b16 %v10163, %v10163
  %v10196 = vpack.c.b16 %v10164, %v10164
  %v10197 = vpack.c.b16 %v10165, %v10165
  %v10198 = vpack.c.b16 %v10166, %v10166
  %v10199 = vpack.c.b16 %v10167, %v10167
  %v10200 = vpack.c.b16 %v10168, %v10168
  %v10201 = vpack.c.b16 %v10169, %v10169
  %v10202 = vpack.c.b16 %v10170, %v10170
  %v10203 = vpack.c.b16 %v10171, %v10171
  %v10204 = vpack.c.b16 %v10172, %v10172
  %v10205 = vpack.c.b16 %v10173, %v10173
  %v10207 = vshrl.u32 %v10014, 16
  %v10209 = vshll.u32 %v10014, 16
  %v10211 = vrot.slane %v10209, 1
  %v10212 = vor.u32 %v10207, %v10211
  %v10214 = vshll.u32 %v10174, 16
  %v10216 = vrot.slane %v10214, 1
  %v10217 = vsel %vm1891, %v10212, %v10216
  %v10219 = vshrl.u32 %v10015, 16
  %v10221 = vshll.u32 %v10015, 16
  %v10223 = vrot.slane %v10221, 1
  %v10224 = vor.u32 %v10219, %v10223
  %v10226 = vshll.u32 %v10175, 16
  %v10228 = vrot.slane %v10226, 1
  %v10229 = vsel %vm1891, %v10224, %v10228
  %v10231 = vshrl.u32 %v10016, 16
  %v10233 = vshll.u32 %v10016, 16
  %v10235 = vrot.slane %v10233, 1
  %v10236 = vor.u32 %v10231, %v10235
  %v10238 = vshll.u32 %v10176, 16
  %v10240 = vrot.slane %v10238, 1
  %v10241 = vsel %vm1891, %v10236, %v10240
  %v10243 = vshrl.u32 %v10017, 16
  %v10245 = vshll.u32 %v10017, 16
  %v10247 = vrot.slane %v10245, 1
  %v10248 = vor.u32 %v10243, %v10247
  %v10250 = vshll.u32 %v10177, 16
  %v10252 = vrot.slane %v10250, 1
  %v10253 = vsel %vm1891, %v10248, %v10252
  %v10255 = vshrl.u32 %v10018, 16
  %v10257 = vshll.u32 %v10018, 16
  %v10259 = vrot.slane %v10257, 1
  %v10260 = vor.u32 %v10255, %v10259
  %v10262 = vshll.u32 %v10178, 16
  %v10264 = vrot.slane %v10262, 1
  %v10265 = vsel %vm1891, %v10260, %v10264
  %v10267 = vshrl.u32 %v10019, 16
  %v10269 = vshll.u32 %v10019, 16
  %v10271 = vrot.slane %v10269, 1
  %v10272 = vor.u32 %v10267, %v10271
  %v10274 = vshll.u32 %v10179, 16
  %v10276 = vrot.slane %v10274, 1
  %v10277 = vsel %vm1891, %v10272, %v10276
  %v10279 = vshrl.u32 %v10020, 16
  %v10281 = vshll.u32 %v10020, 16
  %v10283 = vrot.slane %v10281, 1
  %v10284 = vor.u32 %v10279, %v10283
  %v10286 = vshll.u32 %v10180, 16
  %v10288 = vrot.slane %v10286, 1
  %v10289 = vsel %vm1891, %v10284, %v10288
  %v10291 = vshrl.u32 %v10021, 16
  %v10293 = vshll.u32 %v10021, 16
  %v10295 = vrot.slane %v10293, 1
  %v10296 = vor.u32 %v10291, %v10295
  %v10298 = vshll.u32 %v10181, 16
  %v10300 = vrot.slane %v10298, 1
  %v10301 = vsel %vm1891, %v10296, %v10300
  %v10303 = vshrl.u32 %v10022, 16
  %v10305 = vshll.u32 %v10022, 16
  %v10307 = vrot.slane %v10305, 1
  %v10308 = vor.u32 %v10303, %v10307
  %v10310 = vshll.u32 %v10182, 16
  %v10312 = vrot.slane %v10310, 1
  %v10313 = vsel %vm1891, %v10308, %v10312
  %v10315 = vshrl.u32 %v10023, 16
  %v10317 = vshll.u32 %v10023, 16
  %v10319 = vrot.slane %v10317, 1
  %v10320 = vor.u32 %v10315, %v10319
  %v10322 = vshll.u32 %v10183, 16
  %v10324 = vrot.slane %v10322, 1
  %v10325 = vsel %vm1891, %v10320, %v10324
  %v10327 = vshrl.u32 %v10024, 16
  %v10329 = vshll.u32 %v10024, 16
  %v10331 = vrot.slane %v10329, 1
  %v10332 = vor.u32 %v10327, %v10331
  %v10334 = vshll.u32 %v10184, 16
  %v10336 = vrot.slane %v10334, 1
  %v10337 = vsel %vm1891, %v10332, %v10336
  %v10339 = vshrl.u32 %v10025, 16
  %v10341 = vshll.u32 %v10025, 16
  %v10343 = vrot.slane %v10341, 1
  %v10344 = vor.u32 %v10339, %v10343
  %v10346 = vshll.u32 %v10185, 16
  %v10348 = vrot.slane %v10346, 1
  %v10349 = vsel %vm1891, %v10344, %v10348
  %v10351 = vshrl.u32 %v10026, 16
  %v10353 = vshll.u32 %v10026, 16
  %v10355 = vrot.slane %v10353, 1
  %v10356 = vor.u32 %v10351, %v10355
  %v10358 = vshll.u32 %v10186, 16
  %v10360 = vrot.slane %v10358, 1
  %v10361 = vsel %vm1891, %v10356, %v10360
  %v10363 = vshrl.u32 %v10027, 16
  %v10365 = vshll.u32 %v10027, 16
  %v10367 = vrot.slane %v10365, 1
  %v10368 = vor.u32 %v10363, %v10367
  %v10370 = vshll.u32 %v10187, 16
  %v10372 = vrot.slane %v10370, 1
  %v10373 = vsel %vm1891, %v10368, %v10372
  %v10375 = vshrl.u32 %v10028, 16
  %v10377 = vshll.u32 %v10028, 16
  %v10379 = vrot.slane %v10377, 1
  %v10380 = vor.u32 %v10375, %v10379
  %v10382 = vshll.u32 %v10188, 16
  %v10384 = vrot.slane %v10382, 1
  %v10385 = vsel %vm1891, %v10380, %v10384
  %v10387 = vshrl.u32 %v10029, 16
  %v10389 = vshll.u32 %v10029, 16
  %v10391 = vrot.slane %v10389, 1
  %v10392 = vor.u32 %v10387, %v10391
  %v10394 = vshll.u32 %v10189, 16
  %v10396 = vrot.slane %v10394, 1
  %v10397 = vsel %vm1891, %v10392, %v10396
  %v10399 = vshrl.u32 %v10030, 16
  %v10401 = vshll.u32 %v10030, 16
  %v10403 = vrot.slane %v10401, 1
  %v10404 = vor.u32 %v10399, %v10403
  %v10406 = vshll.u32 %v10190, 16
  %v10408 = vrot.slane %v10406, 1
  %v10409 = vsel %vm1891, %v10404, %v10408
  %v10411 = vshrl.u32 %v10031, 16
  %v10413 = vshll.u32 %v10031, 16
  %v10415 = vrot.slane %v10413, 1
  %v10416 = vor.u32 %v10411, %v10415
  %v10418 = vshll.u32 %v10191, 16
  %v10420 = vrot.slane %v10418, 1
  %v10421 = vsel %vm1891, %v10416, %v10420
  %v10423 = vshrl.u32 %v10032, 16
  %v10425 = vshll.u32 %v10032, 16
  %v10427 = vrot.slane %v10425, 1
  %v10428 = vor.u32 %v10423, %v10427
  %v10430 = vshll.u32 %v10192, 16
  %v10432 = vrot.slane %v10430, 1
  %v10433 = vsel %vm1891, %v10428, %v10432
  %v10435 = vshrl.u32 %v10033, 16
  %v10437 = vshll.u32 %v10033, 16
  %v10439 = vrot.slane %v10437, 1
  %v10440 = vor.u32 %v10435, %v10439
  %v10442 = vshll.u32 %v10193, 16
  %v10444 = vrot.slane %v10442, 1
  %v10445 = vsel %vm1891, %v10440, %v10444
  %v10447 = vshrl.u32 %v10034, 16
  %v10449 = vshll.u32 %v10034, 16
  %v10451 = vrot.slane %v10449, 1
  %v10452 = vor.u32 %v10447, %v10451
  %v10454 = vshll.u32 %v10194, 16
  %v10456 = vrot.slane %v10454, 1
  %v10457 = vsel %vm1891, %v10452, %v10456
  %v10459 = vshrl.u32 %v10035, 16
  %v10461 = vshll.u32 %v10035, 16
  %v10463 = vrot.slane %v10461, 1
  %v10464 = vor.u32 %v10459, %v10463
  %v10466 = vshll.u32 %v10195, 16
  %v10468 = vrot.slane %v10466, 1
  %v10469 = vsel %vm1891, %v10464, %v10468
  %v10471 = vshrl.u32 %v10036, 16
  %v10473 = vshll.u32 %v10036, 16
  %v10475 = vrot.slane %v10473, 1
  %v10476 = vor.u32 %v10471, %v10475
  %v10478 = vshll.u32 %v10196, 16
  %v10480 = vrot.slane %v10478, 1
  %v10481 = vsel %vm1891, %v10476, %v10480
  %v10483 = vshrl.u32 %v10037, 16
  %v10485 = vshll.u32 %v10037, 16
  %v10487 = vrot.slane %v10485, 1
  %v10488 = vor.u32 %v10483, %v10487
  %v10490 = vshll.u32 %v10197, 16
  %v10492 = vrot.slane %v10490, 1
  %v10493 = vsel %vm1891, %v10488, %v10492
  %v10495 = vshrl.u32 %v10038, 16
  %v10497 = vshll.u32 %v10038, 16
  %v10499 = vrot.slane %v10497, 1
  %v10500 = vor.u32 %v10495, %v10499
  %v10502 = vshll.u32 %v10198, 16
  %v10504 = vrot.slane %v10502, 1
  %v10505 = vsel %vm1891, %v10500, %v10504
  %v10507 = vshrl.u32 %v10039, 16
  %v10509 = vshll.u32 %v10039, 16
  %v10511 = vrot.slane %v10509, 1
  %v10512 = vor.u32 %v10507, %v10511
  %v10514 = vshll.u32 %v10199, 16
  %v10516 = vrot.slane %v10514, 1
  %v10517 = vsel %vm1891, %v10512, %v10516
  %v10519 = vshrl.u32 %v10040, 16
  %v10521 = vshll.u32 %v10040, 16
  %v10523 = vrot.slane %v10521, 1
  %v10524 = vor.u32 %v10519, %v10523
  %v10526 = vshll.u32 %v10200, 16
  %v10528 = vrot.slane %v10526, 1
  %v10529 = vsel %vm1891, %v10524, %v10528
  %v10531 = vshrl.u32 %v10041, 16
  %v10533 = vshll.u32 %v10041, 16
  %v10535 = vrot.slane %v10533, 1
  %v10536 = vor.u32 %v10531, %v10535
  %v10538 = vshll.u32 %v10201, 16
  %v10540 = vrot.slane %v10538, 1
  %v10541 = vsel %vm1891, %v10536, %v10540
  %v10543 = vshrl.u32 %v10042, 16
  %v10545 = vshll.u32 %v10042, 16
  %v10547 = vrot.slane %v10545, 1
  %v10548 = vor.u32 %v10543, %v10547
  %v10550 = vshll.u32 %v10202, 16
  %v10552 = vrot.slane %v10550, 1
  %v10553 = vsel %vm1891, %v10548, %v10552
  %v10555 = vshrl.u32 %v10043, 16
  %v10557 = vshll.u32 %v10043, 16
  %v10559 = vrot.slane %v10557, 1
  %v10560 = vor.u32 %v10555, %v10559
  %v10562 = vshll.u32 %v10203, 16
  %v10564 = vrot.slane %v10562, 1
  %v10565 = vsel %vm1891, %v10560, %v10564
  %v10567 = vshrl.u32 %v10044, 16
  %v10569 = vshll.u32 %v10044, 16
  %v10571 = vrot.slane %v10569, 1
  %v10572 = vor.u32 %v10567, %v10571
  %v10574 = vshll.u32 %v10204, 16
  %v10576 = vrot.slane %v10574, 1
  %v10577 = vsel %vm1891, %v10572, %v10576
  %v10579 = vshrl.u32 %v10045, 16
  %v10581 = vshll.u32 %v10045, 16
  %v10583 = vrot.slane %v10581, 1
  %v10584 = vor.u32 %v10579, %v10583
  %v10586 = vshll.u32 %v10205, 16
  %v10588 = vrot.slane %v10586, 1
  %v10589 = vsel %vm1891, %v10584, %v10588
  %10590 = vrot.lane.b32.xlu0 %v10217, 56
  %v10591 = vpop.permute.xlu0 %10590
  %10592 = vrot.lane.b32.xlu0 %v10229, 56
  %v10593 = vpop.permute.xlu0 %10592
  %10594 = vrot.lane.b32.xlu0 %v10241, 56
  %v10595 = vpop.permute.xlu0 %10594
  %10596 = vrot.lane.b32.xlu0 %v10253, 56
  %v10597 = vpop.permute.xlu0 %10596
  %10598 = vrot.lane.b32.xlu0 %v10265, 56
  %v10599 = vpop.permute.xlu0 %10598
  %10600 = vrot.lane.b32.xlu0 %v10277, 56
  %v10601 = vpop.permute.xlu0 %10600
  %10602 = vrot.lane.b32.xlu0 %v10289, 56
  %v10603 = vpop.permute.xlu0 %10602
  %10604 = vrot.lane.b32.xlu0 %v10301, 56
  %v10605 = vpop.permute.xlu0 %10604
  %10606 = vrot.lane.b32.xlu0 %v10313, 56
  %v10607 = vpop.permute.xlu0 %10606
  %10608 = vrot.lane.b32.xlu0 %v10325, 56
  %v10609 = vpop.permute.xlu0 %10608
  %10610 = vrot.lane.b32.xlu0 %v10337, 56
  %v10611 = vpop.permute.xlu0 %10610
  %10612 = vrot.lane.b32.xlu0 %v10349, 56
  %v10613 = vpop.permute.xlu0 %10612
  %10614 = vrot.lane.b32.xlu0 %v10361, 56
  %v10615 = vpop.permute.xlu0 %10614
  %10616 = vrot.lane.b32.xlu0 %v10373, 56
  %v10617 = vpop.permute.xlu0 %10616
  %10618 = vrot.lane.b32.xlu0 %v10385, 56
  %v10619 = vpop.permute.xlu0 %10618
  %10620 = vrot.lane.b32.xlu0 %v10397, 56
  %v10621 = vpop.permute.xlu0 %10620
  %10622 = vrot.lane.b32.xlu0 %v10409, 56
  %v10623 = vpop.permute.xlu0 %10622
  %10624 = vrot.lane.b32.xlu0 %v10421, 56
  %v10625 = vpop.permute.xlu0 %10624
  %10626 = vrot.lane.b32.xlu0 %v10433, 56
  %v10627 = vpop.permute.xlu0 %10626
  %10628 = vrot.lane.b32.xlu0 %v10445, 56
  %v10629 = vpop.permute.xlu0 %10628
  %10630 = vrot.lane.b32.xlu0 %v10457, 56
  %v10631 = vpop.permute.xlu0 %10630
  %10632 = vrot.lane.b32.xlu0 %v10469, 56
  %v10633 = vpop.permute.xlu0 %10632
  %10634 = vrot.lane.b32.xlu0 %v10481, 56
  %v10635 = vpop.permute.xlu0 %10634
  %10636 = vrot.lane.b32.xlu0 %v10493, 56
  %v10637 = vpop.permute.xlu0 %10636
  %10638 = vrot.lane.b32.xlu0 %v10505, 56
  %v10639 = vpop.permute.xlu0 %10638
  %10640 = vrot.lane.b32.xlu0 %v10517, 56
  %v10641 = vpop.permute.xlu0 %10640
  %10642 = vrot.lane.b32.xlu0 %v10529, 56
  %v10643 = vpop.permute.xlu0 %10642
  %10644 = vrot.lane.b32.xlu0 %v10541, 56
  %v10645 = vpop.permute.xlu0 %10644
  %10646 = vrot.lane.b32.xlu0 %v10553, 56
  %v10647 = vpop.permute.xlu0 %10646
  %10648 = vrot.lane.b32.xlu0 %v10565, 56
  %v10649 = vpop.permute.xlu0 %10648
  %10650 = vrot.lane.b32.xlu0 %v10577, 56
  %v10651 = vpop.permute.xlu0 %10650
  %10652 = vrot.lane.b32.xlu0 %v10589, 56
  %v10653 = vpop.permute.xlu0 %10652
  %v10686 = vunpack.c.l.b16 %v7870
  %v10687 = vunpack.c.l.b16 %v7871
  %v10688 = vunpack.c.l.b16 %v7872
  %v10689 = vunpack.c.l.b16 %v7873
  %v10690 = vunpack.c.l.b16 %v7874
  %v10691 = vunpack.c.l.b16 %v7875
  %v10692 = vunpack.c.l.b16 %v7876
  %v10693 = vunpack.c.l.b16 %v7877
  %v10694 = vunpack.c.l.b16 %v7878
  %v10695 = vunpack.c.l.b16 %v7879
  %v10696 = vunpack.c.l.b16 %v7880
  %v10697 = vunpack.c.l.b16 %v7881
  %v10698 = vunpack.c.l.b16 %v7882
  %v10699 = vunpack.c.l.b16 %v7883
  %v10700 = vunpack.c.l.b16 %v7884
  %v10701 = vunpack.c.l.b16 %v7885
  %v10702 = vunpack.c.l.b16 %v7886
  %v10703 = vunpack.c.l.b16 %v7887
  %v10704 = vunpack.c.l.b16 %v7888
  %v10705 = vunpack.c.l.b16 %v7889
  %v10706 = vunpack.c.l.b16 %v7890
  %v10707 = vunpack.c.l.b16 %v7891
  %v10708 = vunpack.c.l.b16 %v7892
  %v10709 = vunpack.c.l.b16 %v7893
  %v10710 = vunpack.c.l.b16 %v7894
  %v10711 = vunpack.c.l.b16 %v7895
  %v10712 = vunpack.c.l.b16 %v7896
  %v10713 = vunpack.c.l.b16 %v7897
  %v10714 = vunpack.c.l.b16 %v7898
  %v10715 = vunpack.c.l.b16 %v7899
  %v10716 = vunpack.c.l.b16 %v7900
  %v10717 = vunpack.c.l.b16 %v7901
  %v10718 = vpack.c.b16 %v9951, %v10686
  %v10719 = vpack.c.b16 %v9953, %v10687
  %v10720 = vpack.c.b16 %v9955, %v10688
  %v10721 = vpack.c.b16 %v9957, %v10689
  %v10722 = vpack.c.b16 %v9959, %v10690
  %v10723 = vpack.c.b16 %v9961, %v10691
  %v10724 = vpack.c.b16 %v9963, %v10692
  %v10725 = vpack.c.b16 %v9965, %v10693
  %v10726 = vpack.c.b16 %v9967, %v10694
  %v10727 = vpack.c.b16 %v9969, %v10695
  %v10728 = vpack.c.b16 %v9971, %v10696
  %v10729 = vpack.c.b16 %v9973, %v10697
  %v10730 = vpack.c.b16 %v9975, %v10698
  %v10731 = vpack.c.b16 %v9977, %v10699
  %v10732 = vpack.c.b16 %v9979, %v10700
  %v10733 = vpack.c.b16 %v9981, %v10701
  %v10734 = vpack.c.b16 %v9983, %v10702
  %v10735 = vpack.c.b16 %v9985, %v10703
  %v10736 = vpack.c.b16 %v9987, %v10704
  %v10737 = vpack.c.b16 %v9989, %v10705
  %v10738 = vpack.c.b16 %v9991, %v10706
  %v10739 = vpack.c.b16 %v9993, %v10707
  %v10740 = vpack.c.b16 %v9995, %v10708
  %v10741 = vpack.c.b16 %v9997, %v10709
  %v10742 = vpack.c.b16 %v9999, %v10710
  %v10743 = vpack.c.b16 %v10001, %v10711
  %v10744 = vpack.c.b16 %v10003, %v10712
  %v10745 = vpack.c.b16 %v10005, %v10713
  %v10746 = vpack.c.b16 %v10007, %v10714
  %v10747 = vpack.c.b16 %v10009, %v10715
  %v10748 = vpack.c.b16 %v10011, %v10716
  %v10749 = vpack.c.b16 %v10013, %v10717
  %v10750 = vrot.slane %v10718, 1
  %v10751 = vrot.slane %v10174, 1
  %v10752 = vsel %vm2436, %v10750, %v10751
  %v10753 = vrot.slane %v10719, 1
  %v10754 = vrot.slane %v10175, 1
  %v10755 = vsel %vm2436, %v10753, %v10754
  %v10756 = vrot.slane %v10720, 1
  %v10757 = vrot.slane %v10176, 1
  %v10758 = vsel %vm2436, %v10756, %v10757
  %v10759 = vrot.slane %v10721, 1
  %v10760 = vrot.slane %v10177, 1
  %v10761 = vsel %vm2436, %v10759, %v10760
  %v10762 = vrot.slane %v10722, 1
  %v10763 = vrot.slane %v10178, 1
  %v10764 = vsel %vm2436, %v10762, %v10763
  %v10765 = vrot.slane %v10723, 1
  %v10766 = vrot.slane %v10179, 1
  %v10767 = vsel %vm2436, %v10765, %v10766
  %v10768 = vrot.slane %v10724, 1
  %v10769 = vrot.slane %v10180, 1
  %v10770 = vsel %vm2436, %v10768, %v10769
  %v10771 = vrot.slane %v10725, 1
  %v10772 = vrot.slane %v10181, 1
  %v10773 = vsel %vm2436, %v10771, %v10772
  %v10774 = vrot.slane %v10726, 1
  %v10775 = vrot.slane %v10182, 1
  %v10776 = vsel %vm2436, %v10774, %v10775
  %v10777 = vrot.slane %v10727, 1
  %v10778 = vrot.slane %v10183, 1
  %v10779 = vsel %vm2436, %v10777, %v10778
  %v10780 = vrot.slane %v10728, 1
  %v10781 = vrot.slane %v10184, 1
  %v10782 = vsel %vm2436, %v10780, %v10781
  %v10783 = vrot.slane %v10729, 1
  %v10784 = vrot.slane %v10185, 1
  %v10785 = vsel %vm2436, %v10783, %v10784
  %v10786 = vrot.slane %v10730, 1
  %v10787 = vrot.slane %v10186, 1
  %v10788 = vsel %vm2436, %v10786, %v10787
  %v10789 = vrot.slane %v10731, 1
  %v10790 = vrot.slane %v10187, 1
  %v10791 = vsel %vm2436, %v10789, %v10790
  %v10792 = vrot.slane %v10732, 1
  %v10793 = vrot.slane %v10188, 1
  %v10794 = vsel %vm2436, %v10792, %v10793
  %v10795 = vrot.slane %v10733, 1
  %v10796 = vrot.slane %v10189, 1
  %v10797 = vsel %vm2436, %v10795, %v10796
  %v10798 = vrot.slane %v10734, 1
  %v10799 = vrot.slane %v10190, 1
  %v10800 = vsel %vm2436, %v10798, %v10799
  %v10801 = vrot.slane %v10735, 1
  %v10802 = vrot.slane %v10191, 1
  %v10803 = vsel %vm2436, %v10801, %v10802
  %v10804 = vrot.slane %v10736, 1
  %v10805 = vrot.slane %v10192, 1
  %v10806 = vsel %vm2436, %v10804, %v10805
  %v10807 = vrot.slane %v10737, 1
  %v10808 = vrot.slane %v10193, 1
  %v10809 = vsel %vm2436, %v10807, %v10808
  %v10810 = vrot.slane %v10738, 1
  %v10811 = vrot.slane %v10194, 1
  %v10812 = vsel %vm2436, %v10810, %v10811
  %v10813 = vrot.slane %v10739, 1
  %v10814 = vrot.slane %v10195, 1
  %v10815 = vsel %vm2436, %v10813, %v10814
  %v10816 = vrot.slane %v10740, 1
  %v10817 = vrot.slane %v10196, 1
  %v10818 = vsel %vm2436, %v10816, %v10817
  %v10819 = vrot.slane %v10741, 1
  %v10820 = vrot.slane %v10197, 1
  %v10821 = vsel %vm2436, %v10819, %v10820
  %v10822 = vrot.slane %v10742, 1
  %v10823 = vrot.slane %v10198, 1
  %v10824 = vsel %vm2436, %v10822, %v10823
  %v10825 = vrot.slane %v10743, 1
  %v10826 = vrot.slane %v10199, 1
  %v10827 = vsel %vm2436, %v10825, %v10826
  %v10828 = vrot.slane %v10744, 1
  %v10829 = vrot.slane %v10200, 1
  %v10830 = vsel %vm2436, %v10828, %v10829
  %v10831 = vrot.slane %v10745, 1
  %v10832 = vrot.slane %v10201, 1
  %v10833 = vsel %vm2436, %v10831, %v10832
  %v10834 = vrot.slane %v10746, 1
  %v10835 = vrot.slane %v10202, 1
  %v10836 = vsel %vm2436, %v10834, %v10835
  %v10837 = vrot.slane %v10747, 1
  %v10838 = vrot.slane %v10203, 1
  %v10839 = vsel %vm2436, %v10837, %v10838
  %v10840 = vrot.slane %v10748, 1
  %v10841 = vrot.slane %v10204, 1
  %v10842 = vsel %vm2436, %v10840, %v10841
  %v10843 = vrot.slane %v10749, 1
  %v10844 = vrot.slane %v10205, 1
  %v10845 = vsel %vm2436, %v10843, %v10844
  %10846 = vrot.lane.b32.xlu0 %v10752, 64
  %v10847 = vpop.permute.xlu0 %10846
  %10848 = vrot.lane.b32.xlu0 %v10755, 64
  %v10849 = vpop.permute.xlu0 %10848
  %10850 = vrot.lane.b32.xlu0 %v10758, 64
  %v10851 = vpop.permute.xlu0 %10850
  %10852 = vrot.lane.b32.xlu0 %v10761, 64
  %v10853 = vpop.permute.xlu0 %10852
  %10854 = vrot.lane.b32.xlu0 %v10764, 64
  %v10855 = vpop.permute.xlu0 %10854
  %10856 = vrot.lane.b32.xlu0 %v10767, 64
  %v10857 = vpop.permute.xlu0 %10856
  %10858 = vrot.lane.b32.xlu0 %v10770, 64
  %v10859 = vpop.permute.xlu0 %10858
  %10860 = vrot.lane.b32.xlu0 %v10773, 64
  %v10861 = vpop.permute.xlu0 %10860
  %10862 = vrot.lane.b32.xlu0 %v10776, 64
  %v10863 = vpop.permute.xlu0 %10862
  %10864 = vrot.lane.b32.xlu0 %v10779, 64
  %v10865 = vpop.permute.xlu0 %10864
  %10866 = vrot.lane.b32.xlu0 %v10782, 64
  %v10867 = vpop.permute.xlu0 %10866
  %10868 = vrot.lane.b32.xlu0 %v10785, 64
  %v10869 = vpop.permute.xlu0 %10868
  %10870 = vrot.lane.b32.xlu0 %v10788, 64
  %v10871 = vpop.permute.xlu0 %10870
  %10872 = vrot.lane.b32.xlu0 %v10791, 64
  %v10873 = vpop.permute.xlu0 %10872
  %10874 = vrot.lane.b32.xlu0 %v10794, 64
  %v10875 = vpop.permute.xlu0 %10874
  %10876 = vrot.lane.b32.xlu0 %v10797, 64
  %v10877 = vpop.permute.xlu0 %10876
  %10878 = vrot.lane.b32.xlu0 %v10800, 64
  %v10879 = vpop.permute.xlu0 %10878
  %10880 = vrot.lane.b32.xlu0 %v10803, 64
  %v10881 = vpop.permute.xlu0 %10880
  %10882 = vrot.lane.b32.xlu0 %v10806, 64
  %v10883 = vpop.permute.xlu0 %10882
  %10884 = vrot.lane.b32.xlu0 %v10809, 64
  %v10885 = vpop.permute.xlu0 %10884
  %10886 = vrot.lane.b32.xlu0 %v10812, 64
  %v10887 = vpop.permute.xlu0 %10886
  %10888 = vrot.lane.b32.xlu0 %v10815, 64
  %v10889 = vpop.permute.xlu0 %10888
  %10890 = vrot.lane.b32.xlu0 %v10818, 64
  %v10891 = vpop.permute.xlu0 %10890
  %10892 = vrot.lane.b32.xlu0 %v10821, 64
  %v10893 = vpop.permute.xlu0 %10892
  %10894 = vrot.lane.b32.xlu0 %v10824, 64
  %v10895 = vpop.permute.xlu0 %10894
  %10896 = vrot.lane.b32.xlu0 %v10827, 64
  %v10897 = vpop.permute.xlu0 %10896
  %10898 = vrot.lane.b32.xlu0 %v10830, 64
  %v10899 = vpop.permute.xlu0 %10898
  %10900 = vrot.lane.b32.xlu0 %v10833, 64
  %v10901 = vpop.permute.xlu0 %10900
  %10902 = vrot.lane.b32.xlu0 %v10836, 64
  %v10903 = vpop.permute.xlu0 %10902
  %10904 = vrot.lane.b32.xlu0 %v10839, 64
  %v10905 = vpop.permute.xlu0 %10904
  %10906 = vrot.lane.b32.xlu0 %v10842, 64
  %v10907 = vpop.permute.xlu0 %10906
  %10908 = vrot.lane.b32.xlu0 %v10845, 64
  %v10909 = vpop.permute.xlu0 %10908
  %v10911 = vsel %vm4710, %v8030, %v8543
  %v10913 = vsel %vm4710, %v8031, %v8545
  %v10915 = vsel %vm4710, %v8032, %v8547
  %v10917 = vsel %vm4710, %v8033, %v8549
  %v10919 = vsel %vm4710, %v8034, %v8551
  %v10921 = vsel %vm4710, %v8035, %v8553
  %v10923 = vsel %vm4710, %v8036, %v8555
  %v10925 = vsel %vm4710, %v8037, %v8557
  %v10927 = vsel %vm4710, %v8038, %v8559
  %v10929 = vsel %vm4710, %v8039, %v8561
  %v10931 = vsel %vm4710, %v8040, %v8563
  %v10933 = vsel %vm4710, %v8041, %v8565
  %v10935 = vsel %vm4710, %v8042, %v8567
  %v10937 = vsel %vm4710, %v8043, %v8569
  %v10939 = vsel %vm4710, %v8044, %v8571
  %v10941 = vsel %vm4710, %v8045, %v8573
  %v10943 = vsel %vm4710, %v8046, %v8575
  %v10945 = vsel %vm4710, %v8047, %v8577
  %v10947 = vsel %vm4710, %v8048, %v8579
  %v10949 = vsel %vm4710, %v8049, %v8581
  %v10951 = vsel %vm4710, %v8050, %v8583
  %v10953 = vsel %vm4710, %v8051, %v8585
  %v10955 = vsel %vm4710, %v8052, %v8587
  %v10957 = vsel %vm4710, %v8053, %v8589
  %v10959 = vsel %vm4710, %v8054, %v8591
  %v10961 = vsel %vm4710, %v8055, %v8593
  %v10963 = vsel %vm4710, %v8056, %v8595
  %v10965 = vsel %vm4710, %v8057, %v8597
  %v10967 = vsel %vm4710, %v8058, %v8599
  %v10969 = vsel %vm4710, %v8059, %v8601
  %v10971 = vsel %vm4710, %v8060, %v8603
  %v10973 = vsel %vm4710, %v8061, %v8605
  %v10975 = vsel %vm4840, %v10911, %v8799
  %v10977 = vsel %vm4840, %v10913, %v8801
  %v10979 = vsel %vm4840, %v10915, %v8803
  %v10981 = vsel %vm4840, %v10917, %v8805
  %v10983 = vsel %vm4840, %v10919, %v8807
  %v10985 = vsel %vm4840, %v10921, %v8809
  %v10987 = vsel %vm4840, %v10923, %v8811
  %v10989 = vsel %vm4840, %v10925, %v8813
  %v10991 = vsel %vm4840, %v10927, %v8815
  %v10993 = vsel %vm4840, %v10929, %v8817
  %v10995 = vsel %vm4840, %v10931, %v8819
  %v10997 = vsel %vm4840, %v10933, %v8821
  %v10999 = vsel %vm4840, %v10935, %v8823
  %v11001 = vsel %vm4840, %v10937, %v8825
  %v11003 = vsel %vm4840, %v10939, %v8827
  %v11005 = vsel %vm4840, %v10941, %v8829
  %v11007 = vsel %vm4840, %v10943, %v8831
  %v11009 = vsel %vm4840, %v10945, %v8833
  %v11011 = vsel %vm4840, %v10947, %v8835
  %v11013 = vsel %vm4840, %v10949, %v8837
  %v11015 = vsel %vm4840, %v10951, %v8839
  %v11017 = vsel %vm4840, %v10953, %v8841
  %v11019 = vsel %vm4840, %v10955, %v8843
  %v11021 = vsel %vm4840, %v10957, %v8845
  %v11023 = vsel %vm4840, %v10959, %v8847
  %v11025 = vsel %vm4840, %v10961, %v8849
  %v11027 = vsel %vm4840, %v10963, %v8851
  %v11029 = vsel %vm4840, %v10965, %v8853
  %v11031 = vsel %vm4840, %v10967, %v8855
  %v11033 = vsel %vm4840, %v10969, %v8857
  %v11035 = vsel %vm4840, %v10971, %v8859
  %v11037 = vsel %vm4840, %v10973, %v8861
  %v11039 = vsel %vm4970, %v10975, %v9023
  %v11041 = vsel %vm4970, %v10977, %v9025
  %v11043 = vsel %vm4970, %v10979, %v9027
  %v11045 = vsel %vm4970, %v10981, %v9029
  %v11047 = vsel %vm4970, %v10983, %v9031
  %v11049 = vsel %vm4970, %v10985, %v9033
  %v11051 = vsel %vm4970, %v10987, %v9035
  %v11053 = vsel %vm4970, %v10989, %v9037
  %v11055 = vsel %vm4970, %v10991, %v9039
  %v11057 = vsel %vm4970, %v10993, %v9041
  %v11059 = vsel %vm4970, %v10995, %v9043
  %v11061 = vsel %vm4970, %v10997, %v9045
  %v11063 = vsel %vm4970, %v10999, %v9047
  %v11065 = vsel %vm4970, %v11001, %v9049
  %v11067 = vsel %vm4970, %v11003, %v9051
  %v11069 = vsel %vm4970, %v11005, %v9053
  %v11071 = vsel %vm4970, %v11007, %v9055
  %v11073 = vsel %vm4970, %v11009, %v9057
  %v11075 = vsel %vm4970, %v11011, %v9059
  %v11077 = vsel %vm4970, %v11013, %v9061
  %v11079 = vsel %vm4970, %v11015, %v9063
  %v11081 = vsel %vm4970, %v11017, %v9065
  %v11083 = vsel %vm4970, %v11019, %v9067
  %v11085 = vsel %vm4970, %v11021, %v9069
  %v11087 = vsel %vm4970, %v11023, %v9071
  %v11089 = vsel %vm4970, %v11025, %v9073
  %v11091 = vsel %vm4970, %v11027, %v9075
  %v11093 = vsel %vm4970, %v11029, %v9077
  %v11095 = vsel %vm4970, %v11031, %v9079
  %v11097 = vsel %vm4970, %v11033, %v9081
  %v11099 = vsel %vm4970, %v11035, %v9083
  %v11101 = vsel %vm4970, %v11037, %v9085
  %v11103 = vsel %vm5100, %v11039, %v9567
  %v11105 = vsel %vm5100, %v11041, %v9569
  %v11107 = vsel %vm5100, %v11043, %v9571
  %v11109 = vsel %vm5100, %v11045, %v9573
  %v11111 = vsel %vm5100, %v11047, %v9575
  %v11113 = vsel %vm5100, %v11049, %v9577
  %v11115 = vsel %vm5100, %v11051, %v9579
  %v11117 = vsel %vm5100, %v11053, %v9581
  %v11119 = vsel %vm5100, %v11055, %v9583
  %v11121 = vsel %vm5100, %v11057, %v9585
  %v11123 = vsel %vm5100, %v11059, %v9587
  %v11125 = vsel %vm5100, %v11061, %v9589
  %v11127 = vsel %vm5100, %v11063, %v9591
  %v11129 = vsel %vm5100, %v11065, %v9593
  %v11131 = vsel %vm5100, %v11067, %v9595
  %v11133 = vsel %vm5100, %v11069, %v9597
  %v11135 = vsel %vm5100, %v11071, %v9599
  %v11137 = vsel %vm5100, %v11073, %v9601
  %v11139 = vsel %vm5100, %v11075, %v9603
  %v11141 = vsel %vm5100, %v11077, %v9605
  %v11143 = vsel %vm5100, %v11079, %v9607
  %v11145 = vsel %vm5100, %v11081, %v9609
  %v11147 = vsel %vm5100, %v11083, %v9611
  %v11149 = vsel %vm5100, %v11085, %v9613
  %v11151 = vsel %vm5100, %v11087, %v9615
  %v11153 = vsel %vm5100, %v11089, %v9617
  %v11155 = vsel %vm5100, %v11091, %v9619
  %v11157 = vsel %vm5100, %v11093, %v9621
  %v11159 = vsel %vm5100, %v11095, %v9623
  %v11161 = vsel %vm5100, %v11097, %v9625
  %v11163 = vsel %vm5100, %v11099, %v9627
  %v11165 = vsel %vm5100, %v11101, %v9629
  %vm11166 = vcmask 326656
  %v11168 = vsel %vm11166, %v11103, %v9823
  %v11170 = vsel %vm11166, %v11105, %v9825
  %v11172 = vsel %vm11166, %v11107, %v9827
  %v11174 = vsel %vm11166, %v11109, %v9829
  %v11176 = vsel %vm11166, %v11111, %v9831
  %v11178 = vsel %vm11166, %v11113, %v9833
  %v11180 = vsel %vm11166, %v11115, %v9835
  %v11182 = vsel %vm11166, %v11117, %v9837
  %v11184 = vsel %vm11166, %v11119, %v9839
  %v11186 = vsel %vm11166, %v11121, %v9841
  %v11188 = vsel %vm11166, %v11123, %v9843
  %v11190 = vsel %vm11166, %v11125, %v9845
  %v11192 = vsel %vm11166, %v11127, %v9847
  %v11194 = vsel %vm11166, %v11129, %v9849
  %v11196 = vsel %vm11166, %v11131, %v9851
  %v11198 = vsel %vm11166, %v11133, %v9853
  %v11200 = vsel %vm11166, %v11135, %v9855
  %v11202 = vsel %vm11166, %v11137, %v9857
  %v11204 = vsel %vm11166, %v11139, %v9859
  %v11206 = vsel %vm11166, %v11141, %v9861
  %v11208 = vsel %vm11166, %v11143, %v9863
  %v11210 = vsel %vm11166, %v11145, %v9865
  %v11212 = vsel %vm11166, %v11147, %v9867
  %v11214 = vsel %vm11166, %v11149, %v9869
  %v11216 = vsel %vm11166, %v11151, %v9871
  %v11218 = vsel %vm11166, %v11153, %v9873
  %v11220 = vsel %vm11166, %v11155, %v9875
  %v11222 = vsel %vm11166, %v11157, %v9877
  %v11224 = vsel %vm11166, %v11159, %v9879
  %v11226 = vsel %vm11166, %v11161, %v9881
  %v11228 = vsel %vm11166, %v11163, %v9883
  %v11230 = vsel %vm11166, %v11165, %v9885
  %vm11231 = vcmask 392192
  %v11233 = vsel %vm11231, %v11168, %v10047
  %v11235 = vsel %vm11231, %v11170, %v10049
  %v11237 = vsel %vm11231, %v11172, %v10051
  %v11239 = vsel %vm11231, %v11174, %v10053
  %v11241 = vsel %vm11231, %v11176, %v10055
  %v11243 = vsel %vm11231, %v11178, %v10057
  %v11245 = vsel %vm11231, %v11180, %v10059
  %v11247 = vsel %vm11231, %v11182, %v10061
  %v11249 = vsel %vm11231, %v11184, %v10063
  %v11251 = vsel %vm11231, %v11186, %v10065
  %v11253 = vsel %vm11231, %v11188, %v10067
  %v11255 = vsel %vm11231, %v11190, %v10069
  %v11257 = vsel %vm11231, %v11192, %v10071
  %v11259 = vsel %vm11231, %v11194, %v10073
  %v11261 = vsel %vm11231, %v11196, %v10075
  %v11263 = vsel %vm11231, %v11198, %v10077
  %v11265 = vsel %vm11231, %v11200, %v10079
  %v11267 = vsel %vm11231, %v11202, %v10081
  %v11269 = vsel %vm11231, %v11204, %v10083
  %v11271 = vsel %vm11231, %v11206, %v10085
  %v11273 = vsel %vm11231, %v11208, %v10087
  %v11275 = vsel %vm11231, %v11210, %v10089
  %v11277 = vsel %vm11231, %v11212, %v10091
  %v11279 = vsel %vm11231, %v11214, %v10093
  %v11281 = vsel %vm11231, %v11216, %v10095
  %v11283 = vsel %vm11231, %v11218, %v10097
  %v11285 = vsel %vm11231, %v11220, %v10099
  %v11287 = vsel %vm11231, %v11222, %v10101
  %v11289 = vsel %vm11231, %v11224, %v10103
  %v11291 = vsel %vm11231, %v11226, %v10105
  %v11293 = vsel %vm11231, %v11228, %v10107
  %v11295 = vsel %vm11231, %v11230, %v10109
  %vm11296 = vcmask 457728
  %v11298 = vsel %vm11296, %v11233, %v10591
  %v11300 = vsel %vm11296, %v11235, %v10593
  %v11302 = vsel %vm11296, %v11237, %v10595
  %v11304 = vsel %vm11296, %v11239, %v10597
  %v11306 = vsel %vm11296, %v11241, %v10599
  %v11308 = vsel %vm11296, %v11243, %v10601
  %v11310 = vsel %vm11296, %v11245, %v10603
  %v11312 = vsel %vm11296, %v11247, %v10605
  %v11314 = vsel %vm11296, %v11249, %v10607
  %v11316 = vsel %vm11296, %v11251, %v10609
  %v11318 = vsel %vm11296, %v11253, %v10611
  %v11320 = vsel %vm11296, %v11255, %v10613
  %v11322 = vsel %vm11296, %v11257, %v10615
  %v11324 = vsel %vm11296, %v11259, %v10617
  %v11326 = vsel %vm11296, %v11261, %v10619
  %v11328 = vsel %vm11296, %v11263, %v10621
  %v11330 = vsel %vm11296, %v11265, %v10623
  %v11332 = vsel %vm11296, %v11267, %v10625
  %v11334 = vsel %vm11296, %v11269, %v10627
  %v11336 = vsel %vm11296, %v11271, %v10629
  %v11338 = vsel %vm11296, %v11273, %v10631
  %v11340 = vsel %vm11296, %v11275, %v10633
  %v11342 = vsel %vm11296, %v11277, %v10635
  %v11344 = vsel %vm11296, %v11279, %v10637
  %v11346 = vsel %vm11296, %v11281, %v10639
  %v11348 = vsel %vm11296, %v11283, %v10641
  %v11350 = vsel %vm11296, %v11285, %v10643
  %v11352 = vsel %vm11296, %v11287, %v10645
  %v11354 = vsel %vm11296, %v11289, %v10647
  %v11356 = vsel %vm11296, %v11291, %v10649
  %v11358 = vsel %vm11296, %v11293, %v10651
  %v11360 = vsel %vm11296, %v11295, %v10653
  %vm11361 = vcmask 523264
  %v11363 = vsel %vm11361, %v11298, %v10847
  %v11365 = vsel %vm11361, %v11300, %v10849
  %v11367 = vsel %vm11361, %v11302, %v10851
  %v11369 = vsel %vm11361, %v11304, %v10853
  %v11371 = vsel %vm11361, %v11306, %v10855
  %v11373 = vsel %vm11361, %v11308, %v10857
  %v11375 = vsel %vm11361, %v11310, %v10859
  %v11377 = vsel %vm11361, %v11312, %v10861
  %v11379 = vsel %vm11361, %v11314, %v10863
  %v11381 = vsel %vm11361, %v11316, %v10865
  %v11383 = vsel %vm11361, %v11318, %v10867
  %v11385 = vsel %vm11361, %v11320, %v10869
  %v11387 = vsel %vm11361, %v11322, %v10871
  %v11389 = vsel %vm11361, %v11324, %v10873
  %v11391 = vsel %vm11361, %v11326, %v10875
  %v11393 = vsel %vm11361, %v11328, %v10877
  %v11395 = vsel %vm11361, %v11330, %v10879
  %v11397 = vsel %vm11361, %v11332, %v10881
  %v11399 = vsel %vm11361, %v11334, %v10883
  %v11401 = vsel %vm11361, %v11336, %v10885
  %v11403 = vsel %vm11361, %v11338, %v10887
  %v11405 = vsel %vm11361, %v11340, %v10889
  %v11407 = vsel %vm11361, %v11342, %v10891
  %v11409 = vsel %vm11361, %v11344, %v10893
  %v11411 = vsel %vm11361, %v11346, %v10895
  %v11413 = vsel %vm11361, %v11348, %v10897
  %v11415 = vsel %vm11361, %v11350, %v10899
  %v11417 = vsel %vm11361, %v11352, %v10901
  %v11419 = vsel %vm11361, %v11354, %v10903
  %v11421 = vsel %vm11361, %v11356, %v10905
  %v11423 = vsel %vm11361, %v11358, %v10907
  %v11425 = vsel %vm11361, %v11360, %v10909
  %vm11426 = vcmask 588800
  %v11427 = vsel %vm11426, %v11363, 0
  %v11429 = vsel %vm11426, %v11365, 0
  %v11431 = vsel %vm11426, %v11367, 0
  %v11433 = vsel %vm11426, %v11369, 0
  %v11435 = vsel %vm11426, %v11371, 0
  %v11437 = vsel %vm11426, %v11373, 0
  %v11439 = vsel %vm11426, %v11375, 0
  %v11441 = vsel %vm11426, %v11377, 0
  %v11443 = vsel %vm11426, %v11379, 0
  %v11445 = vsel %vm11426, %v11381, 0
  %v11447 = vsel %vm11426, %v11383, 0
  %v11449 = vsel %vm11426, %v11385, 0
  %v11451 = vsel %vm11426, %v11387, 0
  %v11453 = vsel %vm11426, %v11389, 0
  %v11455 = vsel %vm11426, %v11391, 0
  %v11457 = vsel %vm11426, %v11393, 0
  %v11459 = vsel %vm11426, %v11395, 0
  %v11461 = vsel %vm11426, %v11397, 0
  %v11463 = vsel %vm11426, %v11399, 0
  %v11465 = vsel %vm11426, %v11401, 0
  %v11467 = vsel %vm11426, %v11403, 0
  %v11469 = vsel %vm11426, %v11405, 0
  %v11471 = vsel %vm11426, %v11407, 0
  %v11473 = vsel %vm11426, %v11409, 0
  %v11475 = vsel %vm11426, %v11411, 0
  %v11477 = vsel %vm11426, %v11413, 0
  %v11479 = vsel %vm11426, %v11415, 0
  %v11481 = vsel %vm11426, %v11417, 0
  %v11483 = vsel %vm11426, %v11419, 0
  %v11485 = vsel %vm11426, %v11421, 0
  %v11487 = vsel %vm11426, %v11423, 0
  %v11489 = vsel %vm11426, %v11425, 0
  %v11491 = vld [vmem:[%s4] sm:$0xf]
  %v11492 = vld [vmem:[%s4 + $0x4] sm:$0xf]
  %v11493 = vld [vmem:[%s4 + $0x8] sm:$0xf]
  %v11494 = vld [vmem:[%s4 + $0xc] sm:$0xf]
  %v11495 = vld [vmem:[%s4 + $0x10] sm:$0xf]
  %v11496 = vld [vmem:[%s4 + $0x14] sm:$0xf]
  %v11497 = vld [vmem:[%s4 + $0x18] sm:$0xf]
  %v11498 = vld [vmem:[%s4 + $0x1c] sm:$0xf]
  %v11499 = vld [vmem:[%s4 + $0x20] sm:$0xf]
  %v11500 = vld [vmem:[%s4 + $0x24] sm:$0xf]
  %v11501 = vld [vmem:[%s4 + $0x28] sm:$0xf]
  %v11502 = vld [vmem:[%s4 + $0x2c] sm:$0xf]
  %v11503 = vld [vmem:[%s4 + $0x30] sm:$0xf]
  %v11504 = vld [vmem:[%s4 + $0x34] sm:$0xf]
  %v11505 = vld [vmem:[%s4 + $0x38] sm:$0xf]
  %v11506 = vld [vmem:[%s4 + $0x3c] sm:$0xf]
  %v11523 = vunpack.c.l.b16 %v11491
  %v11524 = vunpack.c.l.b16 %v11492
  %v11525 = vunpack.c.l.b16 %v11493
  %v11526 = vunpack.c.l.b16 %v11494
  %v11527 = vunpack.c.l.b16 %v11495
  %v11528 = vunpack.c.l.b16 %v11496
  %v11529 = vunpack.c.l.b16 %v11497
  %v11530 = vunpack.c.l.b16 %v11498
  %v11531 = vunpack.c.l.b16 %v11499
  %v11532 = vunpack.c.l.b16 %v11500
  %v11533 = vunpack.c.l.b16 %v11501
  %v11534 = vunpack.c.l.b16 %v11502
  %v11535 = vunpack.c.l.b16 %v11503
  %v11536 = vunpack.c.l.b16 %v11504
  %v11537 = vunpack.c.l.b16 %v11505
  %v11538 = vunpack.c.l.b16 %v11506
  %v11539 = vpack.c.b16 %v11524, %v11523
  %v11540 = vpack.c.b16 %v11526, %v11525
  %v11541 = vpack.c.b16 %v11528, %v11527
  %v11542 = vpack.c.b16 %v11530, %v11529
  %v11543 = vpack.c.b16 %v11532, %v11531
  %v11544 = vpack.c.b16 %v11534, %v11533
  %v11545 = vpack.c.b16 %v11536, %v11535
  %v11546 = vpack.c.b16 %v11538, %v11537
  %11555 = vmatpush.bf16.msra.mxu0 %v11546
  %11556 = vmatpush.bf16.msra.mxu0 %v11545
  %11557 = vmatpush.bf16.msra.mxu0 %v11544
  %11558 = vmatpush.bf16.msra.mxu0 %v11543
  %11559 = vmatpush.bf16.msra.mxu0 %v11542
  %11560 = vmatpush.bf16.msra.mxu0 %v11541
  %11561 = vmatpush.bf16.msra.mxu0 %v11540
  %11562 = vmatpush.bf16.msra.mxu0 %v11539
  %11563 = vmatmul.bf16.gmra.mxu0 %v11427
  %v11564 = vpop.f32.mrf.mxu0
  %v11565 = vadd.f32 0.0, %v11564
  %v11566 = vpop.f32.mrf.mxu0
  %v11567 = vadd.f32 0.0, %v11566
  %11568 = vmatmul.bf16.gmra.mxu0 %v11429
  %v11569 = vpop.f32.mrf.mxu0
  %v11570 = vadd.f32 0.0, %v11569
  %v11571 = vpop.f32.mrf.mxu0
  %v11572 = vadd.f32 0.0, %v11571
  %11573 = vmatmul.bf16.gmra.mxu0 %v11431
  %v11574 = vpop.f32.mrf.mxu0
  %v11575 = vadd.f32 0.0, %v11574
  %v11576 = vpop.f32.mrf.mxu0
  %v11577 = vadd.f32 0.0, %v11576
  %11578 = vmatmul.bf16.gmra.mxu0 %v11433
  %v11579 = vpop.f32.mrf.mxu0
  %v11580 = vadd.f32 0.0, %v11579
  %v11581 = vpop.f32.mrf.mxu0
  %v11582 = vadd.f32 0.0, %v11581
  %11583 = vmatmul.bf16.gmra.mxu0 %v11435
  %v11584 = vpop.f32.mrf.mxu0
  %v11585 = vadd.f32 0.0, %v11584
  %v11586 = vpop.f32.mrf.mxu0
  %v11587 = vadd.f32 0.0, %v11586
  %11588 = vmatmul.bf16.gmra.mxu0 %v11437
  %v11589 = vpop.f32.mrf.mxu0
  %v11590 = vadd.f32 0.0, %v11589
  %v11591 = vpop.f32.mrf.mxu0
  %v11592 = vadd.f32 0.0, %v11591
  %11593 = vmatmul.bf16.gmra.mxu0 %v11439
  %v11594 = vpop.f32.mrf.mxu0
  %v11595 = vadd.f32 0.0, %v11594
  %v11596 = vpop.f32.mrf.mxu0
  %v11597 = vadd.f32 0.0, %v11596
  %11598 = vmatmul.bf16.gmra.mxu0 %v11441
  %v11599 = vpop.f32.mrf.mxu0
  %v11600 = vadd.f32 0.0, %v11599
  %v11601 = vpop.f32.mrf.mxu0
  %v11602 = vadd.f32 0.0, %v11601
  %11603 = vmatmul.bf16.gmra.mxu0 %v11443
  %v11604 = vpop.f32.mrf.mxu0
  %v11605 = vadd.f32 0.0, %v11604
  %v11606 = vpop.f32.mrf.mxu0
  %v11607 = vadd.f32 0.0, %v11606
  %11608 = vmatmul.bf16.gmra.mxu0 %v11445
  %v11609 = vpop.f32.mrf.mxu0
  %v11610 = vadd.f32 0.0, %v11609
  %v11611 = vpop.f32.mrf.mxu0
  %v11612 = vadd.f32 0.0, %v11611
  %11613 = vmatmul.bf16.gmra.mxu0 %v11447
  %v11614 = vpop.f32.mrf.mxu0
  %v11615 = vadd.f32 0.0, %v11614
  %v11616 = vpop.f32.mrf.mxu0
  %v11617 = vadd.f32 0.0, %v11616
  %11618 = vmatmul.bf16.gmra.mxu0 %v11449
  %v11619 = vpop.f32.mrf.mxu0
  %v11620 = vadd.f32 0.0, %v11619
  %v11621 = vpop.f32.mrf.mxu0
  %v11622 = vadd.f32 0.0, %v11621
  %11623 = vmatmul.bf16.gmra.mxu0 %v11451
  %v11624 = vpop.f32.mrf.mxu0
  %v11625 = vadd.f32 0.0, %v11624
  %v11626 = vpop.f32.mrf.mxu0
  %v11627 = vadd.f32 0.0, %v11626
  %11628 = vmatmul.bf16.gmra.mxu0 %v11453
  %v11629 = vpop.f32.mrf.mxu0
  %v11630 = vadd.f32 0.0, %v11629
  %v11631 = vpop.f32.mrf.mxu0
  %v11632 = vadd.f32 0.0, %v11631
  %11633 = vmatmul.bf16.gmra.mxu0 %v11455
  %v11634 = vpop.f32.mrf.mxu0
  %v11635 = vadd.f32 0.0, %v11634
  %v11636 = vpop.f32.mrf.mxu0
  %v11637 = vadd.f32 0.0, %v11636
  %11638 = vmatmul.bf16.gmra.mxu0 %v11457
  %v11639 = vpop.f32.mrf.mxu0
  %v11640 = vadd.f32 0.0, %v11639
  %v11641 = vpop.f32.mrf.mxu0
  %v11642 = vadd.f32 0.0, %v11641
  %11643 = vmatmul.bf16.gmra.mxu0 %v11459
  %v11644 = vpop.f32.mrf.mxu0
  %v11645 = vadd.f32 0.0, %v11644
  %v11646 = vpop.f32.mrf.mxu0
  %v11647 = vadd.f32 0.0, %v11646
  %11648 = vmatmul.bf16.gmra.mxu0 %v11461
  %v11649 = vpop.f32.mrf.mxu0
  %v11650 = vadd.f32 0.0, %v11649
  %v11651 = vpop.f32.mrf.mxu0
  %v11652 = vadd.f32 0.0, %v11651
  %11653 = vmatmul.bf16.gmra.mxu0 %v11463
  %v11654 = vpop.f32.mrf.mxu0
  %v11655 = vadd.f32 0.0, %v11654
  %v11656 = vpop.f32.mrf.mxu0
  %v11657 = vadd.f32 0.0, %v11656
  %11658 = vmatmul.bf16.gmra.mxu0 %v11465
  %v11659 = vpop.f32.mrf.mxu0
  %v11660 = vadd.f32 0.0, %v11659
  %v11661 = vpop.f32.mrf.mxu0
  %v11662 = vadd.f32 0.0, %v11661
  %11663 = vmatmul.bf16.gmra.mxu0 %v11467
  %v11664 = vpop.f32.mrf.mxu0
  %v11665 = vadd.f32 0.0, %v11664
  %v11666 = vpop.f32.mrf.mxu0
  %v11667 = vadd.f32 0.0, %v11666
  %11668 = vmatmul.bf16.gmra.mxu0 %v11469
  %v11669 = vpop.f32.mrf.mxu0
  %v11670 = vadd.f32 0.0, %v11669
  %v11671 = vpop.f32.mrf.mxu0
  %v11672 = vadd.f32 0.0, %v11671
  %11673 = vmatmul.bf16.gmra.mxu0 %v11471
  %v11674 = vpop.f32.mrf.mxu0
  %v11675 = vadd.f32 0.0, %v11674
  %v11676 = vpop.f32.mrf.mxu0
  %v11677 = vadd.f32 0.0, %v11676
  %11678 = vmatmul.bf16.gmra.mxu0 %v11473
  %v11679 = vpop.f32.mrf.mxu0
  %v11680 = vadd.f32 0.0, %v11679
  %v11681 = vpop.f32.mrf.mxu0
  %v11682 = vadd.f32 0.0, %v11681
  %11683 = vmatmul.bf16.gmra.mxu0 %v11475
  %v11684 = vpop.f32.mrf.mxu0
  %v11685 = vadd.f32 0.0, %v11684
  %v11686 = vpop.f32.mrf.mxu0
  %v11687 = vadd.f32 0.0, %v11686
  %11688 = vmatmul.bf16.gmra.mxu0 %v11477
  %v11689 = vpop.f32.mrf.mxu0
  %v11690 = vadd.f32 0.0, %v11689
  %v11691 = vpop.f32.mrf.mxu0
  %v11692 = vadd.f32 0.0, %v11691
  %11693 = vmatmul.bf16.gmra.mxu0 %v11479
  %v11694 = vpop.f32.mrf.mxu0
  %v11695 = vadd.f32 0.0, %v11694
  %v11696 = vpop.f32.mrf.mxu0
  %v11697 = vadd.f32 0.0, %v11696
  %11698 = vmatmul.bf16.gmra.mxu0 %v11481
  %v11699 = vpop.f32.mrf.mxu0
  %v11700 = vadd.f32 0.0, %v11699
  %v11701 = vpop.f32.mrf.mxu0
  %v11702 = vadd.f32 0.0, %v11701
  %11703 = vmatmul.bf16.gmra.mxu0 %v11483
  %v11704 = vpop.f32.mrf.mxu0
  %v11705 = vadd.f32 0.0, %v11704
  %v11706 = vpop.f32.mrf.mxu0
  %v11707 = vadd.f32 0.0, %v11706
  %11708 = vmatmul.bf16.gmra.mxu0 %v11485
  %v11709 = vpop.f32.mrf.mxu0
  %v11710 = vadd.f32 0.0, %v11709
  %v11711 = vpop.f32.mrf.mxu0
  %v11712 = vadd.f32 0.0, %v11711
  %11713 = vmatmul.bf16.gmra.mxu0 %v11487
  %v11714 = vpop.f32.mrf.mxu0
  %v11715 = vadd.f32 0.0, %v11714
  %v11716 = vpop.f32.mrf.mxu0
  %v11717 = vadd.f32 0.0, %v11716
  %11718 = vmatmul.bf16.gmra.mxu0 %v11489
  %v11719 = vpop.f32.mrf.mxu0
  %v11720 = vadd.f32 0.0, %v11719
  %v11721 = vpop.f32.mrf.mxu0
  %v11722 = vadd.f32 0.0, %v11721
  %11723 = vdwg.mxu0
  %v11724 = vld [vmem:[%s5] sm:$0x1]
  %v11725 = vld [vmem:[%s6] sm:$0x1]
  %v11726 = vadd.f32 %v11565, %v11567
  %v11727 = vadd.f32 %v11726, %v11570
  %v11728 = vadd.f32 %v11727, %v11572
  %v11729 = vadd.f32 %v11728, %v11575
  %v11730 = vadd.f32 %v11729, %v11577
  %v11731 = vadd.f32 %v11730, %v11580
  %v11732 = vadd.f32 %v11731, %v11582
  %v11733 = vadd.f32 %v11732, %v11585
  %v11734 = vadd.f32 %v11733, %v11587
  %v11735 = vadd.f32 %v11734, %v11590
  %v11736 = vadd.f32 %v11735, %v11592
  %v11737 = vadd.f32 %v11736, %v11595
  %v11738 = vadd.f32 %v11737, %v11597
  %v11739 = vadd.f32 %v11738, %v11600
  %v11740 = vadd.f32 %v11739, %v11602
  %v11741 = vadd.f32 %v11740, %v11605
  %v11742 = vadd.f32 %v11741, %v11607
  %v11743 = vadd.f32 %v11742, %v11610
  %v11744 = vadd.f32 %v11743, %v11612
  %v11745 = vadd.f32 %v11744, %v11615
  %v11746 = vadd.f32 %v11745, %v11617
  %v11747 = vadd.f32 %v11746, %v11620
  %v11748 = vadd.f32 %v11747, %v11622
  %v11749 = vadd.f32 %v11748, %v11625
  %v11750 = vadd.f32 %v11749, %v11627
  %v11751 = vadd.f32 %v11750, %v11630
  %v11752 = vadd.f32 %v11751, %v11632
  %v11753 = vadd.f32 %v11752, %v11635
  %v11754 = vadd.f32 %v11753, %v11637
  %v11755 = vadd.f32 %v11754, %v11640
  %v11756 = vadd.f32 %v11755, %v11642
  %v11757 = vadd.f32 %v11756, %v11645
  %v11758 = vadd.f32 %v11757, %v11647
  %v11759 = vadd.f32 %v11758, %v11650
  %v11760 = vadd.f32 %v11759, %v11652
  %v11761 = vadd.f32 %v11760, %v11655
  %v11762 = vadd.f32 %v11761, %v11657
  %v11763 = vadd.f32 %v11762, %v11660
  %v11764 = vadd.f32 %v11763, %v11662
  %v11765 = vadd.f32 %v11764, %v11665
  %v11766 = vadd.f32 %v11765, %v11667
  %v11767 = vadd.f32 %v11766, %v11670
  %v11768 = vadd.f32 %v11767, %v11672
  %v11769 = vadd.f32 %v11768, %v11675
  %v11770 = vadd.f32 %v11769, %v11677
  %v11771 = vadd.f32 %v11770, %v11680
  %v11772 = vadd.f32 %v11771, %v11682
  %v11773 = vadd.f32 %v11772, %v11685
  %v11774 = vadd.f32 %v11773, %v11687
  %v11775 = vadd.f32 %v11774, %v11690
  %v11776 = vadd.f32 %v11775, %v11692
  %v11777 = vadd.f32 %v11776, %v11695
  %v11778 = vadd.f32 %v11777, %v11697
  %v11779 = vadd.f32 %v11778, %v11700
  %v11780 = vadd.f32 %v11779, %v11702
  %v11781 = vadd.f32 %v11780, %v11705
  %v11782 = vadd.f32 %v11781, %v11707
  %v11783 = vadd.f32 %v11782, %v11710
  %v11784 = vadd.f32 %v11783, %v11712
  %v11785 = vadd.f32 %v11784, %v11715
  %v11786 = vadd.f32 %v11785, %v11717
  %v11787 = vadd.f32 %v11786, %v11720
  %v11788 = vadd.f32 %v11787, %v11722
  %v11789 = vrot.slane %v11788, 4
  %v11790 = vadd.f32 %v11788, %v11789
  %v11791 = vrot.slane %v11790, 2
  %v11792 = vadd.f32 %v11790, %v11791
  %v11793 = vrot.slane %v11792, 1
  %v11794 = vadd.f32 %v11792, %v11793
  %v11795 = vmul.f32 %v11794, 0.001953125
  %v11796 = vsub.f32 %v11565, %v11795
  %v11797 = vsub.f32 %v11567, %v11795
  %v11798 = vsub.f32 %v11570, %v11795
  %v11799 = vsub.f32 %v11572, %v11795
  %v11800 = vsub.f32 %v11575, %v11795
  %v11801 = vsub.f32 %v11577, %v11795
  %v11802 = vsub.f32 %v11580, %v11795
  %v11803 = vsub.f32 %v11582, %v11795
  %v11804 = vsub.f32 %v11585, %v11795
  %v11805 = vsub.f32 %v11587, %v11795
  %v11806 = vsub.f32 %v11590, %v11795
  %v11807 = vsub.f32 %v11592, %v11795
  %v11808 = vsub.f32 %v11595, %v11795
  %v11809 = vsub.f32 %v11597, %v11795
  %v11810 = vsub.f32 %v11600, %v11795
  %v11811 = vsub.f32 %v11602, %v11795
  %v11812 = vsub.f32 %v11605, %v11795
  %v11813 = vsub.f32 %v11607, %v11795
  %v11814 = vsub.f32 %v11610, %v11795
  %v11815 = vsub.f32 %v11612, %v11795
  %v11816 = vsub.f32 %v11615, %v11795
  %v11817 = vsub.f32 %v11617, %v11795
  %v11818 = vsub.f32 %v11620, %v11795
  %v11819 = vsub.f32 %v11622, %v11795
  %v11820 = vsub.f32 %v11625, %v11795
  %v11821 = vsub.f32 %v11627, %v11795
  %v11822 = vsub.f32 %v11630, %v11795
  %v11823 = vsub.f32 %v11632, %v11795
  %v11824 = vsub.f32 %v11635, %v11795
  %v11825 = vsub.f32 %v11637, %v11795
  %v11826 = vsub.f32 %v11640, %v11795
  %v11827 = vsub.f32 %v11642, %v11795
  %v11828 = vsub.f32 %v11645, %v11795
  %v11829 = vsub.f32 %v11647, %v11795
  %v11830 = vsub.f32 %v11650, %v11795
  %v11831 = vsub.f32 %v11652, %v11795
  %v11832 = vsub.f32 %v11655, %v11795
  %v11833 = vsub.f32 %v11657, %v11795
  %v11834 = vsub.f32 %v11660, %v11795
  %v11835 = vsub.f32 %v11662, %v11795
  %v11836 = vsub.f32 %v11665, %v11795
  %v11837 = vsub.f32 %v11667, %v11795
  %v11838 = vsub.f32 %v11670, %v11795
  %v11839 = vsub.f32 %v11672, %v11795
  %v11840 = vsub.f32 %v11675, %v11795
  %v11841 = vsub.f32 %v11677, %v11795
  %v11842 = vsub.f32 %v11680, %v11795
  %v11843 = vsub.f32 %v11682, %v11795
  %v11844 = vsub.f32 %v11685, %v11795
  %v11845 = vsub.f32 %v11687, %v11795
  %v11846 = vsub.f32 %v11690, %v11795
  %v11847 = vsub.f32 %v11692, %v11795
  %v11848 = vsub.f32 %v11695, %v11795
  %v11849 = vsub.f32 %v11697, %v11795
  %v11850 = vsub.f32 %v11700, %v11795
  %v11851 = vsub.f32 %v11702, %v11795
  %v11852 = vsub.f32 %v11705, %v11795
  %v11853 = vsub.f32 %v11707, %v11795
  %v11854 = vsub.f32 %v11710, %v11795
  %v11855 = vsub.f32 %v11712, %v11795
  %v11856 = vsub.f32 %v11715, %v11795
  %v11857 = vsub.f32 %v11717, %v11795
  %v11858 = vsub.f32 %v11720, %v11795
  %v11859 = vsub.f32 %v11722, %v11795
  %v11860 = vmul.f32 %v11796, %v11796
  %v11861 = vmul.f32 %v11797, %v11797
  %v11862 = vmul.f32 %v11798, %v11798
  %v11863 = vmul.f32 %v11799, %v11799
  %v11864 = vmul.f32 %v11800, %v11800
  %v11865 = vmul.f32 %v11801, %v11801
  %v11866 = vmul.f32 %v11802, %v11802
  %v11867 = vmul.f32 %v11803, %v11803
  %v11868 = vmul.f32 %v11804, %v11804
  %v11869 = vmul.f32 %v11805, %v11805
  %v11870 = vmul.f32 %v11806, %v11806
  %v11871 = vmul.f32 %v11807, %v11807
  %v11872 = vmul.f32 %v11808, %v11808
  %v11873 = vmul.f32 %v11809, %v11809
  %v11874 = vmul.f32 %v11810, %v11810
  %v11875 = vmul.f32 %v11811, %v11811
  %v11876 = vmul.f32 %v11812, %v11812
  %v11877 = vmul.f32 %v11813, %v11813
  %v11878 = vmul.f32 %v11814, %v11814
  %v11879 = vmul.f32 %v11815, %v11815
  %v11880 = vmul.f32 %v11816, %v11816
  %v11881 = vmul.f32 %v11817, %v11817
  %v11882 = vmul.f32 %v11818, %v11818
  %v11883 = vmul.f32 %v11819, %v11819
  %v11884 = vmul.f32 %v11820, %v11820
  %v11885 = vmul.f32 %v11821, %v11821
  %v11886 = vmul.f32 %v11822, %v11822
  %v11887 = vmul.f32 %v11823, %v11823
  %v11888 = vmul.f32 %v11824, %v11824
  %v11889 = vmul.f32 %v11825, %v11825
  %v11890 = vmul.f32 %v11826, %v11826
  %v11891 = vmul.f32 %v11827, %v11827
  %v11892 = vmul.f32 %v11828, %v11828
  %v11893 = vmul.f32 %v11829, %v11829
  %v11894 = vmul.f32 %v11830, %v11830
  %v11895 = vmul.f32 %v11831, %v11831
  %v11896 = vmul.f32 %v11832, %v11832
  %v11897 = vmul.f32 %v11833, %v11833
  %v11898 = vmul.f32 %v11834, %v11834
  %v11899 = vmul.f32 %v11835, %v11835
  %v11900 = vmul.f32 %v11836, %v11836
  %v11901 = vmul.f32 %v11837, %v11837
  %v11902 = vmul.f32 %v11838, %v11838
  %v11903 = vmul.f32 %v11839, %v11839
  %v11904 = vmul.f32 %v11840, %v11840
  %v11905 = vmul.f32 %v11841, %v11841
  %v11906 = vmul.f32 %v11842, %v11842
  %v11907 = vmul.f32 %v11843, %v11843
  %v11908 = vmul.f32 %v11844, %v11844
  %v11909 = vmul.f32 %v11845, %v11845
  %v11910 = vmul.f32 %v11846, %v11846
  %v11911 = vmul.f32 %v11847, %v11847
  %v11912 = vmul.f32 %v11848, %v11848
  %v11913 = vmul.f32 %v11849, %v11849
  %v11914 = vmul.f32 %v11850, %v11850
  %v11915 = vmul.f32 %v11851, %v11851
  %v11916 = vmul.f32 %v11852, %v11852
  %v11917 = vmul.f32 %v11853, %v11853
  %v11918 = vmul.f32 %v11854, %v11854
  %v11919 = vmul.f32 %v11855, %v11855
  %v11920 = vmul.f32 %v11856, %v11856
  %v11921 = vmul.f32 %v11857, %v11857
  %v11922 = vmul.f32 %v11858, %v11858
  %v11923 = vmul.f32 %v11859, %v11859
  %v11924 = vadd.f32 %v11860, %v11861
  %v11925 = vadd.f32 %v11924, %v11862
  %v11926 = vadd.f32 %v11925, %v11863
  %v11927 = vadd.f32 %v11926, %v11864
  %v11928 = vadd.f32 %v11927, %v11865
  %v11929 = vadd.f32 %v11928, %v11866
  %v11930 = vadd.f32 %v11929, %v11867
  %v11931 = vadd.f32 %v11930, %v11868
  %v11932 = vadd.f32 %v11931, %v11869
  %v11933 = vadd.f32 %v11932, %v11870
  %v11934 = vadd.f32 %v11933, %v11871
  %v11935 = vadd.f32 %v11934, %v11872
  %v11936 = vadd.f32 %v11935, %v11873
  %v11937 = vadd.f32 %v11936, %v11874
  %v11938 = vadd.f32 %v11937, %v11875
  %v11939 = vadd.f32 %v11938, %v11876
  %v11940 = vadd.f32 %v11939, %v11877
  %v11941 = vadd.f32 %v11940, %v11878
  %v11942 = vadd.f32 %v11941, %v11879
  %v11943 = vadd.f32 %v11942, %v11880
  %v11944 = vadd.f32 %v11943, %v11881
  %v11945 = vadd.f32 %v11944, %v11882
  %v11946 = vadd.f32 %v11945, %v11883
  %v11947 = vadd.f32 %v11946, %v11884
  %v11948 = vadd.f32 %v11947, %v11885
  %v11949 = vadd.f32 %v11948, %v11886
  %v11950 = vadd.f32 %v11949, %v11887
  %v11951 = vadd.f32 %v11950, %v11888
  %v11952 = vadd.f32 %v11951, %v11889
  %v11953 = vadd.f32 %v11952, %v11890
  %v11954 = vadd.f32 %v11953, %v11891
  %v11955 = vadd.f32 %v11954, %v11892
  %v11956 = vadd.f32 %v11955, %v11893
  %v11957 = vadd.f32 %v11956, %v11894
  %v11958 = vadd.f32 %v11957, %v11895
  %v11959 = vadd.f32 %v11958, %v11896
  %v11960 = vadd.f32 %v11959, %v11897
  %v11961 = vadd.f32 %v11960, %v11898
  %v11962 = vadd.f32 %v11961, %v11899
  %v11963 = vadd.f32 %v11962, %v11900
  %v11964 = vadd.f32 %v11963, %v11901
  %v11965 = vadd.f32 %v11964, %v11902
  %v11966 = vadd.f32 %v11965, %v11903
  %v11967 = vadd.f32 %v11966, %v11904
  %v11968 = vadd.f32 %v11967, %v11905
  %v11969 = vadd.f32 %v11968, %v11906
  %v11970 = vadd.f32 %v11969, %v11907
  %v11971 = vadd.f32 %v11970, %v11908
  %v11972 = vadd.f32 %v11971, %v11909
  %v11973 = vadd.f32 %v11972, %v11910
  %v11974 = vadd.f32 %v11973, %v11911
  %v11975 = vadd.f32 %v11974, %v11912
  %v11976 = vadd.f32 %v11975, %v11913
  %v11977 = vadd.f32 %v11976, %v11914
  %v11978 = vadd.f32 %v11977, %v11915
  %v11979 = vadd.f32 %v11978, %v11916
  %v11980 = vadd.f32 %v11979, %v11917
  %v11981 = vadd.f32 %v11980, %v11918
  %v11982 = vadd.f32 %v11981, %v11919
  %v11983 = vadd.f32 %v11982, %v11920
  %v11984 = vadd.f32 %v11983, %v11921
  %v11985 = vadd.f32 %v11984, %v11922
  %v11986 = vadd.f32 %v11985, %v11923
  %v11987 = vrot.slane %v11986, 4
  %v11988 = vadd.f32 %v11986, %v11987
  %v11989 = vrot.slane %v11988, 2
  %v11990 = vadd.f32 %v11988, %v11989
  %v11991 = vrot.slane %v11990, 1
  %v11992 = vadd.f32 %v11990, %v11991
  %v11993 = vmul.f32 %v11992, 0.001953125
  %v11994 = vadd.f32 %v11993, 1e-05
  %v11995 = vrsqrt.pop %v11994
  %v11996 = vmul.f32 %v11995, %v11994
  %v11997 = vmul.f32 %v11996, %v11995
  %v11998 = vmul.f32 0.5, %v11997
  %v11999 = vsub.f32 1.5, %v11998
  %v12000 = vmul.f32 %v11995, %v11999
  %vm12001 = vweird.f32 %v11994
  %vm12002 = vweird.f32 %v11995
  %vm12003 = vmor %vm12001, %vm12002
  %v12004 = vsel %vm12003, %v11995, %v12000
  %v12005 = vmul.f32 %v12004, %v11724
  %v12006 = vperm.slane %v12005, 0
  %v12007 = vmul.f32 %v11796, %v12006
  %v12008 = vmul.f32 %v11797, %v12006
  %v12009 = vmul.f32 %v11798, %v12006
  %v12010 = vmul.f32 %v11799, %v12006
  %v12011 = vmul.f32 %v11800, %v12006
  %v12012 = vmul.f32 %v11801, %v12006
  %v12013 = vmul.f32 %v11802, %v12006
  %v12014 = vmul.f32 %v11803, %v12006
  %v12015 = vmul.f32 %v11804, %v12006
  %v12016 = vmul.f32 %v11805, %v12006
  %v12017 = vmul.f32 %v11806, %v12006
  %v12018 = vmul.f32 %v11807, %v12006
  %v12019 = vmul.f32 %v11808, %v12006
  %v12020 = vmul.f32 %v11809, %v12006
  %v12021 = vmul.f32 %v11810, %v12006
  %v12022 = vmul.f32 %v11811, %v12006
  %v12023 = vmul.f32 %v11812, %v12006
  %v12024 = vmul.f32 %v11813, %v12006
  %v12025 = vmul.f32 %v11814, %v12006
  %v12026 = vmul.f32 %v11815, %v12006
  %v12027 = vmul.f32 %v11816, %v12006
  %v12028 = vmul.f32 %v11817, %v12006
  %v12029 = vmul.f32 %v11818, %v12006
  %v12030 = vmul.f32 %v11819, %v12006
  %v12031 = vmul.f32 %v11820, %v12006
  %v12032 = vmul.f32 %v11821, %v12006
  %v12033 = vmul.f32 %v11822, %v12006
  %v12034 = vmul.f32 %v11823, %v12006
  %v12035 = vmul.f32 %v11824, %v12006
  %v12036 = vmul.f32 %v11825, %v12006
  %v12037 = vmul.f32 %v11826, %v12006
  %v12038 = vmul.f32 %v11827, %v12006
  %v12039 = vmul.f32 %v11828, %v12006
  %v12040 = vmul.f32 %v11829, %v12006
  %v12041 = vmul.f32 %v11830, %v12006
  %v12042 = vmul.f32 %v11831, %v12006
  %v12043 = vmul.f32 %v11832, %v12006
  %v12044 = vmul.f32 %v11833, %v12006
  %v12045 = vmul.f32 %v11834, %v12006
  %v12046 = vmul.f32 %v11835, %v12006
  %v12047 = vmul.f32 %v11836, %v12006
  %v12048 = vmul.f32 %v11837, %v12006
  %v12049 = vmul.f32 %v11838, %v12006
  %v12050 = vmul.f32 %v11839, %v12006
  %v12051 = vmul.f32 %v11840, %v12006
  %v12052 = vmul.f32 %v11841, %v12006
  %v12053 = vmul.f32 %v11842, %v12006
  %v12054 = vmul.f32 %v11843, %v12006
  %v12055 = vmul.f32 %v11844, %v12006
  %v12056 = vmul.f32 %v11845, %v12006
  %v12057 = vmul.f32 %v11846, %v12006
  %v12058 = vmul.f32 %v11847, %v12006
  %v12059 = vmul.f32 %v11848, %v12006
  %v12060 = vmul.f32 %v11849, %v12006
  %v12061 = vmul.f32 %v11850, %v12006
  %v12062 = vmul.f32 %v11851, %v12006
  %v12063 = vmul.f32 %v11852, %v12006
  %v12064 = vmul.f32 %v11853, %v12006
  %v12065 = vmul.f32 %v11854, %v12006
  %v12066 = vmul.f32 %v11855, %v12006
  %v12067 = vmul.f32 %v11856, %v12006
  %v12068 = vmul.f32 %v11857, %v12006
  %v12069 = vmul.f32 %v11858, %v12006
  %v12070 = vmul.f32 %v11859, %v12006
  %v12072 = vperm.slane %v11725, 0
  %v12074 = vadd.f32 %v12007, %v12072
  %v12075 = vadd.f32 %v12008, %v12072
  %v12076 = vadd.f32 %v12009, %v12072
  %v12077 = vadd.f32 %v12010, %v12072
  %v12078 = vadd.f32 %v12011, %v12072
  %v12079 = vadd.f32 %v12012, %v12072
  %v12080 = vadd.f32 %v12013, %v12072
  %v12081 = vadd.f32 %v12014, %v12072
  %v12082 = vadd.f32 %v12015, %v12072
  %v12083 = vadd.f32 %v12016, %v12072
  %v12084 = vadd.f32 %v12017, %v12072
  %v12085 = vadd.f32 %v12018, %v12072
  %v12086 = vadd.f32 %v12019, %v12072
  %v12087 = vadd.f32 %v12020, %v12072
  %v12088 = vadd.f32 %v12021, %v12072
  %v12089 = vadd.f32 %v12022, %v12072
  %v12090 = vadd.f32 %v12023, %v12072
  %v12091 = vadd.f32 %v12024, %v12072
  %v12092 = vadd.f32 %v12025, %v12072
  %v12093 = vadd.f32 %v12026, %v12072
  %v12094 = vadd.f32 %v12027, %v12072
  %v12095 = vadd.f32 %v12028, %v12072
  %v12096 = vadd.f32 %v12029, %v12072
  %v12097 = vadd.f32 %v12030, %v12072
  %v12098 = vadd.f32 %v12031, %v12072
  %v12099 = vadd.f32 %v12032, %v12072
  %v12100 = vadd.f32 %v12033, %v12072
  %v12101 = vadd.f32 %v12034, %v12072
  %v12102 = vadd.f32 %v12035, %v12072
  %v12103 = vadd.f32 %v12036, %v12072
  %v12104 = vadd.f32 %v12037, %v12072
  %v12105 = vadd.f32 %v12038, %v12072
  %v12106 = vadd.f32 %v12039, %v12072
  %v12107 = vadd.f32 %v12040, %v12072
  %v12108 = vadd.f32 %v12041, %v12072
  %v12109 = vadd.f32 %v12042, %v12072
  %v12110 = vadd.f32 %v12043, %v12072
  %v12111 = vadd.f32 %v12044, %v12072
  %v12112 = vadd.f32 %v12045, %v12072
  %v12113 = vadd.f32 %v12046, %v12072
  %v12114 = vadd.f32 %v12047, %v12072
  %v12115 = vadd.f32 %v12048, %v12072
  %v12116 = vadd.f32 %v12049, %v12072
  %v12117 = vadd.f32 %v12050, %v12072
  %v12118 = vadd.f32 %v12051, %v12072
  %v12119 = vadd.f32 %v12052, %v12072
  %v12120 = vadd.f32 %v12053, %v12072
  %v12121 = vadd.f32 %v12054, %v12072
  %v12122 = vadd.f32 %v12055, %v12072
  %v12123 = vadd.f32 %v12056, %v12072
  %v12124 = vadd.f32 %v12057, %v12072
  %v12125 = vadd.f32 %v12058, %v12072
  %v12126 = vadd.f32 %v12059, %v12072
  %v12127 = vadd.f32 %v12060, %v12072
  %v12128 = vadd.f32 %v12061, %v12072
  %v12129 = vadd.f32 %v12062, %v12072
  %v12130 = vadd.f32 %v12063, %v12072
  %v12131 = vadd.f32 %v12064, %v12072
  %v12132 = vadd.f32 %v12065, %v12072
  %v12133 = vadd.f32 %v12066, %v12072
  %v12134 = vadd.f32 %v12067, %v12072
  %v12135 = vadd.f32 %v12068, %v12072
  %v12136 = vadd.f32 %v12069, %v12072
  %v12137 = vadd.f32 %v12070, %v12072
  %v12138 = vadd.f32 %v6525, %v12074
  %v12139 = vadd.f32 %v6526, %v12075
  %v12140 = vadd.f32 %v6527, %v12076
  %v12141 = vadd.f32 %v6528, %v12077
  %v12142 = vadd.f32 %v6529, %v12078
  %v12143 = vadd.f32 %v6530, %v12079
  %v12144 = vadd.f32 %v6531, %v12080
  %v12145 = vadd.f32 %v6532, %v12081
  %v12146 = vadd.f32 %v6533, %v12082
  %v12147 = vadd.f32 %v6534, %v12083
  %v12148 = vadd.f32 %v6535, %v12084
  %v12149 = vadd.f32 %v6536, %v12085
  %v12150 = vadd.f32 %v6537, %v12086
  %v12151 = vadd.f32 %v6538, %v12087
  %v12152 = vadd.f32 %v6539, %v12088
  %v12153 = vadd.f32 %v6540, %v12089
  %v12154 = vadd.f32 %v6541, %v12090
  %v12155 = vadd.f32 %v6542, %v12091
  %v12156 = vadd.f32 %v6543, %v12092
  %v12157 = vadd.f32 %v6544, %v12093
  %v12158 = vadd.f32 %v6545, %v12094
  %v12159 = vadd.f32 %v6546, %v12095
  %v12160 = vadd.f32 %v6547, %v12096
  %v12161 = vadd.f32 %v6548, %v12097
  %v12162 = vadd.f32 %v6549, %v12098
  %v12163 = vadd.f32 %v6550, %v12099
  %v12164 = vadd.f32 %v6551, %v12100
  %v12165 = vadd.f32 %v6552, %v12101
  %v12166 = vadd.f32 %v6553, %v12102
  %v12167 = vadd.f32 %v6554, %v12103
  %v12168 = vadd.f32 %v6555, %v12104
  %v12169 = vadd.f32 %v6556, %v12105
  %v12170 = vadd.f32 %v6557, %v12106
  %v12171 = vadd.f32 %v6558, %v12107
  %v12172 = vadd.f32 %v6559, %v12108
  %v12173 = vadd.f32 %v6560, %v12109
  %v12174 = vadd.f32 %v6561, %v12110
  %v12175 = vadd.f32 %v6562, %v12111
  %v12176 = vadd.f32 %v6563, %v12112
  %v12177 = vadd.f32 %v6564, %v12113
  %v12178 = vadd.f32 %v6565, %v12114
  %v12179 = vadd.f32 %v6566, %v12115
  %v12180 = vadd.f32 %v6567, %v12116
  %v12181 = vadd.f32 %v6568, %v12117
  %v12182 = vadd.f32 %v6569, %v12118
  %v12183 = vadd.f32 %v6570, %v12119
  %v12184 = vadd.f32 %v6571, %v12120
  %v12185 = vadd.f32 %v6572, %v12121
  %v12186 = vadd.f32 %v6573, %v12122
  %v12187 = vadd.f32 %v6574, %v12123
  %v12188 = vadd.f32 %v6575, %v12124
  %v12189 = vadd.f32 %v6576, %v12125
  %v12190 = vadd.f32 %v6577, %v12126
  %v12191 = vadd.f32 %v6578, %v12127
  %v12192 = vadd.f32 %v6579, %v12128
  %v12193 = vadd.f32 %v6580, %v12129
  %v12194 = vadd.f32 %v6581, %v12130
  %v12195 = vadd.f32 %v6582, %v12131
  %v12196 = vadd.f32 %v6583, %v12132
  %v12197 = vadd.f32 %v6584, %v12133
  %v12198 = vadd.f32 %v6585, %v12134
  %v12199 = vadd.f32 %v6586, %v12135
  %v12200 = vadd.f32 %v6587, %v12136
  %v12201 = vadd.f32 %v6588, %v12137
  %v12202 = vmax.f32 %v12138, 0.0
  %v12203 = vmax.f32 %v12139, 0.0
  %v12204 = vmax.f32 %v12140, 0.0
  %v12205 = vmax.f32 %v12141, 0.0
  %v12206 = vmax.f32 %v12142, 0.0
  %v12207 = vmax.f32 %v12143, 0.0
  %v12208 = vmax.f32 %v12144, 0.0
  %v12209 = vmax.f32 %v12145, 0.0
  %v12210 = vmax.f32 %v12146, 0.0
  %v12211 = vmax.f32 %v12147, 0.0
  %v12212 = vmax.f32 %v12148, 0.0
  %v12213 = vmax.f32 %v12149, 0.0
  %v12214 = vmax.f32 %v12150, 0.0
  %v12215 = vmax.f32 %v12151, 0.0
  %v12216 = vmax.f32 %v12152, 0.0
  %v12217 = vmax.f32 %v12153, 0.0
  %v12218 = vmax.f32 %v12154, 0.0
  %v12219 = vmax.f32 %v12155, 0.0
  %v12220 = vmax.f32 %v12156, 0.0
  %v12221 = vmax.f32 %v12157, 0.0
  %v12222 = vmax.f32 %v12158, 0.0
  %v12223 = vmax.f32 %v12159, 0.0
  %v12224 = vmax.f32 %v12160, 0.0
  %v12225 = vmax.f32 %v12161, 0.0
  %v12226 = vmax.f32 %v12162, 0.0
  %v12227 = vmax.f32 %v12163, 0.0
  %v12228 = vmax.f32 %v12164, 0.0
  %v12229 = vmax.f32 %v12165, 0.0
  %v12230 = vmax.f32 %v12166, 0.0
  %v12231 = vmax.f32 %v12167, 0.0
  %v12232 = vmax.f32 %v12168, 0.0
  %v12233 = vmax.f32 %v12169, 0.0
  %v12234 = vmax.f32 %v12170, 0.0
  %v12235 = vmax.f32 %v12171, 0.0
  %v12236 = vmax.f32 %v12172, 0.0
  %v12237 = vmax.f32 %v12173, 0.0
  %v12238 = vmax.f32 %v12174, 0.0
  %v12239 = vmax.f32 %v12175, 0.0
  %v12240 = vmax.f32 %v12176, 0.0
  %v12241 = vmax.f32 %v12177, 0.0
  %v12242 = vmax.f32 %v12178, 0.0
  %v12243 = vmax.f32 %v12179, 0.0
  %v12244 = vmax.f32 %v12180, 0.0
  %v12245 = vmax.f32 %v12181, 0.0
  %v12246 = vmax.f32 %v12182, 0.0
  %v12247 = vmax.f32 %v12183, 0.0
  %v12248 = vmax.f32 %v12184, 0.0
  %v12249 = vmax.f32 %v12185, 0.0
  %v12250 = vmax.f32 %v12186, 0.0
  %v12251 = vmax.f32 %v12187, 0.0
  %v12252 = vmax.f32 %v12188, 0.0
  %v12253 = vmax.f32 %v12189, 0.0
  %v12254 = vmax.f32 %v12190, 0.0
  %v12255 = vmax.f32 %v12191, 0.0
  %v12256 = vmax.f32 %v12192, 0.0
  %v12257 = vmax.f32 %v12193, 0.0
  %v12258 = vmax.f32 %v12194, 0.0
  %v12259 = vmax.f32 %v12195, 0.0
  %v12260 = vmax.f32 %v12196, 0.0
  %v12261 = vmax.f32 %v12197, 0.0
  %v12262 = vmax.f32 %v12198, 0.0
  %v12263 = vmax.f32 %v12199, 0.0
  %v12264 = vmax.f32 %v12200, 0.0
  %v12265 = vmax.f32 %v12201, 0.0
  %12266 = vst.msk [vmem:[%s10] sm:$0xff] %vm4710, %v12202
  %12267 = vst.msk [vmem:[%s10 + $0x8] sm:$0xff] %vm4710, %v12203
  %12268 = vst.msk [vmem:[%s10 + $0x10] sm:$0xff] %vm4710, %v12204
  %12269 = vst.msk [vmem:[%s10 + $0x18] sm:$0xff] %vm4710, %v12205
  %12270 = vst.msk [vmem:[%s10 + $0x20] sm:$0xff] %vm4710, %v12206
  %12271 = vst.msk [vmem:[%s10 + $0x28] sm:$0xff] %vm4710, %v12207
  %12272 = vst.msk [vmem:[%s10 + $0x30] sm:$0xff] %vm4710, %v12208
  %12273 = vst.msk [vmem:[%s10 + $0x38] sm:$0xff] %vm4710, %v12209
  %12274 = vst.msk [vmem:[%s10 + $0x40] sm:$0xff] %vm4710, %v12210
  %12275 = vst.msk [vmem:[%s10 + $0x48] sm:$0xff] %vm4710, %v12211
  %12276 = vst.msk [vmem:[%s10 + $0x50] sm:$0xff] %vm4710, %v12212
  %12277 = vst.msk [vmem:[%s10 + $0x58] sm:$0xff] %vm4710, %v12213
  %12278 = vst.msk [vmem:[%s10 + $0x60] sm:$0xff] %vm4710, %v12214
  %12279 = vst.msk [vmem:[%s10 + $0x68] sm:$0xff] %vm4710, %v12215
  %12280 = vst.msk [vmem:[%s10 + $0x70] sm:$0xff] %vm4710, %v12216
  %12281 = vst.msk [vmem:[%s10 + $0x78] sm:$0xff] %vm4710, %v12217
  %12282 = vst.msk [vmem:[%s10 + $0x80] sm:$0xff] %vm4710, %v12218
  %12283 = vst.msk [vmem:[%s10 + $0x88] sm:$0xff] %vm4710, %v12219
  %12284 = vst.msk [vmem:[%s10 + $0x90] sm:$0xff] %vm4710, %v12220
  %12285 = vst.msk [vmem:[%s10 + $0x98] sm:$0xff] %vm4710, %v12221
  %12286 = vst.msk [vmem:[%s10 + $0xa0] sm:$0xff] %vm4710, %v12222
  %12287 = vst.msk [vmem:[%s10 + $0xa8] sm:$0xff] %vm4710, %v12223
  %12288 = vst.msk [vmem:[%s10 + $0xb0] sm:$0xff] %vm4710, %v12224
  %12289 = vst.msk [vmem:[%s10 + $0xb8] sm:$0xff] %vm4710, %v12225
  %12290 = vst.msk [vmem:[%s10 + $0xc0] sm:$0xff] %vm4710, %v12226
  %12291 = vst.msk [vmem:[%s10 + $0xc8] sm:$0xff] %vm4710, %v12227
  %12292 = vst.msk [vmem:[%s10 + $0xd0] sm:$0xff] %vm4710, %v12228
  %12293 = vst.msk [vmem:[%s10 + $0xd8] sm:$0xff] %vm4710, %v12229
  %12294 = vst.msk [vmem:[%s10 + $0xe0] sm:$0xff] %vm4710, %v12230
  %12295 = vst.msk [vmem:[%s10 + $0xe8] sm:$0xff] %vm4710, %v12231
  %12296 = vst.msk [vmem:[%s10 + $0xf0] sm:$0xff] %vm4710, %v12232
  %12297 = vst.msk [vmem:[%s10 + $0xf8] sm:$0xff] %vm4710, %v12233
  %12298 = vst.msk [vmem:[%s10 + $0x100] sm:$0xff] %vm4710, %v12234
  %12299 = vst.msk [vmem:[%s10 + $0x108] sm:$0xff] %vm4710, %v12235
  %12300 = vst.msk [vmem:[%s10 + $0x110] sm:$0xff] %vm4710, %v12236
  %12301 = vst.msk [vmem:[%s10 + $0x118] sm:$0xff] %vm4710, %v12237
  %12302 = vst.msk [vmem:[%s10 + $0x120] sm:$0xff] %vm4710, %v12238
  %12303 = vst.msk [vmem:[%s10 + $0x128] sm:$0xff] %vm4710, %v12239
  %12304 = vst.msk [vmem:[%s10 + $0x130] sm:$0xff] %vm4710, %v12240
  %12305 = vst.msk [vmem:[%s10 + $0x138] sm:$0xff] %vm4710, %v12241
  %12306 = vst.msk [vmem:[%s10 + $0x140] sm:$0xff] %vm4710, %v12242
  %12307 = vst.msk [vmem:[%s10 + $0x148] sm:$0xff] %vm4710, %v12243
  %12308 = vst.msk [vmem:[%s10 + $0x150] sm:$0xff] %vm4710, %v12244
  %12309 = vst.msk [vmem:[%s10 + $0x158] sm:$0xff] %vm4710, %v12245
  %12310 = vst.msk [vmem:[%s10 + $0x160] sm:$0xff] %vm4710, %v12246
  %12311 = vst.msk [vmem:[%s10 + $0x168] sm:$0xff] %vm4710, %v12247
  %12312 = vst.msk [vmem:[%s10 + $0x170] sm:$0xff] %vm4710, %v12248
  %12313 = vst.msk [vmem:[%s10 + $0x178] sm:$0xff] %vm4710, %v12249
  %12314 = vst.msk [vmem:[%s10 + $0x180] sm:$0xff] %vm4710, %v12250
  %12315 = vst.msk [vmem:[%s10 + $0x188] sm:$0xff] %vm4710, %v12251
  %12316 = vst.msk [vmem:[%s10 + $0x190] sm:$0xff] %vm4710, %v12252
  %12317 = vst.msk [vmem:[%s10 + $0x198] sm:$0xff] %vm4710, %v12253
  %12318 = vst.msk [vmem:[%s10 + $0x1a0] sm:$0xff] %vm4710, %v12254
  %12319 = vst.msk [vmem:[%s10 + $0x1a8] sm:$0xff] %vm4710, %v12255
  %12320 = vst.msk [vmem:[%s10 + $0x1b0] sm:$0xff] %vm4710, %v12256
  %12321 = vst.msk [vmem:[%s10 + $0x1b8] sm:$0xff] %vm4710, %v12257
  %12322 = vst.msk [vmem:[%s10 + $0x1c0] sm:$0xff] %vm4710, %v12258
  %12323 = vst.msk [vmem:[%s10 + $0x1c8] sm:$0xff] %vm4710, %v12259
  %12324 = vst.msk [vmem:[%s10 + $0x1d0] sm:$0xff] %vm4710, %v12260
  %12325 = vst.msk [vmem:[%s10 + $0x1d8] sm:$0xff] %vm4710, %v12261
  %12326 = vst.msk [vmem:[%s10 + $0x1e0] sm:$0xff] %vm4710, %v12262
  %12327 = vst.msk [vmem:[%s10 + $0x1e8] sm:$0xff] %vm4710, %v12263
  %12328 = vst.msk [vmem:[%s10 + $0x1f0] sm:$0xff] %vm4710, %v12264
  %12329 = vst.msk [vmem:[%s10 + $0x1f8] sm:$0xff] %vm4710, %v12265
  // Predicated region
  $region42: #{tpu_custom_call.1} parent=0 // pred_check
    _
  $region43: #{tpu_custom_call.1} parent=0 // pred_check_branch
    %12331 = sbr.rel (0) target = $region45
  $region44: #{tpu_custom_call.1} parent=0 // pred_region
    _
  $region45: #{tpu_custom_call.1} parent=0 // pred_fallthru
    _
  // Predicated region
  $region46: #{tpu_custom_call.1} parent=0 // pred_check
    _
  $region47: #{tpu_custom_call.1} parent=0 // pred_check_branch
    %12333 = sbr.rel (0) target = $region49
  $region48: #{tpu_custom_call.1} parent=0 // pred_region
    _
  $region49: #{tpu_custom_call.1} parent=0 // pred_fallthru
    _

</llo_original>
